<compile_context>
chip_gen: v7x
topology: tpu7x:2x2x1
jax: 0.10.0
libtpu: 0.0.40
codegen_flags: <defaults>
</compile_context>

<pallas_src>
import functools

import jax
import jax.numpy as jnp
from jax import lax
from jax.experimental import pallas as pl
from jax.experimental.pallas import tpu as pltpu

# ----------------------------- small synthetic config ------------------------------
AUDIO_NUM_CODEBOOKS = 4          # real csm-1b: 32
AUDIO_VOCAB = 128                # real csm-1b: 2051    (128 -> lane-dense logits)
TEXT_VOCAB = 128                 # real csm-1b: 128256
D_BACKBONE = 128                 # real csm-1b: 2048    (128 -> lane-dense activations)
D_DECODER = 128                  # real csm-1b: 1024
N_HEADS_BB, N_HEADS_DEC = 2, 2
HEAD_DIM_BB = D_BACKBONE // N_HEADS_BB       # 64, matches the real model head_dim
HEAD_DIM_DEC = D_DECODER // N_HEADS_DEC      # 64
MLP_HIDDEN_BB, MLP_HIDDEN_DEC = 256, 256
IGNORE_INDEX = -100


# =================================== Pallas kernels =================================

def _rms(x, w, eps=1e-5):
    var = jnp.mean(x * x, axis=-1, keepdims=True)
    return x * lax.rsqrt(var + eps) * w


def _block_compute(x, nb, sl, attn_norm, mlp_norm, final_norm, wqkv, wo, wgu, wd,
                   n_heads, head_dim):
    """Fused pre-norm causal transformer block.

    x: [nb*sl, D] f32 (batch folded into the matmul M dimension); norms [1, D] f32;
    weights bf16 ([D,3D], [D,D], [D,2H], [H,D]).  Returns [nb*sl, D] f32.
    """
    M, D = x.shape
    n = _rms(x, attn_norm)
    qkv = jnp.dot(n.astype(jnp.bfloat16), wqkv,
                  preferred_element_type=jnp.float32)               # [M, 3D]
    qkv_bf = qkv.astype(jnp.bfloat16)                               # cast ONCE

    scale = 1.0 / (head_dim ** 0.5)
    row = lax.broadcasted_iota(jnp.int32, (1, sl, sl), 1)
    col = lax.broadcasted_iota(jnp.int32, (1, sl, sl), 2)
    causal = col <= row                                             # [1, sl, sl]

    # TODO(synk): heads could additionally be folded into the einsum batch dim via
    # pltpu.einshape; kept as a short statically-unrolled loop (2 iters, hd=64) with
    # sequence-batched dots to avoid in-kernel 4-D transposes.
    heads = []
    for h in range(n_heads):
        q = qkv_bf[:, h * head_dim:(h + 1) * head_dim].reshape(nb, sl, head_dim)
        k = qkv_bf[:, D + h * head_dim:D + (h + 1) * head_dim].reshape(nb, sl, head_dim)
        v = qkv_bf[:, 2 * D + h * head_dim:2 * D + (h + 1) * head_dim].reshape(nb, sl, head_dim)
        s = jnp.einsum('bqd,bkd->bqk', q, k,
                       preferred_element_type=jnp.float32) * scale  # [nb, sl, sl]
        s = jnp.where(causal, s, jnp.float32(-1e30))
        s = s - jnp.max(s, axis=-1, keepdims=True)
        p = jnp.exp(s)
        p = p * pl.reciprocal(jnp.sum(p, axis=-1, keepdims=True), approx=True)
        o = jnp.einsum('bqk,bkd->bqd', p.astype(jnp.bfloat16), v,
                       preferred_element_type=jnp.float32)          # [nb, sl, hd]
        heads.append(o.reshape(M, head_dim))
    a = jnp.concatenate(heads, axis=-1).astype(jnp.bfloat16)        # [M, D], cast ONCE

    x = x + jnp.dot(a, wo, preferred_element_type=jnp.float32)

    n2 = _rms(x, mlp_norm)
    gu = jnp.dot(n2.astype(jnp.bfloat16), wgu,
                 preferred_element_type=jnp.float32)                # [M, 2H]
    hidden = gu.shape[-1] // 2
    g = gu[:, :hidden]
    u = gu[:, hidden:]
    mid = (g * jax.nn.sigmoid(g)) * u                               # SiLU gate
    x = x + jnp.dot(mid.astype(jnp.bfloat16), wd, preferred_element_type=jnp.float32)
    return _rms(x, final_norm)


def _backbone_block_kernel(x_ref, an_ref, mn_ref, fn_ref,
                           wqkv_ref, wo_ref, wgu_ref, wd_ref, o_ref,
                           *, n_heads, head_dim):
    B, S, D = x_ref.shape
    x = x_ref[...].astype(jnp.float32).reshape(B * S, D)
    y = _block_compute(x, B, S, an_ref[...], mn_ref[...], fn_ref[...],
                       wqkv_ref[...], wo_ref[...], wgu_ref[...], wd_ref[...],
                       n_heads, head_dim)
    o_ref[...] = y.reshape(B, S, D).astype(o_ref.dtype)


def _decoder_block_kernel(x_ref, wproj_ref, an_ref, mn_ref, fn_ref,
                          wqkv_ref, wo_ref, wgu_ref, wd_ref, o_ref,
                          *, n_heads, head_dim):
    # fused projection D_BACKBONE -> D_DECODER as ONE [R*Sd, Dbb] matmul,
    # then the transformer block over all R frames at once.
    R, Sd, Dbb = x_ref.shape
    Ddec = wproj_ref.shape[1]
    x2 = x_ref[...].reshape(R * Sd, Dbb)                            # bf16
    x = jnp.dot(x2, wproj_ref[...], preferred_element_type=jnp.float32)
    y = _block_compute(x, R, Sd, an_ref[...], mn_ref[...], fn_ref[...],
                       wqkv_ref[...], wo_ref[...], wgu_ref[...], wd_ref[...],
                       n_heads, head_dim)
    o_ref[...] = y.reshape(R, Sd, Ddec).astype(o_ref.dtype)


def fused_backbone_block(x, p, n_heads, head_dim):
    """x: [B, S, D] bf16 -> [B, S, D] bf16, single invocation (batch folded into M)."""
    B, S, D = x.shape
    H2 = p['wgu'].shape[1]
    Hm = p['wd'].shape[0]
    kern = functools.partial(_backbone_block_kernel, n_heads=n_heads, head_dim=head_dim)
    # TODO(synk): at real csm-1b dims the whole-weight BlockSpecs must become a tiled
    # reduction grid axis with single-buffered weight specs (v7x VMEM = 64 MiB).
    return pl.pallas_call(
        kern,
        out_shape=jax.ShapeDtypeStruct((B, S, D), x.dtype),
        grid=(1,),
        in_specs=[pl.BlockSpec((B, S, D), lambda i: (0, 0, 0)),
                  pl.BlockSpec((1, D), lambda i: (0, 0)),
                  pl.BlockSpec((1, D), lambda i: (0, 0)),
                  pl.BlockSpec((1, D), lambda i: (0, 0)),
                  pl.BlockSpec((D, 3 * D), lambda i: (0, 0)),
                  pl.BlockSpec((D, D), lambda i: (0, 0)),
                  pl.BlockSpec((D, H2), lambda i: (0, 0)),
                  pl.BlockSpec((Hm, D), lambda i: (0, 0))],
        out_specs=pl.BlockSpec((B, S, D), lambda i: (0, 0, 0)),
    )(x, p['attn_norm'], p['mlp_norm'], p['final_norm'],
      p['wqkv'], p['wo'], p['wgu'], p['wd'])


def fused_decoder_block(x, wproj, p, n_heads, head_dim):
    """x: [R, Sd, D_bb] bf16 -> [R, Sd, D_dec] bf16; projection + block fused,
    all R frames in one invocation."""
    R, Sd, Dbb = x.shape
    Ddec = wproj.shape[1]
    H2 = p['wgu'].shape[1]
    Hm = p['wd'].shape[0]
    kern = functools.partial(_decoder_block_kernel, n_heads=n_heads, head_dim=head_dim)
    return pl.pallas_call(
        kern,
        out_shape=jax.ShapeDtypeStruct((R, Sd, Ddec), x.dtype),
        grid=(1,),
        in_specs=[pl.BlockSpec((R, Sd, Dbb), lambda i: (0, 0, 0)),
                  pl.BlockSpec((Dbb, Ddec), lambda i: (0, 0)),
                  pl.BlockSpec((1, Ddec), lambda i: (0, 0)),
                  pl.BlockSpec((1, Ddec), lambda i: (0, 0)),
                  pl.BlockSpec((1, Ddec), lambda i: (0, 0)),
                  pl.BlockSpec((Ddec, 3 * Ddec), lambda i: (0, 0)),
                  pl.BlockSpec((Ddec, Ddec), lambda i: (0, 0)),
                  pl.BlockSpec((Ddec, H2), lambda i: (0, 0)),
                  pl.BlockSpec((Hm, Ddec), lambda i: (0, 0))],
        out_specs=pl.BlockSpec((R, Sd, Ddec), lambda i: (0, 0, 0)),
    )(x, wproj, p['attn_norm'], p['mlp_norm'], p['final_norm'],
      p['wqkv'], p['wo'], p['wgu'], p['wd'])


# ----- fused linear-cross-entropy over all codebooks, single invocation --------------

def _ce_mean(x_bf, w_bf, labels_col):
    """x: [N, Din] bf16, w: [Din, V] bf16, labels: [N, 1] int32 -> (1,1) mean CE.
    loss-sum and valid-count accumulated separately, divided once."""
    logits = jnp.dot(x_bf, w_bf, preferred_element_type=jnp.float32)     # [N, V] f32
    m = jnp.max(logits, axis=-1, keepdims=True)
    lse = m + jnp.log(jnp.sum(jnp.exp(logits - m), axis=-1, keepdims=True))   # [N, 1]
    col = lax.broadcasted_iota(jnp.int32, logits.shape, 1)
    onehot = (col == labels_col).astype(jnp.float32)
    tgt = jnp.sum(logits * onehot, axis=-1, keepdims=True)               # [N, 1]
    valid = labels_col != IGNORE_INDEX
    per_row = jnp.where(valid, lse - tgt, jnp.float32(0.0))
    loss_sum = jnp.sum(per_row, axis=(0, 1), keepdims=True)              # (1, 1)
    cnt = jnp.sum(valid.astype(jnp.float32), axis=(0, 1), keepdims=True)
    # NOTE: clamp returns 0 loss (not NaN) if a codebook is entirely IGNORE_INDEX.
    return loss_sum / jnp.maximum(cnt, 1.0)


def _loss_kernel(h_ref, c0w_ref, dh_ref, aw_ref, lab_ref, out_ref, *, num_codebooks):
    lab = lab_ref[...]                                   # [R, NC] int32
    dh = dh_ref[...]                                     # [R, NC+1, Dd] bf16
    total = _ce_mean(h_ref[...], c0w_ref[...], lab[:, 0:1])        # codebook 0
    for i in range(1, num_codebooks):                    # statically unrolled
        total = total + _ce_mean(dh[:, i, :], aw_ref[i - 1], lab[:, i:i + 1])
    out_ref[...] = total


def pallas_total_codebook_loss(h_flat, c0_head, decoder_h, audio_head, labels_flat):
    """Sum over codebooks of per-codebook mean CE, all in ONE kernel.

    h_flat: [R, Dbb] bf16; c0_head: [Dbb, V] bf16; decoder_h: [R, NC+1, Dd] bf16;
    audio_head: [NC-1, Dd, V] bf16; labels_flat: [R, NC] int32.
    """
    R, Dbb = h_flat.shape
    _, K, Dd = decoder_h.shape
    NC = labels_flat.shape[1]
    V = c0_head.shape[1]
    # TODO(synk): at real csm-1b scale (V=2051, R in the thousands) this needs a
    # row-tile grid axis with separate loss-sum / valid-count accumulators.
    kern = functools.partial(_loss_kernel, num_codebooks=NC)
    out = pl.pallas_call(
        kern,
        out_shape=jax.ShapeDtypeStruct((1, 1), jnp.float32),
        grid=(1,),
        in_specs=[pl.BlockSpec((R, Dbb), lambda i: (0, 0)),
                  pl.BlockSpec((Dbb, V), lambda i: (0, 0)),
                  pl.BlockSpec((R, K, Dd), lambda i: (0, 0, 0)),
                  pl.BlockSpec((NC - 1, Dd, V), lambda i: (0, 0, 0)),
                  pl.BlockSpec((R, NC), lambda i: (0, 0))],
        out_specs=pl.BlockSpec((1, 1), lambda i: (0, 0)),
    )(h_flat, c0_head, decoder_h, audio_head, labels_flat)
    return out[0, 0]


# ================================ params & forward ==================================

def init_params(key):
    keys = iter(jax.random.split(key, 32))

    def w(shape, scale=0.02, dtype=jnp.bfloat16):
        # weights pre-cast to bf16 once here (matmul operand dtype), f32 accumulation
        return (scale * jax.random.normal(next(keys), shape, dtype=jnp.float32)).astype(dtype)

    def tf_params(d, hidden):
        return dict(
            attn_norm=jnp.ones((1, d), jnp.float32),
            mlp_norm=jnp.ones((1, d), jnp.float32),
            final_norm=jnp.ones((1, d), jnp.float32),
            wqkv=w((d, 3 * d)),          # fused [Wq | Wk | Wv]
            wo=w((d, d)),
            wgu=w((d, 2 * hidden)),      # fused [Wgate | Wup]
            wd=w((hidden, d)),
        )

    return dict(
        text_embeddings=w((TEXT_VOCAB, D_BACKBONE)),
        audio_embeddings=w((AUDIO_NUM_CODEBOOKS * AUDIO_VOCAB, D_BACKBONE)),
        backbone=tf_params(D_BACKBONE, MLP_HIDDEN_BB),
        decoder=tf_params(D_DECODER, MLP_HIDDEN_DEC),
        projection=w((D_BACKBONE, D_DECODER)),
        # heads stored pre-transposed to [in, out] and pre-cast to bf16
        codebook0_head=w((D_BACKBONE, AUDIO_VOCAB)),
        audio_head=w((AUDIO_NUM_CODEBOOKS - 1, D_DECODER, AUDIO_VOCAB)),
    )


def tts_forward(params, input_ids, attention_mask, labels, extra_mask=None, input_pos=None):
    """Mirrors TTS.forward.  input_ids/attention_mask/labels: [B, S, NC+1]."""
    B, S, K = input_ids.shape
    NC = K - 1
    R = B * (S - 1)

    shifted_audio_tokens = input_ids[:, 1:, :-1]                   # [B, S-1, NC]
    labels_shifted = labels[:, 1:, :-1]                            # [B, S-1, NC]

    # _embed_tokens: audio codebooks (offset embeddings) + text token, masked sum (plain JAX)
    cb_offsets = AUDIO_VOCAB * jnp.arange(NC, dtype=input_ids.dtype)
    text_emb = params['text_embeddings'][input_ids[:, :, -1]]                        # [B,S,D]
    audio_emb = params['audio_embeddings'][input_ids[:, :, :-1] + cb_offsets]        # [B,S,NC,D]
    embeds = jnp.concatenate([audio_emb, text_emb[:, :, None, :]], axis=-2)          # [B,S,NC+1,D]
    masked = embeds * attention_mask[..., None].astype(embeds.dtype)
    h = masked.sum(axis=2)                                                           # [B,S,D] bf16

    # TODO(synk): the real csm-1b backbone/decoder are multi-layer Llama-3.2 stacks with
    # RoPE (input_pos/extra_mask); this synthetic stand-in uses one fused causal block each.
    h = fused_backbone_block(h, params['backbone'], N_HEADS_BB, HEAD_DIM_BB)
    h = h[:, :-1]                                                                    # [B,S-1,D]

    # NOTE: the reference computes c0_logits = codebook0_head(h) and never uses it;
    # that dead matmul is intentionally dropped here.

    # _embed_audio(i, shifted_audio_tokens[:, :, i]) stacked on the codebook axis
    ci_stacked = params['audio_embeddings'][shifted_audio_tokens + cb_offsets]       # [B,S-1,NC,D]
    decoder_inputs = jnp.concatenate([h[:, :, None, :], ci_stacked], axis=-2)        # [B,S-1,NC+1,D]
    decoder_inputs = decoder_inputs.reshape(R, NC + 1, D_BACKBONE)

    # projection + decoder transformer fused; all R frames in one invocation
    decoder_h = fused_decoder_block(decoder_inputs, params['projection'],
                                    params['decoder'], N_HEADS_DEC, HEAD_DIM_DEC)    # [R,NC+1,Dd]

    # all codebook losses in one kernel (no wrapper transposes; contiguous reshapes only)
    h_flat = h.reshape(R, D_BACKBONE)                                                # bf16
    labels_flat = labels_shifted.reshape(R, NC).astype(jnp.int32)
    total = pallas_total_codebook_loss(h_flat, params['codebook0_head'],
                                       decoder_h, params['audio_head'], labels_flat)
    return {'loss': total / NC}


# ====================================== driver ======================================

if __name__ == "__main__":
    key = jax.random.PRNGKey(0)
    pkey, k1, k2, k3, k4 = jax.random.split(key, 5)
    params = init_params(pkey)

    B, S = 2, 8
    K = AUDIO_NUM_CODEBOOKS + 1
    audio_ids = jax.random.randint(k1, (B, S, AUDIO_NUM_CODEBOOKS), 0, AUDIO_VOCAB)
    text_ids = jax.random.randint(k2, (B, S, 1), 0, TEXT_VOCAB)
    input_ids = jnp.concatenate([audio_ids, text_ids], axis=-1).astype(jnp.int32)

    attention_mask = jnp.ones((B, S, K), dtype=jnp.float32)

    label_audio = jax.random.randint(k3, (B, S, AUDIO_NUM_CODEBOOKS), 0, AUDIO_VOCAB)
    label_text = jax.random.randint(k4, (B, S, 1), 0, TEXT_VOCAB)
    labels = jnp.concatenate([label_audio, label_text], axis=-1).astype(jnp.int32)
    # exercise IGNORE_INDEX masking on a frame that survives the time shift
    labels = labels.at[0, 3, :AUDIO_NUM_CODEBOOKS].set(IGNORE_INDEX)

    fwd = jax.jit(tts_forward)
    out = fwd(params, input_ids, attention_mask, labels)
    loss = jax.block_until_ready(out['loss'])
    assert jnp.isfinite(loss), f"non-finite loss: {loss}"
    print("KERNEL_OK")
</pallas_src>

<mosaic_0001>
module attributes {stable_mosaic.version = 11 : i64} {
  func.func @_decoder_block_kernel(%arg0: i32, %arg1: memref<14x5x128xbf16, #tpu.memory_space<vmem>>, %arg2: memref<128x128xbf16, #tpu.memory_space<vmem>>, %arg3: memref<1x128xf32, #tpu.memory_space<vmem>>, %arg4: memref<1x128xf32, #tpu.memory_space<vmem>>, %arg5: memref<1x128xf32, #tpu.memory_space<vmem>>, %arg6: memref<128x384xbf16, #tpu.memory_space<vmem>>, %arg7: memref<128x128xbf16, #tpu.memory_space<vmem>>, %arg8: memref<128x512xbf16, #tpu.memory_space<vmem>>, %arg9: memref<256x128xbf16, #tpu.memory_space<vmem>>, %arg10: memref<14x5x128xbf16, #tpu.memory_space<vmem>>) attributes {dimension_semantics = [#tpu.dimension_semantics<arbitrary>], iteration_bounds = array<i64: 1>, scalar_prefetch = 0 : i64, scratch_operands = 0 : i64, tpu.core_type = #tpu.core_type<tc>, window_params = [{pipeline_mode = #tpu.pipeline_mode<synchronous>, transform_indices = @transform_0, window_bounds = array<i64: 14, 5, 128>}, {pipeline_mode = #tpu.pipeline_mode<synchronous>, transform_indices = @transform_1, window_bounds = array<i64: 128, 128>}, {pipeline_mode = #tpu.pipeline_mode<synchronous>, transform_indices = @transform_2, window_bounds = array<i64: 1, 128>}, {pipeline_mode = #tpu.pipeline_mode<synchronous>, transform_indices = @transform_3, window_bounds = array<i64: 1, 128>}, {pipeline_mode = #tpu.pipeline_mode<synchronous>, transform_indices = @transform_4, window_bounds = array<i64: 1, 128>}, {pipeline_mode = #tpu.pipeline_mode<synchronous>, transform_indices = @transform_5, window_bounds = array<i64: 128, 384>}, {pipeline_mode = #tpu.pipeline_mode<synchronous>, transform_indices = @transform_6, window_bounds = array<i64: 128, 128>}, {pipeline_mode = #tpu.pipeline_mode<synchronous>, transform_indices = @transform_7, window_bounds = array<i64: 128, 512>}, {pipeline_mode = #tpu.pipeline_mode<synchronous>, transform_indices = @transform_8, window_bounds = array<i64: 256, 128>}, {pipeline_mode = #tpu.pipeline_mode<synchronous>, transform_indices = @transform_9, window_bounds = array<i64: 14, 5, 128>}]} {
    %c0 = arith.constant 0 : index
    %c0_0 = arith.constant 0 : index
    %c0_1 = arith.constant 0 : index
    %0 = vector.load %arg1[%c0, %c0_0, %c0_1] : memref<14x5x128xbf16, #tpu.memory_space<vmem>>, vector<14x5x128xbf16>
    %1 = vector.shape_cast %0 : vector<14x5x128xbf16> to vector<70x128xbf16>
    %c0_2 = arith.constant 0 : index
    %c0_3 = arith.constant 0 : index
    %2 = vector.load %arg2[%c0_2, %c0_3] : memref<128x128xbf16, #tpu.memory_space<vmem>>, vector<128x128xbf16>
    %cst = arith.constant dense<0.000000e+00> : vector<70x128xf32>
    %3 = tpu.matmul %1, %2, %cst {dimension_numbers = #tpu.dot_dimension_numbers<[1], [0], [0], [1], [0, 0, 1, 1], [], []>} : vector<70x128xbf16>, vector<128x128xbf16>, vector<70x128xf32> -> vector<70x128xf32>
    %c0_4 = arith.constant 0 : index
    %c0_5 = arith.constant 0 : index
    %4 = vector.load %arg3[%c0_4, %c0_5] : memref<1x128xf32, #tpu.memory_space<vmem>>, vector<1x128xf32>
    %c0_6 = arith.constant 0 : index
    %c0_7 = arith.constant 0 : index
    %5 = vector.load %arg4[%c0_6, %c0_7] : memref<1x128xf32, #tpu.memory_space<vmem>>, vector<1x128xf32>
    %c0_8 = arith.constant 0 : index
    %c0_9 = arith.constant 0 : index
    %6 = vector.load %arg5[%c0_8, %c0_9] : memref<1x128xf32, #tpu.memory_space<vmem>>, vector<1x128xf32>
    %c0_10 = arith.constant 0 : index
    %c0_11 = arith.constant 0 : index
    %7 = vector.load %arg6[%c0_10, %c0_11] : memref<128x384xbf16, #tpu.memory_space<vmem>>, vector<128x384xbf16>
    %c0_12 = arith.constant 0 : index
    %c0_13 = arith.constant 0 : index
    %8 = vector.load %arg7[%c0_12, %c0_13] : memref<128x128xbf16, #tpu.memory_space<vmem>>, vector<128x128xbf16>
    %c0_14 = arith.constant 0 : index
    %c0_15 = arith.constant 0 : index
    %9 = vector.load %arg8[%c0_14, %c0_15] : memref<128x512xbf16, #tpu.memory_space<vmem>>, vector<128x512xbf16>
    %c0_16 = arith.constant 0 : index
    %c0_17 = arith.constant 0 : index
    %10 = vector.load %arg9[%c0_16, %c0_17] : memref<256x128xbf16, #tpu.memory_space<vmem>>, vector<256x128xbf16>
    %11 = arith.mulf %3, %3 : vector<70x128xf32>
    %cst_18 = arith.constant dense<0.000000e+00> : vector<70xf32>
    %12 = vector.multi_reduction <add>, %11, %cst_18 [1] : vector<70x128xf32> to vector<70xf32>
    %13 = vector.shape_cast %12 : vector<70xf32> to vector<70x1xf32>
    %cst_19 = arith.constant 1.280000e+02 : f32
    %14 = vector.broadcast %cst_19 : f32 to vector<70x1xf32>
    %15 = arith.divf %13, %14 : vector<70x1xf32>
    %cst_20 = arith.constant 9.99999974E-6 : f32
    %16 = vector.broadcast %cst_20 : f32 to vector<70x1xf32>
    %17 = arith.addf %15, %16 : vector<70x1xf32>
    %18 = math.rsqrt %17 : vector<70x1xf32>
    %19 = vector.broadcast %18 : vector<70x1xf32> to vector<70x128xf32>
    %20 = arith.mulf %3, %19 : vector<70x128xf32>
    %21 = vector.broadcast %4 : vector<1x128xf32> to vector<70x128xf32>
    %22 = arith.mulf %20, %21 : vector<70x128xf32>
    %23 = arith.truncf %22 : vector<70x128xf32> to vector<70x128xbf16>
    %cst_21 = arith.constant dense<0.000000e+00> : vector<70x384xf32>
    %24 = tpu.matmul %23, %7, %cst_21 {dimension_numbers = #tpu.dot_dimension_numbers<[1], [0], [0], [1], [0, 0, 1, 1], [], []>} : vector<70x128xbf16>, vector<128x384xbf16>, vector<70x384xf32> -> vector<70x384xf32>
    %25 = arith.truncf %24 : vector<70x384xf32> to vector<70x384xbf16>
    %26 = tpu.iota {dimensions = array<i32: 1>} : vector<1x5x5xi32>
    %27 = tpu.iota {dimensions = array<i32: 2>} : vector<1x5x5xi32>
    %28 = arith.cmpi sle, %27, %26 : vector<1x5x5xi32>
    %29 = vector.extract_strided_slice %25 {offsets = [0, 0], sizes = [70, 64], strides = [1, 1]} : vector<70x384xbf16> to vector<70x64xbf16>
    %30 = vector.shape_cast %29 : vector<70x64xbf16> to vector<14x5x64xbf16>
    %31 = vector.extract_strided_slice %25 {offsets = [0, 128], sizes = [70, 64], strides = [1, 1]} : vector<70x384xbf16> to vector<70x64xbf16>
    %32 = vector.shape_cast %31 : vector<70x64xbf16> to vector<14x5x64xbf16>
    %33 = vector.extract_strided_slice %25 {offsets = [0, 256], sizes = [70, 64], strides = [1, 1]} : vector<70x384xbf16> to vector<70x64xbf16>
    %34 = vector.shape_cast %33 : vector<70x64xbf16> to vector<14x5x64xbf16>
    "tpu.trace_start"() <{level = 10 : i32, message = "bqd,bkd->bqk"}> : () -> ()
    %cst_22 = arith.constant dense<0.000000e+00> : vector<14x5x5xf32>
    %35 = tpu.matmul %30, %32, %cst_22 {dimension_numbers = #tpu.dot_dimension_numbers<[2], [2], [1], [1], [0, 0, 0, 1, 1, 1], [0], [0]>} : vector<14x5x64xbf16>, vector<14x5x64xbf16>, vector<14x5x5xf32> -> vector<14x5x5xf32>
    "tpu.trace_stop"() : () -> ()
    %cst_23 = arith.constant 1.250000e-01 : f32
    %36 = vector.broadcast %cst_23 : f32 to vector<14x5x5xf32>
    %37 = arith.mulf %35, %36 : vector<14x5x5xf32>
    %cst_24 = arith.constant -1.000000e+30 : f32
    %38 = vector.shape_cast %28 : vector<1x5x5xi1> to vector<1x5x5xi1>
    %39 = vector.broadcast %38 : vector<1x5x5xi1> to vector<14x5x5xi1>
    %40 = vector.broadcast %cst_24 : f32 to vector<14x5x5xf32>
    %41 = arith.select %39, %37, %40 : vector<14x5x5xi1>, vector<14x5x5xf32>
    %cst_25 = arith.constant dense<0xFF800000> : vector<14x5xf32>
    %42 = vector.multi_reduction <maximumf>, %41, %cst_25 [2] : vector<14x5x5xf32> to vector<14x5xf32>
    %43 = vector.shape_cast %42 : vector<14x5xf32> to vector<14x5x1xf32>
    %44 = vector.broadcast %43 : vector<14x5x1xf32> to vector<14x5x5xf32>
    %45 = arith.subf %41, %44 : vector<14x5x5xf32>
    %46 = math.exp %45 : vector<14x5x5xf32>
    %cst_26 = arith.constant dense<0.000000e+00> : vector<14x5xf32>
    %47 = vector.multi_reduction <add>, %46, %cst_26 [2] : vector<14x5x5xf32> to vector<14x5xf32>
    %48 = vector.shape_cast %47 : vector<14x5xf32> to vector<14x5x1xf32>
    %49 = tpu.reciprocal %48 {approx = true} : vector<14x5x1xf32> -> vector<14x5x1xf32>
    %50 = vector.broadcast %49 : vector<14x5x1xf32> to vector<14x5x5xf32>
    %51 = arith.mulf %46, %50 : vector<14x5x5xf32>
    %52 = arith.truncf %51 : vector<14x5x5xf32> to vector<14x5x5xbf16>
    "tpu.trace_start"() <{level = 10 : i32, message = "bqk,bkd->bqd"}> : () -> ()
    %cst_27 = arith.constant dense<0.000000e+00> : vector<14x5x64xf32>
    %53 = tpu.matmul %52, %34, %cst_27 {dimension_numbers = #tpu.dot_dimension_numbers<[2], [1], [1], [2], [0, 0, 0, 1, 1, 2], [0], [0]>} : vector<14x5x5xbf16>, vector<14x5x64xbf16>, vector<14x5x64xf32> -> vector<14x5x64xf32>
    "tpu.trace_stop"() : () -> ()
    %54 = vector.shape_cast %53 : vector<14x5x64xf32> to vector<70x64xf32>
    %55 = vector.extract_strided_slice %25 {offsets = [0, 64], sizes = [70, 64], strides = [1, 1]} : vector<70x384xbf16> to vector<70x64xbf16>
    %56 = vector.shape_cast %55 : vector<70x64xbf16> to vector<14x5x64xbf16>
    %57 = vector.extract_strided_slice %25 {offsets = [0, 192], sizes = [70, 64], strides = [1, 1]} : vector<70x384xbf16> to vector<70x64xbf16>
    %58 = vector.shape_cast %57 : vector<70x64xbf16> to vector<14x5x64xbf16>
    %59 = vector.extract_strided_slice %25 {offsets = [0, 320], sizes = [70, 64], strides = [1, 1]} : vector<70x384xbf16> to vector<70x64xbf16>
    %60 = vector.shape_cast %59 : vector<70x64xbf16> to vector<14x5x64xbf16>
    "tpu.trace_start"() <{level = 10 : i32, message = "bqd,bkd->bqk"}> : () -> ()
    %cst_28 = arith.constant dense<0.000000e+00> : vector<14x5x5xf32>
    %61 = tpu.matmul %56, %58, %cst_28 {dimension_numbers = #tpu.dot_dimension_numbers<[2], [2], [1], [1], [0, 0, 0, 1, 1, 1], [0], [0]>} : vector<14x5x64xbf16>, vector<14x5x64xbf16>, vector<14x5x5xf32> -> vector<14x5x5xf32>
    "tpu.trace_stop"() : () -> ()
    %cst_29 = arith.constant 1.250000e-01 : f32
    %62 = vector.broadcast %cst_29 : f32 to vector<14x5x5xf32>
    %63 = arith.mulf %61, %62 : vector<14x5x5xf32>
    %cst_30 = arith.constant -1.000000e+30 : f32
    %64 = vector.shape_cast %28 : vector<1x5x5xi1> to vector<1x5x5xi1>
    %65 = vector.broadcast %64 : vector<1x5x5xi1> to vector<14x5x5xi1>
    %66 = vector.broadcast %cst_30 : f32 to vector<14x5x5xf32>
    %67 = arith.select %65, %63, %66 : vector<14x5x5xi1>, vector<14x5x5xf32>
    %cst_31 = arith.constant dense<0xFF800000> : vector<14x5xf32>
    %68 = vector.multi_reduction <maximumf>, %67, %cst_31 [2] : vector<14x5x5xf32> to vector<14x5xf32>
    %69 = vector.shape_cast %68 : vector<14x5xf32> to vector<14x5x1xf32>
    %70 = vector.broadcast %69 : vector<14x5x1xf32> to vector<14x5x5xf32>
    %71 = arith.subf %67, %70 : vector<14x5x5xf32>
    %72 = math.exp %71 : vector<14x5x5xf32>
    %cst_32 = arith.constant dense<0.000000e+00> : vector<14x5xf32>
    %73 = vector.multi_reduction <add>, %72, %cst_32 [2] : vector<14x5x5xf32> to vector<14x5xf32>
    %74 = vector.shape_cast %73 : vector<14x5xf32> to vector<14x5x1xf32>
    %75 = tpu.reciprocal %74 {approx = true} : vector<14x5x1xf32> -> vector<14x5x1xf32>
    %76 = vector.broadcast %75 : vector<14x5x1xf32> to vector<14x5x5xf32>
    %77 = arith.mulf %72, %76 : vector<14x5x5xf32>
    %78 = arith.truncf %77 : vector<14x5x5xf32> to vector<14x5x5xbf16>
    "tpu.trace_start"() <{level = 10 : i32, message = "bqk,bkd->bqd"}> : () -> ()
    %cst_33 = arith.constant dense<0.000000e+00> : vector<14x5x64xf32>
    %79 = tpu.matmul %78, %60, %cst_33 {dimension_numbers = #tpu.dot_dimension_numbers<[2], [1], [1], [2], [0, 0, 0, 1, 1, 2], [0], [0]>} : vector<14x5x5xbf16>, vector<14x5x64xbf16>, vector<14x5x64xf32> -> vector<14x5x64xf32>
    "tpu.trace_stop"() : () -> ()
    %80 = vector.shape_cast %79 : vector<14x5x64xf32> to vector<70x64xf32>
    %81 = tpu.concatenate %54, %80 in 1 : vector<70x64xf32>, vector<70x64xf32> -> vector<70x128xf32>
    %82 = arith.truncf %81 : vector<70x128xf32> to vector<70x128xbf16>
    %cst_34 = arith.constant dense<0.000000e+00> : vector<70x128xf32>
    %83 = tpu.matmul %82, %8, %cst_34 {dimension_numbers = #tpu.dot_dimension_numbers<[1], [0], [0], [1], [0, 0, 1, 1], [], []>} : vector<70x128xbf16>, vector<128x128xbf16>, vector<70x128xf32> -> vector<70x128xf32>
    %84 = arith.addf %3, %83 : vector<70x128xf32>
    %85 = arith.mulf %84, %84 : vector<70x128xf32>
    %cst_35 = arith.constant dense<0.000000e+00> : vector<70xf32>
    %86 = vector.multi_reduction <add>, %85, %cst_35 [1] : vector<70x128xf32> to vector<70xf32>
    %87 = vector.shape_cast %86 : vector<70xf32> to vector<70x1xf32>
    %cst_36 = arith.constant 1.280000e+02 : f32
    %88 = vector.broadcast %cst_36 : f32 to vector<70x1xf32>
    %89 = arith.divf %87, %88 : vector<70x1xf32>
    %cst_37 = arith.constant 9.99999974E-6 : f32
    %90 = vector.broadcast %cst_37 : f32 to vector<70x1xf32>
    %91 = arith.addf %89, %90 : vector<70x1xf32>
    %92 = math.rsqrt %91 : vector<70x1xf32>
    %93 = vector.broadcast %92 : vector<70x1xf32> to vector<70x128xf32>
    %94 = arith.mulf %84, %93 : vector<70x128xf32>
    %95 = vector.broadcast %5 : vector<1x128xf32> to vector<70x128xf32>
    %96 = arith.mulf %94, %95 : vector<70x128xf32>
    %97 = arith.truncf %96 : vector<70x128xf32> to vector<70x128xbf16>
    %cst_38 = arith.constant dense<0.000000e+00> : vector<70x512xf32>
    %98 = tpu.matmul %97, %9, %cst_38 {dimension_numbers = #tpu.dot_dimension_numbers<[1], [0], [0], [1], [0, 0, 1, 1], [], []>} : vector<70x128xbf16>, vector<128x512xbf16>, vector<70x512xf32> -> vector<70x512xf32>
    %99 = vector.extract_strided_slice %98 {offsets = [0, 0], sizes = [70, 256], strides = [1, 1]} : vector<70x512xf32> to vector<70x256xf32>
    %100 = vector.extract_strided_slice %98 {offsets = [0, 256], sizes = [70, 256], strides = [1, 1]} : vector<70x512xf32> to vector<70x256xf32>
    %101 = arith.negf %99 : vector<70x256xf32>
    %102 = math.exp %101 : vector<70x256xf32>
    %cst_39 = arith.constant 1.000000e+00 : f32
    %103 = vector.broadcast %cst_39 : f32 to vector<70x256xf32>
    %104 = arith.addf %103, %102 : vector<70x256xf32>
    %105 = arith.divf %103, %104 : vector<70x256xf32>
    %106 = arith.mulf %99, %105 : vector<70x256xf32>
    %107 = arith.mulf %106, %100 : vector<70x256xf32>
    %108 = arith.truncf %107 : vector<70x256xf32> to vector<70x256xbf16>
    %cst_40 = arith.constant dense<0.000000e+00> : vector<70x128xf32>
    %109 = tpu.matmul %108, %10, %cst_40 {dimension_numbers = #tpu.dot_dimension_numbers<[1], [0], [0], [1], [0, 0, 1, 1], [], []>} : vector<70x256xbf16>, vector<256x128xbf16>, vector<70x128xf32> -> vector<70x128xf32>
    %110 = arith.addf %84, %109 : vector<70x128xf32>
    %111 = arith.mulf %110, %110 : vector<70x128xf32>
    %cst_41 = arith.constant dense<0.000000e+00> : vector<70xf32>
    %112 = vector.multi_reduction <add>, %111, %cst_41 [1] : vector<70x128xf32> to vector<70xf32>
    %113 = vector.shape_cast %112 : vector<70xf32> to vector<70x1xf32>
    %cst_42 = arith.constant 1.280000e+02 : f32
    %114 = vector.broadcast %cst_42 : f32 to vector<70x1xf32>
    %115 = arith.divf %113, %114 : vector<70x1xf32>
    %cst_43 = arith.constant 9.99999974E-6 : f32
    %116 = vector.broadcast %cst_43 : f32 to vector<70x1xf32>
    %117 = arith.addf %115, %116 : vector<70x1xf32>
    %118 = math.rsqrt %117 : vector<70x1xf32>
    %119 = vector.broadcast %118 : vector<70x1xf32> to vector<70x128xf32>
    %120 = arith.mulf %110, %119 : vector<70x128xf32>
    %121 = vector.broadcast %6 : vector<1x128xf32> to vector<70x128xf32>
    %122 = arith.mulf %120, %121 : vector<70x128xf32>
    %123 = vector.shape_cast %122 : vector<70x128xf32> to vector<14x5x128xf32>
    %124 = arith.truncf %123 : vector<14x5x128xf32> to vector<14x5x128xbf16>
    %c0_44 = arith.constant 0 : index
    %c0_45 = arith.constant 0 : index
    %c0_46 = arith.constant 0 : index
    %125 = vector.load %arg10[%c0_44, %c0_45, %c0_46] : memref<14x5x128xbf16, #tpu.memory_space<vmem>>, vector<14x5x128xbf16>
    tpu.vector_store %arg10[%c0_44, %c0_45, %c0_46], %124 {strides = array<i32>} : memref<14x5x128xbf16, #tpu.memory_space<vmem>>, vector<14x5x128xbf16>,
    return
  }
  func.func @transform_0(%arg0: i32) -> (i32, i32, i32) {
    %c0_i32 = arith.constant 0 : i32
    %c0_i32_0 = arith.constant 0 : i32
    %c0_i32_1 = arith.constant 0 : i32
    %c0_i32_2 = arith.constant 0 : i32
    return %c0_i32, %c0_i32_0, %c0_i32_1 : i32, i32, i32
  }
  func.func @transform_1(%arg0: i32) -> (i32, i32) {
    %c0_i32 = arith.constant 0 : i32
    %c0_i32_0 = arith.constant 0 : i32
    %c0_i32_1 = arith.constant 0 : i32
    return %c0_i32, %c0_i32_0 : i32, i32
  }
  func.func @transform_2(%arg0: i32) -> (i32, i32) {
    %c0_i32 = arith.constant 0 : i32
    %c0_i32_0 = arith.constant 0 : i32
    %c0_i32_1 = arith.constant 0 : i32
    return %c0_i32, %c0_i32_0 : i32, i32
  }
  func.func @transform_3(%arg0: i32) -> (i32, i32) {
    %c0_i32 = arith.constant 0 : i32
    %c0_i32_0 = arith.constant 0 : i32
    %c0_i32_1 = arith.constant 0 : i32
    return %c0_i32, %c0_i32_0 : i32, i32
  }
  func.func @transform_4(%arg0: i32) -> (i32, i32) {
    %c0_i32 = arith.constant 0 : i32
    %c0_i32_0 = arith.constant 0 : i32
    %c0_i32_1 = arith.constant 0 : i32
    return %c0_i32, %c0_i32_0 : i32, i32
  }
  func.func @transform_5(%arg0: i32) -> (i32, i32) {
    %c0_i32 = arith.constant 0 : i32
    %c0_i32_0 = arith.constant 0 : i32
    %c0_i32_1 = arith.constant 0 : i32
    return %c0_i32, %c0_i32_0 : i32, i32
  }
  func.func @transform_6(%arg0: i32) -> (i32, i32) {
    %c0_i32 = arith.constant 0 : i32
    %c0_i32_0 = arith.constant 0 : i32
    %c0_i32_1 = arith.constant 0 : i32
    return %c0_i32, %c0_i32_0 : i32, i32
  }
  func.func @transform_7(%arg0: i32) -> (i32, i32) {
    %c0_i32 = arith.constant 0 : i32
    %c0_i32_0 = arith.constant 0 : i32
    %c0_i32_1 = arith.constant 0 : i32
    return %c0_i32, %c0_i32_0 : i32, i32
  }
  func.func @transform_8(%arg0: i32) -> (i32, i32) {
    %c0_i32 = arith.constant 0 : i32
    %c0_i32_0 = arith.constant 0 : i32
    %c0_i32_1 = arith.constant 0 : i32
    return %c0_i32, %c0_i32_0 : i32, i32
  }
  func.func @transform_9(%arg0: i32) -> (i32, i32, i32) {
    %c0_i32 = arith.constant 0 : i32
    %c0_i32_0 = arith.constant 0 : i32
    %c0_i32_1 = arith.constant 0 : i32
    %c0_i32_2 = arith.constant 0 : i32
    return %c0_i32, %c0_i32_0, %c0_i32_1 : i32, i32, i32
  }
}

module attributes {stable_mosaic.version = 11 : i64} {
  func.func @_backbone_block_kernel(%arg0: i32, %arg1: memref<2x8x128xbf16, #tpu.memory_space<vmem>>, %arg2: memref<1x128xf32, #tpu.memory_space<vmem>>, %arg3: memref<1x128xf32, #tpu.memory_space<vmem>>, %arg4: memref<1x128xf32, #tpu.memory_space<vmem>>, %arg5: memref<128x384xbf16, #tpu.memory_space<vmem>>, %arg6: memref<128x128xbf16, #tpu.memory_space<vmem>>, %arg7: memref<128x512xbf16, #tpu.memory_space<vmem>>, %arg8: memref<256x128xbf16, #tpu.memory_space<vmem>>, %arg9: memref<2x8x128xbf16, #tpu.memory_space<vmem>>) attributes {dimension_semantics = [#tpu.dimension_semantics<arbitrary>], iteration_bounds = array<i64: 1>, scalar_prefetch = 0 : i64, scratch_operands = 0 : i64, tpu.core_type = #tpu.core_type<tc>, window_params = [{pipeline_mode = #tpu.pipeline_mode<synchronous>, transform_indices = @transform_0, window_bounds = array<i64: 2, 8, 128>}, {pipeline_mode = #tpu.pipeline_mode<synchronous>, transform_indices = @transform_1, window_bounds = array<i64: 1, 128>}, {pipeline_mode = #tpu.pipeline_mode<synchronous>, transform_indices = @transform_2, window_bounds = array<i64: 1, 128>}, {pipeline_mode = #tpu.pipeline_mode<synchronous>, transform_indices = @transform_3, window_bounds = array<i64: 1, 128>}, {pipeline_mode = #tpu.pipeline_mode<synchronous>, transform_indices = @transform_4, window_bounds = array<i64: 128, 384>}, {pipeline_mode = #tpu.pipeline_mode<synchronous>, transform_indices = @transform_5, window_bounds = array<i64: 128, 128>}, {pipeline_mode = #tpu.pipeline_mode<synchronous>, transform_indices = @transform_6, window_bounds = array<i64: 128, 512>}, {pipeline_mode = #tpu.pipeline_mode<synchronous>, transform_indices = @transform_7, window_bounds = array<i64: 256, 128>}, {pipeline_mode = #tpu.pipeline_mode<synchronous>, transform_indices = @transform_8, window_bounds = array<i64: 2, 8, 128>}]} {
    %c0 = arith.constant 0 : index
    %c0_0 = arith.constant 0 : index
    %c0_1 = arith.constant 0 : index
    %0 = vector.load %arg1[%c0, %c0_0, %c0_1] : memref<2x8x128xbf16, #tpu.memory_space<vmem>>, vector<2x8x128xbf16>
    %1 = arith.extf %0 : vector<2x8x128xbf16> to vector<2x8x128xf32>
    %2 = vector.shape_cast %1 : vector<2x8x128xf32> to vector<16x128xf32>
    %c0_2 = arith.constant 0 : index
    %c0_3 = arith.constant 0 : index
    %3 = vector.load %arg2[%c0_2, %c0_3] : memref<1x128xf32, #tpu.memory_space<vmem>>, vector<1x128xf32>
    %c0_4 = arith.constant 0 : index
    %c0_5 = arith.constant 0 : index
    %4 = vector.load %arg3[%c0_4, %c0_5] : memref<1x128xf32, #tpu.memory_space<vmem>>, vector<1x128xf32>
    %c0_6 = arith.constant 0 : index
    %c0_7 = arith.constant 0 : index
    %5 = vector.load %arg4[%c0_6, %c0_7] : memref<1x128xf32, #tpu.memory_space<vmem>>, vector<1x128xf32>
    %c0_8 = arith.constant 0 : index
    %c0_9 = arith.constant 0 : index
    %6 = vector.load %arg5[%c0_8, %c0_9] : memref<128x384xbf16, #tpu.memory_space<vmem>>, vector<128x384xbf16>
    %c0_10 = arith.constant 0 : index
    %c0_11 = arith.constant 0 : index
    %7 = vector.load %arg6[%c0_10, %c0_11] : memref<128x128xbf16, #tpu.memory_space<vmem>>, vector<128x128xbf16>
    %c0_12 = arith.constant 0 : index
    %c0_13 = arith.constant 0 : index
    %8 = vector.load %arg7[%c0_12, %c0_13] : memref<128x512xbf16, #tpu.memory_space<vmem>>, vector<128x512xbf16>
    %c0_14 = arith.constant 0 : index
    %c0_15 = arith.constant 0 : index
    %9 = vector.load %arg8[%c0_14, %c0_15] : memref<256x128xbf16, #tpu.memory_space<vmem>>, vector<256x128xbf16>
    %10 = arith.mulf %2, %2 : vector<16x128xf32>
    %cst = arith.constant dense<0.000000e+00> : vector<16xf32>
    %11 = vector.multi_reduction <add>, %10, %cst [1] : vector<16x128xf32> to vector<16xf32>
    %12 = vector.shape_cast %11 : vector<16xf32> to vector<16x1xf32>
    %cst_16 = arith.constant 1.280000e+02 : f32
    %13 = vector.broadcast %cst_16 : f32 to vector<16x1xf32>
    %14 = arith.divf %12, %13 : vector<16x1xf32>
    %cst_17 = arith.constant 9.99999974E-6 : f32
    %15 = vector.broadcast %cst_17 : f32 to vector<16x1xf32>
    %16 = arith.addf %14, %15 : vector<16x1xf32>
    %17 = math.rsqrt %16 : vector<16x1xf32>
    %18 = vector.broadcast %17 : vector<16x1xf32> to vector<16x128xf32>
    %19 = arith.mulf %2, %18 : vector<16x128xf32>
    %20 = vector.broadcast %3 : vector<1x128xf32> to vector<16x128xf32>
    %21 = arith.mulf %19, %20 : vector<16x128xf32>
    %22 = arith.truncf %21 : vector<16x128xf32> to vector<16x128xbf16>
    %cst_18 = arith.constant dense<0.000000e+00> : vector<16x384xf32>
    %23 = tpu.matmul %22, %6, %cst_18 {dimension_numbers = #tpu.dot_dimension_numbers<[1], [0], [0], [1], [0, 0, 1, 1], [], []>} : vector<16x128xbf16>, vector<128x384xbf16>, vector<16x384xf32> -> vector<16x384xf32>
    %24 = arith.truncf %23 : vector<16x384xf32> to vector<16x384xbf16>
    %25 = tpu.iota {dimensions = array<i32: 1>} : vector<1x8x8xi32>
    %26 = tpu.iota {dimensions = array<i32: 2>} : vector<1x8x8xi32>
    %27 = arith.cmpi sle, %26, %25 : vector<1x8x8xi32>
    %28 = vector.extract_strided_slice %24 {offsets = [0, 0], sizes = [16, 64], strides = [1, 1]} : vector<16x384xbf16> to vector<16x64xbf16>
    %29 = vector.shape_cast %28 : vector<16x64xbf16> to vector<2x8x64xbf16>
    %30 = vector.extract_strided_slice %24 {offsets = [0, 128], sizes = [16, 64], strides = [1, 1]} : vector<16x384xbf16> to vector<16x64xbf16>
    %31 = vector.shape_cast %30 : vector<16x64xbf16> to vector<2x8x64xbf16>
    %32 = vector.extract_strided_slice %24 {offsets = [0, 256], sizes = [16, 64], strides = [1, 1]} : vector<16x384xbf16> to vector<16x64xbf16>
    %33 = vector.shape_cast %32 : vector<16x64xbf16> to vector<2x8x64xbf16>
    "tpu.trace_start"() <{level = 10 : i32, message = "bqd,bkd->bqk"}> : () -> ()
    %cst_19 = arith.constant dense<0.000000e+00> : vector<2x8x8xf32>
    %34 = tpu.matmul %29, %31, %cst_19 {dimension_numbers = #tpu.dot_dimension_numbers<[2], [2], [1], [1], [0, 0, 0, 1, 1, 1], [0], [0]>} : vector<2x8x64xbf16>, vector<2x8x64xbf16>, vector<2x8x8xf32> -> vector<2x8x8xf32>
    "tpu.trace_stop"() : () -> ()
    %cst_20 = arith.constant 1.250000e-01 : f32
    %35 = vector.broadcast %cst_20 : f32 to vector<2x8x8xf32>
    %36 = arith.mulf %34, %35 : vector<2x8x8xf32>
    %cst_21 = arith.constant -1.000000e+30 : f32
    %37 = vector.shape_cast %27 : vector<1x8x8xi1> to vector<1x8x8xi1>
    %38 = vector.broadcast %37 : vector<1x8x8xi1> to vector<2x8x8xi1>
    %39 = vector.broadcast %cst_21 : f32 to vector<2x8x8xf32>
    %40 = arith.select %38, %36, %39 : vector<2x8x8xi1>, vector<2x8x8xf32>
    %cst_22 = arith.constant dense<0xFF800000> : vector<2x8xf32>
    %41 = vector.multi_reduction <maximumf>, %40, %cst_22 [2] : vector<2x8x8xf32> to vector<2x8xf32>
    %42 = vector.shape_cast %41 : vector<2x8xf32> to vector<2x8x1xf32>
    %43 = vector.broadcast %42 : vector<2x8x1xf32> to vector<2x8x8xf32>
    %44 = arith.subf %40, %43 : vector<2x8x8xf32>
    %45 = math.exp %44 : vector<2x8x8xf32>
    %cst_23 = arith.constant dense<0.000000e+00> : vector<2x8xf32>
    %46 = vector.multi_reduction <add>, %45, %cst_23 [2] : vector<2x8x8xf32> to vector<2x8xf32>
    %47 = vector.shape_cast %46 : vector<2x8xf32> to vector<2x8x1xf32>
    %48 = tpu.reciprocal %47 {approx = true} : vector<2x8x1xf32> -> vector<2x8x1xf32>
    %49 = vector.broadcast %48 : vector<2x8x1xf32> to vector<2x8x8xf32>
    %50 = arith.mulf %45, %49 : vector<2x8x8xf32>
    %51 = arith.truncf %50 : vector<2x8x8xf32> to vector<2x8x8xbf16>
    "tpu.trace_start"() <{level = 10 : i32, message = "bqk,bkd->bqd"}> : () -> ()
    %cst_24 = arith.constant dense<0.000000e+00> : vector<2x8x64xf32>
    %52 = tpu.matmul %51, %33, %cst_24 {dimension_numbers = #tpu.dot_dimension_numbers<[2], [1], [1], [2], [0, 0, 0, 1, 1, 2], [0], [0]>} : vector<2x8x8xbf16>, vector<2x8x64xbf16>, vector<2x8x64xf32> -> vector<2x8x64xf32>
    "tpu.trace_stop"() : () -> ()
    %53 = vector.shape_cast %52 : vector<2x8x64xf32> to vector<16x64xf32>
    %54 = vector.extract_strided_slice %24 {offsets = [0, 64], sizes = [16, 64], strides = [1, 1]} : vector<16x384xbf16> to vector<16x64xbf16>
    %55 = vector.shape_cast %54 : vector<16x64xbf16> to vector<2x8x64xbf16>
    %56 = vector.extract_strided_slice %24 {offsets = [0, 192], sizes = [16, 64], strides = [1, 1]} : vector<16x384xbf16> to vector<16x64xbf16>
    %57 = vector.shape_cast %56 : vector<16x64xbf16> to vector<2x8x64xbf16>
    %58 = vector.extract_strided_slice %24 {offsets = [0, 320], sizes = [16, 64], strides = [1, 1]} : vector<16x384xbf16> to vector<16x64xbf16>
    %59 = vector.shape_cast %58 : vector<16x64xbf16> to vector<2x8x64xbf16>
    "tpu.trace_start"() <{level = 10 : i32, message = "bqd,bkd->bqk"}> : () -> ()
    %cst_25 = arith.constant dense<0.000000e+00> : vector<2x8x8xf32>
    %60 = tpu.matmul %55, %57, %cst_25 {dimension_numbers = #tpu.dot_dimension_numbers<[2], [2], [1], [1], [0, 0, 0, 1, 1, 1], [0], [0]>} : vector<2x8x64xbf16>, vector<2x8x64xbf16>, vector<2x8x8xf32> -> vector<2x8x8xf32>
    "tpu.trace_stop"() : () -> ()
    %cst_26 = arith.constant 1.250000e-01 : f32
    %61 = vector.broadcast %cst_26 : f32 to vector<2x8x8xf32>
    %62 = arith.mulf %60, %61 : vector<2x8x8xf32>
    %cst_27 = arith.constant -1.000000e+30 : f32
    %63 = vector.shape_cast %27 : vector<1x8x8xi1> to vector<1x8x8xi1>
    %64 = vector.broadcast %63 : vector<1x8x8xi1> to vector<2x8x8xi1>
    %65 = vector.broadcast %cst_27 : f32 to vector<2x8x8xf32>
    %66 = arith.select %64, %62, %65 : vector<2x8x8xi1>, vector<2x8x8xf32>
    %cst_28 = arith.constant dense<0xFF800000> : vector<2x8xf32>
    %67 = vector.multi_reduction <maximumf>, %66, %cst_28 [2] : vector<2x8x8xf32> to vector<2x8xf32>
    %68 = vector.shape_cast %67 : vector<2x8xf32> to vector<2x8x1xf32>
    %69 = vector.broadcast %68 : vector<2x8x1xf32> to vector<2x8x8xf32>
    %70 = arith.subf %66, %69 : vector<2x8x8xf32>
    %71 = math.exp %70 : vector<2x8x8xf32>
    %cst_29 = arith.constant dense<0.000000e+00> : vector<2x8xf32>
    %72 = vector.multi_reduction <add>, %71, %cst_29 [2] : vector<2x8x8xf32> to vector<2x8xf32>
    %73 = vector.shape_cast %72 : vector<2x8xf32> to vector<2x8x1xf32>
    %74 = tpu.reciprocal %73 {approx = true} : vector<2x8x1xf32> -> vector<2x8x1xf32>
    %75 = vector.broadcast %74 : vector<2x8x1xf32> to vector<2x8x8xf32>
    %76 = arith.mulf %71, %75 : vector<2x8x8xf32>
    %77 = arith.truncf %76 : vector<2x8x8xf32> to vector<2x8x8xbf16>
    "tpu.trace_start"() <{level = 10 : i32, message = "bqk,bkd->bqd"}> : () -> ()
    %cst_30 = arith.constant dense<0.000000e+00> : vector<2x8x64xf32>
    %78 = tpu.matmul %77, %59, %cst_30 {dimension_numbers = #tpu.dot_dimension_numbers<[2], [1], [1], [2], [0, 0, 0, 1, 1, 2], [0], [0]>} : vector<2x8x8xbf16>, vector<2x8x64xbf16>, vector<2x8x64xf32> -> vector<2x8x64xf32>
    "tpu.trace_stop"() : () -> ()
    %79 = vector.shape_cast %78 : vector<2x8x64xf32> to vector<16x64xf32>
    %80 = tpu.concatenate %53, %79 in 1 : vector<16x64xf32>, vector<16x64xf32> -> vector<16x128xf32>
    %81 = arith.truncf %80 : vector<16x128xf32> to vector<16x128xbf16>
    %cst_31 = arith.constant dense<0.000000e+00> : vector<16x128xf32>
    %82 = tpu.matmul %81, %7, %cst_31 {dimension_numbers = #tpu.dot_dimension_numbers<[1], [0], [0], [1], [0, 0, 1, 1], [], []>} : vector<16x128xbf16>, vector<128x128xbf16>, vector<16x128xf32> -> vector<16x128xf32>
    %83 = arith.addf %2, %82 : vector<16x128xf32>
    %84 = arith.mulf %83, %83 : vector<16x128xf32>
    %cst_32 = arith.constant dense<0.000000e+00> : vector<16xf32>
    %85 = vector.multi_reduction <add>, %84, %cst_32 [1] : vector<16x128xf32> to vector<16xf32>
    %86 = vector.shape_cast %85 : vector<16xf32> to vector<16x1xf32>
    %cst_33 = arith.constant 1.280000e+02 : f32
    %87 = vector.broadcast %cst_33 : f32 to vector<16x1xf32>
    %88 = arith.divf %86, %87 : vector<16x1xf32>
    %cst_34 = arith.constant 9.99999974E-6 : f32
    %89 = vector.broadcast %cst_34 : f32 to vector<16x1xf32>
    %90 = arith.addf %88, %89 : vector<16x1xf32>
    %91 = math.rsqrt %90 : vector<16x1xf32>
    %92 = vector.broadcast %91 : vector<16x1xf32> to vector<16x128xf32>
    %93 = arith.mulf %83, %92 : vector<16x128xf32>
    %94 = vector.broadcast %4 : vector<1x128xf32> to vector<16x128xf32>
    %95 = arith.mulf %93, %94 : vector<16x128xf32>
    %96 = arith.truncf %95 : vector<16x128xf32> to vector<16x128xbf16>
    %cst_35 = arith.constant dense<0.000000e+00> : vector<16x512xf32>
    %97 = tpu.matmul %96, %8, %cst_35 {dimension_numbers = #tpu.dot_dimension_numbers<[1], [0], [0], [1], [0, 0, 1, 1], [], []>} : vector<16x128xbf16>, vector<128x512xbf16>, vector<16x512xf32> -> vector<16x512xf32>
    %98 = vector.extract_strided_slice %97 {offsets = [0, 0], sizes = [16, 256], strides = [1, 1]} : vector<16x512xf32> to vector<16x256xf32>
    %99 = vector.extract_strided_slice %97 {offsets = [0, 256], sizes = [16, 256], strides = [1, 1]} : vector<16x512xf32> to vector<16x256xf32>
    %100 = arith.negf %98 : vector<16x256xf32>
    %101 = math.exp %100 : vector<16x256xf32>
    %cst_36 = arith.constant 1.000000e+00 : f32
    %102 = vector.broadcast %cst_36 : f32 to vector<16x256xf32>
    %103 = arith.addf %102, %101 : vector<16x256xf32>
    %104 = arith.divf %102, %103 : vector<16x256xf32>
    %105 = arith.mulf %98, %104 : vector<16x256xf32>
    %106 = arith.mulf %105, %99 : vector<16x256xf32>
    %107 = arith.truncf %106 : vector<16x256xf32> to vector<16x256xbf16>
    %cst_37 = arith.constant dense<0.000000e+00> : vector<16x128xf32>
    %108 = tpu.matmul %107, %9, %cst_37 {dimension_numbers = #tpu.dot_dimension_numbers<[1], [0], [0], [1], [0, 0, 1, 1], [], []>} : vector<16x256xbf16>, vector<256x128xbf16>, vector<16x128xf32> -> vector<16x128xf32>
    %109 = arith.addf %83, %108 : vector<16x128xf32>
    %110 = arith.mulf %109, %109 : vector<16x128xf32>
    %cst_38 = arith.constant dense<0.000000e+00> : vector<16xf32>
    %111 = vector.multi_reduction <add>, %110, %cst_38 [1] : vector<16x128xf32> to vector<16xf32>
    %112 = vector.shape_cast %111 : vector<16xf32> to vector<16x1xf32>
    %cst_39 = arith.constant 1.280000e+02 : f32
    %113 = vector.broadcast %cst_39 : f32 to vector<16x1xf32>
    %114 = arith.divf %112, %113 : vector<16x1xf32>
    %cst_40 = arith.constant 9.99999974E-6 : f32
    %115 = vector.broadcast %cst_40 : f32 to vector<16x1xf32>
    %116 = arith.addf %114, %115 : vector<16x1xf32>
    %117 = math.rsqrt %116 : vector<16x1xf32>
    %118 = vector.broadcast %117 : vector<16x1xf32> to vector<16x128xf32>
    %119 = arith.mulf %109, %118 : vector<16x128xf32>
    %120 = vector.broadcast %5 : vector<1x128xf32> to vector<16x128xf32>
    %121 = arith.mulf %119, %120 : vector<16x128xf32>
    %122 = vector.shape_cast %121 : vector<16x128xf32> to vector<2x8x128xf32>
    %123 = arith.truncf %122 : vector<2x8x128xf32> to vector<2x8x128xbf16>
    %c0_41 = arith.constant 0 : index
    %c0_42 = arith.constant 0 : index
    %c0_43 = arith.constant 0 : index
    %124 = vector.load %arg9[%c0_41, %c0_42, %c0_43] : memref<2x8x128xbf16, #tpu.memory_space<vmem>>, vector<2x8x128xbf16>
    tpu.vector_store %arg9[%c0_41, %c0_42, %c0_43], %123 {strides = array<i32>} : memref<2x8x128xbf16, #tpu.memory_space<vmem>>, vector<2x8x128xbf16>,
    return
  }
  func.func @transform_0(%arg0: i32) -> (i32, i32, i32) {
    %c0_i32 = arith.constant 0 : i32
    %c0_i32_0 = arith.constant 0 : i32
    %c0_i32_1 = arith.constant 0 : i32
    %c0_i32_2 = arith.constant 0 : i32
    return %c0_i32, %c0_i32_0, %c0_i32_1 : i32, i32, i32
  }
  func.func @transform_1(%arg0: i32) -> (i32, i32) {
    %c0_i32 = arith.constant 0 : i32
    %c0_i32_0 = arith.constant 0 : i32
    %c0_i32_1 = arith.constant 0 : i32
    return %c0_i32, %c0_i32_0 : i32, i32
  }
  func.func @transform_2(%arg0: i32) -> (i32, i32) {
    %c0_i32 = arith.constant 0 : i32
    %c0_i32_0 = arith.constant 0 : i32
    %c0_i32_1 = arith.constant 0 : i32
    return %c0_i32, %c0_i32_0 : i32, i32
  }
  func.func @transform_3(%arg0: i32) -> (i32, i32) {
    %c0_i32 = arith.constant 0 : i32
    %c0_i32_0 = arith.constant 0 : i32
    %c0_i32_1 = arith.constant 0 : i32
    return %c0_i32, %c0_i32_0 : i32, i32
  }
  func.func @transform_4(%arg0: i32) -> (i32, i32) {
    %c0_i32 = arith.constant 0 : i32
    %c0_i32_0 = arith.constant 0 : i32
    %c0_i32_1 = arith.constant 0 : i32
    return %c0_i32, %c0_i32_0 : i32, i32
  }
  func.func @transform_5(%arg0: i32) -> (i32, i32) {
    %c0_i32 = arith.constant 0 : i32
    %c0_i32_0 = arith.constant 0 : i32
    %c0_i32_1 = arith.constant 0 : i32
    return %c0_i32, %c0_i32_0 : i32, i32
  }
  func.func @transform_6(%arg0: i32) -> (i32, i32) {
    %c0_i32 = arith.constant 0 : i32
    %c0_i32_0 = arith.constant 0 : i32
    %c0_i32_1 = arith.constant 0 : i32
    return %c0_i32, %c0_i32_0 : i32, i32
  }
  func.func @transform_7(%arg0: i32) -> (i32, i32) {
    %c0_i32 = arith.constant 0 : i32
    %c0_i32_0 = arith.constant 0 : i32
    %c0_i32_1 = arith.constant 0 : i32
    return %c0_i32, %c0_i32_0 : i32, i32
  }
  func.func @transform_8(%arg0: i32) -> (i32, i32, i32) {
    %c0_i32 = arith.constant 0 : i32
    %c0_i32_0 = arith.constant 0 : i32
    %c0_i32_1 = arith.constant 0 : i32
    %c0_i32_2 = arith.constant 0 : i32
    return %c0_i32, %c0_i32_0, %c0_i32_1 : i32, i32, i32
  }
}

module attributes {stable_mosaic.version = 11 : i64} {
  func.func @_loss_kernel(%arg0: i32, %arg1: memref<14x128xbf16, #tpu.memory_space<vmem>>, %arg2: memref<128x128xbf16, #tpu.memory_space<vmem>>, %arg3: memref<14x5x128xbf16, #tpu.memory_space<vmem>>, %arg4: memref<3x128x128xbf16, #tpu.memory_space<vmem>>, %arg5: memref<14x4xi32, #tpu.memory_space<vmem>>, %arg6: memref<1x1xf32, #tpu.memory_space<vmem>>) attributes {dimension_semantics = [#tpu.dimension_semantics<arbitrary>], iteration_bounds = array<i64: 1>, scalar_prefetch = 0 : i64, scratch_operands = 0 : i64, tpu.core_type = #tpu.core_type<tc>, window_params = [{pipeline_mode = #tpu.pipeline_mode<synchronous>, transform_indices = @transform_0, window_bounds = array<i64: 14, 128>}, {pipeline_mode = #tpu.pipeline_mode<synchronous>, transform_indices = @transform_1, window_bounds = array<i64: 128, 128>}, {pipeline_mode = #tpu.pipeline_mode<synchronous>, transform_indices = @transform_2, window_bounds = array<i64: 14, 5, 128>}, {pipeline_mode = #tpu.pipeline_mode<synchronous>, transform_indices = @transform_3, window_bounds = array<i64: 3, 128, 128>}, {pipeline_mode = #tpu.pipeline_mode<synchronous>, transform_indices = @transform_4, window_bounds = array<i64: 14, 4>}, {pipeline_mode = #tpu.pipeline_mode<synchronous>, transform_indices = @transform_5, window_bounds = array<i64: 1, 1>}]} {
    %c0 = arith.constant 0 : index
    %c0_0 = arith.constant 0 : index
    %0 = vector.load %arg5[%c0, %c0_0] : memref<14x4xi32, #tpu.memory_space<vmem>>, vector<14x4xi32>
    %c0_1 = arith.constant 0 : index
    %c0_2 = arith.constant 0 : index
    %c0_3 = arith.constant 0 : index
    %1 = vector.load %arg3[%c0_1, %c0_2, %c0_3] : memref<14x5x128xbf16, #tpu.memory_space<vmem>>, vector<14x5x128xbf16>
    %c0_4 = arith.constant 0 : index
    %c0_5 = arith.constant 0 : index
    %2 = vector.load %arg1[%c0_4, %c0_5] : memref<14x128xbf16, #tpu.memory_space<vmem>>, vector<14x128xbf16>
    %c0_6 = arith.constant 0 : index
    %c0_7 = arith.constant 0 : index
    %3 = vector.load %arg2[%c0_6, %c0_7] : memref<128x128xbf16, #tpu.memory_space<vmem>>, vector<128x128xbf16>
    %4 = vector.extract_strided_slice %0 {offsets = [0, 0], sizes = [14, 1], strides = [1, 1]} : vector<14x4xi32> to vector<14x1xi32>
    %cst = arith.constant dense<0.000000e+00> : vector<14x128xf32>
    %5 = tpu.matmul %2, %3, %cst {dimension_numbers = #tpu.dot_dimension_numbers<[1], [0], [0], [1], [0, 0, 1, 1], [], []>} : vector<14x128xbf16>, vector<128x128xbf16>, vector<14x128xf32> -> vector<14x128xf32>
    %cst_8 = arith.constant dense<0xFF800000> : vector<14xf32>
    %6 = vector.multi_reduction <maximumf>, %5, %cst_8 [1] : vector<14x128xf32> to vector<14xf32>
    %7 = vector.shape_cast %6 : vector<14xf32> to vector<14x1xf32>
    %8 = vector.broadcast %7 : vector<14x1xf32> to vector<14x128xf32>
    %9 = arith.subf %5, %8 : vector<14x128xf32>
    %10 = math.exp %9 : vector<14x128xf32>
    %cst_9 = arith.constant dense<0.000000e+00> : vector<14xf32>
    %11 = vector.multi_reduction <add>, %10, %cst_9 [1] : vector<14x128xf32> to vector<14xf32>
    %12 = vector.shape_cast %11 : vector<14xf32> to vector<14x1xf32>
    %13 = math.log %12 : vector<14x1xf32>
    %14 = arith.addf %7, %13 : vector<14x1xf32>
    %15 = tpu.iota {dimensions = array<i32: 1>} : vector<14x128xi32>
    %16 = vector.broadcast %4 : vector<14x1xi32> to vector<14x128xi32>
    %17 = arith.cmpi eq, %15, %16 : vector<14x128xi32>
    %18 = arith.extui %17 : vector<14x128xi1> to vector<14x128xi32>
    %19 = arith.sitofp %18 : vector<14x128xi32> to vector<14x128xf32>
    %20 = arith.mulf %5, %19 : vector<14x128xf32>
    %cst_10 = arith.constant dense<0.000000e+00> : vector<14xf32>
    %21 = vector.multi_reduction <add>, %20, %cst_10 [1] : vector<14x128xf32> to vector<14xf32>
    %22 = vector.shape_cast %21 : vector<14xf32> to vector<14x1xf32>
    %c-100_i32 = arith.constant -100 : i32
    %23 = vector.broadcast %c-100_i32 : i32 to vector<14x1xi32>
    %24 = arith.cmpi ne, %4, %23 : vector<14x1xi32>
    %25 = arith.subf %14, %22 : vector<14x1xf32>
    %cst_11 = arith.constant 0.000000e+00 : f32
    %26 = vector.broadcast %cst_11 : f32 to vector<14x1xf32>
    %27 = arith.select %24, %25, %26 : vector<14x1xi1>, vector<14x1xf32>
    %28 = vector.shape_cast %27 : vector<14x1xf32> to vector<1x14x1xf32>
    %cst_12 = arith.constant dense<0.000000e+00> : vector<1xf32>
    %29 = vector.multi_reduction <add>, %28, %cst_12 [1, 2] : vector<1x14x1xf32> to vector<1xf32>
    %30 = vector.shape_cast %29 : vector<1xf32> to vector<1x1x1xf32>
    %31 = vector.extract %30[0, 0, 0] : f32 from vector<1x1x1xf32>
    %32 = vector.broadcast %31 : f32 to vector<1x1xf32>
    %33 = arith.extui %24 : vector<14x1xi1> to vector<14x1xi32>
    %34 = arith.sitofp %33 : vector<14x1xi32> to vector<14x1xf32>
    %35 = vector.shape_cast %34 : vector<14x1xf32> to vector<1x14x1xf32>
    %cst_13 = arith.constant dense<0.000000e+00> : vector<1xf32>
    %36 = vector.multi_reduction <add>, %35, %cst_13 [1, 2] : vector<1x14x1xf32> to vector<1xf32>
    %37 = vector.shape_cast %36 : vector<1xf32> to vector<1x1x1xf32>
    %38 = vector.extract %37[0, 0, 0] : f32 from vector<1x1x1xf32>
    %39 = vector.broadcast %38 : f32 to vector<1x1xf32>
    %cst_14 = arith.constant 1.000000e+00 : f32
    %40 = vector.broadcast %cst_14 : f32 to vector<1x1xf32>
    %41 = arith.maximumf %39, %40 : vector<1x1xf32>
    %42 = arith.divf %32, %41 : vector<1x1xf32>
    %43 = vector.extract_strided_slice %1 {offsets = [0, 1, 0], sizes = [14, 1, 128], strides = [1, 1, 1]} : vector<14x5x128xbf16> to vector<14x1x128xbf16>
    %44 = vector.shape_cast %43 : vector<14x1x128xbf16> to vector<14x128xbf16>
    %c0_15 = arith.constant 0 : index
    %c0_16 = arith.constant 0 : index
    %c0_17 = arith.constant 0 : index
    %45 = vector.load %arg4[%c0_15, %c0_16, %c0_17] : memref<3x128x128xbf16, #tpu.memory_space<vmem>>, vector<1x128x128xbf16>
    %46 = vector.shape_cast %45 : vector<1x128x128xbf16> to vector<128x128xbf16>
    %47 = vector.extract_strided_slice %0 {offsets = [0, 1], sizes = [14, 1], strides = [1, 1]} : vector<14x4xi32> to vector<14x1xi32>
    %cst_18 = arith.constant dense<0.000000e+00> : vector<14x128xf32>
    %48 = tpu.matmul %44, %46, %cst_18 {dimension_numbers = #tpu.dot_dimension_numbers<[1], [0], [0], [1], [0, 0, 1, 1], [], []>} : vector<14x128xbf16>, vector<128x128xbf16>, vector<14x128xf32> -> vector<14x128xf32>
    %cst_19 = arith.constant dense<0xFF800000> : vector<14xf32>
    %49 = vector.multi_reduction <maximumf>, %48, %cst_19 [1] : vector<14x128xf32> to vector<14xf32>
    %50 = vector.shape_cast %49 : vector<14xf32> to vector<14x1xf32>
    %51 = vector.broadcast %50 : vector<14x1xf32> to vector<14x128xf32>
    %52 = arith.subf %48, %51 : vector<14x128xf32>
    %53 = math.exp %52 : vector<14x128xf32>
    %cst_20 = arith.constant dense<0.000000e+00> : vector<14xf32>
    %54 = vector.multi_reduction <add>, %53, %cst_20 [1] : vector<14x128xf32> to vector<14xf32>
    %55 = vector.shape_cast %54 : vector<14xf32> to vector<14x1xf32>
    %56 = math.log %55 : vector<14x1xf32>
    %57 = arith.addf %50, %56 : vector<14x1xf32>
    %58 = tpu.iota {dimensions = array<i32: 1>} : vector<14x128xi32>
    %59 = vector.broadcast %47 : vector<14x1xi32> to vector<14x128xi32>
    %60 = arith.cmpi eq, %58, %59 : vector<14x128xi32>
    %61 = arith.extui %60 : vector<14x128xi1> to vector<14x128xi32>
    %62 = arith.sitofp %61 : vector<14x128xi32> to vector<14x128xf32>
    %63 = arith.mulf %48, %62 : vector<14x128xf32>
    %cst_21 = arith.constant dense<0.000000e+00> : vector<14xf32>
    %64 = vector.multi_reduction <add>, %63, %cst_21 [1] : vector<14x128xf32> to vector<14xf32>
    %65 = vector.shape_cast %64 : vector<14xf32> to vector<14x1xf32>
    %c-100_i32_22 = arith.constant -100 : i32
    %66 = vector.broadcast %c-100_i32_22 : i32 to vector<14x1xi32>
    %67 = arith.cmpi ne, %47, %66 : vector<14x1xi32>
    %68 = arith.subf %57, %65 : vector<14x1xf32>
    %cst_23 = arith.constant 0.000000e+00 : f32
    %69 = vector.broadcast %cst_23 : f32 to vector<14x1xf32>
    %70 = arith.select %67, %68, %69 : vector<14x1xi1>, vector<14x1xf32>
    %71 = vector.shape_cast %70 : vector<14x1xf32> to vector<1x14x1xf32>
    %cst_24 = arith.constant dense<0.000000e+00> : vector<1xf32>
    %72 = vector.multi_reduction <add>, %71, %cst_24 [1, 2] : vector<1x14x1xf32> to vector<1xf32>
    %73 = vector.shape_cast %72 : vector<1xf32> to vector<1x1x1xf32>
    %74 = vector.extract %73[0, 0, 0] : f32 from vector<1x1x1xf32>
    %75 = vector.broadcast %74 : f32 to vector<1x1xf32>
    %76 = arith.extui %67 : vector<14x1xi1> to vector<14x1xi32>
    %77 = arith.sitofp %76 : vector<14x1xi32> to vector<14x1xf32>
    %78 = vector.shape_cast %77 : vector<14x1xf32> to vector<1x14x1xf32>
    %cst_25 = arith.constant dense<0.000000e+00> : vector<1xf32>
    %79 = vector.multi_reduction <add>, %78, %cst_25 [1, 2] : vector<1x14x1xf32> to vector<1xf32>
    %80 = vector.shape_cast %79 : vector<1xf32> to vector<1x1x1xf32>
    %81 = vector.extract %80[0, 0, 0] : f32 from vector<1x1x1xf32>
    %82 = vector.broadcast %81 : f32 to vector<1x1xf32>
    %cst_26 = arith.constant 1.000000e+00 : f32
    %83 = vector.broadcast %cst_26 : f32 to vector<1x1xf32>
    %84 = arith.maximumf %82, %83 : vector<1x1xf32>
    %85 = arith.divf %75, %84 : vector<1x1xf32>
    %86 = arith.addf %42, %85 : vector<1x1xf32>
    %87 = vector.extract_strided_slice %1 {offsets = [0, 2, 0], sizes = [14, 1, 128], strides = [1, 1, 1]} : vector<14x5x128xbf16> to vector<14x1x128xbf16>
    %88 = vector.shape_cast %87 : vector<14x1x128xbf16> to vector<14x128xbf16>
    %c1 = arith.constant 1 : index
    %c0_27 = arith.constant 0 : index
    %c0_28 = arith.constant 0 : index
    %89 = vector.load %arg4[%c1, %c0_27, %c0_28] : memref<3x128x128xbf16, #tpu.memory_space<vmem>>, vector<1x128x128xbf16>
    %90 = vector.shape_cast %89 : vector<1x128x128xbf16> to vector<128x128xbf16>
    %91 = vector.extract_strided_slice %0 {offsets = [0, 2], sizes = [14, 1], strides = [1, 1]} : vector<14x4xi32> to vector<14x1xi32>
    %cst_29 = arith.constant dense<0.000000e+00> : vector<14x128xf32>
    %92 = tpu.matmul %88, %90, %cst_29 {dimension_numbers = #tpu.dot_dimension_numbers<[1], [0], [0], [1], [0, 0, 1, 1], [], []>} : vector<14x128xbf16>, vector<128x128xbf16>, vector<14x128xf32> -> vector<14x128xf32>
    %cst_30 = arith.constant dense<0xFF800000> : vector<14xf32>
    %93 = vector.multi_reduction <maximumf>, %92, %cst_30 [1] : vector<14x128xf32> to vector<14xf32>
    %94 = vector.shape_cast %93 : vector<14xf32> to vector<14x1xf32>
    %95 = vector.broadcast %94 : vector<14x1xf32> to vector<14x128xf32>
    %96 = arith.subf %92, %95 : vector<14x128xf32>
    %97 = math.exp %96 : vector<14x128xf32>
    %cst_31 = arith.constant dense<0.000000e+00> : vector<14xf32>
    %98 = vector.multi_reduction <add>, %97, %cst_31 [1] : vector<14x128xf32> to vector<14xf32>
    %99 = vector.shape_cast %98 : vector<14xf32> to vector<14x1xf32>
    %100 = math.log %99 : vector<14x1xf32>
    %101 = arith.addf %94, %100 : vector<14x1xf32>
    %102 = tpu.iota {dimensions = array<i32: 1>} : vector<14x128xi32>
    %103 = vector.broadcast %91 : vector<14x1xi32> to vector<14x128xi32>
    %104 = arith.cmpi eq, %102, %103 : vector<14x128xi32>
    %105 = arith.extui %104 : vector<14x128xi1> to vector<14x128xi32>
    %106 = arith.sitofp %105 : vector<14x128xi32> to vector<14x128xf32>
    %107 = arith.mulf %92, %106 : vector<14x128xf32>
    %cst_32 = arith.constant dense<0.000000e+00> : vector<14xf32>
    %108 = vector.multi_reduction <add>, %107, %cst_32 [1] : vector<14x128xf32> to vector<14xf32>
    %109 = vector.shape_cast %108 : vector<14xf32> to vector<14x1xf32>
    %c-100_i32_33 = arith.constant -100 : i32
    %110 = vector.broadcast %c-100_i32_33 : i32 to vector<14x1xi32>
    %111 = arith.cmpi ne, %91, %110 : vector<14x1xi32>
    %112 = arith.subf %101, %109 : vector<14x1xf32>
    %cst_34 = arith.constant 0.000000e+00 : f32
    %113 = vector.broadcast %cst_34 : f32 to vector<14x1xf32>
    %114 = arith.select %111, %112, %113 : vector<14x1xi1>, vector<14x1xf32>
    %115 = vector.shape_cast %114 : vector<14x1xf32> to vector<1x14x1xf32>
    %cst_35 = arith.constant dense<0.000000e+00> : vector<1xf32>
    %116 = vector.multi_reduction <add>, %115, %cst_35 [1, 2] : vector<1x14x1xf32> to vector<1xf32>
    %117 = vector.shape_cast %116 : vector<1xf32> to vector<1x1x1xf32>
    %118 = vector.extract %117[0, 0, 0] : f32 from vector<1x1x1xf32>
    %119 = vector.broadcast %118 : f32 to vector<1x1xf32>
    %120 = arith.extui %111 : vector<14x1xi1> to vector<14x1xi32>
    %121 = arith.sitofp %120 : vector<14x1xi32> to vector<14x1xf32>
    %122 = vector.shape_cast %121 : vector<14x1xf32> to vector<1x14x1xf32>
    %cst_36 = arith.constant dense<0.000000e+00> : vector<1xf32>
    %123 = vector.multi_reduction <add>, %122, %cst_36 [1, 2] : vector<1x14x1xf32> to vector<1xf32>
    %124 = vector.shape_cast %123 : vector<1xf32> to vector<1x1x1xf32>
    %125 = vector.extract %124[0, 0, 0] : f32 from vector<1x1x1xf32>
    %126 = vector.broadcast %125 : f32 to vector<1x1xf32>
    %cst_37 = arith.constant 1.000000e+00 : f32
    %127 = vector.broadcast %cst_37 : f32 to vector<1x1xf32>
    %128 = arith.maximumf %126, %127 : vector<1x1xf32>
    %129 = arith.divf %119, %128 : vector<1x1xf32>
    %130 = arith.addf %86, %129 : vector<1x1xf32>
    %131 = vector.extract_strided_slice %1 {offsets = [0, 3, 0], sizes = [14, 1, 128], strides = [1, 1, 1]} : vector<14x5x128xbf16> to vector<14x1x128xbf16>
    %132 = vector.shape_cast %131 : vector<14x1x128xbf16> to vector<14x128xbf16>
    %c2 = arith.constant 2 : index
    %c0_38 = arith.constant 0 : index
    %c0_39 = arith.constant 0 : index
    %133 = vector.load %arg4[%c2, %c0_38, %c0_39] : memref<3x128x128xbf16, #tpu.memory_space<vmem>>, vector<1x128x128xbf16>
    %134 = vector.shape_cast %133 : vector<1x128x128xbf16> to vector<128x128xbf16>
    %135 = vector.extract_strided_slice %0 {offsets = [0, 3], sizes = [14, 1], strides = [1, 1]} : vector<14x4xi32> to vector<14x1xi32>
    %cst_40 = arith.constant dense<0.000000e+00> : vector<14x128xf32>
    %136 = tpu.matmul %132, %134, %cst_40 {dimension_numbers = #tpu.dot_dimension_numbers<[1], [0], [0], [1], [0, 0, 1, 1], [], []>} : vector<14x128xbf16>, vector<128x128xbf16>, vector<14x128xf32> -> vector<14x128xf32>
    %cst_41 = arith.constant dense<0xFF800000> : vector<14xf32>
    %137 = vector.multi_reduction <maximumf>, %136, %cst_41 [1] : vector<14x128xf32> to vector<14xf32>
    %138 = vector.shape_cast %137 : vector<14xf32> to vector<14x1xf32>
    %139 = vector.broadcast %138 : vector<14x1xf32> to vector<14x128xf32>
    %140 = arith.subf %136, %139 : vector<14x128xf32>
    %141 = math.exp %140 : vector<14x128xf32>
    %cst_42 = arith.constant dense<0.000000e+00> : vector<14xf32>
    %142 = vector.multi_reduction <add>, %141, %cst_42 [1] : vector<14x128xf32> to vector<14xf32>
    %143 = vector.shape_cast %142 : vector<14xf32> to vector<14x1xf32>
    %144 = math.log %143 : vector<14x1xf32>
    %145 = arith.addf %138, %144 : vector<14x1xf32>
    %146 = tpu.iota {dimensions = array<i32: 1>} : vector<14x128xi32>
    %147 = vector.broadcast %135 : vector<14x1xi32> to vector<14x128xi32>
    %148 = arith.cmpi eq, %146, %147 : vector<14x128xi32>
    %149 = arith.extui %148 : vector<14x128xi1> to vector<14x128xi32>
    %150 = arith.sitofp %149 : vector<14x128xi32> to vector<14x128xf32>
    %151 = arith.mulf %136, %150 : vector<14x128xf32>
    %cst_43 = arith.constant dense<0.000000e+00> : vector<14xf32>
    %152 = vector.multi_reduction <add>, %151, %cst_43 [1] : vector<14x128xf32> to vector<14xf32>
    %153 = vector.shape_cast %152 : vector<14xf32> to vector<14x1xf32>
    %c-100_i32_44 = arith.constant -100 : i32
    %154 = vector.broadcast %c-100_i32_44 : i32 to vector<14x1xi32>
    %155 = arith.cmpi ne, %135, %154 : vector<14x1xi32>
    %156 = arith.subf %145, %153 : vector<14x1xf32>
    %cst_45 = arith.constant 0.000000e+00 : f32
    %157 = vector.broadcast %cst_45 : f32 to vector<14x1xf32>
    %158 = arith.select %155, %156, %157 : vector<14x1xi1>, vector<14x1xf32>
    %159 = vector.shape_cast %158 : vector<14x1xf32> to vector<1x14x1xf32>
    %cst_46 = arith.constant dense<0.000000e+00> : vector<1xf32>
    %160 = vector.multi_reduction <add>, %159, %cst_46 [1, 2] : vector<1x14x1xf32> to vector<1xf32>
    %161 = vector.shape_cast %160 : vector<1xf32> to vector<1x1x1xf32>
    %162 = vector.extract %161[0, 0, 0] : f32 from vector<1x1x1xf32>
    %163 = vector.broadcast %162 : f32 to vector<1x1xf32>
    %164 = arith.extui %155 : vector<14x1xi1> to vector<14x1xi32>
    %165 = arith.sitofp %164 : vector<14x1xi32> to vector<14x1xf32>
    %166 = vector.shape_cast %165 : vector<14x1xf32> to vector<1x14x1xf32>
    %cst_47 = arith.constant dense<0.000000e+00> : vector<1xf32>
    %167 = vector.multi_reduction <add>, %166, %cst_47 [1, 2] : vector<1x14x1xf32> to vector<1xf32>
    %168 = vector.shape_cast %167 : vector<1xf32> to vector<1x1x1xf32>
    %169 = vector.extract %168[0, 0, 0] : f32 from vector<1x1x1xf32>
    %170 = vector.broadcast %169 : f32 to vector<1x1xf32>
    %cst_48 = arith.constant 1.000000e+00 : f32
    %171 = vector.broadcast %cst_48 : f32 to vector<1x1xf32>
    %172 = arith.maximumf %170, %171 : vector<1x1xf32>
    %173 = arith.divf %163, %172 : vector<1x1xf32>
    %174 = arith.addf %130, %173 : vector<1x1xf32>
    %c0_49 = arith.constant 0 : index
    %c0_50 = arith.constant 0 : index
    %175 = vector.load %arg6[%c0_49, %c0_50] : memref<1x1xf32, #tpu.memory_space<vmem>>, vector<1x1xf32>
    tpu.vector_store %arg6[%c0_49, %c0_50], %174 {strides = array<i32>} : memref<1x1xf32, #tpu.memory_space<vmem>>, vector<1x1xf32>,
    return
  }
  func.func @transform_0(%arg0: i32) -> (i32, i32) {
    %c0_i32 = arith.constant 0 : i32
    %c0_i32_0 = arith.constant 0 : i32
    %c0_i32_1 = arith.constant 0 : i32
    return %c0_i32, %c0_i32_0 : i32, i32
  }
  func.func @transform_1(%arg0: i32) -> (i32, i32) {
    %c0_i32 = arith.constant 0 : i32
    %c0_i32_0 = arith.constant 0 : i32
    %c0_i32_1 = arith.constant 0 : i32
    return %c0_i32, %c0_i32_0 : i32, i32
  }
  func.func @transform_2(%arg0: i32) -> (i32, i32, i32) {
    %c0_i32 = arith.constant 0 : i32
    %c0_i32_0 = arith.constant 0 : i32
    %c0_i32_1 = arith.constant 0 : i32
    %c0_i32_2 = arith.constant 0 : i32
    return %c0_i32, %c0_i32_0, %c0_i32_1 : i32, i32, i32
  }
  func.func @transform_3(%arg0: i32) -> (i32, i32, i32) {
    %c0_i32 = arith.constant 0 : i32
    %c0_i32_0 = arith.constant 0 : i32
    %c0_i32_1 = arith.constant 0 : i32
    %c0_i32_2 = arith.constant 0 : i32
    return %c0_i32, %c0_i32_0, %c0_i32_1 : i32, i32, i32
  }
  func.func @transform_4(%arg0: i32) -> (i32, i32) {
    %c0_i32 = arith.constant 0 : i32
    %c0_i32_0 = arith.constant 0 : i32
    %c0_i32_1 = arith.constant 0 : i32
    return %c0_i32, %c0_i32_0 : i32, i32
  }
  func.func @transform_5(%arg0: i32) -> (i32, i32) {
    %c0_i32 = arith.constant 0 : i32
    %c0_i32_0 = arith.constant 0 : i32
    %c0_i32_1 = arith.constant 0 : i32
    return %c0_i32, %c0_i32_0 : i32, i32
  }
}

</mosaic_0001>

<llo_original>
// kernel: tts_forward.5
$region0: #{tts_forward.5}
  #allocation0 [shape = 'u32[]', space=smem, size = 0x4, offset = 0x4, fixed_abs, tag = 'smem constant byte address 0x4 - core index']
  #allocation1 [shape = 'u32[144,128]{1,0:T(1,128)}', space=vmem, size = 0x12000, scoped, tag = 'internal scratch']
  %s0 = inlined_call_operand.vmem [shape: bf16[14,128], index: 0, kind: input, shape index: {}]
  %s1 = inlined_call_operand.vmem [shape: bf16[128,128], index: 1, kind: input, shape index: {}]
  %s2 = inlined_call_operand.vmem [shape: bf16[14,5,128], index: 2, kind: input, shape index: {}]
  %s3 = inlined_call_operand.vmem [shape: bf16[3,128,128], index: 3, kind: input, shape index: {}]
  %s4 = inlined_call_operand.vmem [shape: s32[14,4], index: 4, kind: input, shape index: {}]
  %s5 = inlined_call_operand.hbm [shape: f32[1,1], index: 5, kind: output, shape index: {}]
  %s6 = sld [smem:[#allocation0]]
  $region30: #{tts_forward.5} parent=0
    _
  %s8 = ssub.s32 1, %s6
  %s9 = scalar_select 0, %s8, %s6
  $region1: #{tts_forward.5} parent=0
    #allocation2 [shape = 'u8[512]{0}', space=vmem, size = 0x400, scoped, tag = 'output window, operand 0, single buffered']
    #allocation3 [shape = 's32[1]{0}', space=sflag, size = 0x4, scoped, tag = 'scoped memory for tts_forward.5']
    %10 = vsyncpa [#allocation3], 0
    // Predicated region
    $region2: #{tts_forward.5} parent=1 // pred_check
      _
    $region3: #{tts_forward.5} parent=1 // pred_check_branch
      %12 = sbr.rel (0) target = $region5
    $region4: #{tts_forward.5} parent=1 // pred_region
      _
    $region5: #{tts_forward.5} parent=1 // pred_fallthru
      _
    // Predicated region
    $region6: #{tts_forward.5} parent=1 // pred_check
      _
    $region7: #{tts_forward.5} parent=1 // pred_check_branch
      %14 = sbr.rel (0) target = $region9
    $region8: #{tts_forward.5} parent=1 // pred_region
      _
    $region9: #{tts_forward.5} parent=1 // pred_fallthru
      _
    // Predicated region
    $region10: #{tts_forward.5} parent=1 // pred_check
      _
    $region11: #{tts_forward.5} parent=1 // pred_check_branch
      %16 = sbr.rel (0) target = $region13
    $region12: #{tts_forward.5} parent=1 // pred_region
      _
    $region13: #{tts_forward.5} parent=1 // pred_fallthru
      _
    // Predicated region
    $region14: #{tts_forward.5} parent=1 // pred_check
      _
    $region15: #{tts_forward.5} parent=1 // pred_check_branch
      %18 = sbr.rel (0) target = $region17
    $region16: #{tts_forward.5} parent=1 // pred_region
      _
    $region17: #{tts_forward.5} parent=1 // pred_fallthru
      _
    // Predicated region
    $region18: #{tts_forward.5} parent=1 // pred_check
      _
    $region19: #{tts_forward.5} parent=1 // pred_check_branch
      %20 = sbr.rel (0) target = $region21
    $region20: #{tts_forward.5} parent=1 // pred_region
      _
    $region21: #{tts_forward.5} parent=1 // pred_fallthru
      _
    %v22 = vld [vmem:[%s4] sm:$0xff]
    %v23 = vld [vmem:[%s4 + $0x8] sm:$0x3f]
    %v24 = vld [vmem:[%s2] sm:$0x7]
    %v25 = vld [vmem:[%s2 + $0x4] sm:$0x7]
    %v26 = vld [vmem:[%s2 + $0x8] sm:$0x7]
    %v27 = vld [vmem:[%s2 + $0xc] sm:$0x7]
    %v28 = vld [vmem:[%s2 + $0x10] sm:$0x7]
    %v29 = vld [vmem:[%s2 + $0x14] sm:$0x7]
    %v30 = vld [vmem:[%s2 + $0x18] sm:$0x7]
    %v31 = vld [vmem:[%s2 + $0x1c] sm:$0x7]
    %v32 = vld [vmem:[%s2 + $0x20] sm:$0x7]
    %v33 = vld [vmem:[%s2 + $0x24] sm:$0x7]
    %v34 = vld [vmem:[%s2 + $0x28] sm:$0x7]
    %v35 = vld [vmem:[%s2 + $0x2c] sm:$0x7]
    %v36 = vld [vmem:[%s2 + $0x30] sm:$0x7]
    %v37 = vld [vmem:[%s2 + $0x34] sm:$0x7]
    %v38 = vld [vmem:[%s0] sm:$0xf]
    %v39 = vld [vmem:[%s0 + $0x4] sm:$0x7]
    %v40 = vld [vmem:[%s1] sm:$0xf]
    %v41 = vld [vmem:[%s1 + $0x4] sm:$0xf]
    %v42 = vld [vmem:[%s1 + $0x8] sm:$0xf]
    %v43 = vld [vmem:[%s1 + $0xc] sm:$0xf]
    %v44 = vld [vmem:[%s1 + $0x10] sm:$0xf]
    %v45 = vld [vmem:[%s1 + $0x14] sm:$0xf]
    %v46 = vld [vmem:[%s1 + $0x18] sm:$0xf]
    %v47 = vld [vmem:[%s1 + $0x1c] sm:$0xf]
    %v48 = vld [vmem:[%s1 + $0x20] sm:$0xf]
    %v49 = vld [vmem:[%s1 + $0x24] sm:$0xf]
    %v50 = vld [vmem:[%s1 + $0x28] sm:$0xf]
    %v51 = vld [vmem:[%s1 + $0x2c] sm:$0xf]
    %v52 = vld [vmem:[%s1 + $0x30] sm:$0xf]
    %v53 = vld [vmem:[%s1 + $0x34] sm:$0xf]
    %v54 = vld [vmem:[%s1 + $0x38] sm:$0xf]
    %v55 = vld [vmem:[%s1 + $0x3c] sm:$0xf]
    %v58 = vunpack.c.l.b16 %v38
    %v59 = vunpack.c.l.b16 %v39
    %v60 = vpack.c.b16 %v59, %v58
    %v78 = vunpack.c.l.b16 %v40
    %v79 = vunpack.c.l.b16 %v41
    %v80 = vunpack.c.l.b16 %v42
    %v81 = vunpack.c.l.b16 %v43
    %v82 = vunpack.c.l.b16 %v44
    %v83 = vunpack.c.l.b16 %v45
    %v84 = vunpack.c.l.b16 %v46
    %v85 = vunpack.c.l.b16 %v47
    %v86 = vunpack.c.l.b16 %v48
    %v87 = vunpack.c.l.b16 %v49
    %v88 = vunpack.c.l.b16 %v50
    %v89 = vunpack.c.l.b16 %v51
    %v90 = vunpack.c.l.b16 %v52
    %v91 = vunpack.c.l.b16 %v53
    %v92 = vunpack.c.l.b16 %v54
    %v93 = vunpack.c.l.b16 %v55
    %v94 = vpack.c.b16 %v79, %v78
    %v95 = vpack.c.b16 %v81, %v80
    %v96 = vpack.c.b16 %v83, %v82
    %v97 = vpack.c.b16 %v85, %v84
    %v98 = vpack.c.b16 %v87, %v86
    %v99 = vpack.c.b16 %v89, %v88
    %v100 = vpack.c.b16 %v91, %v90
    %v101 = vpack.c.b16 %v93, %v92
    %110 = vmatprep.subr.bf16.mxu0 0
    %111 = vmatpush1.bf16.msra.mxu0 %v94
    %112 = vmatprep.subr.bf16.mxu0 0
    %113 = vmatpush1.bf16.msra.mxu0 %v95
    %114 = vmatprep.subr.bf16.mxu0 0
    %115 = vmatpush1.bf16.msra.mxu0 %v96
    %116 = vmatprep.subr.bf16.mxu0 0
    %117 = vmatpush1.bf16.msra.mxu0 %v97
    %118 = vmatprep.subr.bf16.mxu0 0
    %119 = vmatpush1.bf16.msra.mxu0 %v98
    %120 = vmatprep.subr.bf16.mxu0 0
    %121 = vmatpush1.bf16.msra.mxu0 %v99
    %122 = vmatprep.subr.bf16.mxu0 0
    %123 = vmatpush1.bf16.msra.mxu0 %v100
    %124 = vmatprep.subr.bf16.mxu0 0
    %125 = vmatpush1.bf16.msra.mxu0 %v101
    %126 = vmatprep.subr.bf16.mxu0 0
    %127 = vmatpush1.bf16.msra.mxu0 0
    %128 = vmatprep.subr.bf16.mxu0 0
    %129 = vmatpush1.bf16.msra.mxu0 0
    %130 = vmatprep.subr.bf16.mxu0 0
    %131 = vmatpush1.bf16.msra.mxu0 0
    %132 = vmatprep.subr.bf16.mxu0 0
    %133 = vmatpush1.bf16.msra.mxu0 0
    %134 = vmatprep.subr.bf16.mxu0 0
    %135 = vmatpush1.bf16.msra.mxu0 0
    %136 = vmatprep.subr.bf16.mxu0 0
    %137 = vmatpush1.bf16.msra.mxu0 0
    %138 = vmatprep.subr.bf16.mxu0 0
    %139 = vmatpush1.bf16.msra.mxu0 0
    %140 = vmatprep.subr.bf16.mxu0 0
    %141 = vmatpush1.bf16.msra.mxu0 0
    %142 = vmatprep.mubr.bf16.mxu0 0
    %143 = vmatmul.mubr.bf16.gmra.mrb[0].mxu0 %v60
    %v144 = vpop.f32.mrb[0].mxu0
    %v145 = vadd.f32 0.0, %v144
    %v146 = vpop.f32.mrb[0].mxu0
    %v147 = vpop.f32.mrb[0].mxu0
    %v148 = vadd.f32 0.0, %v147
    %v149 = vpop.f32.mrb[0].mxu0
    %150 = vdwg.mxu0
    %151 = vmax.xlane.f32.xlu0 %v145
    %v152 = vpop.xlane.xlu0 %151
    %vm153 = vcmask 1045504
    %v154 = vsel %vm153, %v148, -inf
    %155 = vmax.xlane.f32.xlu0 %v154
    %v156 = vpop.xlane.xlu0 %155
    %v157 = vsub.f32 %v145, %v152
    %v158 = vsub.f32 %v148, %v156
    %v159 = vmul.f32 %v157, 1.442695
    %v160 = vpow.pop %v159
    %v161 = vmul.f32 %v158, 1.442695
    %v162 = vpow.pop %v161
    %163 = vadd.xlane.f32.xlu0 %v160
    %v164 = vpop.xlane.xlu0 %163
    %v165 = vsel %vm153, %v162, 0.0
    %166 = vadd.xlane.f32.xlu0 %v165
    %v167 = vpop.xlane.xlu0 %166
    %v168 = vlog2.pop %v164
    %v169 = vmul.f32 %v168, 0.6931472
    %v170 = vlog2.pop %v167
    %v171 = vmul.f32 %v170, 0.6931472
    %v172 = vadd.f32 %v152, %v169
    %v173 = vadd.f32 %v156, %v171
    %v174 = vlaneseq
    %v175 = vand.u32 %v174, 127
    %176 = vset.pattern.permute.xlu0 0
    %177 = vperm.xlu0 %176, %v22
    %v178 = vpop.permute.xlu0 %177
    %179 = vset.pattern.permute.xlu0 0
    %180 = vperm.xlu0 %179, %v23
    %v181 = vpop.permute.xlu0 %180
    %vm182 = vcmp.eq.s32.totalorder %v175, %v178
    %vm183 = vcmp.eq.s32.totalorder %v175, %v181
    %v184 = vsel %vm182, 1, 0
    %v185 = vsel %vm183, 1, 0
    %v186 = vcvt.s32.f32 %v184
    %v187 = vcvt.s32.f32 %v185
    %v188 = vmul.f32 %v145, %v186
    %v189 = vmul.f32 %v148, %v187
    %190 = vadd.xlane.f32.xlu0 %v188
    %v191 = vpop.xlane.xlu0 %190
    %v192 = vsel %vm153, %v189, 0.0
    %193 = vadd.xlane.f32.xlu0 %v192
    %v194 = vpop.xlane.xlu0 %193
    %vm195 = vcmp.ne.s32.totalorder %v22, 4294967196
    %vm196 = vcmp.ne.s32.totalorder %v23, 4294967196
    %v197 = vsub.f32 %v172, %v191
    %v198 = vsub.f32 %v173, %v194
    %v199 = vsel %vm195, %v197, 0.0
    %v200 = vsel %vm196, %v198, 0.0
    %vm201 = vcmask 7168
    %v202 = vsel %vm201, %v199, 0.0
    %vm203 = vcmask 5120
    %v204 = vsel %vm203, %v200, 0.0
    %v205 = vadd.f32 %v202, %v204
    %206 = vadd.xlane.f32.xlu0 %v205
    %v207 = vpop.xlane.xlu0 %206
    %v208 = vrot.slane %v207, 4
    %v209 = vadd.f32 %v207, %v208
    %v210 = vrot.slane %v209, 2
    %v211 = vadd.f32 %v209, %v210
    %v212 = vrot.slane %v211, 1
    %v213 = vadd.f32 %v211, %v212
    %s214 = vtos %v213
    %v215 = vstv %s214
    %v216 = vsel %vm195, 1, 0
    %v217 = vsel %vm196, 1, 0
    %v218 = vcvt.s32.f32 %v216
    %v219 = vcvt.s32.f32 %v217
    %v220 = vsel %vm201, %v218, 0.0
    %v221 = vsel %vm203, %v219, 0.0
    %v222 = vadd.f32 %v220, %v221
    %223 = vadd.xlane.f32.xlu0 %v222
    %v224 = vpop.xlane.xlu0 %223
    %v225 = vrot.slane %v224, 4
    %v226 = vadd.f32 %v224, %v225
    %v227 = vrot.slane %v226, 2
    %v228 = vadd.f32 %v226, %v227
    %v229 = vrot.slane %v228, 1
    %v230 = vadd.f32 %v228, %v229
    %s231 = vtos %v230
    %v232 = vstv %s231
    %v233 = vmax.f32 %v232, 1.0
    %v234 = vrcp.pop %v233
    %v235 = vmul.f32 %v215, %v234
    %v236 = vld [vmem:[%s3] sm:$0xf]
    %v237 = vld [vmem:[%s3 + $0x4] sm:$0xf]
    %v238 = vld [vmem:[%s3 + $0x8] sm:$0xf]
    %v239 = vld [vmem:[%s3 + $0xc] sm:$0xf]
    %v240 = vld [vmem:[%s3 + $0x10] sm:$0xf]
    %v241 = vld [vmem:[%s3 + $0x14] sm:$0xf]
    %v242 = vld [vmem:[%s3 + $0x18] sm:$0xf]
    %v243 = vld [vmem:[%s3 + $0x1c] sm:$0xf]
    %v244 = vld [vmem:[%s3 + $0x20] sm:$0xf]
    %v245 = vld [vmem:[%s3 + $0x24] sm:$0xf]
    %v246 = vld [vmem:[%s3 + $0x28] sm:$0xf]
    %v247 = vld [vmem:[%s3 + $0x2c] sm:$0xf]
    %v248 = vld [vmem:[%s3 + $0x30] sm:$0xf]
    %v249 = vld [vmem:[%s3 + $0x34] sm:$0xf]
    %v250 = vld [vmem:[%s3 + $0x38] sm:$0xf]
    %v251 = vld [vmem:[%s3 + $0x3c] sm:$0xf]
    %v266 = vunpack.c.l.b16 %v24
    %v267 = vunpack.c.l.b16 %v25
    %v268 = vunpack.c.l.b16 %v26
    %v269 = vunpack.c.l.b16 %v27
    %v270 = vunpack.c.l.b16 %v28
    %v271 = vunpack.c.l.b16 %v29
    %v272 = vunpack.c.l.b16 %v30
    %v273 = vunpack.c.l.b16 %v31
    %v274 = vunpack.c.l.b16 %v32
    %v275 = vunpack.c.l.b16 %v33
    %v276 = vunpack.c.l.b16 %v34
    %v277 = vunpack.c.l.b16 %v35
    %v278 = vunpack.c.l.b16 %v36
    %v279 = vunpack.c.l.b16 %v37
    %v280 = vpack.c.b16 %v266, %v266
    %v281 = vpack.c.b16 %v267, %v267
    %v282 = vpack.c.b16 %v268, %v268
    %v283 = vpack.c.b16 %v269, %v269
    %v284 = vpack.c.b16 %v270, %v270
    %v285 = vpack.c.b16 %v271, %v271
    %v286 = vpack.c.b16 %v272, %v272
    %v287 = vpack.c.b16 %v273, %v273
    %v288 = vpack.c.b16 %v274, %v274
    %v289 = vpack.c.b16 %v275, %v275
    %v290 = vpack.c.b16 %v276, %v276
    %v291 = vpack.c.b16 %v277, %v277
    %v292 = vpack.c.b16 %v278, %v278
    %v293 = vpack.c.b16 %v279, %v279
    %v294 = vunpack.c.l.b16 %v280
    %v295 = vunpack.c.l.b16 %v281
    %v296 = vunpack.c.l.b16 %v282
    %v297 = vunpack.c.l.b16 %v283
    %v298 = vunpack.c.l.b16 %v284
    %v299 = vunpack.c.l.b16 %v285
    %v300 = vunpack.c.l.b16 %v286
    %v301 = vunpack.c.l.b16 %v287
    %v302 = vunpack.c.l.b16 %v288
    %v303 = vunpack.c.l.b16 %v289
    %v304 = vunpack.c.l.b16 %v290
    %v305 = vunpack.c.l.b16 %v291
    %v306 = vunpack.c.l.b16 %v292
    %v307 = vunpack.c.l.b16 %v293
    %v308 = vrot.slane %v294, 1
    %vm309 = vcmask 1041409
    %v310 = vsel %vm309, %v295, %v308
    %v311 = vrot.slane %v296, 7
    %vm312 = vcmask 1042434
    %v313 = vsel %vm312, %v311, %v310
    %v314 = vrot.slane %v297, 6
    %vm315 = vcmask 1043459
    %v316 = vsel %vm315, %v314, %v313
    %v317 = vrot.slane %v298, 5
    %vm318 = vcmask 1044484
    %v319 = vsel %vm318, %v317, %v316
    %v320 = vrot.slane %v299, 4
    %vm321 = vcmask 1045509
    %v322 = vsel %vm321, %v320, %v319
    %v323 = vrot.slane %v300, 3
    %vm324 = vcmask 1046534
    %v325 = vsel %vm324, %v323, %v322
    %v326 = vrot.slane %v301, 2
    %vm327 = vcmask 1047559
    %v328 = vsel %vm327, %v326, %v325
    %v329 = vrot.slane %v302, 1
    %v330 = vsel %vm309, %v303, %v329
    %v331 = vrot.slane %v304, 7
    %v332 = vsel %vm312, %v331, %v330
    %v333 = vrot.slane %v305, 6
    %v334 = vsel %vm315, %v333, %v332
    %v335 = vrot.slane %v306, 5
    %v336 = vsel %vm318, %v335, %v334
    %v337 = vrot.slane %v307, 4
    %v338 = vsel %vm321, %v337, %v336
    %v339 = vpack.c.b16 %v338, %v328
    %v357 = vunpack.c.l.b16 %v236
    %v358 = vunpack.c.l.b16 %v237
    %v359 = vunpack.c.l.b16 %v238
    %v360 = vunpack.c.l.b16 %v239
    %v361 = vunpack.c.l.b16 %v240
    %v362 = vunpack.c.l.b16 %v241
    %v363 = vunpack.c.l.b16 %v242
    %v364 = vunpack.c.l.b16 %v243
    %v365 = vunpack.c.l.b16 %v244
    %v366 = vunpack.c.l.b16 %v245
    %v367 = vunpack.c.l.b16 %v246
    %v368 = vunpack.c.l.b16 %v247
    %v369 = vunpack.c.l.b16 %v248
    %v370 = vunpack.c.l.b16 %v249
    %v371 = vunpack.c.l.b16 %v250
    %v372 = vunpack.c.l.b16 %v251
    %v373 = vpack.c.b16 %v358, %v357
    %v374 = vpack.c.b16 %v360, %v359
    %v375 = vpack.c.b16 %v362, %v361
    %v376 = vpack.c.b16 %v364, %v363
    %v377 = vpack.c.b16 %v366, %v365
    %v378 = vpack.c.b16 %v368, %v367
    %v379 = vpack.c.b16 %v370, %v369
    %v380 = vpack.c.b16 %v372, %v371
    %389 = vmatprep.subr.bf16.mxu0 0
    %390 = vmatpush1.bf16.msra.mxu0 %v373
    %391 = vmatprep.subr.bf16.mxu0 0
    %392 = vmatpush1.bf16.msra.mxu0 %v374
    %393 = vmatprep.subr.bf16.mxu0 0
    %394 = vmatpush1.bf16.msra.mxu0 %v375
    %395 = vmatprep.subr.bf16.mxu0 0
    %396 = vmatpush1.bf16.msra.mxu0 %v376
    %397 = vmatprep.subr.bf16.mxu0 0
    %398 = vmatpush1.bf16.msra.mxu0 %v377
    %399 = vmatprep.subr.bf16.mxu0 0
    %400 = vmatpush1.bf16.msra.mxu0 %v378
    %401 = vmatprep.subr.bf16.mxu0 0
    %402 = vmatpush1.bf16.msra.mxu0 %v379
    %403 = vmatprep.subr.bf16.mxu0 0
    %404 = vmatpush1.bf16.msra.mxu0 %v380
    %405 = vmatprep.subr.bf16.mxu0 0
    %406 = vmatpush1.bf16.msra.mxu0 0
    %407 = vmatprep.subr.bf16.mxu0 0
    %408 = vmatpush1.bf16.msra.mxu0 0
    %409 = vmatprep.subr.bf16.mxu0 0
    %410 = vmatpush1.bf16.msra.mxu0 0
    %411 = vmatprep.subr.bf16.mxu0 0
    %412 = vmatpush1.bf16.msra.mxu0 0
    %413 = vmatprep.subr.bf16.mxu0 0
    %414 = vmatpush1.bf16.msra.mxu0 0
    %415 = vmatprep.subr.bf16.mxu0 0
    %416 = vmatpush1.bf16.msra.mxu0 0
    %417 = vmatprep.subr.bf16.mxu0 0
    %418 = vmatpush1.bf16.msra.mxu0 0
    %419 = vmatprep.subr.bf16.mxu0 0
    %420 = vmatpush1.bf16.msra.mxu0 0
    %421 = vmatprep.mubr.bf16.mxu0 0
    %422 = vmatmul.mubr.bf16.gmra.mrb[0].mxu0 %v339
    %v423 = vpop.f32.mrb[0].mxu0
    %v424 = vadd.f32 0.0, %v423
    %v425 = vpop.f32.mrb[0].mxu0
    %v426 = vpop.f32.mrb[0].mxu0
    %v427 = vadd.f32 0.0, %v426
    %v428 = vpop.f32.mrb[0].mxu0
    %429 = vdwg.mxu0
    %430 = vmax.xlane.f32.xlu0 %v424
    %v431 = vpop.xlane.xlu0 %430
    %v432 = vsel %vm153, %v427, -inf
    %433 = vmax.xlane.f32.xlu0 %v432
    %v434 = vpop.xlane.xlu0 %433
    %v435 = vsub.f32 %v424, %v431
    %v436 = vsub.f32 %v427, %v434
    %v437 = vmul.f32 %v435, 1.442695
    %v438 = vpow.pop %v437
    %v439 = vmul.f32 %v436, 1.442695
    %v440 = vpow.pop %v439
    %441 = vadd.xlane.f32.xlu0 %v438
    %v442 = vpop.xlane.xlu0 %441
    %v443 = vsel %vm153, %v440, 0.0
    %444 = vadd.xlane.f32.xlu0 %v443
    %v445 = vpop.xlane.xlu0 %444
    %v446 = vlog2.pop %v442
    %v447 = vmul.f32 %v446, 0.6931472
    %v448 = vlog2.pop %v445
    %v449 = vmul.f32 %v448, 0.6931472
    %v450 = vadd.f32 %v431, %v447
    %v451 = vadd.f32 %v434, %v449
    %452 = vset.pattern.permute.xlu0 1
    %453 = vperm.xlu0 %452, %v22
    %v454 = vpop.permute.xlu0 %453
    %455 = vset.pattern.permute.xlu0 1
    %456 = vperm.xlu0 %455, %v23
    %v457 = vpop.permute.xlu0 %456
    %vm458 = vcmp.eq.s32.totalorder %v175, %v454
    %vm459 = vcmp.eq.s32.totalorder %v175, %v457
    %v460 = vsel %vm458, 1, 0
    %v461 = vsel %vm459, 1, 0
    %v462 = vcvt.s32.f32 %v460
    %v463 = vcvt.s32.f32 %v461
    %v464 = vmul.f32 %v424, %v462
    %v465 = vmul.f32 %v427, %v463
    %466 = vadd.xlane.f32.xlu0 %v464
    %v467 = vpop.xlane.xlu0 %466
    %v468 = vsel %vm153, %v465, 0.0
    %469 = vadd.xlane.f32.xlu0 %v468
    %v470 = vpop.xlane.xlu0 %469
    %v471 = vsub.f32 %v450, %v467
    %v472 = vsub.f32 %v451, %v470
    %v473 = vsel %vm195, %v471, 0.0
    %v474 = vsel %vm196, %v472, 0.0
    %477 = vrot.lane.b32.xlu0 %v473, 127
    %v478 = vpop.permute.xlu0 %477
    %479 = vrot.lane.b32.xlu0 %v474, 127
    %v480 = vpop.permute.xlu0 %479
    %v483 = vsel %vm201, %v478, 0.0
    %v484 = vsel %vm203, %v480, 0.0
    %v485 = vadd.f32 %v483, %v484
    %486 = vadd.xlane.f32.xlu0 %v485
    %v487 = vpop.xlane.xlu0 %486
    %v488 = vrot.slane %v487, 4
    %v489 = vadd.f32 %v487, %v488
    %v490 = vrot.slane %v489, 2
    %v491 = vadd.f32 %v489, %v490
    %v492 = vrot.slane %v491, 1
    %v493 = vadd.f32 %v491, %v492
    %s494 = vtos %v493
    %v495 = vstv %s494
    %498 = vrot.lane.b32.xlu0 %v218, 127
    %v499 = vpop.permute.xlu0 %498
    %500 = vrot.lane.b32.xlu0 %v219, 127
    %v501 = vpop.permute.xlu0 %500
    %v504 = vsel %vm201, %v499, 0.0
    %v505 = vsel %vm203, %v501, 0.0
    %v506 = vadd.f32 %v504, %v505
    %507 = vadd.xlane.f32.xlu0 %v506
    %v508 = vpop.xlane.xlu0 %507
    %v509 = vrot.slane %v508, 4
    %v510 = vadd.f32 %v508, %v509
    %v511 = vrot.slane %v510, 2
    %v512 = vadd.f32 %v510, %v511
    %v513 = vrot.slane %v512, 1
    %v514 = vadd.f32 %v512, %v513
    %s515 = vtos %v514
    %v516 = vstv %s515
    %v517 = vmax.f32 %v516, 1.0
    %v518 = vrcp.pop %v517
    %v519 = vmul.f32 %v495, %v518
    %v520 = vadd.f32 %v235, %v519
    %s521 = scalar_lea.vmem %s3, 64
    %v522 = vld [vmem:[%s521] sm:$0xf]
    %v523 = vld [vmem:[%s521 + $0x4] sm:$0xf]
    %v524 = vld [vmem:[%s521 + $0x8] sm:$0xf]
    %v525 = vld [vmem:[%s521 + $0xc] sm:$0xf]
    %v526 = vld [vmem:[%s521 + $0x10] sm:$0xf]
    %v527 = vld [vmem:[%s521 + $0x14] sm:$0xf]
    %v528 = vld [vmem:[%s521 + $0x18] sm:$0xf]
    %v529 = vld [vmem:[%s521 + $0x1c] sm:$0xf]
    %v530 = vld [vmem:[%s521 + $0x20] sm:$0xf]
    %v531 = vld [vmem:[%s521 + $0x24] sm:$0xf]
    %v532 = vld [vmem:[%s521 + $0x28] sm:$0xf]
    %v533 = vld [vmem:[%s521 + $0x2c] sm:$0xf]
    %v534 = vld [vmem:[%s521 + $0x30] sm:$0xf]
    %v535 = vld [vmem:[%s521 + $0x34] sm:$0xf]
    %v536 = vld [vmem:[%s521 + $0x38] sm:$0xf]
    %v537 = vld [vmem:[%s521 + $0x3c] sm:$0xf]
    %v538 = vrot.slane %v294, 2
    %v539 = vrot.slane %v295, 1
    %v540 = vsel %vm309, %v539, %v538
    %v541 = vsel %vm312, %v296, %v540
    %v542 = vrot.slane %v297, 7
    %v543 = vsel %vm315, %v542, %v541
    %v544 = vrot.slane %v298, 6
    %v545 = vsel %vm318, %v544, %v543
    %v546 = vrot.slane %v299, 5
    %v547 = vsel %vm321, %v546, %v545
    %v548 = vrot.slane %v300, 4
    %v549 = vsel %vm324, %v548, %v547
    %v550 = vrot.slane %v301, 3
    %v551 = vsel %vm327, %v550, %v549
    %v552 = vrot.slane %v302, 2
    %v553 = vrot.slane %v303, 1
    %v554 = vsel %vm309, %v553, %v552
    %v555 = vsel %vm312, %v304, %v554
    %v556 = vrot.slane %v305, 7
    %v557 = vsel %vm315, %v556, %v555
    %v558 = vrot.slane %v306, 6
    %v559 = vsel %vm318, %v558, %v557
    %v560 = vrot.slane %v307, 5
    %v561 = vsel %vm321, %v560, %v559
    %v562 = vpack.c.b16 %v561, %v551
    %v580 = vunpack.c.l.b16 %v522
    %v581 = vunpack.c.l.b16 %v523
    %v582 = vunpack.c.l.b16 %v524
    %v583 = vunpack.c.l.b16 %v525
    %v584 = vunpack.c.l.b16 %v526
    %v585 = vunpack.c.l.b16 %v527
    %v586 = vunpack.c.l.b16 %v528
    %v587 = vunpack.c.l.b16 %v529
    %v588 = vunpack.c.l.b16 %v530
    %v589 = vunpack.c.l.b16 %v531
    %v590 = vunpack.c.l.b16 %v532
    %v591 = vunpack.c.l.b16 %v533
    %v592 = vunpack.c.l.b16 %v534
    %v593 = vunpack.c.l.b16 %v535
    %v594 = vunpack.c.l.b16 %v536
    %v595 = vunpack.c.l.b16 %v537
    %v596 = vpack.c.b16 %v581, %v580
    %v597 = vpack.c.b16 %v583, %v582
    %v598 = vpack.c.b16 %v585, %v584
    %v599 = vpack.c.b16 %v587, %v586
    %v600 = vpack.c.b16 %v589, %v588
    %v601 = vpack.c.b16 %v591, %v590
    %v602 = vpack.c.b16 %v593, %v592
    %v603 = vpack.c.b16 %v595, %v594
    %612 = vmatprep.subr.bf16.mxu0 0
    %613 = vmatpush1.bf16.msra.mxu0 %v596
    %614 = vmatprep.subr.bf16.mxu0 0
    %615 = vmatpush1.bf16.msra.mxu0 %v597
    %616 = vmatprep.subr.bf16.mxu0 0
    %617 = vmatpush1.bf16.msra.mxu0 %v598
    %618 = vmatprep.subr.bf16.mxu0 0
    %619 = vmatpush1.bf16.msra.mxu0 %v599
    %620 = vmatprep.subr.bf16.mxu0 0
    %621 = vmatpush1.bf16.msra.mxu0 %v600
    %622 = vmatprep.subr.bf16.mxu0 0
    %623 = vmatpush1.bf16.msra.mxu0 %v601
    %624 = vmatprep.subr.bf16.mxu0 0
    %625 = vmatpush1.bf16.msra.mxu0 %v602
    %626 = vmatprep.subr.bf16.mxu0 0
    %627 = vmatpush1.bf16.msra.mxu0 %v603
    %628 = vmatprep.subr.bf16.mxu0 0
    %629 = vmatpush1.bf16.msra.mxu0 0
    %630 = vmatprep.subr.bf16.mxu0 0
    %631 = vmatpush1.bf16.msra.mxu0 0
    %632 = vmatprep.subr.bf16.mxu0 0
    %633 = vmatpush1.bf16.msra.mxu0 0
    %634 = vmatprep.subr.bf16.mxu0 0
    %635 = vmatpush1.bf16.msra.mxu0 0
    %636 = vmatprep.subr.bf16.mxu0 0
    %637 = vmatpush1.bf16.msra.mxu0 0
    %638 = vmatprep.subr.bf16.mxu0 0
    %639 = vmatpush1.bf16.msra.mxu0 0
    %640 = vmatprep.subr.bf16.mxu0 0
    %641 = vmatpush1.bf16.msra.mxu0 0
    %642 = vmatprep.subr.bf16.mxu0 0
    %643 = vmatpush1.bf16.msra.mxu0 0
    %644 = vmatprep.mubr.bf16.mxu0 0
    %645 = vmatmul.mubr.bf16.gmra.mrb[0].mxu0 %v562
    %v646 = vpop.f32.mrb[0].mxu0
    %v647 = vadd.f32 0.0, %v646
    %v648 = vpop.f32.mrb[0].mxu0
    %v649 = vpop.f32.mrb[0].mxu0
    %v650 = vadd.f32 0.0, %v649
    %v651 = vpop.f32.mrb[0].mxu0
    %652 = vdwg.mxu0
    %653 = vmax.xlane.f32.xlu0 %v647
    %v654 = vpop.xlane.xlu0 %653
    %v655 = vsel %vm153, %v650, -inf
    %656 = vmax.xlane.f32.xlu0 %v655
    %v657 = vpop.xlane.xlu0 %656
    %v658 = vsub.f32 %v647, %v654
    %v659 = vsub.f32 %v650, %v657
    %v660 = vmul.f32 %v658, 1.442695
    %v661 = vpow.pop %v660
    %v662 = vmul.f32 %v659, 1.442695
    %v663 = vpow.pop %v662
    %664 = vadd.xlane.f32.xlu0 %v661
    %v665 = vpop.xlane.xlu0 %664
    %v666 = vsel %vm153, %v663, 0.0
    %667 = vadd.xlane.f32.xlu0 %v666
    %v668 = vpop.xlane.xlu0 %667
    %v669 = vlog2.pop %v665
    %v670 = vmul.f32 %v669, 0.6931472
    %v671 = vlog2.pop %v668
    %v672 = vmul.f32 %v671, 0.6931472
    %v673 = vadd.f32 %v654, %v670
    %v674 = vadd.f32 %v657, %v672
    %675 = vset.pattern.permute.xlu0 2
    %676 = vperm.xlu0 %675, %v22
    %v677 = vpop.permute.xlu0 %676
    %678 = vset.pattern.permute.xlu0 2
    %679 = vperm.xlu0 %678, %v23
    %v680 = vpop.permute.xlu0 %679
    %vm681 = vcmp.eq.s32.totalorder %v175, %v677
    %vm682 = vcmp.eq.s32.totalorder %v175, %v680
    %v683 = vsel %vm681, 1, 0
    %v684 = vsel %vm682, 1, 0
    %v685 = vcvt.s32.f32 %v683
    %v686 = vcvt.s32.f32 %v684
    %v687 = vmul.f32 %v647, %v685
    %v688 = vmul.f32 %v650, %v686
    %689 = vadd.xlane.f32.xlu0 %v687
    %v690 = vpop.xlane.xlu0 %689
    %v691 = vsel %vm153, %v688, 0.0
    %692 = vadd.xlane.f32.xlu0 %v691
    %v693 = vpop.xlane.xlu0 %692
    %v694 = vsub.f32 %v673, %v690
    %v695 = vsub.f32 %v674, %v693
    %v696 = vsel %vm195, %v694, 0.0
    %v697 = vsel %vm196, %v695, 0.0
    %700 = vrot.lane.b32.xlu0 %v696, 126
    %v701 = vpop.permute.xlu0 %700
    %702 = vrot.lane.b32.xlu0 %v697, 126
    %v703 = vpop.permute.xlu0 %702
    %v706 = vsel %vm201, %v701, 0.0
    %v707 = vsel %vm203, %v703, 0.0
    %v708 = vadd.f32 %v706, %v707
    %709 = vadd.xlane.f32.xlu0 %v708
    %v710 = vpop.xlane.xlu0 %709
    %v711 = vrot.slane %v710, 4
    %v712 = vadd.f32 %v710, %v711
    %v713 = vrot.slane %v712, 2
    %v714 = vadd.f32 %v712, %v713
    %v715 = vrot.slane %v714, 1
    %v716 = vadd.f32 %v714, %v715
    %s717 = vtos %v716
    %v718 = vstv %s717
    %719 = vrot.lane.b32.xlu0 %v218, 126
    %v720 = vpop.permute.xlu0 %719
    %721 = vrot.lane.b32.xlu0 %v219, 126
    %v722 = vpop.permute.xlu0 %721
    %v725 = vsel %vm201, %v720, 0.0
    %v726 = vsel %vm203, %v722, 0.0
    %v727 = vadd.f32 %v725, %v726
    %728 = vadd.xlane.f32.xlu0 %v727
    %v729 = vpop.xlane.xlu0 %728
    %v730 = vrot.slane %v729, 4
    %v731 = vadd.f32 %v729, %v730
    %v732 = vrot.slane %v731, 2
    %v733 = vadd.f32 %v731, %v732
    %v734 = vrot.slane %v733, 1
    %v735 = vadd.f32 %v733, %v734
    %s736 = vtos %v735
    %v737 = vstv %s736
    %v738 = vmax.f32 %v737, 1.0
    %v739 = vrcp.pop %v738
    %v740 = vmul.f32 %v718, %v739
    %v741 = vadd.f32 %v520, %v740
    %s742 = scalar_lea.vmem %s3, 128
    %v743 = vld [vmem:[%s742] sm:$0xf]
    %v744 = vld [vmem:[%s742 + $0x4] sm:$0xf]
    %v745 = vld [vmem:[%s742 + $0x8] sm:$0xf]
    %v746 = vld [vmem:[%s742 + $0xc] sm:$0xf]
    %v747 = vld [vmem:[%s742 + $0x10] sm:$0xf]
    %v748 = vld [vmem:[%s742 + $0x14] sm:$0xf]
    %v749 = vld [vmem:[%s742 + $0x18] sm:$0xf]
    %v750 = vld [vmem:[%s742 + $0x1c] sm:$0xf]
    %v751 = vld [vmem:[%s742 + $0x20] sm:$0xf]
    %v752 = vld [vmem:[%s742 + $0x24] sm:$0xf]
    %v753 = vld [vmem:[%s742 + $0x28] sm:$0xf]
    %v754 = vld [vmem:[%s742 + $0x2c] sm:$0xf]
    %v755 = vld [vmem:[%s742 + $0x30] sm:$0xf]
    %v756 = vld [vmem:[%s742 + $0x34] sm:$0xf]
    %v757 = vld [vmem:[%s742 + $0x38] sm:$0xf]
    %v758 = vld [vmem:[%s742 + $0x3c] sm:$0xf]
    %v759 = vrot.slane %v294, 3
    %v760 = vrot.slane %v295, 2
    %v761 = vsel %vm309, %v760, %v759
    %v762 = vrot.slane %v296, 1
    %v763 = vsel %vm312, %v762, %v761
    %v764 = vsel %vm315, %v297, %v763
    %v765 = vrot.slane %v298, 7
    %v766 = vsel %vm318, %v765, %v764
    %v767 = vrot.slane %v299, 6
    %v768 = vsel %vm321, %v767, %v766
    %v769 = vrot.slane %v300, 5
    %v770 = vsel %vm324, %v769, %v768
    %v771 = vrot.slane %v301, 4
    %v772 = vsel %vm327, %v771, %v770
    %v773 = vrot.slane %v302, 3
    %v774 = vrot.slane %v303, 2
    %v775 = vsel %vm309, %v774, %v773
    %v776 = vrot.slane %v304, 1
    %v777 = vsel %vm312, %v776, %v775
    %v778 = vsel %vm315, %v305, %v777
    %v779 = vrot.slane %v306, 7
    %v780 = vsel %vm318, %v779, %v778
    %v781 = vrot.slane %v307, 6
    %v782 = vsel %vm321, %v781, %v780
    %v783 = vpack.c.b16 %v782, %v772
    %v801 = vunpack.c.l.b16 %v743
    %v802 = vunpack.c.l.b16 %v744
    %v803 = vunpack.c.l.b16 %v745
    %v804 = vunpack.c.l.b16 %v746
    %v805 = vunpack.c.l.b16 %v747
    %v806 = vunpack.c.l.b16 %v748
    %v807 = vunpack.c.l.b16 %v749
    %v808 = vunpack.c.l.b16 %v750
    %v809 = vunpack.c.l.b16 %v751
    %v810 = vunpack.c.l.b16 %v752
    %v811 = vunpack.c.l.b16 %v753
    %v812 = vunpack.c.l.b16 %v754
    %v813 = vunpack.c.l.b16 %v755
    %v814 = vunpack.c.l.b16 %v756
    %v815 = vunpack.c.l.b16 %v757
    %v816 = vunpack.c.l.b16 %v758
    %v817 = vpack.c.b16 %v802, %v801
    %v818 = vpack.c.b16 %v804, %v803
    %v819 = vpack.c.b16 %v806, %v805
    %v820 = vpack.c.b16 %v808, %v807
    %v821 = vpack.c.b16 %v810, %v809
    %v822 = vpack.c.b16 %v812, %v811
    %v823 = vpack.c.b16 %v814, %v813
    %v824 = vpack.c.b16 %v816, %v815
    %833 = vmatprep.subr.bf16.mxu0 0
    %834 = vmatpush1.bf16.msra.mxu0 %v817
    %835 = vmatprep.subr.bf16.mxu0 0
    %836 = vmatpush1.bf16.msra.mxu0 %v818
    %837 = vmatprep.subr.bf16.mxu0 0
    %838 = vmatpush1.bf16.msra.mxu0 %v819
    %839 = vmatprep.subr.bf16.mxu0 0
    %840 = vmatpush1.bf16.msra.mxu0 %v820
    %841 = vmatprep.subr.bf16.mxu0 0
    %842 = vmatpush1.bf16.msra.mxu0 %v821
    %843 = vmatprep.subr.bf16.mxu0 0
    %844 = vmatpush1.bf16.msra.mxu0 %v822
    %845 = vmatprep.subr.bf16.mxu0 0
    %846 = vmatpush1.bf16.msra.mxu0 %v823
    %847 = vmatprep.subr.bf16.mxu0 0
    %848 = vmatpush1.bf16.msra.mxu0 %v824
    %849 = vmatprep.subr.bf16.mxu0 0
    %850 = vmatpush1.bf16.msra.mxu0 0
    %851 = vmatprep.subr.bf16.mxu0 0
    %852 = vmatpush1.bf16.msra.mxu0 0
    %853 = vmatprep.subr.bf16.mxu0 0
    %854 = vmatpush1.bf16.msra.mxu0 0
    %855 = vmatprep.subr.bf16.mxu0 0
    %856 = vmatpush1.bf16.msra.mxu0 0
    %857 = vmatprep.subr.bf16.mxu0 0
    %858 = vmatpush1.bf16.msra.mxu0 0
    %859 = vmatprep.subr.bf16.mxu0 0
    %860 = vmatpush1.bf16.msra.mxu0 0
    %861 = vmatprep.subr.bf16.mxu0 0
    %862 = vmatpush1.bf16.msra.mxu0 0
    %863 = vmatprep.subr.bf16.mxu0 0
    %864 = vmatpush1.bf16.msra.mxu0 0
    %865 = vmatprep.mubr.bf16.mxu0 0
    %866 = vmatmul.mubr.bf16.gmra.mrb[0].mxu0 %v783
    %v867 = vpop.f32.mrb[0].mxu0
    %v868 = vadd.f32 0.0, %v867
    %v869 = vpop.f32.mrb[0].mxu0
    %v870 = vpop.f32.mrb[0].mxu0
    %v871 = vadd.f32 0.0, %v870
    %v872 = vpop.f32.mrb[0].mxu0
    %873 = vdwg.mxu0
    %874 = vmax.xlane.f32.xlu0 %v868
    %v875 = vpop.xlane.xlu0 %874
    %v876 = vsel %vm153, %v871, -inf
    %877 = vmax.xlane.f32.xlu0 %v876
    %v878 = vpop.xlane.xlu0 %877
    %v879 = vsub.f32 %v868, %v875
    %v880 = vsub.f32 %v871, %v878
    %v881 = vmul.f32 %v879, 1.442695
    %v882 = vpow.pop %v881
    %v883 = vmul.f32 %v880, 1.442695
    %v884 = vpow.pop %v883
    %885 = vadd.xlane.f32.xlu0 %v882
    %v886 = vpop.xlane.xlu0 %885
    %v887 = vsel %vm153, %v884, 0.0
    %888 = vadd.xlane.f32.xlu0 %v887
    %v889 = vpop.xlane.xlu0 %888
    %v890 = vlog2.pop %v886
    %v891 = vmul.f32 %v890, 0.6931472
    %v892 = vlog2.pop %v889
    %v893 = vmul.f32 %v892, 0.6931472
    %v894 = vadd.f32 %v875, %v891
    %v895 = vadd.f32 %v878, %v893
    %896 = vset.pattern.permute.xlu0 3
    %897 = vperm.xlu0 %896, %v22
    %v898 = vpop.permute.xlu0 %897
    %899 = vset.pattern.permute.xlu0 3
    %900 = vperm.xlu0 %899, %v23
    %v901 = vpop.permute.xlu0 %900
    %vm902 = vcmp.eq.s32.totalorder %v175, %v898
    %vm903 = vcmp.eq.s32.totalorder %v175, %v901
    %v904 = vsel %vm902, 1, 0
    %v905 = vsel %vm903, 1, 0
    %v906 = vcvt.s32.f32 %v904
    %v907 = vcvt.s32.f32 %v905
    %v908 = vmul.f32 %v868, %v906
    %v909 = vmul.f32 %v871, %v907
    %910 = vadd.xlane.f32.xlu0 %v908
    %v911 = vpop.xlane.xlu0 %910
    %v912 = vsel %vm153, %v909, 0.0
    %913 = vadd.xlane.f32.xlu0 %v912
    %v914 = vpop.xlane.xlu0 %913
    %v915 = vsub.f32 %v894, %v911
    %v916 = vsub.f32 %v895, %v914
    %v917 = vsel %vm195, %v915, 0.0
    %v918 = vsel %vm196, %v916, 0.0
    %921 = vrot.lane.b32.xlu0 %v917, 125
    %v922 = vpop.permute.xlu0 %921
    %923 = vrot.lane.b32.xlu0 %v918, 125
    %v924 = vpop.permute.xlu0 %923
    %v927 = vsel %vm201, %v922, 0.0
    %v928 = vsel %vm203, %v924, 0.0
    %v929 = vadd.f32 %v927, %v928
    %930 = vadd.xlane.f32.xlu0 %v929
    %v931 = vpop.xlane.xlu0 %930
    %v932 = vrot.slane %v931, 4
    %v933 = vadd.f32 %v931, %v932
    %v934 = vrot.slane %v933, 2
    %v935 = vadd.f32 %v933, %v934
    %v936 = vrot.slane %v935, 1
    %v937 = vadd.f32 %v935, %v936
    %s938 = vtos %v937
    %v939 = vstv %s938
    %940 = vrot.lane.b32.xlu0 %v218, 125
    %v941 = vpop.permute.xlu0 %940
    %942 = vrot.lane.b32.xlu0 %v219, 125
    %v943 = vpop.permute.xlu0 %942
    %v946 = vsel %vm201, %v941, 0.0
    %v947 = vsel %vm203, %v943, 0.0
    %v948 = vadd.f32 %v946, %v947
    %949 = vadd.xlane.f32.xlu0 %v948
    %v950 = vpop.xlane.xlu0 %949
    %v951 = vrot.slane %v950, 4
    %v952 = vadd.f32 %v950, %v951
    %v953 = vrot.slane %v952, 2
    %v954 = vadd.f32 %v952, %v953
    %v955 = vrot.slane %v954, 1
    %v956 = vadd.f32 %v954, %v955
    %s957 = vtos %v956
    %v958 = vstv %s957
    %v959 = vmax.f32 %v958, 1.0
    %v960 = vrcp.pop %v959
    %v961 = vmul.f32 %v939, %v960
    %v962 = vadd.f32 %v741, %v961
    %vm963 = vcmask 0
    %964 = vst.msk [vmem:[#allocation2] sm:$0x1] %vm963, %v962
    // Predicated region
    $region22: #{tts_forward.5} parent=1 // pred_check
      _
    $region23: #{tts_forward.5} parent=1 // pred_check_branch
      %966 = sbr.rel (0) target = $region25
    $region24: #{tts_forward.5} parent=1 // pred_region
      %s968 = ssub.s32 16, 16
      %969 = vsyncadd [#allocation3], %s968
      %s971 = sshll.u32 [#allocation2], 4
      %s972 = int_to_ptr.vmem [resolvable:$true] %s971
      %974 = dma.vmem_to_hbm [thread:$0]  %s972, 16, %s5, [#allocation3]
    $region25: #{tts_forward.5} parent=1 // pred_fallthru
      _
    // Predicated region
    $region26: #{tts_forward.5} parent=1 // pred_check
      _
    $region27: #{tts_forward.5} parent=1 // pred_check_branch
      %976 = sbr.rel (0) target = $region29
    $region28: #{tts_forward.5} parent=1 // pred_region
      %977 = dma.done [#allocation3], 16
    $region29: #{tts_forward.5} parent=1 // pred_fallthru
      _
    %978 = vsyncpa [#allocation3], 1

// kernel: tts_forward.3
$region0: #{tts_forward.3}
  #allocation0 [shape = 'u32[]', space=smem, size = 0x4, offset = 0x4, fixed_abs, tag = 'smem constant byte address 0x4 - core index']
  #allocation1 [shape = 'u32[144,128]{1,0:T(1,128)}', space=vmem, size = 0x12000, scoped, tag = 'internal scratch']
  %s0 = inlined_call_operand.vmem [shape: bf16[2,8,128], index: 0, kind: input, shape index: {}]
  %s1 = inlined_call_operand.vmem [shape: f32[1,128], index: 1, kind: input, shape index: {}]
  %s2 = inlined_call_operand.vmem [shape: f32[1,128], index: 2, kind: input, shape index: {}]
  %s3 = inlined_call_operand.vmem [shape: f32[1,128], index: 3, kind: input, shape index: {}]
  %s4 = inlined_call_operand.vmem [shape: bf16[128,384], index: 4, kind: input, shape index: {}]
  %s5 = inlined_call_operand.hbm [shape: bf16[128,128], index: 5, kind: input, shape index: {}]
  %s6 = inlined_call_operand.vmem [shape: bf16[128,512], index: 6, kind: input, shape index: {}]
  %s7 = inlined_call_operand.vmem [shape: bf16[256,128], index: 7, kind: input, shape index: {}]
  %s8 = inlined_call_operand.vmem [shape: bf16[2,8,128], index: 8, kind: output, shape index: {}]
  %s9 = sld [smem:[#allocation0]]
  $region46: #{tts_forward.3} parent=0
    _
  %s11 = ssub.s32 1, %s9
  %s12 = scalar_select 0, %s11, %s9
  $region1: #{tts_forward.3} parent=0
    #allocation2 [shape = 'u8[32768]{0}', space=vmem, size = 0x8000, scoped, tag = 'input window, operand 5, single buffered']
    #allocation3 [shape = 's32[1]{0}', space=sflag, size = 0x4, scoped, tag = 'scoped memory for tts_forward.3']
    %13 = vsyncpa [#allocation3], 0
    // Predicated region
    $region2: #{tts_forward.3} parent=1 // pred_check
      _
    $region3: #{tts_forward.3} parent=1 // pred_check_branch
      %15 = sbr.rel (0) target = $region5
    $region4: #{tts_forward.3} parent=1 // pred_region
      _
    $region5: #{tts_forward.3} parent=1 // pred_fallthru
      _
    // Predicated region
    $region6: #{tts_forward.3} parent=1 // pred_check
      _
    $region7: #{tts_forward.3} parent=1 // pred_check_branch
      %17 = sbr.rel (0) target = $region9
    $region8: #{tts_forward.3} parent=1 // pred_region
      _
    $region9: #{tts_forward.3} parent=1 // pred_fallthru
      _
    // Predicated region
    $region10: #{tts_forward.3} parent=1 // pred_check
      _
    $region11: #{tts_forward.3} parent=1 // pred_check_branch
      %19 = sbr.rel (0) target = $region13
    $region12: #{tts_forward.3} parent=1 // pred_region
      _
    $region13: #{tts_forward.3} parent=1 // pred_fallthru
      _
    // Predicated region
    $region14: #{tts_forward.3} parent=1 // pred_check
      _
    $region15: #{tts_forward.3} parent=1 // pred_check_branch
      %21 = sbr.rel (0) target = $region17
    $region16: #{tts_forward.3} parent=1 // pred_region
      _
    $region17: #{tts_forward.3} parent=1 // pred_fallthru
      _
    // Predicated region
    $region18: #{tts_forward.3} parent=1 // pred_check
      _
    $region19: #{tts_forward.3} parent=1 // pred_check_branch
      %23 = sbr.rel (0) target = $region21
    $region20: #{tts_forward.3} parent=1 // pred_region
      _
    $region21: #{tts_forward.3} parent=1 // pred_fallthru
      _
    // Predicated region
    $region22: #{tts_forward.3} parent=1 // pred_check
      _
    $region23: #{tts_forward.3} parent=1 // pred_check_branch
      %25 = sbr.rel (0) target = $region25
    $region24: #{tts_forward.3} parent=1 // pred_region
      %s27 = ssub.s32 1024, 1024
      %28 = vsyncadd [#allocation3], %s27
      %s29 = sshll.u32 [#allocation2], 4
      %s30 = int_to_ptr.vmem [resolvable:$true] %s29
      %35 = dma.hbm_to_vmem [thread:$0]  %s5, 1024, %s30, [#allocation3], 64, 64, 4
    $region25: #{tts_forward.3} parent=1 // pred_fallthru
      _
    // Predicated region
    $region26: #{tts_forward.3} parent=1 // pred_check
      _
    $region27: #{tts_forward.3} parent=1 // pred_check_branch
      %37 = sbr.rel (0) target = $region29
    $region28: #{tts_forward.3} parent=1 // pred_region
      _
    $region29: #{tts_forward.3} parent=1 // pred_fallthru
      _
    // Predicated region
    $region30: #{tts_forward.3} parent=1 // pred_check
      _
    $region31: #{tts_forward.3} parent=1 // pred_check_branch
      %39 = sbr.rel (0) target = $region33
    $region32: #{tts_forward.3} parent=1 // pred_region
      _
    $region33: #{tts_forward.3} parent=1 // pred_fallthru
      _
    // Predicated region
    $region34: #{tts_forward.3} parent=1 // pred_check
      _
    $region35: #{tts_forward.3} parent=1 // pred_check_branch
      %41 = sbr.rel (0) target = $region37
    $region36: #{tts_forward.3} parent=1 // pred_region
      %42 = dma.done [#allocation3], 1024
    $region37: #{tts_forward.3} parent=1 // pred_fallthru
      _
    %v44 = vld [vmem:[%s0] sm:$0xf]
    %v45 = vld [vmem:[%s0 + $0x4] sm:$0xf]
    %v46 = vunpack.c.l.bf16 %v44
    %v47 = vunpack.c.l.bf16 %v45
    %v48 = vld [vmem:[%s1] sm:$0x1]
    %v49 = vld [vmem:[%s2] sm:$0x1]
    %v50 = vld [vmem:[%s3] sm:$0x1]
    %v51 = vld [vmem:[%s4] sm:$0xff]
    %v52 = vld [vmem:[%s4 + $0x8] sm:$0xf]
    %v53 = vld [vmem:[%s4 + $0xc] sm:$0xff]
    %v54 = vld [vmem:[%s4 + $0x14] sm:$0xf]
    %v55 = vld [vmem:[%s4 + $0x18] sm:$0xff]
    %v56 = vld [vmem:[%s4 + $0x20] sm:$0xf]
    %v57 = vld [vmem:[%s4 + $0x24] sm:$0xff]
    %v58 = vld [vmem:[%s4 + $0x2c] sm:$0xf]
    %v59 = vld [vmem:[%s4 + $0x30] sm:$0xff]
    %v60 = vld [vmem:[%s4 + $0x38] sm:$0xf]
    %v61 = vld [vmem:[%s4 + $0x3c] sm:$0xff]
    %v62 = vld [vmem:[%s4 + $0x44] sm:$0xf]
    %v63 = vld [vmem:[%s4 + $0x48] sm:$0xff]
    %v64 = vld [vmem:[%s4 + $0x50] sm:$0xf]
    %v65 = vld [vmem:[%s4 + $0x54] sm:$0xff]
    %v66 = vld [vmem:[%s4 + $0x5c] sm:$0xf]
    %v67 = vld [vmem:[%s4 + $0x60] sm:$0xff]
    %v68 = vld [vmem:[%s4 + $0x68] sm:$0xf]
    %v69 = vld [vmem:[%s4 + $0x6c] sm:$0xff]
    %v70 = vld [vmem:[%s4 + $0x74] sm:$0xf]
    %v71 = vld [vmem:[%s4 + $0x78] sm:$0xff]
    %v72 = vld [vmem:[%s4 + $0x80] sm:$0xf]
    %v73 = vld [vmem:[%s4 + $0x84] sm:$0xff]
    %v74 = vld [vmem:[%s4 + $0x8c] sm:$0xf]
    %v75 = vld [vmem:[%s4 + $0x90] sm:$0xff]
    %v76 = vld [vmem:[%s4 + $0x98] sm:$0xf]
    %v77 = vld [vmem:[%s4 + $0x9c] sm:$0xff]
    %v78 = vld [vmem:[%s4 + $0xa4] sm:$0xf]
    %v79 = vld [vmem:[%s4 + $0xa8] sm:$0xff]
    %v80 = vld [vmem:[%s4 + $0xb0] sm:$0xf]
    %v81 = vld [vmem:[%s4 + $0xb4] sm:$0xff]
    %v82 = vld [vmem:[%s4 + $0xbc] sm:$0xf]
    %v83 = vld [vmem:[#allocation2] sm:$0xf]
    %v84 = vld [vmem:[#allocation2 + $0x4] sm:$0xf]
    %v85 = vld [vmem:[#allocation2 + $0x8] sm:$0xf]
    %v86 = vld [vmem:[#allocation2 + $0xc] sm:$0xf]
    %v87 = vld [vmem:[#allocation2 + $0x10] sm:$0xf]
    %v88 = vld [vmem:[#allocation2 + $0x14] sm:$0xf]
    %v89 = vld [vmem:[#allocation2 + $0x18] sm:$0xf]
    %v90 = vld [vmem:[#allocation2 + $0x1c] sm:$0xf]
    %v91 = vld [vmem:[#allocation2 + $0x20] sm:$0xf]
    %v92 = vld [vmem:[#allocation2 + $0x24] sm:$0xf]
    %v93 = vld [vmem:[#allocation2 + $0x28] sm:$0xf]
    %v94 = vld [vmem:[#allocation2 + $0x2c] sm:$0xf]
    %v95 = vld [vmem:[#allocation2 + $0x30] sm:$0xf]
    %v96 = vld [vmem:[#allocation2 + $0x34] sm:$0xf]
    %v97 = vld [vmem:[#allocation2 + $0x38] sm:$0xf]
    %v98 = vld [vmem:[#allocation2 + $0x3c] sm:$0xf]
    %v99 = vld [vmem:[%s6] sm:$0xff]
    %v100 = vld [vmem:[%s6 + $0x8] sm:$0xff]
    %v101 = vld [vmem:[%s6 + $0x10] sm:$0xff]
    %v102 = vld [vmem:[%s6 + $0x18] sm:$0xff]
    %v103 = vld [vmem:[%s6 + $0x20] sm:$0xff]
    %v104 = vld [vmem:[%s6 + $0x28] sm:$0xff]
    %v105 = vld [vmem:[%s6 + $0x30] sm:$0xff]
    %v106 = vld [vmem:[%s6 + $0x38] sm:$0xff]
    %v107 = vld [vmem:[%s6 + $0x40] sm:$0xff]
    %v108 = vld [vmem:[%s6 + $0x48] sm:$0xff]
    %v109 = vld [vmem:[%s6 + $0x50] sm:$0xff]
    %v110 = vld [vmem:[%s6 + $0x58] sm:$0xff]
    %v111 = vld [vmem:[%s6 + $0x60] sm:$0xff]
    %v112 = vld [vmem:[%s6 + $0x68] sm:$0xff]
    %v113 = vld [vmem:[%s6 + $0x70] sm:$0xff]
    %v114 = vld [vmem:[%s6 + $0x78] sm:$0xff]
    %v115 = vld [vmem:[%s6 + $0x80] sm:$0xff]
    %v116 = vld [vmem:[%s6 + $0x88] sm:$0xff]
    %v117 = vld [vmem:[%s6 + $0x90] sm:$0xff]
    %v118 = vld [vmem:[%s6 + $0x98] sm:$0xff]
    %v119 = vld [vmem:[%s6 + $0xa0] sm:$0xff]
    %v120 = vld [vmem:[%s6 + $0xa8] sm:$0xff]
    %v121 = vld [vmem:[%s6 + $0xb0] sm:$0xff]
    %v122 = vld [vmem:[%s6 + $0xb8] sm:$0xff]
    %v123 = vld [vmem:[%s6 + $0xc0] sm:$0xff]
    %v124 = vld [vmem:[%s6 + $0xc8] sm:$0xff]
    %v125 = vld [vmem:[%s6 + $0xd0] sm:$0xff]
    %v126 = vld [vmem:[%s6 + $0xd8] sm:$0xff]
    %v127 = vld [vmem:[%s6 + $0xe0] sm:$0xff]
    %v128 = vld [vmem:[%s6 + $0xe8] sm:$0xff]
    %v129 = vld [vmem:[%s6 + $0xf0] sm:$0xff]
    %v130 = vld [vmem:[%s6 + $0xf8] sm:$0xff]
    %v131 = vld [vmem:[%s7] sm:$0xf]
    %v132 = vld [vmem:[%s7 + $0x4] sm:$0xf]
    %v133 = vld [vmem:[%s7 + $0x8] sm:$0xf]
    %v134 = vld [vmem:[%s7 + $0xc] sm:$0xf]
    %v135 = vld [vmem:[%s7 + $0x10] sm:$0xf]
    %v136 = vld [vmem:[%s7 + $0x14] sm:$0xf]
    %v137 = vld [vmem:[%s7 + $0x18] sm:$0xf]
    %v138 = vld [vmem:[%s7 + $0x1c] sm:$0xf]
    %v139 = vld [vmem:[%s7 + $0x20] sm:$0xf]
    %v140 = vld [vmem:[%s7 + $0x24] sm:$0xf]
    %v141 = vld [vmem:[%s7 + $0x28] sm:$0xf]
    %v142 = vld [vmem:[%s7 + $0x2c] sm:$0xf]
    %v143 = vld [vmem:[%s7 + $0x30] sm:$0xf]
    %v144 = vld [vmem:[%s7 + $0x34] sm:$0xf]
    %v145 = vld [vmem:[%s7 + $0x38] sm:$0xf]
    %v146 = vld [vmem:[%s7 + $0x3c] sm:$0xf]
    %v147 = vld [vmem:[%s7 + $0x40] sm:$0xf]
    %v148 = vld [vmem:[%s7 + $0x44] sm:$0xf]
    %v149 = vld [vmem:[%s7 + $0x48] sm:$0xf]
    %v150 = vld [vmem:[%s7 + $0x4c] sm:$0xf]
    %v151 = vld [vmem:[%s7 + $0x50] sm:$0xf]
    %v152 = vld [vmem:[%s7 + $0x54] sm:$0xf]
    %v153 = vld [vmem:[%s7 + $0x58] sm:$0xf]
    %v154 = vld [vmem:[%s7 + $0x5c] sm:$0xf]
    %v155 = vld [vmem:[%s7 + $0x60] sm:$0xf]
    %v156 = vld [vmem:[%s7 + $0x64] sm:$0xf]
    %v157 = vld [vmem:[%s7 + $0x68] sm:$0xf]
    %v158 = vld [vmem:[%s7 + $0x6c] sm:$0xf]
    %v159 = vld [vmem:[%s7 + $0x70] sm:$0xf]
    %v160 = vld [vmem:[%s7 + $0x74] sm:$0xf]
    %v161 = vld [vmem:[%s7 + $0x78] sm:$0xf]
    %v162 = vld [vmem:[%s7 + $0x7c] sm:$0xf]
    %v163 = vmul.f32 %v46, %v46
    %v164 = vmul.f32 %v47, %v47
    %165 = vadd.xlane.f32.xlu0 %v163
    %v166 = vpop.xlane.xlu0 %165
    %167 = vadd.xlane.f32.xlu0 %v164
    %v168 = vpop.xlane.xlu0 %167
    %v169 = vrcp.pop 128.0
    %v170 = vmul.f32 %v166, %v169
    %v171 = vmul.f32 %v168, %v169
    %v172 = vadd.f32 %v170, 1e-05
    %v173 = vadd.f32 %v171, 1e-05
    %v174 = vrsqrt.pop %v172
    %v175 = vrsqrt.pop %v173
    %v176 = vmul.f32 %v46, %v174
    %v177 = vmul.f32 %v47, %v175
    %v179 = vlaneseq
    %v180 = vshrl.u32 %v179, 7
    %v181 = vsub.s32 0, %v180
    %v182 = vrot.slane %v48, %v181
    %v184 = vmul.f32 %v176, %v182
    %v185 = vmul.f32 %v177, %v182
    %v186 = vpack.c.bf16 %v185, %v184
    %v219 = vunpack.c.l.b16 %v51
    %v220 = vunpack.c.h.b16 %v51
    %v221 = vunpack.c.l.b16 %v52
    %v222 = vunpack.c.l.b16 %v53
    %v223 = vunpack.c.h.b16 %v53
    %v224 = vunpack.c.l.b16 %v54
    %v225 = vunpack.c.l.b16 %v55
    %v226 = vunpack.c.h.b16 %v55
    %v227 = vunpack.c.l.b16 %v56
    %v228 = vunpack.c.l.b16 %v57
    %v229 = vunpack.c.h.b16 %v57
    %v230 = vunpack.c.l.b16 %v58
    %v231 = vunpack.c.l.b16 %v59
    %v232 = vunpack.c.h.b16 %v59
    %v233 = vunpack.c.l.b16 %v60
    %v234 = vunpack.c.l.b16 %v61
    %v235 = vunpack.c.h.b16 %v61
    %v236 = vunpack.c.l.b16 %v62
    %v237 = vunpack.c.l.b16 %v63
    %v238 = vunpack.c.h.b16 %v63
    %v239 = vunpack.c.l.b16 %v64
    %v240 = vunpack.c.l.b16 %v65
    %v241 = vunpack.c.h.b16 %v65
    %v242 = vunpack.c.l.b16 %v66
    %v243 = vunpack.c.l.b16 %v67
    %v244 = vunpack.c.h.b16 %v67
    %v245 = vunpack.c.l.b16 %v68
    %v246 = vunpack.c.l.b16 %v69
    %v247 = vunpack.c.h.b16 %v69
    %v248 = vunpack.c.l.b16 %v70
    %v249 = vunpack.c.l.b16 %v71
    %v250 = vunpack.c.h.b16 %v71
    %v251 = vunpack.c.l.b16 %v72
    %v252 = vunpack.c.l.b16 %v73
    %v253 = vunpack.c.h.b16 %v73
    %v254 = vunpack.c.l.b16 %v74
    %v255 = vunpack.c.l.b16 %v75
    %v256 = vunpack.c.h.b16 %v75
    %v257 = vunpack.c.l.b16 %v76
    %v258 = vunpack.c.l.b16 %v77
    %v259 = vunpack.c.h.b16 %v77
    %v260 = vunpack.c.l.b16 %v78
    %v261 = vunpack.c.l.b16 %v79
    %v262 = vunpack.c.h.b16 %v79
    %v263 = vunpack.c.l.b16 %v80
    %v264 = vunpack.c.l.b16 %v81
    %v265 = vunpack.c.h.b16 %v81
    %v266 = vunpack.c.l.b16 %v82
    %v267 = vpack.c.b16 %v222, %v219
    %v268 = vpack.c.b16 %v223, %v220
    %v269 = vpack.c.b16 %v224, %v221
    %v270 = vpack.c.b16 %v228, %v225
    %v271 = vpack.c.b16 %v229, %v226
    %v272 = vpack.c.b16 %v230, %v227
    %v273 = vpack.c.b16 %v234, %v231
    %v274 = vpack.c.b16 %v235, %v232
    %v275 = vpack.c.b16 %v236, %v233
    %v276 = vpack.c.b16 %v240, %v237
    %v277 = vpack.c.b16 %v241, %v238
    %v278 = vpack.c.b16 %v242, %v239
    %v279 = vpack.c.b16 %v246, %v243
    %v280 = vpack.c.b16 %v247, %v244
    %v281 = vpack.c.b16 %v248, %v245
    %v282 = vpack.c.b16 %v252, %v249
    %v283 = vpack.c.b16 %v253, %v250
    %v284 = vpack.c.b16 %v254, %v251
    %v285 = vpack.c.b16 %v258, %v255
    %v286 = vpack.c.b16 %v259, %v256
    %v287 = vpack.c.b16 %v260, %v257
    %v288 = vpack.c.b16 %v264, %v261
    %v289 = vpack.c.b16 %v265, %v262
    %v290 = vpack.c.b16 %v266, %v263
    %315 = vmatprep.subr.bf16.mxu0 %v268
    %316 = vmatpush1.bf16.msra.mxu0 %v267
    %317 = vmatprep.subr.bf16.mxu0 %v271
    %318 = vmatpush1.bf16.msra.mxu0 %v270
    %319 = vmatprep.subr.bf16.mxu0 %v274
    %320 = vmatpush1.bf16.msra.mxu0 %v273
    %321 = vmatprep.subr.bf16.mxu0 %v277
    %322 = vmatpush1.bf16.msra.mxu0 %v276
    %323 = vmatprep.subr.bf16.mxu0 %v280
    %324 = vmatpush1.bf16.msra.mxu0 %v279
    %325 = vmatprep.subr.bf16.mxu0 %v283
    %326 = vmatpush1.bf16.msra.mxu0 %v282
    %327 = vmatprep.subr.bf16.mxu0 %v286
    %328 = vmatpush1.bf16.msra.mxu0 %v285
    %329 = vmatprep.subr.bf16.mxu0 %v289
    %330 = vmatpush1.bf16.msra.mxu0 %v288
    %331 = vmatprep.subr.bf16.mxu0 0
    %332 = vmatpush1.bf16.msra.mxu0 0
    %333 = vmatprep.subr.bf16.mxu0 0
    %334 = vmatpush1.bf16.msra.mxu0 0
    %335 = vmatprep.subr.bf16.mxu0 0
    %336 = vmatpush1.bf16.msra.mxu0 0
    %337 = vmatprep.subr.bf16.mxu0 0
    %338 = vmatpush1.bf16.msra.mxu0 0
    %339 = vmatprep.subr.bf16.mxu0 0
    %340 = vmatpush1.bf16.msra.mxu0 0
    %341 = vmatprep.subr.bf16.mxu0 0
    %342 = vmatpush1.bf16.msra.mxu0 0
    %343 = vmatprep.subr.bf16.mxu0 0
    %344 = vmatpush1.bf16.msra.mxu0 0
    %345 = vmatprep.subr.bf16.mxu0 0
    %346 = vmatpush1.bf16.msra.mxu0 0
    %347 = vmatprep.mubr.bf16.mxu0 0
    %348 = vmatmul.mubr.bf16.gmra.mrb[0].mxu0 %v186
    %v349 = vpop.f32.mrb[0].mxu0
    %v350 = vadd.f32 0.0, %v349
    %v351 = vpop.f32.mrb[0].mxu0
    %v352 = vadd.f32 0.0, %v351
    %v353 = vpop.f32.mrb[0].mxu0
    %v354 = vadd.f32 0.0, %v353
    %v355 = vpop.f32.mrb[0].mxu0
    %v356 = vadd.f32 0.0, %v355
    %357 = vdwg.mxu0
    %358 = vmatprep.subr.bf16.mxu0 0
    %359 = vmatpush1.bf16.msra.mxu0 %v269
    %360 = vmatprep.subr.bf16.mxu0 0
    %361 = vmatpush1.bf16.msra.mxu0 %v272
    %362 = vmatprep.subr.bf16.mxu0 0
    %363 = vmatpush1.bf16.msra.mxu0 %v275
    %364 = vmatprep.subr.bf16.mxu0 0
    %365 = vmatpush1.bf16.msra.mxu0 %v278
    %366 = vmatprep.subr.bf16.mxu0 0
    %367 = vmatpush1.bf16.msra.mxu0 %v281
    %368 = vmatprep.subr.bf16.mxu0 0
    %369 = vmatpush1.bf16.msra.mxu0 %v284
    %370 = vmatprep.subr.bf16.mxu0 0
    %371 = vmatpush1.bf16.msra.mxu0 %v287
    %372 = vmatprep.subr.bf16.mxu0 0
    %373 = vmatpush1.bf16.msra.mxu0 %v290
    %374 = vmatprep.subr.bf16.mxu0 0
    %375 = vmatpush1.bf16.msra.mxu0 0
    %376 = vmatprep.subr.bf16.mxu0 0
    %377 = vmatpush1.bf16.msra.mxu0 0
    %378 = vmatprep.subr.bf16.mxu0 0
    %379 = vmatpush1.bf16.msra.mxu0 0
    %380 = vmatprep.subr.bf16.mxu0 0
    %381 = vmatpush1.bf16.msra.mxu0 0
    %382 = vmatprep.subr.bf16.mxu0 0
    %383 = vmatpush1.bf16.msra.mxu0 0
    %384 = vmatprep.subr.bf16.mxu0 0
    %385 = vmatpush1.bf16.msra.mxu0 0
    %386 = vmatprep.subr.bf16.mxu0 0
    %387 = vmatpush1.bf16.msra.mxu0 0
    %388 = vmatprep.subr.bf16.mxu0 0
    %389 = vmatpush1.bf16.msra.mxu0 0
    %390 = vmatprep.mubr.bf16.mxu0 0
    %391 = vmatmul.mubr.bf16.gmra.mrb[0].mxu0 %v186
    %v392 = vpop.f32.mrb[0].mxu0
    %v393 = vadd.f32 0.0, %v392
    %v394 = vpop.f32.mrb[0].mxu0
    %v395 = vpop.f32.mrb[0].mxu0
    %v396 = vadd.f32 0.0, %v395
    %v397 = vpop.f32.mrb[0].mxu0
    %398 = vdwg.mxu0
    %v399 = vpack.c.bf16 %v354, %v350
    %v400 = vpack.c.bf16 %v356, %v352
    %v401 = vpack.c.bf16 %v396, %v393
    %v402 = vlaneseq
    %v403 = vshrl.u32 %v402, 7
    %v404 = vlaneseq
    %v405 = vand.u32 %v404, 127
    %vm406 = vcmp.le.s32.totalorder %v405, %v403
    %v408 = vunpack.c.l.b16 %v399
    %v409 = vunpack.c.h.b16 %v399
    %v410 = vpack.c.b16 %v408, %v408
    %v411 = vpack.c.b16 %v409, %v409
    %v413 = vunpack.c.l.b16 %v400
    %v414 = vunpack.c.h.b16 %v400
    %v415 = vpack.c.b16 %v413, %v413
    %v416 = vpack.c.b16 %v414, %v414
    %v418 = vunpack.c.l.b16 %v401
    %v419 = vunpack.c.h.b16 %v401
    %v420 = vpack.c.b16 %v418, %v418
    %v421 = vpack.c.b16 %v419, %v419
    %vm422 = vcmask 523264
    %v424 = vsel %vm422, %v410, 0
    %v427 = vsel %vm422, %v415, 0
    %429 = vmatprep.subr.bf16.mxu0 0
    %430 = vmatpush1.bf16.xpose.msra.mxu0 %v427
    %431 = vmatprep.subr.bf16.mxu0 0
    %432 = vmatpush1.bf16.xpose.msra.mxu0 0
    %433 = vmatprep.subr.bf16.mxu0 0
    %434 = vmatpush1.bf16.xpose.msra.mxu0 0
    %435 = vmatprep.subr.bf16.mxu0 0
    %436 = vmatpush1.bf16.xpose.msra.mxu0 0
    %437 = vmatprep.subr.bf16.mxu0 0
    %438 = vmatpush1.bf16.xpose.msra.mxu0 0
    %439 = vmatprep.subr.bf16.mxu0 0
    %440 = vmatpush1.bf16.xpose.msra.mxu0 0
    %441 = vmatprep.subr.bf16.mxu0 0
    %442 = vmatpush1.bf16.xpose.msra.mxu0 0
    %443 = vmatprep.subr.bf16.mxu0 0
    %444 = vmatpush1.bf16.xpose.msra.mxu0 0
    %445 = vmatprep.subr.bf16.mxu0 0
    %446 = vmatpush1.bf16.xpose.msra.mxu0 0
    %447 = vmatprep.subr.bf16.mxu0 0
    %448 = vmatpush1.bf16.xpose.msra.mxu0 0
    %449 = vmatprep.subr.bf16.mxu0 0
    %450 = vmatpush1.bf16.xpose.msra.mxu0 0
    %451 = vmatprep.subr.bf16.mxu0 0
    %452 = vmatpush1.bf16.xpose.msra.mxu0 0
    %453 = vmatprep.subr.bf16.mxu0 0
    %454 = vmatpush1.bf16.xpose.msra.mxu0 0
    %455 = vmatprep.subr.bf16.mxu0 0
    %456 = vmatpush1.bf16.xpose.msra.mxu0 0
    %457 = vmatprep.subr.bf16.mxu0 0
    %458 = vmatpush1.bf16.xpose.msra.mxu0 0
    %459 = vmatprep.subr.bf16.mxu0 0
    %460 = vmatpush1.bf16.xpose.msra.mxu0 0
    %461 = vmatprep.mubr.bf16.mxu0 0
    %462 = vmatmul.mubr.bf16.gmra.mrb[0].mxu0 %v424
    %v463 = vpop.f32.mrb[0].mxu0
    %v464 = vadd.f32 0.0, %v463
    %v465 = vpop.f32.mrb[0].mxu0
    %v466 = vpop.f32.mrb[0].mxu0
    %v467 = vpop.f32.mrb[0].mxu0
    %468 = vdwg.mxu0
    %v470 = vsel %vm422, %v411, 0
    %v473 = vsel %vm422, %v416, 0
    %475 = vmatprep.subr.bf16.mxu0 0
    %476 = vmatpush1.bf16.xpose.msra.mxu0 %v473
    %477 = vmatprep.subr.bf16.mxu0 0
    %478 = vmatpush1.bf16.xpose.msra.mxu0 0
    %479 = vmatprep.subr.bf16.mxu0 0
    %480 = vmatpush1.bf16.xpose.msra.mxu0 0
    %481 = vmatprep.subr.bf16.mxu0 0
    %482 = vmatpush1.bf16.xpose.msra.mxu0 0
    %483 = vmatprep.subr.bf16.mxu0 0
    %484 = vmatpush1.bf16.xpose.msra.mxu0 0
    %485 = vmatprep.subr.bf16.mxu0 0
    %486 = vmatpush1.bf16.xpose.msra.mxu0 0
    %487 = vmatprep.subr.bf16.mxu0 0
    %488 = vmatpush1.bf16.xpose.msra.mxu0 0
    %489 = vmatprep.subr.bf16.mxu0 0
    %490 = vmatpush1.bf16.xpose.msra.mxu0 0
    %491 = vmatprep.subr.bf16.mxu0 0
    %492 = vmatpush1.bf16.xpose.msra.mxu0 0
    %493 = vmatprep.subr.bf16.mxu0 0
    %494 = vmatpush1.bf16.xpose.msra.mxu0 0
    %495 = vmatprep.subr.bf16.mxu0 0
    %496 = vmatpush1.bf16.xpose.msra.mxu0 0
    %497 = vmatprep.subr.bf16.mxu0 0
    %498 = vmatpush1.bf16.xpose.msra.mxu0 0
    %499 = vmatprep.subr.bf16.mxu0 0
    %500 = vmatpush1.bf16.xpose.msra.mxu0 0
    %501 = vmatprep.subr.bf16.mxu0 0
    %502 = vmatpush1.bf16.xpose.msra.mxu0 0
    %503 = vmatprep.subr.bf16.mxu0 0
    %504 = vmatpush1.bf16.xpose.msra.mxu0 0
    %505 = vmatprep.subr.bf16.mxu0 0
    %506 = vmatpush1.bf16.xpose.msra.mxu0 0
    %507 = vmatprep.mubr.bf16.mxu0 0
    %508 = vmatmul.mubr.bf16.gmra.mrb[0].mxu0 %v470
    %v509 = vpop.f32.mrb[0].mxu0
    %v510 = vadd.f32 0.0, %v509
    %v511 = vpop.f32.mrb[0].mxu0
    %v512 = vpop.f32.mrb[0].mxu0
    %v513 = vpop.f32.mrb[0].mxu0
    %514 = vdwg.mxu0
    %v515 = vmul.f32 %v464, 0.125
    %v516 = vmul.f32 %v510, 0.125
    %v517 = vsel %vm406, 1, 0
    %vm518 = vcmp.eq.s32.totalorder %v517, 1
    %v519 = vsel %vm518, %v515, -1e+30
    %v520 = vsel %vm518, %v516, -1e+30
    %vm521 = vcmask 64512
    %v522 = vsel %vm521, %v519, -inf
    %523 = vmax.xlane.f32.xlu0 %v522
    %v524 = vpop.xlane.xlu0 %523
    %v525 = vsel %vm521, %v520, -inf
    %526 = vmax.xlane.f32.xlu0 %v525
    %v527 = vpop.xlane.xlu0 %526
    %v528 = vsub.f32 %v519, %v524
    %v529 = vsub.f32 %v520, %v527
    %v530 = vmul.f32 %v528, 1.442695
    %v531 = vpow.pop %v530
    %v532 = vmul.f32 %v529, 1.442695
    %v533 = vpow.pop %v532
    %v534 = vsel %vm521, %v531, 0.0
    %535 = vadd.xlane.f32.xlu0 %v534
    %v536 = vpop.xlane.xlu0 %535
    %v537 = vsel %vm521, %v533, 0.0
    %538 = vadd.xlane.f32.xlu0 %v537
    %v539 = vpop.xlane.xlu0 %538
    %v540 = vrcp.pop %v536
    %v541 = vrcp.pop %v539
    %v542 = vmul.f32 %v531, %v540
    %v543 = vmul.f32 %v533, %v541
    %v544 = vpack.c.bf16 %v542, %v542
    %v545 = vpack.c.bf16 %v543, %v543
    %v547 = vsel %vm521, %v544, 0
    %vm549 = vcmask 1043456
    %v551 = vsel %vm549, %v420, 0
    %553 = vmatprep.subr.bf16.mxu0 0
    %554 = vmatpush1.bf16.msra.mxu0 %v551
    %555 = vmatprep.subr.bf16.mxu0 0
    %556 = vmatpush1.bf16.msra.mxu0 0
    %557 = vmatprep.subr.bf16.mxu0 0
    %558 = vmatpush1.bf16.msra.mxu0 0
    %559 = vmatprep.subr.bf16.mxu0 0
    %560 = vmatpush1.bf16.msra.mxu0 0
    %561 = vmatprep.subr.bf16.mxu0 0
    %562 = vmatpush1.bf16.msra.mxu0 0
    %563 = vmatprep.subr.bf16.mxu0 0
    %564 = vmatpush1.bf16.msra.mxu0 0
    %565 = vmatprep.subr.bf16.mxu0 0
    %566 = vmatpush1.bf16.msra.mxu0 0
    %567 = vmatprep.subr.bf16.mxu0 0
    %568 = vmatpush1.bf16.msra.mxu0 0
    %569 = vmatprep.subr.bf16.mxu0 0
    %570 = vmatpush1.bf16.msra.mxu0 0
    %571 = vmatprep.subr.bf16.mxu0 0
    %572 = vmatpush1.bf16.msra.mxu0 0
    %573 = vmatprep.subr.bf16.mxu0 0
    %574 = vmatpush1.bf16.msra.mxu0 0
    %575 = vmatprep.subr.bf16.mxu0 0
    %576 = vmatpush1.bf16.msra.mxu0 0
    %577 = vmatprep.subr.bf16.mxu0 0
    %578 = vmatpush1.bf16.msra.mxu0 0
    %579 = vmatprep.subr.bf16.mxu0 0
    %580 = vmatpush1.bf16.msra.mxu0 0
    %581 = vmatprep.subr.bf16.mxu0 0
    %582 = vmatpush1.bf16.msra.mxu0 0
    %583 = vmatprep.subr.bf16.mxu0 0
    %584 = vmatpush1.bf16.msra.mxu0 0
    %585 = vmatprep.mubr.bf16.mxu0 0
    %586 = vmatmul.mubr.bf16.gmra.mrb[0].mxu0 %v547
    %v587 = vpop.f32.mrb[0].mxu0
    %v588 = vadd.f32 0.0, %v587
    %v589 = vpop.f32.mrb[0].mxu0
    %v590 = vpop.f32.mrb[0].mxu0
    %v591 = vpop.f32.mrb[0].mxu0
    %592 = vdwg.mxu0
    %v594 = vsel %vm521, %v545, 0
    %v597 = vsel %vm549, %v421, 0
    %599 = vmatprep.subr.bf16.mxu0 0
    %600 = vmatpush1.bf16.msra.mxu0 %v597
    %601 = vmatprep.subr.bf16.mxu0 0
    %602 = vmatpush1.bf16.msra.mxu0 0
    %603 = vmatprep.subr.bf16.mxu0 0
    %604 = vmatpush1.bf16.msra.mxu0 0
    %605 = vmatprep.subr.bf16.mxu0 0
    %606 = vmatpush1.bf16.msra.mxu0 0
    %607 = vmatprep.subr.bf16.mxu0 0
    %608 = vmatpush1.bf16.msra.mxu0 0
    %609 = vmatprep.subr.bf16.mxu0 0
    %610 = vmatpush1.bf16.msra.mxu0 0
    %611 = vmatprep.subr.bf16.mxu0 0
    %612 = vmatpush1.bf16.msra.mxu0 0
    %613 = vmatprep.subr.bf16.mxu0 0
    %614 = vmatpush1.bf16.msra.mxu0 0
    %615 = vmatprep.subr.bf16.mxu0 0
    %616 = vmatpush1.bf16.msra.mxu0 0
    %617 = vmatprep.subr.bf16.mxu0 0
    %618 = vmatpush1.bf16.msra.mxu0 0
    %619 = vmatprep.subr.bf16.mxu0 0
    %620 = vmatpush1.bf16.msra.mxu0 0
    %621 = vmatprep.subr.bf16.mxu0 0
    %622 = vmatpush1.bf16.msra.mxu0 0
    %623 = vmatprep.subr.bf16.mxu0 0
    %624 = vmatpush1.bf16.msra.mxu0 0
    %625 = vmatprep.subr.bf16.mxu0 0
    %626 = vmatpush1.bf16.msra.mxu0 0
    %627 = vmatprep.subr.bf16.mxu0 0
    %628 = vmatpush1.bf16.msra.mxu0 0
    %629 = vmatprep.subr.bf16.mxu0 0
    %630 = vmatpush1.bf16.msra.mxu0 0
    %631 = vmatprep.mubr.bf16.mxu0 0
    %632 = vmatmul.mubr.bf16.gmra.mrb[0].mxu0 %v594
    %v633 = vpop.f32.mrb[0].mxu0
    %v634 = vadd.f32 0.0, %v633
    %v635 = vpop.f32.mrb[0].mxu0
    %v636 = vpop.f32.mrb[0].mxu0
    %v637 = vpop.f32.mrb[0].mxu0
    %638 = vdwg.mxu0
    %639 = vrot.lane.b32.xlu0 %v410, 64
    %v640 = vpop.permute.xlu0 %639
    %641 = vrot.lane.b32.xlu0 %v415, 64
    %v642 = vpop.permute.xlu0 %641
    %v644 = vsel %vm422, %v640, 0
    %v647 = vsel %vm422, %v642, 0
    %649 = vmatprep.subr.bf16.mxu0 0
    %650 = vmatpush1.bf16.xpose.msra.mxu0 %v647
    %651 = vmatprep.subr.bf16.mxu0 0
    %652 = vmatpush1.bf16.xpose.msra.mxu0 0
    %653 = vmatprep.subr.bf16.mxu0 0
    %654 = vmatpush1.bf16.xpose.msra.mxu0 0
    %655 = vmatprep.subr.bf16.mxu0 0
    %656 = vmatpush1.bf16.xpose.msra.mxu0 0
    %657 = vmatprep.subr.bf16.mxu0 0
    %658 = vmatpush1.bf16.xpose.msra.mxu0 0
    %659 = vmatprep.subr.bf16.mxu0 0
    %660 = vmatpush1.bf16.xpose.msra.mxu0 0
    %661 = vmatprep.subr.bf16.mxu0 0
    %662 = vmatpush1.bf16.xpose.msra.mxu0 0
    %663 = vmatprep.subr.bf16.mxu0 0
    %664 = vmatpush1.bf16.xpose.msra.mxu0 0
    %665 = vmatprep.subr.bf16.mxu0 0
    %666 = vmatpush1.bf16.xpose.msra.mxu0 0
    %667 = vmatprep.subr.bf16.mxu0 0
    %668 = vmatpush1.bf16.xpose.msra.mxu0 0
    %669 = vmatprep.subr.bf16.mxu0 0
    %670 = vmatpush1.bf16.xpose.msra.mxu0 0
    %671 = vmatprep.subr.bf16.mxu0 0
    %672 = vmatpush1.bf16.xpose.msra.mxu0 0
    %673 = vmatprep.subr.bf16.mxu0 0
    %674 = vmatpush1.bf16.xpose.msra.mxu0 0
    %675 = vmatprep.subr.bf16.mxu0 0
    %676 = vmatpush1.bf16.xpose.msra.mxu0 0
    %677 = vmatprep.subr.bf16.mxu0 0
    %678 = vmatpush1.bf16.xpose.msra.mxu0 0
    %679 = vmatprep.subr.bf16.mxu0 0
    %680 = vmatpush1.bf16.xpose.msra.mxu0 0
    %681 = vmatprep.mubr.bf16.mxu0 0
    %682 = vmatmul.mubr.bf16.gmra.mrb[0].mxu0 %v644
    %v683 = vpop.f32.mrb[0].mxu0
    %v684 = vadd.f32 0.0, %v683
    %v685 = vpop.f32.mrb[0].mxu0
    %v686 = vpop.f32.mrb[0].mxu0
    %v687 = vpop.f32.mrb[0].mxu0
    %688 = vdwg.mxu0
    %689 = vrot.lane.b32.xlu0 %v411, 64
    %v690 = vpop.permute.xlu0 %689
    %691 = vrot.lane.b32.xlu0 %v416, 64
    %v692 = vpop.permute.xlu0 %691
    %v694 = vsel %vm422, %v690, 0
    %v697 = vsel %vm422, %v692, 0
    %699 = vmatprep.subr.bf16.mxu0 0
    %700 = vmatpush1.bf16.xpose.msra.mxu0 %v697
    %701 = vmatprep.subr.bf16.mxu0 0
    %702 = vmatpush1.bf16.xpose.msra.mxu0 0
    %703 = vmatprep.subr.bf16.mxu0 0
    %704 = vmatpush1.bf16.xpose.msra.mxu0 0
    %705 = vmatprep.subr.bf16.mxu0 0
    %706 = vmatpush1.bf16.xpose.msra.mxu0 0
    %707 = vmatprep.subr.bf16.mxu0 0
    %708 = vmatpush1.bf16.xpose.msra.mxu0 0
    %709 = vmatprep.subr.bf16.mxu0 0
    %710 = vmatpush1.bf16.xpose.msra.mxu0 0
    %711 = vmatprep.subr.bf16.mxu0 0
    %712 = vmatpush1.bf16.xpose.msra.mxu0 0
    %713 = vmatprep.subr.bf16.mxu0 0
    %714 = vmatpush1.bf16.xpose.msra.mxu0 0
    %715 = vmatprep.subr.bf16.mxu0 0
    %716 = vmatpush1.bf16.xpose.msra.mxu0 0
    %717 = vmatprep.subr.bf16.mxu0 0
    %718 = vmatpush1.bf16.xpose.msra.mxu0 0
    %719 = vmatprep.subr.bf16.mxu0 0
    %720 = vmatpush1.bf16.xpose.msra.mxu0 0
    %721 = vmatprep.subr.bf16.mxu0 0
    %722 = vmatpush1.bf16.xpose.msra.mxu0 0
    %723 = vmatprep.subr.bf16.mxu0 0
    %724 = vmatpush1.bf16.xpose.msra.mxu0 0
    %725 = vmatprep.subr.bf16.mxu0 0
    %726 = vmatpush1.bf16.xpose.msra.mxu0 0
    %727 = vmatprep.subr.bf16.mxu0 0
    %728 = vmatpush1.bf16.xpose.msra.mxu0 0
    %729 = vmatprep.subr.bf16.mxu0 0
    %730 = vmatpush1.bf16.xpose.msra.mxu0 0
    %731 = vmatprep.mubr.bf16.mxu0 0
    %732 = vmatmul.mubr.bf16.gmra.mrb[0].mxu0 %v694
    %v733 = vpop.f32.mrb[0].mxu0
    %v734 = vadd.f32 0.0, %v733
    %v735 = vpop.f32.mrb[0].mxu0
    %v736 = vpop.f32.mrb[0].mxu0
    %v737 = vpop.f32.mrb[0].mxu0
    %738 = vdwg.mxu0
    %v739 = vmul.f32 %v684, 0.125
    %v740 = vmul.f32 %v734, 0.125
    %v741 = vsel %vm518, %v739, -1e+30
    %v742 = vsel %vm518, %v740, -1e+30
    %v743 = vsel %vm521, %v741, -inf
    %744 = vmax.xlane.f32.xlu0 %v743
    %v745 = vpop.xlane.xlu0 %744
    %v746 = vsel %vm521, %v742, -inf
    %747 = vmax.xlane.f32.xlu0 %v746
    %v748 = vpop.xlane.xlu0 %747
    %v749 = vsub.f32 %v741, %v745
    %v750 = vsub.f32 %v742, %v748
    %v751 = vmul.f32 %v749, 1.442695
    %v752 = vpow.pop %v751
    %v753 = vmul.f32 %v750, 1.442695
    %v754 = vpow.pop %v753
    %v755 = vsel %vm521, %v752, 0.0
    %756 = vadd.xlane.f32.xlu0 %v755
    %v757 = vpop.xlane.xlu0 %756
    %v758 = vsel %vm521, %v754, 0.0
    %759 = vadd.xlane.f32.xlu0 %v758
    %v760 = vpop.xlane.xlu0 %759
    %v761 = vrcp.pop %v757
    %v762 = vrcp.pop %v760
    %v763 = vmul.f32 %v752, %v761
    %v764 = vmul.f32 %v754, %v762
    %v765 = vpack.c.bf16 %v763, %v763
    %v766 = vpack.c.bf16 %v764, %v764
    %767 = vrot.lane.b32.xlu0 %v420, 64
    %v768 = vpop.permute.xlu0 %767
    %v770 = vsel %vm521, %v765, 0
    %v773 = vsel %vm549, %v768, 0
    %775 = vmatprep.subr.bf16.mxu0 0
    %776 = vmatpush1.bf16.msra.mxu0 %v773
    %777 = vmatprep.subr.bf16.mxu0 0
    %778 = vmatpush1.bf16.msra.mxu0 0
    %779 = vmatprep.subr.bf16.mxu0 0
    %780 = vmatpush1.bf16.msra.mxu0 0
    %781 = vmatprep.subr.bf16.mxu0 0
    %782 = vmatpush1.bf16.msra.mxu0 0
    %783 = vmatprep.subr.bf16.mxu0 0
    %784 = vmatpush1.bf16.msra.mxu0 0
    %785 = vmatprep.subr.bf16.mxu0 0
    %786 = vmatpush1.bf16.msra.mxu0 0
    %787 = vmatprep.subr.bf16.mxu0 0
    %788 = vmatpush1.bf16.msra.mxu0 0
    %789 = vmatprep.subr.bf16.mxu0 0
    %790 = vmatpush1.bf16.msra.mxu0 0
    %791 = vmatprep.subr.bf16.mxu0 0
    %792 = vmatpush1.bf16.msra.mxu0 0
    %793 = vmatprep.subr.bf16.mxu0 0
    %794 = vmatpush1.bf16.msra.mxu0 0
    %795 = vmatprep.subr.bf16.mxu0 0
    %796 = vmatpush1.bf16.msra.mxu0 0
    %797 = vmatprep.subr.bf16.mxu0 0
    %798 = vmatpush1.bf16.msra.mxu0 0
    %799 = vmatprep.subr.bf16.mxu0 0
    %800 = vmatpush1.bf16.msra.mxu0 0
    %801 = vmatprep.subr.bf16.mxu0 0
    %802 = vmatpush1.bf16.msra.mxu0 0
    %803 = vmatprep.subr.bf16.mxu0 0
    %804 = vmatpush1.bf16.msra.mxu0 0
    %805 = vmatprep.subr.bf16.mxu0 0
    %806 = vmatpush1.bf16.msra.mxu0 0
    %807 = vmatprep.mubr.bf16.mxu0 0
    %808 = vmatmul.mubr.bf16.gmra.mrb[0].mxu0 %v770
    %v809 = vpop.f32.mrb[0].mxu0
    %v810 = vadd.f32 0.0, %v809
    %v811 = vpop.f32.mrb[0].mxu0
    %v812 = vpop.f32.mrb[0].mxu0
    %v813 = vpop.f32.mrb[0].mxu0
    %814 = vdwg.mxu0
    %815 = vrot.lane.b32.xlu0 %v421, 64
    %v816 = vpop.permute.xlu0 %815
    %v818 = vsel %vm521, %v766, 0
    %v821 = vsel %vm549, %v816, 0
    %823 = vmatprep.subr.bf16.mxu0 0
    %824 = vmatpush1.bf16.msra.mxu0 %v821
    %825 = vmatprep.subr.bf16.mxu0 0
    %826 = vmatpush1.bf16.msra.mxu0 0
    %827 = vmatprep.subr.bf16.mxu0 0
    %828 = vmatpush1.bf16.msra.mxu0 0
    %829 = vmatprep.subr.bf16.mxu0 0
    %830 = vmatpush1.bf16.msra.mxu0 0
    %831 = vmatprep.subr.bf16.mxu0 0
    %832 = vmatpush1.bf16.msra.mxu0 0
    %833 = vmatprep.subr.bf16.mxu0 0
    %834 = vmatpush1.bf16.msra.mxu0 0
    %835 = vmatprep.subr.bf16.mxu0 0
    %836 = vmatpush1.bf16.msra.mxu0 0
    %837 = vmatprep.subr.bf16.mxu0 0
    %838 = vmatpush1.bf16.msra.mxu0 0
    %839 = vmatprep.subr.bf16.mxu0 0
    %840 = vmatpush1.bf16.msra.mxu0 0
    %841 = vmatprep.subr.bf16.mxu0 0
    %842 = vmatpush1.bf16.msra.mxu0 0
    %843 = vmatprep.subr.bf16.mxu0 0
    %844 = vmatpush1.bf16.msra.mxu0 0
    %845 = vmatprep.subr.bf16.mxu0 0
    %846 = vmatpush1.bf16.msra.mxu0 0
    %847 = vmatprep.subr.bf16.mxu0 0
    %848 = vmatpush1.bf16.msra.mxu0 0
    %849 = vmatprep.subr.bf16.mxu0 0
    %850 = vmatpush1.bf16.msra.mxu0 0
    %851 = vmatprep.subr.bf16.mxu0 0
    %852 = vmatpush1.bf16.msra.mxu0 0
    %853 = vmatprep.subr.bf16.mxu0 0
    %854 = vmatpush1.bf16.msra.mxu0 0
    %855 = vmatprep.mubr.bf16.mxu0 0
    %856 = vmatmul.mubr.bf16.gmra.mrb[0].mxu0 %v818
    %v857 = vpop.f32.mrb[0].mxu0
    %v858 = vadd.f32 0.0, %v857
    %v859 = vpop.f32.mrb[0].mxu0
    %v860 = vpop.f32.mrb[0].mxu0
    %v861 = vpop.f32.mrb[0].mxu0
    %862 = vdwg.mxu0
    %865 = vrot.lane.b32.xlu0 %v810, 64
    %v866 = vpop.permute.xlu0 %865
    %867 = vrot.lane.b32.xlu0 %v858, 64
    %v868 = vpop.permute.xlu0 %867
    %v871 = vsel %vm422, %v588, %v866
    %v872 = vsel %vm422, %v634, %v868
    %v873 = vpack.c.bf16 %v872, %v871
    %v890 = vunpack.c.l.b16 %v83
    %v891 = vunpack.c.l.b16 %v84
    %v892 = vunpack.c.l.b16 %v85
    %v893 = vunpack.c.l.b16 %v86
    %v894 = vunpack.c.l.b16 %v87
    %v895 = vunpack.c.l.b16 %v88
    %v896 = vunpack.c.l.b16 %v89
    %v897 = vunpack.c.l.b16 %v90
    %v898 = vunpack.c.l.b16 %v91
    %v899 = vunpack.c.l.b16 %v92
    %v900 = vunpack.c.l.b16 %v93
    %v901 = vunpack.c.l.b16 %v94
    %v902 = vunpack.c.l.b16 %v95
    %v903 = vunpack.c.l.b16 %v96
    %v904 = vunpack.c.l.b16 %v97
    %v905 = vunpack.c.l.b16 %v98
    %v906 = vpack.c.b16 %v891, %v890
    %v907 = vpack.c.b16 %v893, %v892
    %v908 = vpack.c.b16 %v895, %v894
    %v909 = vpack.c.b16 %v897, %v896
    %v910 = vpack.c.b16 %v899, %v898
    %v911 = vpack.c.b16 %v901, %v900
    %v912 = vpack.c.b16 %v903, %v902
    %v913 = vpack.c.b16 %v905, %v904
    %922 = vmatprep.subr.bf16.mxu0 0
    %923 = vmatpush1.bf16.msra.mxu0 %v906
    %924 = vmatprep.subr.bf16.mxu0 0
    %925 = vmatpush1.bf16.msra.mxu0 %v907
    %926 = vmatprep.subr.bf16.mxu0 0
    %927 = vmatpush1.bf16.msra.mxu0 %v908
    %928 = vmatprep.subr.bf16.mxu0 0
    %929 = vmatpush1.bf16.msra.mxu0 %v909
    %930 = vmatprep.subr.bf16.mxu0 0
    %931 = vmatpush1.bf16.msra.mxu0 %v910
    %932 = vmatprep.subr.bf16.mxu0 0
    %933 = vmatpush1.bf16.msra.mxu0 %v911
    %934 = vmatprep.subr.bf16.mxu0 0
    %935 = vmatpush1.bf16.msra.mxu0 %v912
    %936 = vmatprep.subr.bf16.mxu0 0
    %937 = vmatpush1.bf16.msra.mxu0 %v913
    %938 = vmatprep.subr.bf16.mxu0 0
    %939 = vmatpush1.bf16.msra.mxu0 0
    %940 = vmatprep.subr.bf16.mxu0 0
    %941 = vmatpush1.bf16.msra.mxu0 0
    %942 = vmatprep.subr.bf16.mxu0 0
    %943 = vmatpush1.bf16.msra.mxu0 0
    %944 = vmatprep.subr.bf16.mxu0 0
    %945 = vmatpush1.bf16.msra.mxu0 0
    %946 = vmatprep.subr.bf16.mxu0 0
    %947 = vmatpush1.bf16.msra.mxu0 0
    %948 = vmatprep.subr.bf16.mxu0 0
    %949 = vmatpush1.bf16.msra.mxu0 0
    %950 = vmatprep.subr.bf16.mxu0 0
    %951 = vmatpush1.bf16.msra.mxu0 0
    %952 = vmatprep.subr.bf16.mxu0 0
    %953 = vmatpush1.bf16.msra.mxu0 0
    %954 = vmatprep.mubr.bf16.mxu0 0
    %955 = vmatmul.mubr.bf16.gmra.mrb[0].mxu0 %v873
    %v956 = vpop.f32.mrb[0].mxu0
    %v957 = vadd.f32 0.0, %v956
    %v958 = vpop.f32.mrb[0].mxu0
    %v959 = vpop.f32.mrb[0].mxu0
    %v960 = vadd.f32 0.0, %v959
    %v961 = vpop.f32.mrb[0].mxu0
    %962 = vdwg.mxu0
    %v963 = vadd.f32 %v46, %v957
    %v964 = vadd.f32 %v47, %v960
    %v965 = vmul.f32 %v963, %v963
    %v966 = vmul.f32 %v964, %v964
    %967 = vadd.xlane.f32.xlu0 %v965
    %v968 = vpop.xlane.xlu0 %967
    %969 = vadd.xlane.f32.xlu0 %v966
    %v970 = vpop.xlane.xlu0 %969
    %v971 = vmul.f32 %v968, %v169
    %v972 = vmul.f32 %v970, %v169
    %v973 = vadd.f32 %v971, 1e-05
    %v974 = vadd.f32 %v972, 1e-05
    %v975 = vrsqrt.pop %v973
    %v976 = vrsqrt.pop %v974
    %v977 = vmul.f32 %v963, %v975
    %v978 = vmul.f32 %v964, %v976
    %v980 = vlaneseq
    %v981 = vshrl.u32 %v980, 7
    %v982 = vsub.s32 0, %v981
    %v983 = vrot.slane %v49, %v982
    %v985 = vmul.f32 %v977, %v983
    %v986 = vmul.f32 %v978, %v983
    %v987 = vpack.c.bf16 %v986, %v985
    %v1020 = vunpack.c.l.b16 %v99
    %v1021 = vunpack.c.h.b16 %v99
    %v1022 = vunpack.c.l.b16 %v100
    %v1023 = vunpack.c.h.b16 %v100
    %v1024 = vunpack.c.l.b16 %v101
    %v1025 = vunpack.c.h.b16 %v101
    %v1026 = vunpack.c.l.b16 %v102
    %v1027 = vunpack.c.h.b16 %v102
    %v1028 = vunpack.c.l.b16 %v103
    %v1029 = vunpack.c.h.b16 %v103
    %v1030 = vunpack.c.l.b16 %v104
    %v1031 = vunpack.c.h.b16 %v104
    %v1032 = vunpack.c.l.b16 %v105
    %v1033 = vunpack.c.h.b16 %v105
    %v1034 = vunpack.c.l.b16 %v106
    %v1035 = vunpack.c.h.b16 %v106
    %v1036 = vunpack.c.l.b16 %v107
    %v1037 = vunpack.c.h.b16 %v107
    %v1038 = vunpack.c.l.b16 %v108
    %v1039 = vunpack.c.h.b16 %v108
    %v1040 = vunpack.c.l.b16 %v109
    %v1041 = vunpack.c.h.b16 %v109
    %v1042 = vunpack.c.l.b16 %v110
    %v1043 = vunpack.c.h.b16 %v110
    %v1044 = vunpack.c.l.b16 %v111
    %v1045 = vunpack.c.h.b16 %v111
    %v1046 = vunpack.c.l.b16 %v112
    %v1047 = vunpack.c.h.b16 %v112
    %v1048 = vunpack.c.l.b16 %v113
    %v1049 = vunpack.c.h.b16 %v113
    %v1050 = vunpack.c.l.b16 %v114
    %v1051 = vunpack.c.h.b16 %v114
    %v1052 = vunpack.c.l.b16 %v115
    %v1053 = vunpack.c.h.b16 %v115
    %v1054 = vunpack.c.l.b16 %v116
    %v1055 = vunpack.c.h.b16 %v116
    %v1056 = vunpack.c.l.b16 %v117
    %v1057 = vunpack.c.h.b16 %v117
    %v1058 = vunpack.c.l.b16 %v118
    %v1059 = vunpack.c.h.b16 %v118
    %v1060 = vunpack.c.l.b16 %v119
    %v1061 = vunpack.c.h.b16 %v119
    %v1062 = vunpack.c.l.b16 %v120
    %v1063 = vunpack.c.h.b16 %v120
    %v1064 = vunpack.c.l.b16 %v121
    %v1065 = vunpack.c.h.b16 %v121
    %v1066 = vunpack.c.l.b16 %v122
    %v1067 = vunpack.c.h.b16 %v122
    %v1068 = vunpack.c.l.b16 %v123
    %v1069 = vunpack.c.h.b16 %v123
    %v1070 = vunpack.c.l.b16 %v124
    %v1071 = vunpack.c.h.b16 %v124
    %v1072 = vunpack.c.l.b16 %v125
    %v1073 = vunpack.c.h.b16 %v125
    %v1074 = vunpack.c.l.b16 %v126
    %v1075 = vunpack.c.h.b16 %v126
    %v1076 = vunpack.c.l.b16 %v127
    %v1077 = vunpack.c.h.b16 %v127
    %v1078 = vunpack.c.l.b16 %v128
    %v1079 = vunpack.c.h.b16 %v128
    %v1080 = vunpack.c.l.b16 %v129
    %v1081 = vunpack.c.h.b16 %v129
    %v1082 = vunpack.c.l.b16 %v130
    %v1083 = vunpack.c.h.b16 %v130
    %v1084 = vpack.c.b16 %v1024, %v1020
    %v1085 = vpack.c.b16 %v1025, %v1021
    %v1086 = vpack.c.b16 %v1026, %v1022
    %v1087 = vpack.c.b16 %v1027, %v1023
    %v1088 = vpack.c.b16 %v1032, %v1028
    %v1089 = vpack.c.b16 %v1033, %v1029
    %v1090 = vpack.c.b16 %v1034, %v1030
    %v1091 = vpack.c.b16 %v1035, %v1031
    %v1092 = vpack.c.b16 %v1040, %v1036
    %v1093 = vpack.c.b16 %v1041, %v1037
    %v1094 = vpack.c.b16 %v1042, %v1038
    %v1095 = vpack.c.b16 %v1043, %v1039
    %v1096 = vpack.c.b16 %v1048, %v1044
    %v1097 = vpack.c.b16 %v1049, %v1045
    %v1098 = vpack.c.b16 %v1050, %v1046
    %v1099 = vpack.c.b16 %v1051, %v1047
    %v1100 = vpack.c.b16 %v1056, %v1052
    %v1101 = vpack.c.b16 %v1057, %v1053
    %v1102 = vpack.c.b16 %v1058, %v1054
    %v1103 = vpack.c.b16 %v1059, %v1055
    %v1104 = vpack.c.b16 %v1064, %v1060
    %v1105 = vpack.c.b16 %v1065, %v1061
    %v1106 = vpack.c.b16 %v1066, %v1062
    %v1107 = vpack.c.b16 %v1067, %v1063
    %v1108 = vpack.c.b16 %v1072, %v1068
    %v1109 = vpack.c.b16 %v1073, %v1069
    %v1110 = vpack.c.b16 %v1074, %v1070
    %v1111 = vpack.c.b16 %v1075, %v1071
    %v1112 = vpack.c.b16 %v1080, %v1076
    %v1113 = vpack.c.b16 %v1081, %v1077
    %v1114 = vpack.c.b16 %v1082, %v1078
    %v1115 = vpack.c.b16 %v1083, %v1079
    %1148 = vmatprep.subr.bf16.mxu0 %v1085
    %1149 = vmatpush1.bf16.msra.mxu0 %v1084
    %1150 = vmatprep.subr.bf16.mxu0 %v1089
    %1151 = vmatpush1.bf16.msra.mxu0 %v1088
    %1152 = vmatprep.subr.bf16.mxu0 %v1093
    %1153 = vmatpush1.bf16.msra.mxu0 %v1092
    %1154 = vmatprep.subr.bf16.mxu0 %v1097
    %1155 = vmatpush1.bf16.msra.mxu0 %v1096
    %1156 = vmatprep.subr.bf16.mxu0 %v1101
    %1157 = vmatpush1.bf16.msra.mxu0 %v1100
    %1158 = vmatprep.subr.bf16.mxu0 %v1105
    %1159 = vmatpush1.bf16.msra.mxu0 %v1104
    %1160 = vmatprep.subr.bf16.mxu0 %v1109
    %1161 = vmatpush1.bf16.msra.mxu0 %v1108
    %1162 = vmatprep.subr.bf16.mxu0 %v1113
    %1163 = vmatpush1.bf16.msra.mxu0 %v1112
    %1164 = vmatprep.subr.bf16.mxu0 0
    %1165 = vmatpush1.bf16.msra.mxu0 0
    %1166 = vmatprep.subr.bf16.mxu0 0
    %1167 = vmatpush1.bf16.msra.mxu0 0
    %1168 = vmatprep.subr.bf16.mxu0 0
    %1169 = vmatpush1.bf16.msra.mxu0 0
    %1170 = vmatprep.subr.bf16.mxu0 0
    %1171 = vmatpush1.bf16.msra.mxu0 0
    %1172 = vmatprep.subr.bf16.mxu0 0
    %1173 = vmatpush1.bf16.msra.mxu0 0
    %1174 = vmatprep.subr.bf16.mxu0 0
    %1175 = vmatpush1.bf16.msra.mxu0 0
    %1176 = vmatprep.subr.bf16.mxu0 0
    %1177 = vmatpush1.bf16.msra.mxu0 0
    %1178 = vmatprep.subr.bf16.mxu0 0
    %1179 = vmatpush1.bf16.msra.mxu0 0
    %1180 = vmatprep.mubr.bf16.mxu0 0
    %1181 = vmatmul.mubr.bf16.gmra.mrb[0].mxu0 %v987
    %v1182 = vpop.f32.mrb[0].mxu0
    %v1183 = vadd.f32 0.0, %v1182
    %v1184 = vpop.f32.mrb[0].mxu0
    %v1185 = vadd.f32 0.0, %v1184
    %v1186 = vpop.f32.mrb[0].mxu0
    %v1187 = vadd.f32 0.0, %v1186
    %v1188 = vpop.f32.mrb[0].mxu0
    %v1189 = vadd.f32 0.0, %v1188
    %1190 = vdwg.mxu0
    %1191 = vmatprep.subr.bf16.mxu0 %v1087
    %1192 = vmatpush1.bf16.msra.mxu0 %v1086
    %1193 = vmatprep.subr.bf16.mxu0 %v1091
    %1194 = vmatpush1.bf16.msra.mxu0 %v1090
    %1195 = vmatprep.subr.bf16.mxu0 %v1095
    %1196 = vmatpush1.bf16.msra.mxu0 %v1094
    %1197 = vmatprep.subr.bf16.mxu0 %v1099
    %1198 = vmatpush1.bf16.msra.mxu0 %v1098
    %1199 = vmatprep.subr.bf16.mxu0 %v1103
    %1200 = vmatpush1.bf16.msra.mxu0 %v1102
    %1201 = vmatprep.subr.bf16.mxu0 %v1107
    %1202 = vmatpush1.bf16.msra.mxu0 %v1106
    %1203 = vmatprep.subr.bf16.mxu0 %v1111
    %1204 = vmatpush1.bf16.msra.mxu0 %v1110
    %1205 = vmatprep.subr.bf16.mxu0 %v1115
    %1206 = vmatpush1.bf16.msra.mxu0 %v1114
    %1207 = vmatprep.subr.bf16.mxu0 0
    %1208 = vmatpush1.bf16.msra.mxu0 0
    %1209 = vmatprep.subr.bf16.mxu0 0
    %1210 = vmatpush1.bf16.msra.mxu0 0
    %1211 = vmatprep.subr.bf16.mxu0 0
    %1212 = vmatpush1.bf16.msra.mxu0 0
    %1213 = vmatprep.subr.bf16.mxu0 0
    %1214 = vmatpush1.bf16.msra.mxu0 0
    %1215 = vmatprep.subr.bf16.mxu0 0
    %1216 = vmatpush1.bf16.msra.mxu0 0
    %1217 = vmatprep.subr.bf16.mxu0 0
    %1218 = vmatpush1.bf16.msra.mxu0 0
    %1219 = vmatprep.subr.bf16.mxu0 0
    %1220 = vmatpush1.bf16.msra.mxu0 0
    %1221 = vmatprep.subr.bf16.mxu0 0
    %1222 = vmatpush1.bf16.msra.mxu0 0
    %1223 = vmatprep.mubr.bf16.mxu0 0
    %1224 = vmatmul.mubr.bf16.gmra.mrb[0].mxu0 %v987
    %v1225 = vpop.f32.mrb[0].mxu0
    %v1226 = vadd.f32 0.0, %v1225
    %v1227 = vpop.f32.mrb[0].mxu0
    %v1228 = vadd.f32 0.0, %v1227
    %v1229 = vpop.f32.mrb[0].mxu0
    %v1230 = vadd.f32 0.0, %v1229
    %v1231 = vpop.f32.mrb[0].mxu0
    %v1232 = vadd.f32 0.0, %v1231
    %1233 = vdwg.mxu0
    %v1234 = vxor.u32 %v1183, 2147483648
    %v1235 = vxor.u32 %v1185, 2147483648
    %v1236 = vxor.u32 %v1187, 2147483648
    %v1237 = vxor.u32 %v1189, 2147483648
    %v1238 = vmul.f32 %v1234, 1.442695
    %v1239 = vpow.pop %v1238
    %v1240 = vmul.f32 %v1235, 1.442695
    %v1241 = vpow.pop %v1240
    %v1242 = vmul.f32 %v1236, 1.442695
    %v1243 = vpow.pop %v1242
    %v1244 = vmul.f32 %v1237, 1.442695
    %v1245 = vpow.pop %v1244
    %v1246 = vadd.f32 %v1239, 1.0
    %v1247 = vadd.f32 %v1241, 1.0
    %v1248 = vadd.f32 %v1243, 1.0
    %v1249 = vadd.f32 %v1245, 1.0
    %v1250 = vrcp.pop %v1246
    %v1251 = vmul.f32 1.0, %v1250
    %v1252 = vrcp.pop %v1247
    %v1253 = vmul.f32 1.0, %v1252
    %v1254 = vrcp.pop %v1248
    %v1255 = vmul.f32 1.0, %v1254
    %v1256 = vrcp.pop %v1249
    %v1257 = vmul.f32 1.0, %v1256
    %v1258 = vmul.f32 %v1183, %v1251
    %v1259 = vmul.f32 %v1185, %v1253
    %v1260 = vmul.f32 %v1187, %v1255
    %v1261 = vmul.f32 %v1189, %v1257
    %v1262 = vmul.f32 %v1258, %v1226
    %v1263 = vmul.f32 %v1259, %v1228
    %v1264 = vmul.f32 %v1260, %v1230
    %v1265 = vmul.f32 %v1261, %v1232
    %v1266 = vpack.c.bf16 %v1264, %v1262
    %v1267 = vpack.c.bf16 %v1265, %v1263
    %v1300 = vunpack.c.l.b16 %v131
    %v1301 = vunpack.c.l.b16 %v132
    %v1302 = vunpack.c.l.b16 %v133
    %v1303 = vunpack.c.l.b16 %v134
    %v1304 = vunpack.c.l.b16 %v135
    %v1305 = vunpack.c.l.b16 %v136
    %v1306 = vunpack.c.l.b16 %v137
    %v1307 = vunpack.c.l.b16 %v138
    %v1308 = vunpack.c.l.b16 %v139
    %v1309 = vunpack.c.l.b16 %v140
    %v1310 = vunpack.c.l.b16 %v141
    %v1311 = vunpack.c.l.b16 %v142
    %v1312 = vunpack.c.l.b16 %v143
    %v1313 = vunpack.c.l.b16 %v144
    %v1314 = vunpack.c.l.b16 %v145
    %v1315 = vunpack.c.l.b16 %v146
    %v1316 = vunpack.c.l.b16 %v147
    %v1317 = vunpack.c.l.b16 %v148
    %v1318 = vunpack.c.l.b16 %v149
    %v1319 = vunpack.c.l.b16 %v150
    %v1320 = vunpack.c.l.b16 %v151
    %v1321 = vunpack.c.l.b16 %v152
    %v1322 = vunpack.c.l.b16 %v153
    %v1323 = vunpack.c.l.b16 %v154
    %v1324 = vunpack.c.l.b16 %v155
    %v1325 = vunpack.c.l.b16 %v156
    %v1326 = vunpack.c.l.b16 %v157
    %v1327 = vunpack.c.l.b16 %v158
    %v1328 = vunpack.c.l.b16 %v159
    %v1329 = vunpack.c.l.b16 %v160
    %v1330 = vunpack.c.l.b16 %v161
    %v1331 = vunpack.c.l.b16 %v162
    %v1332 = vpack.c.b16 %v1301, %v1300
    %v1333 = vpack.c.b16 %v1303, %v1302
    %v1334 = vpack.c.b16 %v1305, %v1304
    %v1335 = vpack.c.b16 %v1307, %v1306
    %v1336 = vpack.c.b16 %v1309, %v1308
    %v1337 = vpack.c.b16 %v1311, %v1310
    %v1338 = vpack.c.b16 %v1313, %v1312
    %v1339 = vpack.c.b16 %v1315, %v1314
    %v1340 = vpack.c.b16 %v1317, %v1316
    %v1341 = vpack.c.b16 %v1319, %v1318
    %v1342 = vpack.c.b16 %v1321, %v1320
    %v1343 = vpack.c.b16 %v1323, %v1322
    %v1344 = vpack.c.b16 %v1325, %v1324
    %v1345 = vpack.c.b16 %v1327, %v1326
    %v1346 = vpack.c.b16 %v1329, %v1328
    %v1347 = vpack.c.b16 %v1331, %v1330
    %1364 = vmatprep.subr.bf16.mxu0 0
    %1365 = vmatpush1.bf16.msra.mxu0 %v1332
    %1366 = vmatprep.subr.bf16.mxu0 0
    %1367 = vmatpush1.bf16.msra.mxu0 %v1333
    %1368 = vmatprep.subr.bf16.mxu0 0
    %1369 = vmatpush1.bf16.msra.mxu0 %v1334
    %1370 = vmatprep.subr.bf16.mxu0 0
    %1371 = vmatpush1.bf16.msra.mxu0 %v1335
    %1372 = vmatprep.subr.bf16.mxu0 0
    %1373 = vmatpush1.bf16.msra.mxu0 %v1336
    %1374 = vmatprep.subr.bf16.mxu0 0
    %1375 = vmatpush1.bf16.msra.mxu0 %v1337
    %1376 = vmatprep.subr.bf16.mxu0 0
    %1377 = vmatpush1.bf16.msra.mxu0 %v1338
    %1378 = vmatprep.subr.bf16.mxu0 0
    %1379 = vmatpush1.bf16.msra.mxu0 %v1339
    %1380 = vmatprep.subr.bf16.mxu0 0
    %1381 = vmatpush1.bf16.msra.mxu0 %v1340
    %1382 = vmatprep.subr.bf16.mxu0 0
    %1383 = vmatpush1.bf16.msra.mxu0 %v1341
    %1384 = vmatprep.subr.bf16.mxu0 0
    %1385 = vmatpush1.bf16.msra.mxu0 %v1342
    %1386 = vmatprep.subr.bf16.mxu0 0
    %1387 = vmatpush1.bf16.msra.mxu0 %v1343
    %1388 = vmatprep.subr.bf16.mxu0 0
    %1389 = vmatpush1.bf16.msra.mxu0 %v1344
    %1390 = vmatprep.subr.bf16.mxu0 0
    %1391 = vmatpush1.bf16.msra.mxu0 %v1345
    %1392 = vmatprep.subr.bf16.mxu0 0
    %1393 = vmatpush1.bf16.msra.mxu0 %v1346
    %1394 = vmatprep.subr.bf16.mxu0 0
    %1395 = vmatpush1.bf16.msra.mxu0 %v1347
    %1396 = vmatprep.mubr.bf16.mxu0 %v1267
    %1397 = vmatmul.mubr.bf16.gmra.mrb[0].mxu0 %v1266
    %v1398 = vpop.f32.mrb[0].mxu0
    %v1399 = vadd.f32 0.0, %v1398
    %v1400 = vpop.f32.mrb[0].mxu0
    %v1401 = vpop.f32.mrb[0].mxu0
    %v1402 = vadd.f32 0.0, %v1401
    %v1403 = vpop.f32.mrb[0].mxu0
    %1404 = vdwg.mxu0
    %v1405 = vadd.f32 %v963, %v1399
    %v1406 = vadd.f32 %v964, %v1402
    %v1407 = vmul.f32 %v1405, %v1405
    %v1408 = vmul.f32 %v1406, %v1406
    %1409 = vadd.xlane.f32.xlu0 %v1407
    %v1410 = vpop.xlane.xlu0 %1409
    %1411 = vadd.xlane.f32.xlu0 %v1408
    %v1412 = vpop.xlane.xlu0 %1411
    %v1413 = vmul.f32 %v1410, %v169
    %v1414 = vmul.f32 %v1412, %v169
    %v1415 = vadd.f32 %v1413, 1e-05
    %v1416 = vadd.f32 %v1414, 1e-05
    %v1417 = vrsqrt.pop %v1415
    %v1418 = vrsqrt.pop %v1416
    %v1419 = vmul.f32 %v1405, %v1417
    %v1420 = vmul.f32 %v1406, %v1418
    %v1422 = vlaneseq
    %v1423 = vshrl.u32 %v1422, 7
    %v1424 = vsub.s32 0, %v1423
    %v1425 = vrot.slane %v50, %v1424
    %v1427 = vmul.f32 %v1419, %v1425
    %v1428 = vmul.f32 %v1420, %v1425
    %v1429 = vpack.c.bf16 %v1427, %v1427
    %v1430 = vpack.c.bf16 %v1428, %v1428
    %1431 = vst [vmem:[%s8] sm:$0xf] %v1429
    %1432 = vst [vmem:[%s8 + $0x4] sm:$0xf] %v1430
    // Predicated region
    $region38: #{tts_forward.3} parent=1 // pred_check
      _
    $region39: #{tts_forward.3} parent=1 // pred_check_branch
      %1434 = sbr.rel (0) target = $region41
    $region40: #{tts_forward.3} parent=1 // pred_region
      _
    $region41: #{tts_forward.3} parent=1 // pred_fallthru
      _
    // Predicated region
    $region42: #{tts_forward.3} parent=1 // pred_check
      _
    $region43: #{tts_forward.3} parent=1 // pred_check_branch
      %1436 = sbr.rel (0) target = $region45
    $region44: #{tts_forward.3} parent=1 // pred_region
      _
    $region45: #{tts_forward.3} parent=1 // pred_fallthru
      _
    %1437 = vsyncpa [#allocation3], 1

// kernel: tts_forward.4
$region0: #{tts_forward.4}
  #allocation0 [shape = 'u32[]', space=smem, size = 0x4, offset = 0x4, fixed_abs, tag = 'smem constant byte address 0x4 - core index']
  #allocation1 [shape = 'u32[144,128]{1,0:T(1,128)}', space=vmem, size = 0x12000, scoped, tag = 'internal scratch']
  %s0 = inlined_call_operand.vmem [shape: bf16[14,5,128], index: 0, kind: input, shape index: {}]
  %s1 = inlined_call_operand.vmem [shape: bf16[128,128], index: 1, kind: input, shape index: {}]
  %s2 = inlined_call_operand.vmem [shape: f32[1,128], index: 2, kind: input, shape index: {}]
  %s3 = inlined_call_operand.vmem [shape: f32[1,128], index: 3, kind: input, shape index: {}]
  %s4 = inlined_call_operand.vmem [shape: f32[1,128], index: 4, kind: input, shape index: {}]
  %s5 = inlined_call_operand.vmem [shape: bf16[128,384], index: 5, kind: input, shape index: {}]
  %s6 = inlined_call_operand.vmem [shape: bf16[128,128], index: 6, kind: input, shape index: {}]
  %s7 = inlined_call_operand.vmem [shape: bf16[128,512], index: 7, kind: input, shape index: {}]
  %s8 = inlined_call_operand.vmem [shape: bf16[256,128], index: 8, kind: input, shape index: {}]
  %s9 = inlined_call_operand.vmem [shape: bf16[14,5,128], index: 9, kind: output, shape index: {}]
  %s10 = sld [smem:[#allocation0]]
  $region46: #{tts_forward.4} parent=0
    _
  %s12 = ssub.s32 1, %s10
  %s13 = scalar_select 0, %s12, %s10
  // Predicated region
  $region2: #{tts_forward.4} parent=0 // pred_check
    _
  $region3: #{tts_forward.4} parent=0 // pred_check_branch
    %15 = sbr.rel (0) target = $region5
  $region4: #{tts_forward.4} parent=0 // pred_region
    _
  $region5: #{tts_forward.4} parent=0 // pred_fallthru
    _
  // Predicated region
  $region6: #{tts_forward.4} parent=0 // pred_check
    _
  $region7: #{tts_forward.4} parent=0 // pred_check_branch
    %17 = sbr.rel (0) target = $region9
  $region8: #{tts_forward.4} parent=0 // pred_region
    _
  $region9: #{tts_forward.4} parent=0 // pred_fallthru
    _
  // Predicated region
  $region10: #{tts_forward.4} parent=0 // pred_check
    _
  $region11: #{tts_forward.4} parent=0 // pred_check_branch
    %19 = sbr.rel (0) target = $region13
  $region12: #{tts_forward.4} parent=0 // pred_region
    _
  $region13: #{tts_forward.4} parent=0 // pred_fallthru
    _
  // Predicated region
  $region14: #{tts_forward.4} parent=0 // pred_check
    _
  $region15: #{tts_forward.4} parent=0 // pred_check_branch
    %21 = sbr.rel (0) target = $region17
  $region16: #{tts_forward.4} parent=0 // pred_region
    _
  $region17: #{tts_forward.4} parent=0 // pred_fallthru
    _
  // Predicated region
  $region18: #{tts_forward.4} parent=0 // pred_check
    _
  $region19: #{tts_forward.4} parent=0 // pred_check_branch
    %23 = sbr.rel (0) target = $region21
  $region20: #{tts_forward.4} parent=0 // pred_region
    _
  $region21: #{tts_forward.4} parent=0 // pred_fallthru
    _
  // Predicated region
  $region22: #{tts_forward.4} parent=0 // pred_check
    _
  $region23: #{tts_forward.4} parent=0 // pred_check_branch
    %25 = sbr.rel (0) target = $region25
  $region24: #{tts_forward.4} parent=0 // pred_region
    _
  $region25: #{tts_forward.4} parent=0 // pred_fallthru
    _
  // Predicated region
  $region26: #{tts_forward.4} parent=0 // pred_check
    _
  $region27: #{tts_forward.4} parent=0 // pred_check_branch
    %27 = sbr.rel (0) target = $region29
  $region28: #{tts_forward.4} parent=0 // pred_region
    _
  $region29: #{tts_forward.4} parent=0 // pred_fallthru
    _
  // Predicated region
  $region30: #{tts_forward.4} parent=0 // pred_check
    _
  $region31: #{tts_forward.4} parent=0 // pred_check_branch
    %29 = sbr.rel (0) target = $region33
  $region32: #{tts_forward.4} parent=0 // pred_region
    _
  $region33: #{tts_forward.4} parent=0 // pred_fallthru
    _
  // Predicated region
  $region34: #{tts_forward.4} parent=0 // pred_check
    _
  $region35: #{tts_forward.4} parent=0 // pred_check_branch
    %31 = sbr.rel (0) target = $region37
  $region36: #{tts_forward.4} parent=0 // pred_region
    _
  $region37: #{tts_forward.4} parent=0 // pred_fallthru
    _
  %v33 = vld [vmem:[%s0] sm:$0x7]
  %v34 = vld [vmem:[%s0 + $0x4] sm:$0x7]
  %v35 = vld [vmem:[%s0 + $0x8] sm:$0x7]
  %v36 = vld [vmem:[%s0 + $0xc] sm:$0x7]
  %v37 = vld [vmem:[%s0 + $0x10] sm:$0x7]
  %v38 = vld [vmem:[%s0 + $0x14] sm:$0x7]
  %v39 = vld [vmem:[%s0 + $0x18] sm:$0x7]
  %v40 = vld [vmem:[%s0 + $0x1c] sm:$0x7]
  %v41 = vld [vmem:[%s0 + $0x20] sm:$0x7]
  %v42 = vld [vmem:[%s0 + $0x24] sm:$0x7]
  %v43 = vld [vmem:[%s0 + $0x28] sm:$0x7]
  %v44 = vld [vmem:[%s0 + $0x2c] sm:$0x7]
  %v45 = vld [vmem:[%s0 + $0x30] sm:$0x7]
  %v46 = vld [vmem:[%s0 + $0x34] sm:$0x7]
  %v62 = vunpack.c.l.s4 1966171168
  %v63 = vunpack.c.0.s8 %v62
  %v64 = vlaneseq
  %v65 = vshrl.u32 %v64, 7
  %v66 = vsub.s32 %v63, %v65
  %v67 = vrot.slane %v33, %v66
  %v68 = vcombine.high %v67, %v67
  %v70 = vunpack.c.l.s4 1966171168
  %v71 = vunpack.c.0.s8 %v70
  %v72 = vlaneseq
  %v73 = vshrl.u32 %v72, 7
  %v74 = vsub.s32 %v71, %v73
  %v75 = vrot.slane %v67, %v74
  %v77 = vunpack.c.l.s4 1966171168
  %v78 = vunpack.c.0.s8 %v77
  %v79 = vlaneseq
  %v80 = vshrl.u32 %v79, 7
  %v81 = vsub.s32 %v78, %v80
  %v82 = vrot.slane %v68, %v81
  %v83 = vcombine.high %v75, %v75
  %v85 = vunpack.c.l.s4 1966171168
  %v86 = vunpack.c.0.s8 %v85
  %v87 = vlaneseq
  %v88 = vshrl.u32 %v87, 7
  %v89 = vsub.s32 %v86, %v88
  %v90 = vrot.slane %v34, %v89
  %v91 = vcombine.high %v90, %v90
  %v93 = vunpack.c.l.s4 1966171168
  %v94 = vunpack.c.0.s8 %v93
  %v95 = vlaneseq
  %v96 = vshrl.u32 %v95, 7
  %v97 = vsub.s32 %v94, %v96
  %v98 = vrot.slane %v90, %v97
  %v100 = vunpack.c.l.s4 1966171168
  %v101 = vunpack.c.0.s8 %v100
  %v102 = vlaneseq
  %v103 = vshrl.u32 %v102, 7
  %v104 = vsub.s32 %v101, %v103
  %v105 = vrot.slane %v91, %v104
  %v106 = vcombine.high %v98, %v98
  %v108 = vunpack.c.l.s4 1966171168
  %v109 = vunpack.c.0.s8 %v108
  %v110 = vlaneseq
  %v111 = vshrl.u32 %v110, 7
  %v112 = vsub.s32 %v109, %v111
  %v113 = vrot.slane %v35, %v112
  %v114 = vcombine.high %v113, %v113
  %v116 = vunpack.c.l.s4 1966171168
  %v117 = vunpack.c.0.s8 %v116
  %v118 = vlaneseq
  %v119 = vshrl.u32 %v118, 7
  %v120 = vsub.s32 %v117, %v119
  %v121 = vrot.slane %v113, %v120
  %v123 = vunpack.c.l.s4 1966171168
  %v124 = vunpack.c.0.s8 %v123
  %v125 = vlaneseq
  %v126 = vshrl.u32 %v125, 7
  %v127 = vsub.s32 %v124, %v126
  %v128 = vrot.slane %v114, %v127
  %v129 = vcombine.high %v121, %v121
  %v131 = vunpack.c.l.s4 1966171168
  %v132 = vunpack.c.0.s8 %v131
  %v133 = vlaneseq
  %v134 = vshrl.u32 %v133, 7
  %v135 = vsub.s32 %v132, %v134
  %v136 = vrot.slane %v36, %v135
  %v137 = vcombine.high %v136, %v136
  %v139 = vunpack.c.l.s4 1966171168
  %v140 = vunpack.c.0.s8 %v139
  %v141 = vlaneseq
  %v142 = vshrl.u32 %v141, 7
  %v143 = vsub.s32 %v140, %v142
  %v144 = vrot.slane %v136, %v143
  %v146 = vunpack.c.l.s4 1966171168
  %v147 = vunpack.c.0.s8 %v146
  %v148 = vlaneseq
  %v149 = vshrl.u32 %v148, 7
  %v150 = vsub.s32 %v147, %v149
  %v151 = vrot.slane %v137, %v150
  %v152 = vcombine.high %v144, %v144
  %v154 = vunpack.c.l.s4 1966171168
  %v155 = vunpack.c.0.s8 %v154
  %v156 = vlaneseq
  %v157 = vshrl.u32 %v156, 7
  %v158 = vsub.s32 %v155, %v157
  %v159 = vrot.slane %v37, %v158
  %v160 = vcombine.high %v159, %v159
  %v162 = vunpack.c.l.s4 1966171168
  %v163 = vunpack.c.0.s8 %v162
  %v164 = vlaneseq
  %v165 = vshrl.u32 %v164, 7
  %v166 = vsub.s32 %v163, %v165
  %v167 = vrot.slane %v159, %v166
  %v169 = vunpack.c.l.s4 1966171168
  %v170 = vunpack.c.0.s8 %v169
  %v171 = vlaneseq
  %v172 = vshrl.u32 %v171, 7
  %v173 = vsub.s32 %v170, %v172
  %v174 = vrot.slane %v160, %v173
  %v175 = vcombine.high %v167, %v167
  %v177 = vunpack.c.l.s4 1966171168
  %v178 = vunpack.c.0.s8 %v177
  %v179 = vlaneseq
  %v180 = vshrl.u32 %v179, 7
  %v181 = vsub.s32 %v178, %v180
  %v182 = vrot.slane %v38, %v181
  %v183 = vcombine.high %v182, %v182
  %v185 = vunpack.c.l.s4 1966171168
  %v186 = vunpack.c.0.s8 %v185
  %v187 = vlaneseq
  %v188 = vshrl.u32 %v187, 7
  %v189 = vsub.s32 %v186, %v188
  %v190 = vrot.slane %v182, %v189
  %v192 = vunpack.c.l.s4 1966171168
  %v193 = vunpack.c.0.s8 %v192
  %v194 = vlaneseq
  %v195 = vshrl.u32 %v194, 7
  %v196 = vsub.s32 %v193, %v195
  %v197 = vrot.slane %v183, %v196
  %v198 = vcombine.high %v190, %v190
  %v200 = vunpack.c.l.s4 1966171168
  %v201 = vunpack.c.0.s8 %v200
  %v202 = vlaneseq
  %v203 = vshrl.u32 %v202, 7
  %v204 = vsub.s32 %v201, %v203
  %v205 = vrot.slane %v39, %v204
  %v206 = vcombine.high %v205, %v205
  %v208 = vunpack.c.l.s4 1966171168
  %v209 = vunpack.c.0.s8 %v208
  %v210 = vlaneseq
  %v211 = vshrl.u32 %v210, 7
  %v212 = vsub.s32 %v209, %v211
  %v213 = vrot.slane %v205, %v212
  %v215 = vunpack.c.l.s4 1966171168
  %v216 = vunpack.c.0.s8 %v215
  %v217 = vlaneseq
  %v218 = vshrl.u32 %v217, 7
  %v219 = vsub.s32 %v216, %v218
  %v220 = vrot.slane %v206, %v219
  %v221 = vcombine.high %v213, %v213
  %v223 = vunpack.c.l.s4 1966171168
  %v224 = vunpack.c.0.s8 %v223
  %v225 = vlaneseq
  %v226 = vshrl.u32 %v225, 7
  %v227 = vsub.s32 %v224, %v226
  %v228 = vrot.slane %v40, %v227
  %v229 = vcombine.high %v228, %v228
  %v231 = vunpack.c.l.s4 1966171168
  %v232 = vunpack.c.0.s8 %v231
  %v233 = vlaneseq
  %v234 = vshrl.u32 %v233, 7
  %v235 = vsub.s32 %v232, %v234
  %v236 = vrot.slane %v228, %v235
  %v238 = vunpack.c.l.s4 1966171168
  %v239 = vunpack.c.0.s8 %v238
  %v240 = vlaneseq
  %v241 = vshrl.u32 %v240, 7
  %v242 = vsub.s32 %v239, %v241
  %v243 = vrot.slane %v229, %v242
  %v244 = vcombine.high %v236, %v236
  %v246 = vunpack.c.l.s4 1966171168
  %v247 = vunpack.c.0.s8 %v246
  %v248 = vlaneseq
  %v249 = vshrl.u32 %v248, 7
  %v250 = vsub.s32 %v247, %v249
  %v251 = vrot.slane %v41, %v250
  %v252 = vcombine.high %v251, %v251
  %v254 = vunpack.c.l.s4 1966171168
  %v255 = vunpack.c.0.s8 %v254
  %v256 = vlaneseq
  %v257 = vshrl.u32 %v256, 7
  %v258 = vsub.s32 %v255, %v257
  %v259 = vrot.slane %v251, %v258
  %v261 = vunpack.c.l.s4 1966171168
  %v262 = vunpack.c.0.s8 %v261
  %v263 = vlaneseq
  %v264 = vshrl.u32 %v263, 7
  %v265 = vsub.s32 %v262, %v264
  %v266 = vrot.slane %v252, %v265
  %v267 = vcombine.high %v259, %v259
  %v269 = vunpack.c.l.s4 1966171168
  %v270 = vunpack.c.0.s8 %v269
  %v271 = vlaneseq
  %v272 = vshrl.u32 %v271, 7
  %v273 = vsub.s32 %v270, %v272
  %v274 = vrot.slane %v42, %v273
  %v275 = vcombine.high %v274, %v274
  %v277 = vunpack.c.l.s4 1966171168
  %v278 = vunpack.c.0.s8 %v277
  %v279 = vlaneseq
  %v280 = vshrl.u32 %v279, 7
  %v281 = vsub.s32 %v278, %v280
  %v282 = vrot.slane %v274, %v281
  %v284 = vunpack.c.l.s4 1966171168
  %v285 = vunpack.c.0.s8 %v284
  %v286 = vlaneseq
  %v287 = vshrl.u32 %v286, 7
  %v288 = vsub.s32 %v285, %v287
  %v289 = vrot.slane %v275, %v288
  %v290 = vcombine.high %v282, %v282
  %v292 = vunpack.c.l.s4 1966171168
  %v293 = vunpack.c.0.s8 %v292
  %v294 = vlaneseq
  %v295 = vshrl.u32 %v294, 7
  %v296 = vsub.s32 %v293, %v295
  %v297 = vrot.slane %v43, %v296
  %v298 = vcombine.high %v297, %v297
  %v300 = vunpack.c.l.s4 1966171168
  %v301 = vunpack.c.0.s8 %v300
  %v302 = vlaneseq
  %v303 = vshrl.u32 %v302, 7
  %v304 = vsub.s32 %v301, %v303
  %v305 = vrot.slane %v297, %v304
  %v307 = vunpack.c.l.s4 1966171168
  %v308 = vunpack.c.0.s8 %v307
  %v309 = vlaneseq
  %v310 = vshrl.u32 %v309, 7
  %v311 = vsub.s32 %v308, %v310
  %v312 = vrot.slane %v298, %v311
  %v313 = vcombine.high %v305, %v305
  %v315 = vunpack.c.l.s4 1966171168
  %v316 = vunpack.c.0.s8 %v315
  %v317 = vlaneseq
  %v318 = vshrl.u32 %v317, 7
  %v319 = vsub.s32 %v316, %v318
  %v320 = vrot.slane %v44, %v319
  %v321 = vcombine.high %v320, %v320
  %v323 = vunpack.c.l.s4 1966171168
  %v324 = vunpack.c.0.s8 %v323
  %v325 = vlaneseq
  %v326 = vshrl.u32 %v325, 7
  %v327 = vsub.s32 %v324, %v326
  %v328 = vrot.slane %v320, %v327
  %v330 = vunpack.c.l.s4 1966171168
  %v331 = vunpack.c.0.s8 %v330
  %v332 = vlaneseq
  %v333 = vshrl.u32 %v332, 7
  %v334 = vsub.s32 %v331, %v333
  %v335 = vrot.slane %v321, %v334
  %v336 = vcombine.high %v328, %v328
  %v338 = vunpack.c.l.s4 1966171168
  %v339 = vunpack.c.0.s8 %v338
  %v340 = vlaneseq
  %v341 = vshrl.u32 %v340, 7
  %v342 = vsub.s32 %v339, %v341
  %v343 = vrot.slane %v45, %v342
  %v344 = vcombine.high %v343, %v343
  %v346 = vunpack.c.l.s4 1966171168
  %v347 = vunpack.c.0.s8 %v346
  %v348 = vlaneseq
  %v349 = vshrl.u32 %v348, 7
  %v350 = vsub.s32 %v347, %v349
  %v351 = vrot.slane %v343, %v350
  %v353 = vunpack.c.l.s4 1966171168
  %v354 = vunpack.c.0.s8 %v353
  %v355 = vlaneseq
  %v356 = vshrl.u32 %v355, 7
  %v357 = vsub.s32 %v354, %v356
  %v358 = vrot.slane %v344, %v357
  %v359 = vcombine.high %v351, %v351
  %v361 = vunpack.c.l.s4 1966171168
  %v362 = vunpack.c.0.s8 %v361
  %v363 = vlaneseq
  %v364 = vshrl.u32 %v363, 7
  %v365 = vsub.s32 %v362, %v364
  %v366 = vrot.slane %v46, %v365
  %v367 = vcombine.high %v366, %v366
  %v369 = vunpack.c.l.s4 1966171168
  %v370 = vunpack.c.0.s8 %v369
  %v371 = vlaneseq
  %v372 = vshrl.u32 %v371, 7
  %v373 = vsub.s32 %v370, %v372
  %v374 = vrot.slane %v366, %v373
  %v376 = vunpack.c.l.s4 1966171168
  %v377 = vunpack.c.0.s8 %v376
  %v378 = vlaneseq
  %v379 = vshrl.u32 %v378, 7
  %v380 = vsub.s32 %v377, %v379
  %v381 = vrot.slane %v367, %v380
  %v382 = vcombine.high %v374, %v374
  %v383 = vunpack.i.l.s16 %v75
  %v384 = vunpack.i.h.s16 %v75
  %v385 = vunpack.i.l.s16 %v82
  %v386 = vunpack.i.h.s16 %v82
  %v387 = vunpack.i.l.s16 %v83
  %v388 = vunpack.i.l.s16 %v98
  %v389 = vunpack.i.h.s16 %v98
  %v390 = vunpack.i.l.s16 %v105
  %v391 = vunpack.i.h.s16 %v105
  %v392 = vunpack.i.l.s16 %v106
  %v393 = vunpack.i.l.s16 %v121
  %v394 = vunpack.i.h.s16 %v121
  %v395 = vunpack.i.l.s16 %v128
  %v396 = vunpack.i.h.s16 %v128
  %v397 = vunpack.i.l.s16 %v129
  %v398 = vunpack.i.l.s16 %v144
  %v399 = vunpack.i.h.s16 %v144
  %v400 = vunpack.i.l.s16 %v151
  %v401 = vunpack.i.h.s16 %v151
  %v402 = vunpack.i.l.s16 %v152
  %v403 = vunpack.i.l.s16 %v167
  %v404 = vunpack.i.h.s16 %v167
  %v405 = vunpack.i.l.s16 %v174
  %v406 = vunpack.i.h.s16 %v174
  %v407 = vunpack.i.l.s16 %v175
  %v408 = vunpack.i.l.s16 %v190
  %v409 = vunpack.i.h.s16 %v190
  %v410 = vunpack.i.l.s16 %v197
  %v411 = vunpack.i.h.s16 %v197
  %v412 = vunpack.i.l.s16 %v198
  %v413 = vunpack.i.l.s16 %v213
  %v414 = vunpack.i.h.s16 %v213
  %v415 = vunpack.i.l.s16 %v220
  %v416 = vunpack.i.h.s16 %v220
  %v417 = vunpack.i.l.s16 %v221
  %v418 = vunpack.i.l.s16 %v236
  %v419 = vunpack.i.h.s16 %v236
  %v420 = vunpack.i.l.s16 %v243
  %v421 = vunpack.i.h.s16 %v243
  %v422 = vunpack.i.l.s16 %v244
  %v423 = vunpack.i.l.s16 %v259
  %v424 = vunpack.i.h.s16 %v259
  %v425 = vunpack.i.l.s16 %v266
  %v426 = vunpack.i.h.s16 %v266
  %v427 = vunpack.i.l.s16 %v267
  %v428 = vunpack.i.l.s16 %v282
  %v429 = vunpack.i.h.s16 %v282
  %v430 = vunpack.i.l.s16 %v289
  %v431 = vunpack.i.h.s16 %v289
  %v432 = vunpack.i.l.s16 %v290
  %v433 = vunpack.i.l.s16 %v305
  %v434 = vunpack.i.h.s16 %v305
  %v435 = vunpack.i.l.s16 %v312
  %v436 = vunpack.i.h.s16 %v312
  %v437 = vunpack.i.l.s16 %v313
  %v438 = vunpack.i.l.s16 %v328
  %v439 = vunpack.i.h.s16 %v328
  %v440 = vunpack.i.l.s16 %v335
  %v441 = vunpack.i.h.s16 %v335
  %v442 = vunpack.i.l.s16 %v336
  %v443 = vunpack.i.l.s16 %v351
  %v444 = vunpack.i.h.s16 %v351
  %v445 = vunpack.i.l.s16 %v358
  %v446 = vunpack.i.h.s16 %v358
  %v447 = vunpack.i.l.s16 %v359
  %v448 = vunpack.i.l.s16 %v374
  %v449 = vunpack.i.h.s16 %v374
  %v450 = vunpack.i.l.s16 %v381
  %v451 = vunpack.i.h.s16 %v381
  %v452 = vunpack.i.l.s16 %v382
  %v453 = vld [vmem:[%s1] sm:$0xf]
  %v454 = vld [vmem:[%s1 + $0x4] sm:$0xf]
  %v455 = vld [vmem:[%s1 + $0x8] sm:$0xf]
  %v456 = vld [vmem:[%s1 + $0xc] sm:$0xf]
  %v457 = vld [vmem:[%s1 + $0x10] sm:$0xf]
  %v458 = vld [vmem:[%s1 + $0x14] sm:$0xf]
  %v459 = vld [vmem:[%s1 + $0x18] sm:$0xf]
  %v460 = vld [vmem:[%s1 + $0x1c] sm:$0xf]
  %v461 = vld [vmem:[%s1 + $0x20] sm:$0xf]
  %v462 = vld [vmem:[%s1 + $0x24] sm:$0xf]
  %v463 = vld [vmem:[%s1 + $0x28] sm:$0xf]
  %v464 = vld [vmem:[%s1 + $0x2c] sm:$0xf]
  %v465 = vld [vmem:[%s1 + $0x30] sm:$0xf]
  %v466 = vld [vmem:[%s1 + $0x34] sm:$0xf]
  %v467 = vld [vmem:[%s1 + $0x38] sm:$0xf]
  %v468 = vld [vmem:[%s1 + $0x3c] sm:$0xf]
  %v469 = vpack.i.b16 %v384, %v383
  %v470 = vpack.i.b16 %v386, %v385
  %v471 = vpack.i.b16 %v388, %v387
  %v472 = vpack.i.b16 %v390, %v389
  %v473 = vpack.i.b16 %v392, %v391
  %v474 = vpack.i.b16 %v394, %v393
  %v475 = vpack.i.b16 %v396, %v395
  %v476 = vpack.i.b16 %v398, %v397
  %v477 = vpack.i.b16 %v400, %v399
  %v478 = vpack.i.b16 %v402, %v401
  %v479 = vpack.i.b16 %v404, %v403
  %v480 = vpack.i.b16 %v406, %v405
  %v481 = vpack.i.b16 %v408, %v407
  %v482 = vpack.i.b16 %v410, %v409
  %v483 = vpack.i.b16 %v412, %v411
  %v484 = vpack.i.b16 %v414, %v413
  %v485 = vpack.i.b16 %v416, %v415
  %v486 = vpack.i.b16 %v418, %v417
  %v487 = vpack.i.b16 %v420, %v419
  %v488 = vpack.i.b16 %v422, %v421
  %v489 = vpack.i.b16 %v424, %v423
  %v490 = vpack.i.b16 %v426, %v425
  %v491 = vpack.i.b16 %v428, %v427
  %v492 = vpack.i.b16 %v430, %v429
  %v493 = vpack.i.b16 %v432, %v431
  %v494 = vpack.i.b16 %v434, %v433
  %v495 = vpack.i.b16 %v436, %v435
  %v496 = vpack.i.b16 %v438, %v437
  %v497 = vpack.i.b16 %v440, %v439
  %v498 = vpack.i.b16 %v442, %v441
  %v499 = vpack.i.b16 %v444, %v443
  %v500 = vpack.i.b16 %v446, %v445
  %v501 = vpack.i.b16 %v448, %v447
  %v502 = vpack.i.b16 %v450, %v449
  %v503 = vpack.i.b16 %v452, %v451
  %v504 = vcombine.low %v469, %v470
  %v505 = vcombine.low %v471, %v472
  %v506 = vcombine.low %v473, %v474
  %v507 = vcombine.low %v475, %v476
  %v509 = vunpack.c.l.s4 1966171168
  %v510 = vunpack.c.0.s8 %v509
  %v511 = vlaneseq
  %v512 = vshrl.u32 %v511, 7
  %v513 = vsub.s32 %v510, %v512
  %v514 = vrot.slane %v504, %v513
  %v516 = vunpack.c.l.s4 1966171168
  %v517 = vunpack.c.0.s8 %v516
  %v518 = vlaneseq
  %v519 = vshrl.u32 %v518, 7
  %v520 = vsub.s32 %v517, %v519
  %v521 = vrot.slane %v505, %v520
  %v523 = vunpack.c.l.s4 1966171168
  %v524 = vunpack.c.0.s8 %v523
  %v525 = vlaneseq
  %v526 = vshrl.u32 %v525, 7
  %v527 = vsub.s32 %v524, %v526
  %v528 = vrot.slane %v506, %v527
  %v530 = vunpack.c.l.s4 1966171168
  %v531 = vunpack.c.0.s8 %v530
  %v532 = vlaneseq
  %v533 = vshrl.u32 %v532, 7
  %v534 = vsub.s32 %v531, %v533
  %v535 = vrot.slane %v507, %v534
  %v536 = vcombine.low %v514, %v521
  %v537 = vcombine.low %v528, %v535
  %v539 = vunpack.c.l.s4 1966171168
  %v540 = vunpack.c.0.s8 %v539
  %v541 = vlaneseq
  %v542 = vshrl.u32 %v541, 7
  %v543 = vsub.s32 %v540, %v542
  %v544 = vrot.slane %v536, %v543
  %v546 = vunpack.c.l.s4 1966171168
  %v547 = vunpack.c.0.s8 %v546
  %v548 = vlaneseq
  %v549 = vshrl.u32 %v548, 7
  %v550 = vsub.s32 %v547, %v549
  %v551 = vrot.slane %v537, %v550
  %v552 = vcombine.low %v544, %v551
  %v553 = vcombine.low %v477, %v478
  %v554 = vcombine.low %v479, %v480
  %v555 = vcombine.low %v481, %v482
  %v556 = vcombine.low %v483, %v484
  %v558 = vunpack.c.l.s4 1966171168
  %v559 = vunpack.c.0.s8 %v558
  %v560 = vlaneseq
  %v561 = vshrl.u32 %v560, 7
  %v562 = vsub.s32 %v559, %v561
  %v563 = vrot.slane %v553, %v562
  %v565 = vunpack.c.l.s4 1966171168
  %v566 = vunpack.c.0.s8 %v565
  %v567 = vlaneseq
  %v568 = vshrl.u32 %v567, 7
  %v569 = vsub.s32 %v566, %v568
  %v570 = vrot.slane %v554, %v569
  %v572 = vunpack.c.l.s4 1966171168
  %v573 = vunpack.c.0.s8 %v572
  %v574 = vlaneseq
  %v575 = vshrl.u32 %v574, 7
  %v576 = vsub.s32 %v573, %v575
  %v577 = vrot.slane %v555, %v576
  %v579 = vunpack.c.l.s4 1966171168
  %v580 = vunpack.c.0.s8 %v579
  %v581 = vlaneseq
  %v582 = vshrl.u32 %v581, 7
  %v583 = vsub.s32 %v580, %v582
  %v584 = vrot.slane %v556, %v583
  %v585 = vcombine.low %v563, %v570
  %v586 = vcombine.low %v577, %v584
  %v588 = vunpack.c.l.s4 1966171168
  %v589 = vunpack.c.0.s8 %v588
  %v590 = vlaneseq
  %v591 = vshrl.u32 %v590, 7
  %v592 = vsub.s32 %v589, %v591
  %v593 = vrot.slane %v585, %v592
  %v595 = vunpack.c.l.s4 1966171168
  %v596 = vunpack.c.0.s8 %v595
  %v597 = vlaneseq
  %v598 = vshrl.u32 %v597, 7
  %v599 = vsub.s32 %v596, %v598
  %v600 = vrot.slane %v586, %v599
  %v601 = vcombine.low %v593, %v600
  %v602 = vcombine.low %v485, %v486
  %v603 = vcombine.low %v487, %v488
  %v604 = vcombine.low %v489, %v490
  %v605 = vcombine.low %v491, %v492
  %v607 = vunpack.c.l.s4 1966171168
  %v608 = vunpack.c.0.s8 %v607
  %v609 = vlaneseq
  %v610 = vshrl.u32 %v609, 7
  %v611 = vsub.s32 %v608, %v610
  %v612 = vrot.slane %v602, %v611
  %v614 = vunpack.c.l.s4 1966171168
  %v615 = vunpack.c.0.s8 %v614
  %v616 = vlaneseq
  %v617 = vshrl.u32 %v616, 7
  %v618 = vsub.s32 %v615, %v617
  %v619 = vrot.slane %v603, %v618
  %v621 = vunpack.c.l.s4 1966171168
  %v622 = vunpack.c.0.s8 %v621
  %v623 = vlaneseq
  %v624 = vshrl.u32 %v623, 7
  %v625 = vsub.s32 %v622, %v624
  %v626 = vrot.slane %v604, %v625
  %v628 = vunpack.c.l.s4 1966171168
  %v629 = vunpack.c.0.s8 %v628
  %v630 = vlaneseq
  %v631 = vshrl.u32 %v630, 7
  %v632 = vsub.s32 %v629, %v631
  %v633 = vrot.slane %v605, %v632
  %v634 = vcombine.low %v612, %v619
  %v635 = vcombine.low %v626, %v633
  %v637 = vunpack.c.l.s4 1966171168
  %v638 = vunpack.c.0.s8 %v637
  %v639 = vlaneseq
  %v640 = vshrl.u32 %v639, 7
  %v641 = vsub.s32 %v638, %v640
  %v642 = vrot.slane %v634, %v641
  %v644 = vunpack.c.l.s4 1966171168
  %v645 = vunpack.c.0.s8 %v644
  %v646 = vlaneseq
  %v647 = vshrl.u32 %v646, 7
  %v648 = vsub.s32 %v645, %v647
  %v649 = vrot.slane %v635, %v648
  %v650 = vcombine.low %v642, %v649
  %v651 = vcombine.low %v493, %v494
  %v652 = vcombine.low %v495, %v496
  %v653 = vcombine.low %v497, %v498
  %v654 = vcombine.low %v499, %v500
  %v656 = vunpack.c.l.s4 1966171168
  %v657 = vunpack.c.0.s8 %v656
  %v658 = vlaneseq
  %v659 = vshrl.u32 %v658, 7
  %v660 = vsub.s32 %v657, %v659
  %v661 = vrot.slane %v651, %v660
  %v663 = vunpack.c.l.s4 1966171168
  %v664 = vunpack.c.0.s8 %v663
  %v665 = vlaneseq
  %v666 = vshrl.u32 %v665, 7
  %v667 = vsub.s32 %v664, %v666
  %v668 = vrot.slane %v652, %v667
  %v670 = vunpack.c.l.s4 1966171168
  %v671 = vunpack.c.0.s8 %v670
  %v672 = vlaneseq
  %v673 = vshrl.u32 %v672, 7
  %v674 = vsub.s32 %v671, %v673
  %v675 = vrot.slane %v653, %v674
  %v677 = vunpack.c.l.s4 1966171168
  %v678 = vunpack.c.0.s8 %v677
  %v679 = vlaneseq
  %v680 = vshrl.u32 %v679, 7
  %v681 = vsub.s32 %v678, %v680
  %v682 = vrot.slane %v654, %v681
  %v683 = vcombine.low %v661, %v668
  %v684 = vcombine.low %v675, %v682
  %v686 = vunpack.c.l.s4 1966171168
  %v687 = vunpack.c.0.s8 %v686
  %v688 = vlaneseq
  %v689 = vshrl.u32 %v688, 7
  %v690 = vsub.s32 %v687, %v689
  %v691 = vrot.slane %v683, %v690
  %v693 = vunpack.c.l.s4 1966171168
  %v694 = vunpack.c.0.s8 %v693
  %v695 = vlaneseq
  %v696 = vshrl.u32 %v695, 7
  %v697 = vsub.s32 %v694, %v696
  %v698 = vrot.slane %v684, %v697
  %v699 = vcombine.low %v691, %v698
  %v700 = vcombine.low %v501, %v502
  %v702 = vunpack.c.l.s4 1966171168
  %v703 = vunpack.c.0.s8 %v702
  %v704 = vlaneseq
  %v705 = vshrl.u32 %v704, 7
  %v706 = vsub.s32 %v703, %v705
  %v707 = vrot.slane %v700, %v706
  %v709 = vunpack.c.l.s4 1966171168
  %v710 = vunpack.c.0.s8 %v709
  %v711 = vlaneseq
  %v712 = vshrl.u32 %v711, 7
  %v713 = vsub.s32 %v710, %v712
  %v714 = vrot.slane %v503, %v713
  %v715 = vcombine.low %v707, %v714
  %v717 = vunpack.c.l.s4 1966171168
  %v718 = vunpack.c.0.s8 %v717
  %v719 = vlaneseq
  %v720 = vshrl.u32 %v719, 7
  %v721 = vsub.s32 %v718, %v720
  %v722 = vrot.slane %v715, %v721
  %v744 = vunpack.c.l.b16 %v453
  %v745 = vunpack.c.l.b16 %v454
  %v746 = vunpack.c.l.b16 %v455
  %v747 = vunpack.c.l.b16 %v456
  %v748 = vunpack.c.l.b16 %v457
  %v749 = vunpack.c.l.b16 %v458
  %v750 = vunpack.c.l.b16 %v459
  %v751 = vunpack.c.l.b16 %v460
  %v752 = vunpack.c.l.b16 %v461
  %v753 = vunpack.c.l.b16 %v462
  %v754 = vunpack.c.l.b16 %v463
  %v755 = vunpack.c.l.b16 %v464
  %v756 = vunpack.c.l.b16 %v465
  %v757 = vunpack.c.l.b16 %v466
  %v758 = vunpack.c.l.b16 %v467
  %v759 = vunpack.c.l.b16 %v468
  %v760 = vpack.c.b16 %v745, %v744
  %v761 = vpack.c.b16 %v747, %v746
  %v762 = vpack.c.b16 %v749, %v748
  %v763 = vpack.c.b16 %v751, %v750
  %v764 = vpack.c.b16 %v753, %v752
  %v765 = vpack.c.b16 %v755, %v754
  %v766 = vpack.c.b16 %v757, %v756
  %v767 = vpack.c.b16 %v759, %v758
  %776 = vmatprep.subr.bf16.mxu0 0
  %777 = vmatpush1.bf16.msra.mxu0 %v760
  %778 = vmatprep.subr.bf16.mxu0 0
  %779 = vmatpush1.bf16.msra.mxu0 %v761
  %780 = vmatprep.subr.bf16.mxu0 0
  %781 = vmatpush1.bf16.msra.mxu0 %v762
  %782 = vmatprep.subr.bf16.mxu0 0
  %783 = vmatpush1.bf16.msra.mxu0 %v763
  %784 = vmatprep.subr.bf16.mxu0 0
  %785 = vmatpush1.bf16.msra.mxu0 %v764
  %786 = vmatprep.subr.bf16.mxu0 0
  %787 = vmatpush1.bf16.msra.mxu0 %v765
  %788 = vmatprep.subr.bf16.mxu0 0
  %789 = vmatpush1.bf16.msra.mxu0 %v766
  %790 = vmatprep.subr.bf16.mxu0 0
  %791 = vmatpush1.bf16.msra.mxu0 %v767
  %792 = vmatprep.subr.bf16.mxu0 0
  %793 = vmatpush1.bf16.msra.mxu0 0
  %794 = vmatprep.subr.bf16.mxu0 0
  %795 = vmatpush1.bf16.msra.mxu0 0
  %796 = vmatprep.subr.bf16.mxu0 0
  %797 = vmatpush1.bf16.msra.mxu0 0
  %798 = vmatprep.subr.bf16.mxu0 0
  %799 = vmatpush1.bf16.msra.mxu0 0
  %800 = vmatprep.subr.bf16.mxu0 0
  %801 = vmatpush1.bf16.msra.mxu0 0
  %802 = vmatprep.subr.bf16.mxu0 0
  %803 = vmatpush1.bf16.msra.mxu0 0
  %804 = vmatprep.subr.bf16.mxu0 0
  %805 = vmatpush1.bf16.msra.mxu0 0
  %806 = vmatprep.subr.bf16.mxu0 0
  %807 = vmatpush1.bf16.msra.mxu0 0
  %808 = vmatprep.mubr.bf16.mxu0 0
  %809 = vmatmul.mubr.bf16.gmra.mrb[0].mxu0 %v552
  %v810 = vpop.f32.mrb[0].mxu0
  %v811 = vadd.f32 0.0, %v810
  %v812 = vpop.f32.mrb[0].mxu0
  %v813 = vpop.f32.mrb[0].mxu0
  %v814 = vadd.f32 0.0, %v813
  %v815 = vpop.f32.mrb[0].mxu0
  %816 = vmatprep.mubr.bf16.mxu0 0
  %817 = vmatmul.mubr.bf16.gmra.mrb[0].mxu0 %v601
  %v818 = vpop.f32.mrb[0].mxu0
  %v819 = vadd.f32 0.0, %v818
  %v820 = vpop.f32.mrb[0].mxu0
  %v821 = vpop.f32.mrb[0].mxu0
  %v822 = vadd.f32 0.0, %v821
  %v823 = vpop.f32.mrb[0].mxu0
  %824 = vmatprep.mubr.bf16.mxu0 0
  %825 = vmatmul.mubr.bf16.gmra.mrb[0].mxu0 %v650
  %v826 = vpop.f32.mrb[0].mxu0
  %v827 = vadd.f32 0.0, %v826
  %v828 = vpop.f32.mrb[0].mxu0
  %v829 = vpop.f32.mrb[0].mxu0
  %v830 = vadd.f32 0.0, %v829
  %v831 = vpop.f32.mrb[0].mxu0
  %832 = vmatprep.mubr.bf16.mxu0 0
  %833 = vmatmul.mubr.bf16.gmra.mrb[0].mxu0 %v699
  %v834 = vpop.f32.mrb[0].mxu0
  %v835 = vadd.f32 0.0, %v834
  %v836 = vpop.f32.mrb[0].mxu0
  %v837 = vpop.f32.mrb[0].mxu0
  %v838 = vadd.f32 0.0, %v837
  %v839 = vpop.f32.mrb[0].mxu0
  %840 = vmatprep.mubr.bf16.mxu0 0
  %841 = vmatmul.mubr.bf16.gmra.mrb[0].mxu0 %v722
  %v842 = vpop.f32.mrb[0].mxu0
  %v843 = vadd.f32 0.0, %v842
  %v844 = vpop.f32.mrb[0].mxu0
  %v845 = vpop.f32.mrb[0].mxu0
  %v846 = vpop.f32.mrb[0].mxu0
  %847 = vdwg.mxu0
  %v848 = vld [vmem:[%s2] sm:$0x1]
  %v849 = vld [vmem:[%s3] sm:$0x1]
  %v850 = vld [vmem:[%s4] sm:$0x1]
  %v851 = vld [vmem:[%s5] sm:$0xff]
  %v852 = vld [vmem:[%s5 + $0x8] sm:$0xf]
  %v853 = vld [vmem:[%s5 + $0xc] sm:$0xff]
  %v854 = vld [vmem:[%s5 + $0x14] sm:$0xf]
  %v855 = vld [vmem:[%s5 + $0x18] sm:$0xff]
  %v856 = vld [vmem:[%s5 + $0x20] sm:$0xf]
  %v857 = vld [vmem:[%s5 + $0x24] sm:$0xff]
  %v858 = vld [vmem:[%s5 + $0x2c] sm:$0xf]
  %v859 = vld [vmem:[%s5 + $0x30] sm:$0xff]
  %v860 = vld [vmem:[%s5 + $0x38] sm:$0xf]
  %v861 = vld [vmem:[%s5 + $0x3c] sm:$0xff]
  %v862 = vld [vmem:[%s5 + $0x44] sm:$0xf]
  %v863 = vld [vmem:[%s5 + $0x48] sm:$0xff]
  %v864 = vld [vmem:[%s5 + $0x50] sm:$0xf]
  %v865 = vld [vmem:[%s5 + $0x54] sm:$0xff]
  %v866 = vld [vmem:[%s5 + $0x5c] sm:$0xf]
  %v867 = vld [vmem:[%s5 + $0x60] sm:$0xff]
  %v868 = vld [vmem:[%s5 + $0x68] sm:$0xf]
  %v869 = vld [vmem:[%s5 + $0x6c] sm:$0xff]
  %v870 = vld [vmem:[%s5 + $0x74] sm:$0xf]
  %v871 = vld [vmem:[%s5 + $0x78] sm:$0xff]
  %v872 = vld [vmem:[%s5 + $0x80] sm:$0xf]
  %v873 = vld [vmem:[%s5 + $0x84] sm:$0xff]
  %v874 = vld [vmem:[%s5 + $0x8c] sm:$0xf]
  %v875 = vld [vmem:[%s5 + $0x90] sm:$0xff]
  %v876 = vld [vmem:[%s5 + $0x98] sm:$0xf]
  %v877 = vld [vmem:[%s5 + $0x9c] sm:$0xff]
  %v878 = vld [vmem:[%s5 + $0xa4] sm:$0xf]
  %v879 = vld [vmem:[%s5 + $0xa8] sm:$0xff]
  %v880 = vld [vmem:[%s5 + $0xb0] sm:$0xf]
  %v881 = vld [vmem:[%s5 + $0xb4] sm:$0xff]
  %v882 = vld [vmem:[%s5 + $0xbc] sm:$0xf]
  %v883 = vld [vmem:[%s6] sm:$0xf]
  %v884 = vld [vmem:[%s6 + $0x4] sm:$0xf]
  %v885 = vld [vmem:[%s6 + $0x8] sm:$0xf]
  %v886 = vld [vmem:[%s6 + $0xc] sm:$0xf]
  %v887 = vld [vmem:[%s6 + $0x10] sm:$0xf]
  %v888 = vld [vmem:[%s6 + $0x14] sm:$0xf]
  %v889 = vld [vmem:[%s6 + $0x18] sm:$0xf]
  %v890 = vld [vmem:[%s6 + $0x1c] sm:$0xf]
  %v891 = vld [vmem:[%s6 + $0x20] sm:$0xf]
  %v892 = vld [vmem:[%s6 + $0x24] sm:$0xf]
  %v893 = vld [vmem:[%s6 + $0x28] sm:$0xf]
  %v894 = vld [vmem:[%s6 + $0x2c] sm:$0xf]
  %v895 = vld [vmem:[%s6 + $0x30] sm:$0xf]
  %v896 = vld [vmem:[%s6 + $0x34] sm:$0xf]
  %v897 = vld [vmem:[%s6 + $0x38] sm:$0xf]
  %v898 = vld [vmem:[%s6 + $0x3c] sm:$0xf]
  %v899 = vld [vmem:[%s7] sm:$0xff]
  %v900 = vld [vmem:[%s7 + $0x8] sm:$0xff]
  %v901 = vld [vmem:[%s7 + $0x10] sm:$0xff]
  %v902 = vld [vmem:[%s7 + $0x18] sm:$0xff]
  %v903 = vld [vmem:[%s7 + $0x20] sm:$0xff]
  %v904 = vld [vmem:[%s7 + $0x28] sm:$0xff]
  %v905 = vld [vmem:[%s7 + $0x30] sm:$0xff]
  %v906 = vld [vmem:[%s7 + $0x38] sm:$0xff]
  %v907 = vld [vmem:[%s7 + $0x40] sm:$0xff]
  %v908 = vld [vmem:[%s7 + $0x48] sm:$0xff]
  %v909 = vld [vmem:[%s7 + $0x50] sm:$0xff]
  %v910 = vld [vmem:[%s7 + $0x58] sm:$0xff]
  %v911 = vld [vmem:[%s7 + $0x60] sm:$0xff]
  %v912 = vld [vmem:[%s7 + $0x68] sm:$0xff]
  %v913 = vld [vmem:[%s7 + $0x70] sm:$0xff]
  %v914 = vld [vmem:[%s7 + $0x78] sm:$0xff]
  %v915 = vld [vmem:[%s7 + $0x80] sm:$0xff]
  %v916 = vld [vmem:[%s7 + $0x88] sm:$0xff]
  %v917 = vld [vmem:[%s7 + $0x90] sm:$0xff]
  %v918 = vld [vmem:[%s7 + $0x98] sm:$0xff]
  %v919 = vld [vmem:[%s7 + $0xa0] sm:$0xff]
  %v920 = vld [vmem:[%s7 + $0xa8] sm:$0xff]
  %v921 = vld [vmem:[%s7 + $0xb0] sm:$0xff]
  %v922 = vld [vmem:[%s7 + $0xb8] sm:$0xff]
  %v923 = vld [vmem:[%s7 + $0xc0] sm:$0xff]
  %v924 = vld [vmem:[%s7 + $0xc8] sm:$0xff]
  %v925 = vld [vmem:[%s7 + $0xd0] sm:$0xff]
  %v926 = vld [vmem:[%s7 + $0xd8] sm:$0xff]
  %v927 = vld [vmem:[%s7 + $0xe0] sm:$0xff]
  %v928 = vld [vmem:[%s7 + $0xe8] sm:$0xff]
  %v929 = vld [vmem:[%s7 + $0xf0] sm:$0xff]
  %v930 = vld [vmem:[%s7 + $0xf8] sm:$0xff]
  %v931 = vld [vmem:[%s8] sm:$0xf]
  %v932 = vld [vmem:[%s8 + $0x4] sm:$0xf]
  %v933 = vld [vmem:[%s8 + $0x8] sm:$0xf]
  %v934 = vld [vmem:[%s8 + $0xc] sm:$0xf]
  %v935 = vld [vmem:[%s8 + $0x10] sm:$0xf]
  %v936 = vld [vmem:[%s8 + $0x14] sm:$0xf]
  %v937 = vld [vmem:[%s8 + $0x18] sm:$0xf]
  %v938 = vld [vmem:[%s8 + $0x1c] sm:$0xf]
  %v939 = vld [vmem:[%s8 + $0x20] sm:$0xf]
  %v940 = vld [vmem:[%s8 + $0x24] sm:$0xf]
  %v941 = vld [vmem:[%s8 + $0x28] sm:$0xf]
  %v942 = vld [vmem:[%s8 + $0x2c] sm:$0xf]
  %v943 = vld [vmem:[%s8 + $0x30] sm:$0xf]
  %v944 = vld [vmem:[%s8 + $0x34] sm:$0xf]
  %v945 = vld [vmem:[%s8 + $0x38] sm:$0xf]
  %v946 = vld [vmem:[%s8 + $0x3c] sm:$0xf]
  %v947 = vld [vmem:[%s8 + $0x40] sm:$0xf]
  %v948 = vld [vmem:[%s8 + $0x44] sm:$0xf]
  %v949 = vld [vmem:[%s8 + $0x48] sm:$0xf]
  %v950 = vld [vmem:[%s8 + $0x4c] sm:$0xf]
  %v951 = vld [vmem:[%s8 + $0x50] sm:$0xf]
  %v952 = vld [vmem:[%s8 + $0x54] sm:$0xf]
  %v953 = vld [vmem:[%s8 + $0x58] sm:$0xf]
  %v954 = vld [vmem:[%s8 + $0x5c] sm:$0xf]
  %v955 = vld [vmem:[%s8 + $0x60] sm:$0xf]
  %v956 = vld [vmem:[%s8 + $0x64] sm:$0xf]
  %v957 = vld [vmem:[%s8 + $0x68] sm:$0xf]
  %v958 = vld [vmem:[%s8 + $0x6c] sm:$0xf]
  %v959 = vld [vmem:[%s8 + $0x70] sm:$0xf]
  %v960 = vld [vmem:[%s8 + $0x74] sm:$0xf]
  %v961 = vld [vmem:[%s8 + $0x78] sm:$0xf]
  %v962 = vld [vmem:[%s8 + $0x7c] sm:$0xf]
  %v963 = vmul.f32 %v811, %v811
  %v964 = vmul.f32 %v814, %v814
  %v965 = vmul.f32 %v819, %v819
  %v966 = vmul.f32 %v822, %v822
  %v967 = vmul.f32 %v827, %v827
  %v968 = vmul.f32 %v830, %v830
  %v969 = vmul.f32 %v835, %v835
  %v970 = vmul.f32 %v838, %v838
  %v971 = vmul.f32 %v843, %v843
  %972 = vadd.xlane.f32.xlu0 %v963
  %v973 = vpop.xlane.xlu0 %972
  %974 = vadd.xlane.f32.xlu0 %v964
  %v975 = vpop.xlane.xlu0 %974
  %976 = vadd.xlane.f32.xlu0 %v965
  %v977 = vpop.xlane.xlu0 %976
  %978 = vadd.xlane.f32.xlu0 %v966
  %v979 = vpop.xlane.xlu0 %978
  %980 = vadd.xlane.f32.xlu0 %v967
  %v981 = vpop.xlane.xlu0 %980
  %982 = vadd.xlane.f32.xlu0 %v968
  %v983 = vpop.xlane.xlu0 %982
  %984 = vadd.xlane.f32.xlu0 %v969
  %v985 = vpop.xlane.xlu0 %984
  %986 = vadd.xlane.f32.xlu0 %v970
  %v987 = vpop.xlane.xlu0 %986
  %vm988 = vcmask 1045504
  %v989 = vsel %vm988, %v971, 0.0
  %990 = vadd.xlane.f32.xlu0 %v989
  %v991 = vpop.xlane.xlu0 %990
  %v992 = vrcp.pop 128.0
  %v993 = vmul.f32 %v973, %v992
  %v994 = vmul.f32 %v975, %v992
  %v995 = vmul.f32 %v977, %v992
  %v996 = vmul.f32 %v979, %v992
  %v997 = vmul.f32 %v981, %v992
  %v998 = vmul.f32 %v983, %v992
  %v999 = vmul.f32 %v985, %v992
  %v1000 = vmul.f32 %v987, %v992
  %v1001 = vmul.f32 %v991, %v992
  %v1002 = vadd.f32 %v993, 1e-05
  %v1003 = vadd.f32 %v994, 1e-05
  %v1004 = vadd.f32 %v995, 1e-05
  %v1005 = vadd.f32 %v996, 1e-05
  %v1006 = vadd.f32 %v997, 1e-05
  %v1007 = vadd.f32 %v998, 1e-05
  %v1008 = vadd.f32 %v999, 1e-05
  %v1009 = vadd.f32 %v1000, 1e-05
  %v1010 = vadd.f32 %v1001, 1e-05
  %v1011 = vrsqrt.pop %v1002
  %v1012 = vrsqrt.pop %v1003
  %v1013 = vrsqrt.pop %v1004
  %v1014 = vrsqrt.pop %v1005
  %v1015 = vrsqrt.pop %v1006
  %v1016 = vrsqrt.pop %v1007
  %v1017 = vrsqrt.pop %v1008
  %v1018 = vrsqrt.pop %v1009
  %v1019 = vrsqrt.pop %v1010
  %v1020 = vmul.f32 %v811, %v1011
  %v1021 = vmul.f32 %v814, %v1012
  %v1022 = vmul.f32 %v819, %v1013
  %v1023 = vmul.f32 %v822, %v1014
  %v1024 = vmul.f32 %v827, %v1015
  %v1025 = vmul.f32 %v830, %v1016
  %v1026 = vmul.f32 %v835, %v1017
  %v1027 = vmul.f32 %v838, %v1018
  %v1028 = vmul.f32 %v843, %v1019
  %v1030 = vlaneseq
  %v1031 = vshrl.u32 %v1030, 7
  %v1032 = vsub.s32 0, %v1031
  %v1033 = vrot.slane %v848, %v1032
  %v1035 = vmul.f32 %v1020, %v1033
  %v1036 = vmul.f32 %v1021, %v1033
  %v1037 = vmul.f32 %v1022, %v1033
  %v1038 = vmul.f32 %v1023, %v1033
  %v1039 = vmul.f32 %v1024, %v1033
  %v1040 = vmul.f32 %v1025, %v1033
  %v1041 = vmul.f32 %v1026, %v1033
  %v1042 = vmul.f32 %v1027, %v1033
  %v1043 = vmul.f32 %v1028, %v1033
  %v1044 = vpack.c.bf16 %v1036, %v1035
  %v1045 = vpack.c.bf16 %v1038, %v1037
  %v1046 = vpack.c.bf16 %v1040, %v1039
  %v1047 = vpack.c.bf16 %v1042, %v1041
  %v1048 = vpack.c.bf16 %v1043, %v1043
  %v1081 = vunpack.c.l.b16 %v851
  %v1082 = vunpack.c.h.b16 %v851
  %v1083 = vunpack.c.l.b16 %v852
  %v1084 = vunpack.c.l.b16 %v853
  %v1085 = vunpack.c.h.b16 %v853
  %v1086 = vunpack.c.l.b16 %v854
  %v1087 = vunpack.c.l.b16 %v855
  %v1088 = vunpack.c.h.b16 %v855
  %v1089 = vunpack.c.l.b16 %v856
  %v1090 = vunpack.c.l.b16 %v857
  %v1091 = vunpack.c.h.b16 %v857
  %v1092 = vunpack.c.l.b16 %v858
  %v1093 = vunpack.c.l.b16 %v859
  %v1094 = vunpack.c.h.b16 %v859
  %v1095 = vunpack.c.l.b16 %v860
  %v1096 = vunpack.c.l.b16 %v861
  %v1097 = vunpack.c.h.b16 %v861
  %v1098 = vunpack.c.l.b16 %v862
  %v1099 = vunpack.c.l.b16 %v863
  %v1100 = vunpack.c.h.b16 %v863
  %v1101 = vunpack.c.l.b16 %v864
  %v1102 = vunpack.c.l.b16 %v865
  %v1103 = vunpack.c.h.b16 %v865
  %v1104 = vunpack.c.l.b16 %v866
  %v1105 = vunpack.c.l.b16 %v867
  %v1106 = vunpack.c.h.b16 %v867
  %v1107 = vunpack.c.l.b16 %v868
  %v1108 = vunpack.c.l.b16 %v869
  %v1109 = vunpack.c.h.b16 %v869
  %v1110 = vunpack.c.l.b16 %v870
  %v1111 = vunpack.c.l.b16 %v871
  %v1112 = vunpack.c.h.b16 %v871
  %v1113 = vunpack.c.l.b16 %v872
  %v1114 = vunpack.c.l.b16 %v873
  %v1115 = vunpack.c.h.b16 %v873
  %v1116 = vunpack.c.l.b16 %v874
  %v1117 = vunpack.c.l.b16 %v875
  %v1118 = vunpack.c.h.b16 %v875
  %v1119 = vunpack.c.l.b16 %v876
  %v1120 = vunpack.c.l.b16 %v877
  %v1121 = vunpack.c.h.b16 %v877
  %v1122 = vunpack.c.l.b16 %v878
  %v1123 = vunpack.c.l.b16 %v879
  %v1124 = vunpack.c.h.b16 %v879
  %v1125 = vunpack.c.l.b16 %v880
  %v1126 = vunpack.c.l.b16 %v881
  %v1127 = vunpack.c.h.b16 %v881
  %v1128 = vunpack.c.l.b16 %v882
  %v1129 = vpack.c.b16 %v1084, %v1081
  %v1130 = vpack.c.b16 %v1085, %v1082
  %v1131 = vpack.c.b16 %v1086, %v1083
  %v1132 = vpack.c.b16 %v1090, %v1087
  %v1133 = vpack.c.b16 %v1091, %v1088
  %v1134 = vpack.c.b16 %v1092, %v1089
  %v1135 = vpack.c.b16 %v1096, %v1093
  %v1136 = vpack.c.b16 %v1097, %v1094
  %v1137 = vpack.c.b16 %v1098, %v1095
  %v1138 = vpack.c.b16 %v1102, %v1099
  %v1139 = vpack.c.b16 %v1103, %v1100
  %v1140 = vpack.c.b16 %v1104, %v1101
  %v1141 = vpack.c.b16 %v1108, %v1105
  %v1142 = vpack.c.b16 %v1109, %v1106
  %v1143 = vpack.c.b16 %v1110, %v1107
  %v1144 = vpack.c.b16 %v1114, %v1111
  %v1145 = vpack.c.b16 %v1115, %v1112
  %v1146 = vpack.c.b16 %v1116, %v1113
  %v1147 = vpack.c.b16 %v1120, %v1117
  %v1148 = vpack.c.b16 %v1121, %v1118
  %v1149 = vpack.c.b16 %v1122, %v1119
  %v1150 = vpack.c.b16 %v1126, %v1123
  %v1151 = vpack.c.b16 %v1127, %v1124
  %v1152 = vpack.c.b16 %v1128, %v1125
  %1177 = vmatprep.subr.bf16.mxu0 %v1130
  %1178 = vmatpush1.bf16.msra.mxu0 %v1129
  %1179 = vmatprep.subr.bf16.mxu0 %v1133
  %1180 = vmatpush1.bf16.msra.mxu0 %v1132
  %1181 = vmatprep.subr.bf16.mxu0 %v1136
  %1182 = vmatpush1.bf16.msra.mxu0 %v1135
  %1183 = vmatprep.subr.bf16.mxu0 %v1139
  %1184 = vmatpush1.bf16.msra.mxu0 %v1138
  %1185 = vmatprep.subr.bf16.mxu0 %v1142
  %1186 = vmatpush1.bf16.msra.mxu0 %v1141
  %1187 = vmatprep.subr.bf16.mxu0 %v1145
  %1188 = vmatpush1.bf16.msra.mxu0 %v1144
  %1189 = vmatprep.subr.bf16.mxu0 %v1148
  %1190 = vmatpush1.bf16.msra.mxu0 %v1147
  %1191 = vmatprep.subr.bf16.mxu0 %v1151
  %1192 = vmatpush1.bf16.msra.mxu0 %v1150
  %1193 = vmatprep.subr.bf16.mxu0 0
  %1194 = vmatpush1.bf16.msra.mxu0 0
  %1195 = vmatprep.subr.bf16.mxu0 0
  %1196 = vmatpush1.bf16.msra.mxu0 0
  %1197 = vmatprep.subr.bf16.mxu0 0
  %1198 = vmatpush1.bf16.msra.mxu0 0
  %1199 = vmatprep.subr.bf16.mxu0 0
  %1200 = vmatpush1.bf16.msra.mxu0 0
  %1201 = vmatprep.subr.bf16.mxu0 0
  %1202 = vmatpush1.bf16.msra.mxu0 0
  %1203 = vmatprep.subr.bf16.mxu0 0
  %1204 = vmatpush1.bf16.msra.mxu0 0
  %1205 = vmatprep.subr.bf16.mxu0 0
  %1206 = vmatpush1.bf16.msra.mxu0 0
  %1207 = vmatprep.subr.bf16.mxu0 0
  %1208 = vmatpush1.bf16.msra.mxu0 0
  %1209 = vmatprep.mubr.bf16.mxu0 0
  %1210 = vmatmul.mubr.bf16.gmra.mrb[0].mxu0 %v1044
  %v1211 = vpop.f32.mrb[0].mxu0
  %v1212 = vadd.f32 0.0, %v1211
  %v1213 = vpop.f32.mrb[0].mxu0
  %v1214 = vadd.f32 0.0, %v1213
  %v1215 = vpop.f32.mrb[0].mxu0
  %v1216 = vadd.f32 0.0, %v1215
  %v1217 = vpop.f32.mrb[0].mxu0
  %v1218 = vadd.f32 0.0, %v1217
  %1219 = vmatprep.mubr.bf16.mxu0 0
  %1220 = vmatmul.mubr.bf16.gmra.mrb[0].mxu0 %v1045
  %v1221 = vpop.f32.mrb[0].mxu0
  %v1222 = vadd.f32 0.0, %v1221
  %v1223 = vpop.f32.mrb[0].mxu0
  %v1224 = vadd.f32 0.0, %v1223
  %v1225 = vpop.f32.mrb[0].mxu0
  %v1226 = vadd.f32 0.0, %v1225
  %v1227 = vpop.f32.mrb[0].mxu0
  %v1228 = vadd.f32 0.0, %v1227
  %1229 = vmatprep.mubr.bf16.mxu0 0
  %1230 = vmatmul.mubr.bf16.gmra.mrb[0].mxu0 %v1046
  %v1231 = vpop.f32.mrb[0].mxu0
  %v1232 = vadd.f32 0.0, %v1231
  %v1233 = vpop.f32.mrb[0].mxu0
  %v1234 = vadd.f32 0.0, %v1233
  %v1235 = vpop.f32.mrb[0].mxu0
  %v1236 = vadd.f32 0.0, %v1235
  %v1237 = vpop.f32.mrb[0].mxu0
  %v1238 = vadd.f32 0.0, %v1237
  %1239 = vmatprep.mubr.bf16.mxu0 0
  %1240 = vmatmul.mubr.bf16.gmra.mrb[0].mxu0 %v1047
  %v1241 = vpop.f32.mrb[0].mxu0
  %v1242 = vadd.f32 0.0, %v1241
  %v1243 = vpop.f32.mrb[0].mxu0
  %v1244 = vadd.f32 0.0, %v1243
  %v1245 = vpop.f32.mrb[0].mxu0
  %v1246 = vadd.f32 0.0, %v1245
  %v1247 = vpop.f32.mrb[0].mxu0
  %v1248 = vadd.f32 0.0, %v1247
  %1249 = vmatprep.mubr.bf16.mxu0 0
  %1250 = vmatmul.mubr.bf16.gmra.mrb[0].mxu0 %v1048
  %v1251 = vpop.f32.mrb[0].mxu0
  %v1252 = vadd.f32 0.0, %v1251
  %v1253 = vpop.f32.mrb[0].mxu0
  %v1254 = vadd.f32 0.0, %v1253
  %v1255 = vpop.f32.mrb[0].mxu0
  %v1256 = vpop.f32.mrb[0].mxu0
  %1257 = vdwg.mxu0
  %1258 = vmatprep.subr.bf16.mxu0 0
  %1259 = vmatpush1.bf16.msra.mxu0 %v1131
  %1260 = vmatprep.subr.bf16.mxu0 0
  %1261 = vmatpush1.bf16.msra.mxu0 %v1134
  %1262 = vmatprep.subr.bf16.mxu0 0
  %1263 = vmatpush1.bf16.msra.mxu0 %v1137
  %1264 = vmatprep.subr.bf16.mxu0 0
  %1265 = vmatpush1.bf16.msra.mxu0 %v1140
  %1266 = vmatprep.subr.bf16.mxu0 0
  %1267 = vmatpush1.bf16.msra.mxu0 %v1143
  %1268 = vmatprep.subr.bf16.mxu0 0
  %1269 = vmatpush1.bf16.msra.mxu0 %v1146
  %1270 = vmatprep.subr.bf16.mxu0 0
  %1271 = vmatpush1.bf16.msra.mxu0 %v1149
  %1272 = vmatprep.subr.bf16.mxu0 0
  %1273 = vmatpush1.bf16.msra.mxu0 %v1152
  %1274 = vmatprep.subr.bf16.mxu0 0
  %1275 = vmatpush1.bf16.msra.mxu0 0
  %1276 = vmatprep.subr.bf16.mxu0 0
  %1277 = vmatpush1.bf16.msra.mxu0 0
  %1278 = vmatprep.subr.bf16.mxu0 0
  %1279 = vmatpush1.bf16.msra.mxu0 0
  %1280 = vmatprep.subr.bf16.mxu0 0
  %1281 = vmatpush1.bf16.msra.mxu0 0
  %1282 = vmatprep.subr.bf16.mxu0 0
  %1283 = vmatpush1.bf16.msra.mxu0 0
  %1284 = vmatprep.subr.bf16.mxu0 0
  %1285 = vmatpush1.bf16.msra.mxu0 0
  %1286 = vmatprep.subr.bf16.mxu0 0
  %1287 = vmatpush1.bf16.msra.mxu0 0
  %1288 = vmatprep.subr.bf16.mxu0 0
  %1289 = vmatpush1.bf16.msra.mxu0 0
  %1290 = vmatprep.mubr.bf16.mxu0 0
  %1291 = vmatmul.mubr.bf16.gmra.mrb[0].mxu0 %v1044
  %v1292 = vpop.f32.mrb[0].mxu0
  %v1293 = vadd.f32 0.0, %v1292
  %v1294 = vpop.f32.mrb[0].mxu0
  %v1295 = vpop.f32.mrb[0].mxu0
  %v1296 = vadd.f32 0.0, %v1295
  %v1297 = vpop.f32.mrb[0].mxu0
  %1298 = vmatprep.mubr.bf16.mxu0 0
  %1299 = vmatmul.mubr.bf16.gmra.mrb[0].mxu0 %v1045
  %v1300 = vpop.f32.mrb[0].mxu0
  %v1301 = vadd.f32 0.0, %v1300
  %v1302 = vpop.f32.mrb[0].mxu0
  %v1303 = vpop.f32.mrb[0].mxu0
  %v1304 = vadd.f32 0.0, %v1303
  %v1305 = vpop.f32.mrb[0].mxu0
  %1306 = vmatprep.mubr.bf16.mxu0 0
  %1307 = vmatmul.mubr.bf16.gmra.mrb[0].mxu0 %v1046
  %v1308 = vpop.f32.mrb[0].mxu0
  %v1309 = vadd.f32 0.0, %v1308
  %v1310 = vpop.f32.mrb[0].mxu0
  %v1311 = vpop.f32.mrb[0].mxu0
  %v1312 = vadd.f32 0.0, %v1311
  %v1313 = vpop.f32.mrb[0].mxu0
  %1314 = vmatprep.mubr.bf16.mxu0 0
  %1315 = vmatmul.mubr.bf16.gmra.mrb[0].mxu0 %v1047
  %v1316 = vpop.f32.mrb[0].mxu0
  %v1317 = vadd.f32 0.0, %v1316
  %v1318 = vpop.f32.mrb[0].mxu0
  %v1319 = vpop.f32.mrb[0].mxu0
  %v1320 = vadd.f32 0.0, %v1319
  %v1321 = vpop.f32.mrb[0].mxu0
  %1322 = vmatprep.mubr.bf16.mxu0 0
  %1323 = vmatmul.mubr.bf16.gmra.mrb[0].mxu0 %v1048
  %v1324 = vpop.f32.mrb[0].mxu0
  %v1325 = vadd.f32 0.0, %v1324
  %v1326 = vpop.f32.mrb[0].mxu0
  %v1327 = vpop.f32.mrb[0].mxu0
  %v1328 = vpop.f32.mrb[0].mxu0
  %1329 = vdwg.mxu0
  %v1330 = vpack.c.bf16 %v1216, %v1212
  %v1331 = vpack.c.bf16 %v1218, %v1214
  %v1332 = vpack.c.bf16 %v1296, %v1293
  %v1333 = vpack.c.bf16 %v1226, %v1222
  %v1334 = vpack.c.bf16 %v1228, %v1224
  %v1335 = vpack.c.bf16 %v1304, %v1301
  %v1336 = vpack.c.bf16 %v1236, %v1232
  %v1337 = vpack.c.bf16 %v1238, %v1234
  %v1338 = vpack.c.bf16 %v1312, %v1309
  %v1339 = vpack.c.bf16 %v1246, %v1242
  %v1340 = vpack.c.bf16 %v1248, %v1244
  %v1341 = vpack.c.bf16 %v1320, %v1317
  %v1342 = vpack.c.bf16 %v1252, %v1252
  %v1343 = vpack.c.bf16 %v1254, %v1254
  %v1344 = vpack.c.bf16 %v1325, %v1325
  %v1345 = vlaneseq
  %v1346 = vshrl.u32 %v1345, 7
  %v1347 = vlaneseq
  %v1348 = vand.u32 %v1347, 127
  %vm1349 = vcmp.le.s32.totalorder %v1348, %v1346
  %v1355 = vcombine.high %v1330, %v1330
  %v1357 = vunpack.c.l.s4 1966171168
  %v1358 = vunpack.c.0.s8 %v1357
  %v1359 = vlaneseq
  %v1360 = vshrl.u32 %v1359, 7
  %v1361 = vsub.s32 %v1358, %v1360
  %v1362 = vrot.slane %v1330, %v1361
  %v1364 = vunpack.c.l.s4 1966171168
  %v1365 = vunpack.c.0.s8 %v1364
  %v1366 = vlaneseq
  %v1367 = vshrl.u32 %v1366, 7
  %v1368 = vsub.s32 %v1365, %v1367
  %v1369 = vrot.slane %v1355, %v1368
  %v1370 = vcombine.high %v1362, %v1362
  %v1371 = vcombine.high %v1369, %v1369
  %v1373 = vunpack.c.l.s4 1966171168
  %v1374 = vunpack.c.0.s8 %v1373
  %v1375 = vlaneseq
  %v1376 = vshrl.u32 %v1375, 7
  %v1377 = vsub.s32 %v1374, %v1376
  %v1378 = vrot.slane %v1362, %v1377
  %v1380 = vunpack.c.l.s4 1966171168
  %v1381 = vunpack.c.0.s8 %v1380
  %v1382 = vlaneseq
  %v1383 = vshrl.u32 %v1382, 7
  %v1384 = vsub.s32 %v1381, %v1383
  %v1385 = vrot.slane %v1369, %v1384
  %v1387 = vunpack.c.l.s4 1966171168
  %v1388 = vunpack.c.0.s8 %v1387
  %v1389 = vlaneseq
  %v1390 = vshrl.u32 %v1389, 7
  %v1391 = vsub.s32 %v1388, %v1390
  %v1392 = vrot.slane %v1370, %v1391
  %v1394 = vunpack.c.l.s4 1966171168
  %v1395 = vunpack.c.0.s8 %v1394
  %v1396 = vlaneseq
  %v1397 = vshrl.u32 %v1396, 7
  %v1398 = vsub.s32 %v1395, %v1397
  %v1399 = vrot.slane %v1371, %v1398
  %v1400 = vcombine.high %v1378, %v1378
  %v1401 = vcombine.high %v1385, %v1385
  %v1402 = vcombine.high %v1392, %v1392
  %v1403 = vcombine.high %v1399, %v1399
  %v1404 = vcombine.high %v1333, %v1333
  %v1406 = vunpack.c.l.s4 1966171168
  %v1407 = vunpack.c.0.s8 %v1406
  %v1408 = vlaneseq
  %v1409 = vshrl.u32 %v1408, 7
  %v1410 = vsub.s32 %v1407, %v1409
  %v1411 = vrot.slane %v1333, %v1410
  %v1413 = vunpack.c.l.s4 1966171168
  %v1414 = vunpack.c.0.s8 %v1413
  %v1415 = vlaneseq
  %v1416 = vshrl.u32 %v1415, 7
  %v1417 = vsub.s32 %v1414, %v1416
  %v1418 = vrot.slane %v1404, %v1417
  %v1419 = vcombine.high %v1411, %v1411
  %v1420 = vcombine.high %v1418, %v1418
  %v1422 = vunpack.c.l.s4 1966171168
  %v1423 = vunpack.c.0.s8 %v1422
  %v1424 = vlaneseq
  %v1425 = vshrl.u32 %v1424, 7
  %v1426 = vsub.s32 %v1423, %v1425
  %v1427 = vrot.slane %v1411, %v1426
  %v1429 = vunpack.c.l.s4 1966171168
  %v1430 = vunpack.c.0.s8 %v1429
  %v1431 = vlaneseq
  %v1432 = vshrl.u32 %v1431, 7
  %v1433 = vsub.s32 %v1430, %v1432
  %v1434 = vrot.slane %v1418, %v1433
  %v1436 = vunpack.c.l.s4 1966171168
  %v1437 = vunpack.c.0.s8 %v1436
  %v1438 = vlaneseq
  %v1439 = vshrl.u32 %v1438, 7
  %v1440 = vsub.s32 %v1437, %v1439
  %v1441 = vrot.slane %v1419, %v1440
  %v1443 = vunpack.c.l.s4 1966171168
  %v1444 = vunpack.c.0.s8 %v1443
  %v1445 = vlaneseq
  %v1446 = vshrl.u32 %v1445, 7
  %v1447 = vsub.s32 %v1444, %v1446
  %v1448 = vrot.slane %v1420, %v1447
  %v1449 = vcombine.high %v1427, %v1427
  %v1450 = vcombine.high %v1434, %v1434
  %v1451 = vcombine.high %v1441, %v1441
  %v1452 = vcombine.high %v1448, %v1448
  %v1453 = vcombine.high %v1336, %v1336
  %v1455 = vunpack.c.l.s4 1966171168
  %v1456 = vunpack.c.0.s8 %v1455
  %v1457 = vlaneseq
  %v1458 = vshrl.u32 %v1457, 7
  %v1459 = vsub.s32 %v1456, %v1458
  %v1460 = vrot.slane %v1336, %v1459
  %v1462 = vunpack.c.l.s4 1966171168
  %v1463 = vunpack.c.0.s8 %v1462
  %v1464 = vlaneseq
  %v1465 = vshrl.u32 %v1464, 7
  %v1466 = vsub.s32 %v1463, %v1465
  %v1467 = vrot.slane %v1453, %v1466
  %v1468 = vcombine.high %v1460, %v1460
  %v1469 = vcombine.high %v1467, %v1467
  %v1471 = vunpack.c.l.s4 1966171168
  %v1472 = vunpack.c.0.s8 %v1471
  %v1473 = vlaneseq
  %v1474 = vshrl.u32 %v1473, 7
  %v1475 = vsub.s32 %v1472, %v1474
  %v1476 = vrot.slane %v1460, %v1475
  %v1478 = vunpack.c.l.s4 1966171168
  %v1479 = vunpack.c.0.s8 %v1478
  %v1480 = vlaneseq
  %v1481 = vshrl.u32 %v1480, 7
  %v1482 = vsub.s32 %v1479, %v1481
  %v1483 = vrot.slane %v1467, %v1482
  %v1485 = vunpack.c.l.s4 1966171168
  %v1486 = vunpack.c.0.s8 %v1485
  %v1487 = vlaneseq
  %v1488 = vshrl.u32 %v1487, 7
  %v1489 = vsub.s32 %v1486, %v1488
  %v1490 = vrot.slane %v1468, %v1489
  %v1492 = vunpack.c.l.s4 1966171168
  %v1493 = vunpack.c.0.s8 %v1492
  %v1494 = vlaneseq
  %v1495 = vshrl.u32 %v1494, 7
  %v1496 = vsub.s32 %v1493, %v1495
  %v1497 = vrot.slane %v1469, %v1496
  %v1498 = vcombine.high %v1476, %v1476
  %v1499 = vcombine.high %v1483, %v1483
  %v1500 = vcombine.high %v1490, %v1490
  %v1501 = vcombine.high %v1497, %v1497
  %v1502 = vcombine.high %v1339, %v1339
  %v1504 = vunpack.c.l.s4 1966171168
  %v1505 = vunpack.c.0.s8 %v1504
  %v1506 = vlaneseq
  %v1507 = vshrl.u32 %v1506, 7
  %v1508 = vsub.s32 %v1505, %v1507
  %v1509 = vrot.slane %v1339, %v1508
  %v1511 = vunpack.c.l.s4 1966171168
  %v1512 = vunpack.c.0.s8 %v1511
  %v1513 = vlaneseq
  %v1514 = vshrl.u32 %v1513, 7
  %v1515 = vsub.s32 %v1512, %v1514
  %v1516 = vrot.slane %v1502, %v1515
  %v1517 = vcombine.high %v1509, %v1509
  %v1518 = vcombine.high %v1516, %v1516
  %v1520 = vunpack.c.l.s4 1966171168
  %v1521 = vunpack.c.0.s8 %v1520
  %v1522 = vlaneseq
  %v1523 = vshrl.u32 %v1522, 7
  %v1524 = vsub.s32 %v1521, %v1523
  %v1525 = vrot.slane %v1509, %v1524
  %v1527 = vunpack.c.l.s4 1966171168
  %v1528 = vunpack.c.0.s8 %v1527
  %v1529 = vlaneseq
  %v1530 = vshrl.u32 %v1529, 7
  %v1531 = vsub.s32 %v1528, %v1530
  %v1532 = vrot.slane %v1516, %v1531
  %v1534 = vunpack.c.l.s4 1966171168
  %v1535 = vunpack.c.0.s8 %v1534
  %v1536 = vlaneseq
  %v1537 = vshrl.u32 %v1536, 7
  %v1538 = vsub.s32 %v1535, %v1537
  %v1539 = vrot.slane %v1517, %v1538
  %v1541 = vunpack.c.l.s4 1966171168
  %v1542 = vunpack.c.0.s8 %v1541
  %v1543 = vlaneseq
  %v1544 = vshrl.u32 %v1543, 7
  %v1545 = vsub.s32 %v1542, %v1544
  %v1546 = vrot.slane %v1518, %v1545
  %v1547 = vcombine.high %v1525, %v1525
  %v1548 = vcombine.high %v1532, %v1532
  %v1549 = vcombine.high %v1539, %v1539
  %v1550 = vcombine.high %v1546, %v1546
  %v1552 = vunpack.c.l.s4 1966171168
  %v1553 = vunpack.c.0.s8 %v1552
  %v1554 = vlaneseq
  %v1555 = vshrl.u32 %v1554, 7
  %v1556 = vsub.s32 %v1553, %v1555
  %v1557 = vrot.slane %v1342, %v1556
  %v1558 = vcombine.high %v1557, %v1557
  %v1560 = vunpack.c.l.s4 1966171168
  %v1561 = vunpack.c.0.s8 %v1560
  %v1562 = vlaneseq
  %v1563 = vshrl.u32 %v1562, 7
  %v1564 = vsub.s32 %v1561, %v1563
  %v1565 = vrot.slane %v1557, %v1564
  %v1567 = vunpack.c.l.s4 1966171168
  %v1568 = vunpack.c.0.s8 %v1567
  %v1569 = vlaneseq
  %v1570 = vshrl.u32 %v1569, 7
  %v1571 = vsub.s32 %v1568, %v1570
  %v1572 = vrot.slane %v1558, %v1571
  %v1573 = vcombine.high %v1565, %v1565
  %v1574 = vunpack.i.l.s16 %v1378
  %v1575 = vunpack.i.h.s16 %v1378
  %v1576 = vunpack.i.l.s16 %v1392
  %v1577 = vunpack.i.h.s16 %v1392
  %v1578 = vunpack.i.l.s16 %v1400
  %v1579 = vunpack.i.h.s16 %v1400
  %v1580 = vunpack.i.l.s16 %v1402
  %v1581 = vunpack.i.h.s16 %v1402
  %v1582 = vunpack.i.l.s16 %v1385
  %v1583 = vunpack.i.h.s16 %v1385
  %v1584 = vunpack.i.l.s16 %v1399
  %v1585 = vunpack.i.h.s16 %v1399
  %v1586 = vunpack.i.l.s16 %v1401
  %v1587 = vunpack.i.h.s16 %v1401
  %v1588 = vunpack.i.l.s16 %v1403
  %v1589 = vunpack.i.h.s16 %v1403
  %v1590 = vunpack.i.l.s16 %v1427
  %v1591 = vunpack.i.h.s16 %v1427
  %v1592 = vunpack.i.l.s16 %v1441
  %v1593 = vunpack.i.h.s16 %v1441
  %v1594 = vunpack.i.l.s16 %v1449
  %v1595 = vunpack.i.h.s16 %v1449
  %v1596 = vunpack.i.l.s16 %v1451
  %v1597 = vunpack.i.h.s16 %v1451
  %v1598 = vunpack.i.l.s16 %v1434
  %v1599 = vunpack.i.h.s16 %v1434
  %v1600 = vunpack.i.l.s16 %v1448
  %v1601 = vunpack.i.h.s16 %v1448
  %v1602 = vunpack.i.l.s16 %v1450
  %v1603 = vunpack.i.h.s16 %v1450
  %v1604 = vunpack.i.l.s16 %v1452
  %v1605 = vunpack.i.h.s16 %v1452
  %v1606 = vunpack.i.l.s16 %v1476
  %v1607 = vunpack.i.h.s16 %v1476
  %v1608 = vunpack.i.l.s16 %v1490
  %v1609 = vunpack.i.h.s16 %v1490
  %v1610 = vunpack.i.l.s16 %v1498
  %v1611 = vunpack.i.h.s16 %v1498
  %v1612 = vunpack.i.l.s16 %v1500
  %v1613 = vunpack.i.h.s16 %v1500
  %v1614 = vunpack.i.l.s16 %v1483
  %v1615 = vunpack.i.h.s16 %v1483
  %v1616 = vunpack.i.l.s16 %v1497
  %v1617 = vunpack.i.h.s16 %v1497
  %v1618 = vunpack.i.l.s16 %v1499
  %v1619 = vunpack.i.h.s16 %v1499
  %v1620 = vunpack.i.l.s16 %v1501
  %v1621 = vunpack.i.h.s16 %v1501
  %v1622 = vunpack.i.l.s16 %v1525
  %v1623 = vunpack.i.h.s16 %v1525
  %v1624 = vunpack.i.l.s16 %v1539
  %v1625 = vunpack.i.h.s16 %v1539
  %v1626 = vunpack.i.l.s16 %v1547
  %v1627 = vunpack.i.h.s16 %v1547
  %v1628 = vunpack.i.l.s16 %v1549
  %v1629 = vunpack.i.h.s16 %v1549
  %v1630 = vunpack.i.l.s16 %v1532
  %v1631 = vunpack.i.h.s16 %v1532
  %v1632 = vunpack.i.l.s16 %v1546
  %v1633 = vunpack.i.h.s16 %v1546
  %v1634 = vunpack.i.l.s16 %v1548
  %v1635 = vunpack.i.h.s16 %v1548
  %v1636 = vunpack.i.l.s16 %v1550
  %v1637 = vunpack.i.h.s16 %v1550
  %v1638 = vunpack.i.l.s16 %v1565
  %v1639 = vunpack.i.h.s16 %v1565
  %v1640 = vunpack.i.l.s16 %v1572
  %v1641 = vunpack.i.h.s16 %v1572
  %v1642 = vunpack.i.l.s16 %v1573
  %v1643 = vunpack.i.h.s16 %v1573
  %v1649 = vcombine.high %v1331, %v1331
  %v1651 = vunpack.c.l.s4 1966171168
  %v1652 = vunpack.c.0.s8 %v1651
  %v1653 = vlaneseq
  %v1654 = vshrl.u32 %v1653, 7
  %v1655 = vsub.s32 %v1652, %v1654
  %v1656 = vrot.slane %v1331, %v1655
  %v1658 = vunpack.c.l.s4 1966171168
  %v1659 = vunpack.c.0.s8 %v1658
  %v1660 = vlaneseq
  %v1661 = vshrl.u32 %v1660, 7
  %v1662 = vsub.s32 %v1659, %v1661
  %v1663 = vrot.slane %v1649, %v1662
  %v1664 = vcombine.high %v1656, %v1656
  %v1665 = vcombine.high %v1663, %v1663
  %v1667 = vunpack.c.l.s4 1966171168
  %v1668 = vunpack.c.0.s8 %v1667
  %v1669 = vlaneseq
  %v1670 = vshrl.u32 %v1669, 7
  %v1671 = vsub.s32 %v1668, %v1670
  %v1672 = vrot.slane %v1656, %v1671
  %v1674 = vunpack.c.l.s4 1966171168
  %v1675 = vunpack.c.0.s8 %v1674
  %v1676 = vlaneseq
  %v1677 = vshrl.u32 %v1676, 7
  %v1678 = vsub.s32 %v1675, %v1677
  %v1679 = vrot.slane %v1663, %v1678
  %v1681 = vunpack.c.l.s4 1966171168
  %v1682 = vunpack.c.0.s8 %v1681
  %v1683 = vlaneseq
  %v1684 = vshrl.u32 %v1683, 7
  %v1685 = vsub.s32 %v1682, %v1684
  %v1686 = vrot.slane %v1664, %v1685
  %v1688 = vunpack.c.l.s4 1966171168
  %v1689 = vunpack.c.0.s8 %v1688
  %v1690 = vlaneseq
  %v1691 = vshrl.u32 %v1690, 7
  %v1692 = vsub.s32 %v1689, %v1691
  %v1693 = vrot.slane %v1665, %v1692
  %v1694 = vcombine.high %v1672, %v1672
  %v1695 = vcombine.high %v1679, %v1679
  %v1696 = vcombine.high %v1686, %v1686
  %v1697 = vcombine.high %v1693, %v1693
  %v1698 = vcombine.high %v1334, %v1334
  %v1700 = vunpack.c.l.s4 1966171168
  %v1701 = vunpack.c.0.s8 %v1700
  %v1702 = vlaneseq
  %v1703 = vshrl.u32 %v1702, 7
  %v1704 = vsub.s32 %v1701, %v1703
  %v1705 = vrot.slane %v1334, %v1704
  %v1707 = vunpack.c.l.s4 1966171168
  %v1708 = vunpack.c.0.s8 %v1707
  %v1709 = vlaneseq
  %v1710 = vshrl.u32 %v1709, 7
  %v1711 = vsub.s32 %v1708, %v1710
  %v1712 = vrot.slane %v1698, %v1711
  %v1713 = vcombine.high %v1705, %v1705
  %v1714 = vcombine.high %v1712, %v1712
  %v1716 = vunpack.c.l.s4 1966171168
  %v1717 = vunpack.c.0.s8 %v1716
  %v1718 = vlaneseq
  %v1719 = vshrl.u32 %v1718, 7
  %v1720 = vsub.s32 %v1717, %v1719
  %v1721 = vrot.slane %v1705, %v1720
  %v1723 = vunpack.c.l.s4 1966171168
  %v1724 = vunpack.c.0.s8 %v1723
  %v1725 = vlaneseq
  %v1726 = vshrl.u32 %v1725, 7
  %v1727 = vsub.s32 %v1724, %v1726
  %v1728 = vrot.slane %v1712, %v1727
  %v1730 = vunpack.c.l.s4 1966171168
  %v1731 = vunpack.c.0.s8 %v1730
  %v1732 = vlaneseq
  %v1733 = vshrl.u32 %v1732, 7
  %v1734 = vsub.s32 %v1731, %v1733
  %v1735 = vrot.slane %v1713, %v1734
  %v1737 = vunpack.c.l.s4 1966171168
  %v1738 = vunpack.c.0.s8 %v1737
  %v1739 = vlaneseq
  %v1740 = vshrl.u32 %v1739, 7
  %v1741 = vsub.s32 %v1738, %v1740
  %v1742 = vrot.slane %v1714, %v1741
  %v1743 = vcombine.high %v1721, %v1721
  %v1744 = vcombine.high %v1728, %v1728
  %v1745 = vcombine.high %v1735, %v1735
  %v1746 = vcombine.high %v1742, %v1742
  %v1747 = vcombine.high %v1337, %v1337
  %v1749 = vunpack.c.l.s4 1966171168
  %v1750 = vunpack.c.0.s8 %v1749
  %v1751 = vlaneseq
  %v1752 = vshrl.u32 %v1751, 7
  %v1753 = vsub.s32 %v1750, %v1752
  %v1754 = vrot.slane %v1337, %v1753
  %v1756 = vunpack.c.l.s4 1966171168
  %v1757 = vunpack.c.0.s8 %v1756
  %v1758 = vlaneseq
  %v1759 = vshrl.u32 %v1758, 7
  %v1760 = vsub.s32 %v1757, %v1759
  %v1761 = vrot.slane %v1747, %v1760
  %v1762 = vcombine.high %v1754, %v1754
  %v1763 = vcombine.high %v1761, %v1761
  %v1765 = vunpack.c.l.s4 1966171168
  %v1766 = vunpack.c.0.s8 %v1765
  %v1767 = vlaneseq
  %v1768 = vshrl.u32 %v1767, 7
  %v1769 = vsub.s32 %v1766, %v1768
  %v1770 = vrot.slane %v1754, %v1769
  %v1772 = vunpack.c.l.s4 1966171168
  %v1773 = vunpack.c.0.s8 %v1772
  %v1774 = vlaneseq
  %v1775 = vshrl.u32 %v1774, 7
  %v1776 = vsub.s32 %v1773, %v1775
  %v1777 = vrot.slane %v1761, %v1776
  %v1779 = vunpack.c.l.s4 1966171168
  %v1780 = vunpack.c.0.s8 %v1779
  %v1781 = vlaneseq
  %v1782 = vshrl.u32 %v1781, 7
  %v1783 = vsub.s32 %v1780, %v1782
  %v1784 = vrot.slane %v1762, %v1783
  %v1786 = vunpack.c.l.s4 1966171168
  %v1787 = vunpack.c.0.s8 %v1786
  %v1788 = vlaneseq
  %v1789 = vshrl.u32 %v1788, 7
  %v1790 = vsub.s32 %v1787, %v1789
  %v1791 = vrot.slane %v1763, %v1790
  %v1792 = vcombine.high %v1770, %v1770
  %v1793 = vcombine.high %v1777, %v1777
  %v1794 = vcombine.high %v1784, %v1784
  %v1795 = vcombine.high %v1791, %v1791
  %v1796 = vcombine.high %v1340, %v1340
  %v1798 = vunpack.c.l.s4 1966171168
  %v1799 = vunpack.c.0.s8 %v1798
  %v1800 = vlaneseq
  %v1801 = vshrl.u32 %v1800, 7
  %v1802 = vsub.s32 %v1799, %v1801
  %v1803 = vrot.slane %v1340, %v1802
  %v1805 = vunpack.c.l.s4 1966171168
  %v1806 = vunpack.c.0.s8 %v1805
  %v1807 = vlaneseq
  %v1808 = vshrl.u32 %v1807, 7
  %v1809 = vsub.s32 %v1806, %v1808
  %v1810 = vrot.slane %v1796, %v1809
  %v1811 = vcombine.high %v1803, %v1803
  %v1812 = vcombine.high %v1810, %v1810
  %v1814 = vunpack.c.l.s4 1966171168
  %v1815 = vunpack.c.0.s8 %v1814
  %v1816 = vlaneseq
  %v1817 = vshrl.u32 %v1816, 7
  %v1818 = vsub.s32 %v1815, %v1817
  %v1819 = vrot.slane %v1803, %v1818
  %v1821 = vunpack.c.l.s4 1966171168
  %v1822 = vunpack.c.0.s8 %v1821
  %v1823 = vlaneseq
  %v1824 = vshrl.u32 %v1823, 7
  %v1825 = vsub.s32 %v1822, %v1824
  %v1826 = vrot.slane %v1810, %v1825
  %v1828 = vunpack.c.l.s4 1966171168
  %v1829 = vunpack.c.0.s8 %v1828
  %v1830 = vlaneseq
  %v1831 = vshrl.u32 %v1830, 7
  %v1832 = vsub.s32 %v1829, %v1831
  %v1833 = vrot.slane %v1811, %v1832
  %v1835 = vunpack.c.l.s4 1966171168
  %v1836 = vunpack.c.0.s8 %v1835
  %v1837 = vlaneseq
  %v1838 = vshrl.u32 %v1837, 7
  %v1839 = vsub.s32 %v1836, %v1838
  %v1840 = vrot.slane %v1812, %v1839
  %v1841 = vcombine.high %v1819, %v1819
  %v1842 = vcombine.high %v1826, %v1826
  %v1843 = vcombine.high %v1833, %v1833
  %v1844 = vcombine.high %v1840, %v1840
  %v1846 = vunpack.c.l.s4 1966171168
  %v1847 = vunpack.c.0.s8 %v1846
  %v1848 = vlaneseq
  %v1849 = vshrl.u32 %v1848, 7
  %v1850 = vsub.s32 %v1847, %v1849
  %v1851 = vrot.slane %v1343, %v1850
  %v1852 = vcombine.high %v1851, %v1851
  %v1854 = vunpack.c.l.s4 1966171168
  %v1855 = vunpack.c.0.s8 %v1854
  %v1856 = vlaneseq
  %v1857 = vshrl.u32 %v1856, 7
  %v1858 = vsub.s32 %v1855, %v1857
  %v1859 = vrot.slane %v1851, %v1858
  %v1861 = vunpack.c.l.s4 1966171168
  %v1862 = vunpack.c.0.s8 %v1861
  %v1863 = vlaneseq
  %v1864 = vshrl.u32 %v1863, 7
  %v1865 = vsub.s32 %v1862, %v1864
  %v1866 = vrot.slane %v1852, %v1865
  %v1867 = vcombine.high %v1859, %v1859
  %v1868 = vunpack.i.l.s16 %v1672
  %v1869 = vunpack.i.h.s16 %v1672
  %v1870 = vunpack.i.l.s16 %v1686
  %v1871 = vunpack.i.h.s16 %v1686
  %v1872 = vunpack.i.l.s16 %v1694
  %v1873 = vunpack.i.h.s16 %v1694
  %v1874 = vunpack.i.l.s16 %v1696
  %v1875 = vunpack.i.h.s16 %v1696
  %v1876 = vunpack.i.l.s16 %v1679
  %v1877 = vunpack.i.h.s16 %v1679
  %v1878 = vunpack.i.l.s16 %v1693
  %v1879 = vunpack.i.h.s16 %v1693
  %v1880 = vunpack.i.l.s16 %v1695
  %v1881 = vunpack.i.h.s16 %v1695
  %v1882 = vunpack.i.l.s16 %v1697
  %v1883 = vunpack.i.h.s16 %v1697
  %v1884 = vunpack.i.l.s16 %v1721
  %v1885 = vunpack.i.h.s16 %v1721
  %v1886 = vunpack.i.l.s16 %v1735
  %v1887 = vunpack.i.h.s16 %v1735
  %v1888 = vunpack.i.l.s16 %v1743
  %v1889 = vunpack.i.h.s16 %v1743
  %v1890 = vunpack.i.l.s16 %v1745
  %v1891 = vunpack.i.h.s16 %v1745
  %v1892 = vunpack.i.l.s16 %v1728
  %v1893 = vunpack.i.h.s16 %v1728
  %v1894 = vunpack.i.l.s16 %v1742
  %v1895 = vunpack.i.h.s16 %v1742
  %v1896 = vunpack.i.l.s16 %v1744
  %v1897 = vunpack.i.h.s16 %v1744
  %v1898 = vunpack.i.l.s16 %v1746
  %v1899 = vunpack.i.h.s16 %v1746
  %v1900 = vunpack.i.l.s16 %v1770
  %v1901 = vunpack.i.h.s16 %v1770
  %v1902 = vunpack.i.l.s16 %v1784
  %v1903 = vunpack.i.h.s16 %v1784
  %v1904 = vunpack.i.l.s16 %v1792
  %v1905 = vunpack.i.h.s16 %v1792
  %v1906 = vunpack.i.l.s16 %v1794
  %v1907 = vunpack.i.h.s16 %v1794
  %v1908 = vunpack.i.l.s16 %v1777
  %v1909 = vunpack.i.h.s16 %v1777
  %v1910 = vunpack.i.l.s16 %v1791
  %v1911 = vunpack.i.h.s16 %v1791
  %v1912 = vunpack.i.l.s16 %v1793
  %v1913 = vunpack.i.h.s16 %v1793
  %v1914 = vunpack.i.l.s16 %v1795
  %v1915 = vunpack.i.h.s16 %v1795
  %v1916 = vunpack.i.l.s16 %v1819
  %v1917 = vunpack.i.h.s16 %v1819
  %v1918 = vunpack.i.l.s16 %v1833
  %v1919 = vunpack.i.h.s16 %v1833
  %v1920 = vunpack.i.l.s16 %v1841
  %v1921 = vunpack.i.h.s16 %v1841
  %v1922 = vunpack.i.l.s16 %v1843
  %v1923 = vunpack.i.h.s16 %v1843
  %v1924 = vunpack.i.l.s16 %v1826
  %v1925 = vunpack.i.h.s16 %v1826
  %v1926 = vunpack.i.l.s16 %v1840
  %v1927 = vunpack.i.h.s16 %v1840
  %v1928 = vunpack.i.l.s16 %v1842
  %v1929 = vunpack.i.h.s16 %v1842
  %v1930 = vunpack.i.l.s16 %v1844
  %v1931 = vunpack.i.h.s16 %v1844
  %v1932 = vunpack.i.l.s16 %v1859
  %v1933 = vunpack.i.h.s16 %v1859
  %v1934 = vunpack.i.l.s16 %v1866
  %v1935 = vunpack.i.h.s16 %v1866
  %v1936 = vunpack.i.l.s16 %v1867
  %v1937 = vunpack.i.h.s16 %v1867
  %v1943 = vcombine.high %v1332, %v1332
  %v1945 = vunpack.c.l.s4 1966171168
  %v1946 = vunpack.c.0.s8 %v1945
  %v1947 = vlaneseq
  %v1948 = vshrl.u32 %v1947, 7
  %v1949 = vsub.s32 %v1946, %v1948
  %v1950 = vrot.slane %v1332, %v1949
  %v1952 = vunpack.c.l.s4 1966171168
  %v1953 = vunpack.c.0.s8 %v1952
  %v1954 = vlaneseq
  %v1955 = vshrl.u32 %v1954, 7
  %v1956 = vsub.s32 %v1953, %v1955
  %v1957 = vrot.slane %v1943, %v1956
  %v1958 = vcombine.high %v1950, %v1950
  %v1959 = vcombine.high %v1957, %v1957
  %v1961 = vunpack.c.l.s4 1966171168
  %v1962 = vunpack.c.0.s8 %v1961
  %v1963 = vlaneseq
  %v1964 = vshrl.u32 %v1963, 7
  %v1965 = vsub.s32 %v1962, %v1964
  %v1966 = vrot.slane %v1950, %v1965
  %v1968 = vunpack.c.l.s4 1966171168
  %v1969 = vunpack.c.0.s8 %v1968
  %v1970 = vlaneseq
  %v1971 = vshrl.u32 %v1970, 7
  %v1972 = vsub.s32 %v1969, %v1971
  %v1973 = vrot.slane %v1957, %v1972
  %v1975 = vunpack.c.l.s4 1966171168
  %v1976 = vunpack.c.0.s8 %v1975
  %v1977 = vlaneseq
  %v1978 = vshrl.u32 %v1977, 7
  %v1979 = vsub.s32 %v1976, %v1978
  %v1980 = vrot.slane %v1958, %v1979
  %v1982 = vunpack.c.l.s4 1966171168
  %v1983 = vunpack.c.0.s8 %v1982
  %v1984 = vlaneseq
  %v1985 = vshrl.u32 %v1984, 7
  %v1986 = vsub.s32 %v1983, %v1985
  %v1987 = vrot.slane %v1959, %v1986
  %v1988 = vcombine.high %v1966, %v1966
  %v1989 = vcombine.high %v1973, %v1973
  %v1990 = vcombine.high %v1980, %v1980
  %v1991 = vcombine.high %v1987, %v1987
  %v1992 = vcombine.high %v1335, %v1335
  %v1994 = vunpack.c.l.s4 1966171168
  %v1995 = vunpack.c.0.s8 %v1994
  %v1996 = vlaneseq
  %v1997 = vshrl.u32 %v1996, 7
  %v1998 = vsub.s32 %v1995, %v1997
  %v1999 = vrot.slane %v1335, %v1998
  %v2001 = vunpack.c.l.s4 1966171168
  %v2002 = vunpack.c.0.s8 %v2001
  %v2003 = vlaneseq
  %v2004 = vshrl.u32 %v2003, 7
  %v2005 = vsub.s32 %v2002, %v2004
  %v2006 = vrot.slane %v1992, %v2005
  %v2007 = vcombine.high %v1999, %v1999
  %v2008 = vcombine.high %v2006, %v2006
  %v2010 = vunpack.c.l.s4 1966171168
  %v2011 = vunpack.c.0.s8 %v2010
  %v2012 = vlaneseq
  %v2013 = vshrl.u32 %v2012, 7
  %v2014 = vsub.s32 %v2011, %v2013
  %v2015 = vrot.slane %v1999, %v2014
  %v2017 = vunpack.c.l.s4 1966171168
  %v2018 = vunpack.c.0.s8 %v2017
  %v2019 = vlaneseq
  %v2020 = vshrl.u32 %v2019, 7
  %v2021 = vsub.s32 %v2018, %v2020
  %v2022 = vrot.slane %v2006, %v2021
  %v2024 = vunpack.c.l.s4 1966171168
  %v2025 = vunpack.c.0.s8 %v2024
  %v2026 = vlaneseq
  %v2027 = vshrl.u32 %v2026, 7
  %v2028 = vsub.s32 %v2025, %v2027
  %v2029 = vrot.slane %v2007, %v2028
  %v2031 = vunpack.c.l.s4 1966171168
  %v2032 = vunpack.c.0.s8 %v2031
  %v2033 = vlaneseq
  %v2034 = vshrl.u32 %v2033, 7
  %v2035 = vsub.s32 %v2032, %v2034
  %v2036 = vrot.slane %v2008, %v2035
  %v2037 = vcombine.high %v2015, %v2015
  %v2038 = vcombine.high %v2022, %v2022
  %v2039 = vcombine.high %v2029, %v2029
  %v2040 = vcombine.high %v2036, %v2036
  %v2041 = vcombine.high %v1338, %v1338
  %v2043 = vunpack.c.l.s4 1966171168
  %v2044 = vunpack.c.0.s8 %v2043
  %v2045 = vlaneseq
  %v2046 = vshrl.u32 %v2045, 7
  %v2047 = vsub.s32 %v2044, %v2046
  %v2048 = vrot.slane %v1338, %v2047
  %v2050 = vunpack.c.l.s4 1966171168
  %v2051 = vunpack.c.0.s8 %v2050
  %v2052 = vlaneseq
  %v2053 = vshrl.u32 %v2052, 7
  %v2054 = vsub.s32 %v2051, %v2053
  %v2055 = vrot.slane %v2041, %v2054
  %v2056 = vcombine.high %v2048, %v2048
  %v2057 = vcombine.high %v2055, %v2055
  %v2059 = vunpack.c.l.s4 1966171168
  %v2060 = vunpack.c.0.s8 %v2059
  %v2061 = vlaneseq
  %v2062 = vshrl.u32 %v2061, 7
  %v2063 = vsub.s32 %v2060, %v2062
  %v2064 = vrot.slane %v2048, %v2063
  %v2066 = vunpack.c.l.s4 1966171168
  %v2067 = vunpack.c.0.s8 %v2066
  %v2068 = vlaneseq
  %v2069 = vshrl.u32 %v2068, 7
  %v2070 = vsub.s32 %v2067, %v2069
  %v2071 = vrot.slane %v2055, %v2070
  %v2073 = vunpack.c.l.s4 1966171168
  %v2074 = vunpack.c.0.s8 %v2073
  %v2075 = vlaneseq
  %v2076 = vshrl.u32 %v2075, 7
  %v2077 = vsub.s32 %v2074, %v2076
  %v2078 = vrot.slane %v2056, %v2077
  %v2080 = vunpack.c.l.s4 1966171168
  %v2081 = vunpack.c.0.s8 %v2080
  %v2082 = vlaneseq
  %v2083 = vshrl.u32 %v2082, 7
  %v2084 = vsub.s32 %v2081, %v2083
  %v2085 = vrot.slane %v2057, %v2084
  %v2086 = vcombine.high %v2064, %v2064
  %v2087 = vcombine.high %v2071, %v2071
  %v2088 = vcombine.high %v2078, %v2078
  %v2089 = vcombine.high %v2085, %v2085
  %v2090 = vcombine.high %v1341, %v1341
  %v2092 = vunpack.c.l.s4 1966171168
  %v2093 = vunpack.c.0.s8 %v2092
  %v2094 = vlaneseq
  %v2095 = vshrl.u32 %v2094, 7
  %v2096 = vsub.s32 %v2093, %v2095
  %v2097 = vrot.slane %v1341, %v2096
  %v2099 = vunpack.c.l.s4 1966171168
  %v2100 = vunpack.c.0.s8 %v2099
  %v2101 = vlaneseq
  %v2102 = vshrl.u32 %v2101, 7
  %v2103 = vsub.s32 %v2100, %v2102
  %v2104 = vrot.slane %v2090, %v2103
  %v2105 = vcombine.high %v2097, %v2097
  %v2106 = vcombine.high %v2104, %v2104
  %v2108 = vunpack.c.l.s4 1966171168
  %v2109 = vunpack.c.0.s8 %v2108
  %v2110 = vlaneseq
  %v2111 = vshrl.u32 %v2110, 7
  %v2112 = vsub.s32 %v2109, %v2111
  %v2113 = vrot.slane %v2097, %v2112
  %v2115 = vunpack.c.l.s4 1966171168
  %v2116 = vunpack.c.0.s8 %v2115
  %v2117 = vlaneseq
  %v2118 = vshrl.u32 %v2117, 7
  %v2119 = vsub.s32 %v2116, %v2118
  %v2120 = vrot.slane %v2104, %v2119
  %v2122 = vunpack.c.l.s4 1966171168
  %v2123 = vunpack.c.0.s8 %v2122
  %v2124 = vlaneseq
  %v2125 = vshrl.u32 %v2124, 7
  %v2126 = vsub.s32 %v2123, %v2125
  %v2127 = vrot.slane %v2105, %v2126
  %v2129 = vunpack.c.l.s4 1966171168
  %v2130 = vunpack.c.0.s8 %v2129
  %v2131 = vlaneseq
  %v2132 = vshrl.u32 %v2131, 7
  %v2133 = vsub.s32 %v2130, %v2132
  %v2134 = vrot.slane %v2106, %v2133
  %v2135 = vcombine.high %v2113, %v2113
  %v2136 = vcombine.high %v2120, %v2120
  %v2137 = vcombine.high %v2127, %v2127
  %v2138 = vcombine.high %v2134, %v2134
  %v2140 = vunpack.c.l.s4 1966171168
  %v2141 = vunpack.c.0.s8 %v2140
  %v2142 = vlaneseq
  %v2143 = vshrl.u32 %v2142, 7
  %v2144 = vsub.s32 %v2141, %v2143
  %v2145 = vrot.slane %v1344, %v2144
  %v2146 = vcombine.high %v2145, %v2145
  %v2148 = vunpack.c.l.s4 1966171168
  %v2149 = vunpack.c.0.s8 %v2148
  %v2150 = vlaneseq
  %v2151 = vshrl.u32 %v2150, 7
  %v2152 = vsub.s32 %v2149, %v2151
  %v2153 = vrot.slane %v2145, %v2152
  %v2155 = vunpack.c.l.s4 1966171168
  %v2156 = vunpack.c.0.s8 %v2155
  %v2157 = vlaneseq
  %v2158 = vshrl.u32 %v2157, 7
  %v2159 = vsub.s32 %v2156, %v2158
  %v2160 = vrot.slane %v2146, %v2159
  %v2161 = vcombine.high %v2153, %v2153
  %v2162 = vunpack.i.l.s16 %v1966
  %v2163 = vunpack.i.h.s16 %v1966
  %v2164 = vunpack.i.l.s16 %v1980
  %v2165 = vunpack.i.h.s16 %v1980
  %v2166 = vunpack.i.l.s16 %v1988
  %v2167 = vunpack.i.h.s16 %v1988
  %v2168 = vunpack.i.l.s16 %v1990
  %v2169 = vunpack.i.h.s16 %v1990
  %v2170 = vunpack.i.l.s16 %v1973
  %v2171 = vunpack.i.h.s16 %v1973
  %v2172 = vunpack.i.l.s16 %v1987
  %v2173 = vunpack.i.h.s16 %v1987
  %v2174 = vunpack.i.l.s16 %v1989
  %v2175 = vunpack.i.h.s16 %v1989
  %v2176 = vunpack.i.l.s16 %v1991
  %v2177 = vunpack.i.h.s16 %v1991
  %v2178 = vunpack.i.l.s16 %v2015
  %v2179 = vunpack.i.h.s16 %v2015
  %v2180 = vunpack.i.l.s16 %v2029
  %v2181 = vunpack.i.h.s16 %v2029
  %v2182 = vunpack.i.l.s16 %v2037
  %v2183 = vunpack.i.h.s16 %v2037
  %v2184 = vunpack.i.l.s16 %v2039
  %v2185 = vunpack.i.h.s16 %v2039
  %v2186 = vunpack.i.l.s16 %v2022
  %v2187 = vunpack.i.h.s16 %v2022
  %v2188 = vunpack.i.l.s16 %v2036
  %v2189 = vunpack.i.h.s16 %v2036
  %v2190 = vunpack.i.l.s16 %v2038
  %v2191 = vunpack.i.h.s16 %v2038
  %v2192 = vunpack.i.l.s16 %v2040
  %v2193 = vunpack.i.h.s16 %v2040
  %v2194 = vunpack.i.l.s16 %v2064
  %v2195 = vunpack.i.h.s16 %v2064
  %v2196 = vunpack.i.l.s16 %v2078
  %v2197 = vunpack.i.h.s16 %v2078
  %v2198 = vunpack.i.l.s16 %v2086
  %v2199 = vunpack.i.h.s16 %v2086
  %v2200 = vunpack.i.l.s16 %v2088
  %v2201 = vunpack.i.h.s16 %v2088
  %v2202 = vunpack.i.l.s16 %v2071
  %v2203 = vunpack.i.h.s16 %v2071
  %v2204 = vunpack.i.l.s16 %v2085
  %v2205 = vunpack.i.h.s16 %v2085
  %v2206 = vunpack.i.l.s16 %v2087
  %v2207 = vunpack.i.h.s16 %v2087
  %v2208 = vunpack.i.l.s16 %v2089
  %v2209 = vunpack.i.h.s16 %v2089
  %v2210 = vunpack.i.l.s16 %v2113
  %v2211 = vunpack.i.h.s16 %v2113
  %v2212 = vunpack.i.l.s16 %v2127
  %v2213 = vunpack.i.h.s16 %v2127
  %v2214 = vunpack.i.l.s16 %v2135
  %v2215 = vunpack.i.h.s16 %v2135
  %v2216 = vunpack.i.l.s16 %v2137
  %v2217 = vunpack.i.h.s16 %v2137
  %v2218 = vunpack.i.l.s16 %v2120
  %v2219 = vunpack.i.h.s16 %v2120
  %v2220 = vunpack.i.l.s16 %v2134
  %v2221 = vunpack.i.h.s16 %v2134
  %v2222 = vunpack.i.l.s16 %v2136
  %v2223 = vunpack.i.h.s16 %v2136
  %v2224 = vunpack.i.l.s16 %v2138
  %v2225 = vunpack.i.h.s16 %v2138
  %v2226 = vunpack.i.l.s16 %v2153
  %v2227 = vunpack.i.h.s16 %v2153
  %v2228 = vunpack.i.l.s16 %v2160
  %v2229 = vunpack.i.h.s16 %v2160
  %v2230 = vunpack.i.l.s16 %v2161
  %v2231 = vunpack.i.h.s16 %v2161
  %v2232 = vpack.i.b16 %v1575, %v1574
  %v2233 = vpack.i.b16 %v1577, %v1576
  %v2235 = vcombine.low %v2232, %v2233
  %v2237 = vunpack.c.l.s4 1966171168
  %v2238 = vunpack.c.0.s8 %v2237
  %v2239 = vlaneseq
  %v2240 = vshrl.u32 %v2239, 7
  %v2241 = vsub.s32 %v2238, %v2240
  %v2242 = vrot.slane %v2235, %v2241
  %v2244 = vunpack.c.l.s4 1966171168
  %v2245 = vunpack.c.0.s8 %v2244
  %v2246 = vlaneseq
  %v2247 = vshrl.u32 %v2246, 7
  %v2248 = vsub.s32 %v2245, %v2247
  %v2249 = vrot.slane %v1578, %v2248
  %v2250 = vcombine.low %v2242, %v2249
  %v2252 = vunpack.c.l.s4 1966171168
  %v2253 = vunpack.c.0.s8 %v2252
  %v2254 = vlaneseq
  %v2255 = vshrl.u32 %v2254, 7
  %v2256 = vsub.s32 %v2253, %v2255
  %v2257 = vrot.slane %v2250, %v2256
  %v2258 = vpack.i.b16 %v1869, %v1868
  %v2259 = vpack.i.b16 %v1871, %v1870
  %v2261 = vcombine.low %v2258, %v2259
  %v2263 = vunpack.c.l.s4 1966171168
  %v2264 = vunpack.c.0.s8 %v2263
  %v2265 = vlaneseq
  %v2266 = vshrl.u32 %v2265, 7
  %v2267 = vsub.s32 %v2264, %v2266
  %v2268 = vrot.slane %v2261, %v2267
  %v2270 = vunpack.c.l.s4 1966171168
  %v2271 = vunpack.c.0.s8 %v2270
  %v2272 = vlaneseq
  %v2273 = vshrl.u32 %v2272, 7
  %v2274 = vsub.s32 %v2271, %v2273
  %v2275 = vrot.slane %v1872, %v2274
  %v2276 = vcombine.low %v2268, %v2275
  %v2278 = vunpack.c.l.s4 1966171168
  %v2279 = vunpack.c.0.s8 %v2278
  %v2280 = vlaneseq
  %v2281 = vshrl.u32 %v2280, 7
  %v2282 = vsub.s32 %v2279, %v2281
  %v2283 = vrot.slane %v2276, %v2282
  %vm2284 = vcmask 523264
  %v2286 = vsel %vm2284, %v2257, 0
  %v2289 = vsel %vm2284, %v2283, 0
  %2291 = vmatprep.subr.bf16.mxu0 0
  %2292 = vmatpush1.bf16.xpose.msra.mxu0 %v2289
  %2293 = vmatprep.subr.bf16.mxu0 0
  %2294 = vmatpush1.bf16.xpose.msra.mxu0 0
  %2295 = vmatprep.subr.bf16.mxu0 0
  %2296 = vmatpush1.bf16.xpose.msra.mxu0 0
  %2297 = vmatprep.subr.bf16.mxu0 0
  %2298 = vmatpush1.bf16.xpose.msra.mxu0 0
  %2299 = vmatprep.subr.bf16.mxu0 0
  %2300 = vmatpush1.bf16.xpose.msra.mxu0 0
  %2301 = vmatprep.subr.bf16.mxu0 0
  %2302 = vmatpush1.bf16.xpose.msra.mxu0 0
  %2303 = vmatprep.subr.bf16.mxu0 0
  %2304 = vmatpush1.bf16.xpose.msra.mxu0 0
  %2305 = vmatprep.subr.bf16.mxu0 0
  %2306 = vmatpush1.bf16.xpose.msra.mxu0 0
  %2307 = vmatprep.subr.bf16.mxu0 0
  %2308 = vmatpush1.bf16.xpose.msra.mxu0 0
  %2309 = vmatprep.subr.bf16.mxu0 0
  %2310 = vmatpush1.bf16.xpose.msra.mxu0 0
  %2311 = vmatprep.subr.bf16.mxu0 0
  %2312 = vmatpush1.bf16.xpose.msra.mxu0 0
  %2313 = vmatprep.subr.bf16.mxu0 0
  %2314 = vmatpush1.bf16.xpose.msra.mxu0 0
  %2315 = vmatprep.subr.bf16.mxu0 0
  %2316 = vmatpush1.bf16.xpose.msra.mxu0 0
  %2317 = vmatprep.subr.bf16.mxu0 0
  %2318 = vmatpush1.bf16.xpose.msra.mxu0 0
  %2319 = vmatprep.subr.bf16.mxu0 0
  %2320 = vmatpush1.bf16.xpose.msra.mxu0 0
  %2321 = vmatprep.subr.bf16.mxu0 0
  %2322 = vmatpush1.bf16.xpose.msra.mxu0 0
  %2323 = vmatprep.mubr.bf16.mxu0 0
  %2324 = vmatmul.mubr.bf16.gmra.mrb[0].mxu0 %v2286
  %v2325 = vpop.f32.mrb[0].mxu0
  %v2326 = vadd.f32 0.0, %v2325
  %v2327 = vpop.f32.mrb[0].mxu0
  %v2328 = vpop.f32.mrb[0].mxu0
  %v2329 = vpop.f32.mrb[0].mxu0
  %2330 = vdwg.mxu0
  %v2331 = vpack.i.b16 %v1580, %v1579
  %v2332 = vpack.i.b16 %v1582, %v1581
  %v2334 = vcombine.low %v2331, %v2332
  %v2336 = vunpack.c.l.s4 1966171168
  %v2337 = vunpack.c.0.s8 %v2336
  %v2338 = vlaneseq
  %v2339 = vshrl.u32 %v2338, 7
  %v2340 = vsub.s32 %v2337, %v2339
  %v2341 = vrot.slane %v2334, %v2340
  %v2343 = vunpack.c.l.s4 1966171168
  %v2344 = vunpack.c.0.s8 %v2343
  %v2345 = vlaneseq
  %v2346 = vshrl.u32 %v2345, 7
  %v2347 = vsub.s32 %v2344, %v2346
  %v2348 = vrot.slane %v1583, %v2347
  %v2349 = vcombine.low %v2341, %v2348
  %v2351 = vunpack.c.l.s4 1966171168
  %v2352 = vunpack.c.0.s8 %v2351
  %v2353 = vlaneseq
  %v2354 = vshrl.u32 %v2353, 7
  %v2355 = vsub.s32 %v2352, %v2354
  %v2356 = vrot.slane %v2349, %v2355
  %v2357 = vpack.i.b16 %v1874, %v1873
  %v2358 = vpack.i.b16 %v1876, %v1875
  %v2360 = vcombine.low %v2357, %v2358
  %v2362 = vunpack.c.l.s4 1966171168
  %v2363 = vunpack.c.0.s8 %v2362
  %v2364 = vlaneseq
  %v2365 = vshrl.u32 %v2364, 7
  %v2366 = vsub.s32 %v2363, %v2365
  %v2367 = vrot.slane %v2360, %v2366
  %v2369 = vunpack.c.l.s4 1966171168
  %v2370 = vunpack.c.0.s8 %v2369
  %v2371 = vlaneseq
  %v2372 = vshrl.u32 %v2371, 7
  %v2373 = vsub.s32 %v2370, %v2372
  %v2374 = vrot.slane %v1877, %v2373
  %v2375 = vcombine.low %v2367, %v2374
  %v2377 = vunpack.c.l.s4 1966171168
  %v2378 = vunpack.c.0.s8 %v2377
  %v2379 = vlaneseq
  %v2380 = vshrl.u32 %v2379, 7
  %v2381 = vsub.s32 %v2378, %v2380
  %v2382 = vrot.slane %v2375, %v2381
  %v2384 = vsel %vm2284, %v2356, 0
  %v2387 = vsel %vm2284, %v2382, 0
  %2389 = vmatprep.subr.bf16.mxu0 0
  %2390 = vmatpush1.bf16.xpose.msra.mxu0 %v2387
  %2391 = vmatprep.subr.bf16.mxu0 0
  %2392 = vmatpush1.bf16.xpose.msra.mxu0 0
  %2393 = vmatprep.subr.bf16.mxu0 0
  %2394 = vmatpush1.bf16.xpose.msra.mxu0 0
  %2395 = vmatprep.subr.bf16.mxu0 0
  %2396 = vmatpush1.bf16.xpose.msra.mxu0 0
  %2397 = vmatprep.subr.bf16.mxu0 0
  %2398 = vmatpush1.bf16.xpose.msra.mxu0 0
  %2399 = vmatprep.subr.bf16.mxu0 0
  %2400 = vmatpush1.bf16.xpose.msra.mxu0 0
  %2401 = vmatprep.subr.bf16.mxu0 0
  %2402 = vmatpush1.bf16.xpose.msra.mxu0 0
  %2403 = vmatprep.subr.bf16.mxu0 0
  %2404 = vmatpush1.bf16.xpose.msra.mxu0 0
  %2405 = vmatprep.subr.bf16.mxu0 0
  %2406 = vmatpush1.bf16.xpose.msra.mxu0 0
  %2407 = vmatprep.subr.bf16.mxu0 0
  %2408 = vmatpush1.bf16.xpose.msra.mxu0 0
  %2409 = vmatprep.subr.bf16.mxu0 0
  %2410 = vmatpush1.bf16.xpose.msra.mxu0 0
  %2411 = vmatprep.subr.bf16.mxu0 0
  %2412 = vmatpush1.bf16.xpose.msra.mxu0 0
  %2413 = vmatprep.subr.bf16.mxu0 0
  %2414 = vmatpush1.bf16.xpose.msra.mxu0 0
  %2415 = vmatprep.subr.bf16.mxu0 0
  %2416 = vmatpush1.bf16.xpose.msra.mxu0 0
  %2417 = vmatprep.subr.bf16.mxu0 0
  %2418 = vmatpush1.bf16.xpose.msra.mxu0 0
  %2419 = vmatprep.subr.bf16.mxu0 0
  %2420 = vmatpush1.bf16.xpose.msra.mxu0 0
  %2421 = vmatprep.mubr.bf16.mxu0 0
  %2422 = vmatmul.mubr.bf16.gmra.mrb[0].mxu0 %v2384
  %v2423 = vpop.f32.mrb[0].mxu0
  %v2424 = vadd.f32 0.0, %v2423
  %v2425 = vpop.f32.mrb[0].mxu0
  %v2426 = vpop.f32.mrb[0].mxu0
  %v2427 = vpop.f32.mrb[0].mxu0
  %2428 = vdwg.mxu0
  %v2429 = vpack.i.b16 %v1585, %v1584
  %v2430 = vpack.i.b16 %v1587, %v1586
  %v2432 = vcombine.low %v2429, %v2430
  %v2434 = vunpack.c.l.s4 1966171168
  %v2435 = vunpack.c.0.s8 %v2434
  %v2436 = vlaneseq
  %v2437 = vshrl.u32 %v2436, 7
  %v2438 = vsub.s32 %v2435, %v2437
  %v2439 = vrot.slane %v2432, %v2438
  %v2441 = vunpack.c.l.s4 1966171168
  %v2442 = vunpack.c.0.s8 %v2441
  %v2443 = vlaneseq
  %v2444 = vshrl.u32 %v2443, 7
  %v2445 = vsub.s32 %v2442, %v2444
  %v2446 = vrot.slane %v1588, %v2445
  %v2447 = vcombine.low %v2439, %v2446
  %v2449 = vunpack.c.l.s4 1966171168
  %v2450 = vunpack.c.0.s8 %v2449
  %v2451 = vlaneseq
  %v2452 = vshrl.u32 %v2451, 7
  %v2453 = vsub.s32 %v2450, %v2452
  %v2454 = vrot.slane %v2447, %v2453
  %v2455 = vpack.i.b16 %v1879, %v1878
  %v2456 = vpack.i.b16 %v1881, %v1880
  %v2458 = vcombine.low %v2455, %v2456
  %v2460 = vunpack.c.l.s4 1966171168
  %v2461 = vunpack.c.0.s8 %v2460
  %v2462 = vlaneseq
  %v2463 = vshrl.u32 %v2462, 7
  %v2464 = vsub.s32 %v2461, %v2463
  %v2465 = vrot.slane %v2458, %v2464
  %v2467 = vunpack.c.l.s4 1966171168
  %v2468 = vunpack.c.0.s8 %v2467
  %v2469 = vlaneseq
  %v2470 = vshrl.u32 %v2469, 7
  %v2471 = vsub.s32 %v2468, %v2470
  %v2472 = vrot.slane %v1882, %v2471
  %v2473 = vcombine.low %v2465, %v2472
  %v2475 = vunpack.c.l.s4 1966171168
  %v2476 = vunpack.c.0.s8 %v2475
  %v2477 = vlaneseq
  %v2478 = vshrl.u32 %v2477, 7
  %v2479 = vsub.s32 %v2476, %v2478
  %v2480 = vrot.slane %v2473, %v2479
  %v2482 = vsel %vm2284, %v2454, 0
  %v2485 = vsel %vm2284, %v2480, 0
  %2487 = vmatprep.subr.bf16.mxu0 0
  %2488 = vmatpush1.bf16.xpose.msra.mxu0 %v2485
  %2489 = vmatprep.subr.bf16.mxu0 0
  %2490 = vmatpush1.bf16.xpose.msra.mxu0 0
  %2491 = vmatprep.subr.bf16.mxu0 0
  %2492 = vmatpush1.bf16.xpose.msra.mxu0 0
  %2493 = vmatprep.subr.bf16.mxu0 0
  %2494 = vmatpush1.bf16.xpose.msra.mxu0 0
  %2495 = vmatprep.subr.bf16.mxu0 0
  %2496 = vmatpush1.bf16.xpose.msra.mxu0 0
  %2497 = vmatprep.subr.bf16.mxu0 0
  %2498 = vmatpush1.bf16.xpose.msra.mxu0 0
  %2499 = vmatprep.subr.bf16.mxu0 0
  %2500 = vmatpush1.bf16.xpose.msra.mxu0 0
  %2501 = vmatprep.subr.bf16.mxu0 0
  %2502 = vmatpush1.bf16.xpose.msra.mxu0 0
  %2503 = vmatprep.subr.bf16.mxu0 0
  %2504 = vmatpush1.bf16.xpose.msra.mxu0 0
  %2505 = vmatprep.subr.bf16.mxu0 0
  %2506 = vmatpush1.bf16.xpose.msra.mxu0 0
  %2507 = vmatprep.subr.bf16.mxu0 0
  %2508 = vmatpush1.bf16.xpose.msra.mxu0 0
  %2509 = vmatprep.subr.bf16.mxu0 0
  %2510 = vmatpush1.bf16.xpose.msra.mxu0 0
  %2511 = vmatprep.subr.bf16.mxu0 0
  %2512 = vmatpush1.bf16.xpose.msra.mxu0 0
  %2513 = vmatprep.subr.bf16.mxu0 0
  %2514 = vmatpush1.bf16.xpose.msra.mxu0 0
  %2515 = vmatprep.subr.bf16.mxu0 0
  %2516 = vmatpush1.bf16.xpose.msra.mxu0 0
  %2517 = vmatprep.subr.bf16.mxu0 0
  %2518 = vmatpush1.bf16.xpose.msra.mxu0 0
  %2519 = vmatprep.mubr.bf16.mxu0 0
  %2520 = vmatmul.mubr.bf16.gmra.mrb[0].mxu0 %v2482
  %v2521 = vpop.f32.mrb[0].mxu0
  %v2522 = vadd.f32 0.0, %v2521
  %v2523 = vpop.f32.mrb[0].mxu0
  %v2524 = vpop.f32.mrb[0].mxu0
  %v2525 = vpop.f32.mrb[0].mxu0
  %2526 = vdwg.mxu0
  %v2527 = vpack.i.b16 %v1590, %v1589
  %v2528 = vpack.i.b16 %v1592, %v1591
  %v2530 = vcombine.low %v2527, %v2528
  %v2532 = vunpack.c.l.s4 1966171168
  %v2533 = vunpack.c.0.s8 %v2532
  %v2534 = vlaneseq
  %v2535 = vshrl.u32 %v2534, 7
  %v2536 = vsub.s32 %v2533, %v2535
  %v2537 = vrot.slane %v2530, %v2536
  %v2539 = vunpack.c.l.s4 1966171168
  %v2540 = vunpack.c.0.s8 %v2539
  %v2541 = vlaneseq
  %v2542 = vshrl.u32 %v2541, 7
  %v2543 = vsub.s32 %v2540, %v2542
  %v2544 = vrot.slane %v1593, %v2543
  %v2545 = vcombine.low %v2537, %v2544
  %v2547 = vunpack.c.l.s4 1966171168
  %v2548 = vunpack.c.0.s8 %v2547
  %v2549 = vlaneseq
  %v2550 = vshrl.u32 %v2549, 7
  %v2551 = vsub.s32 %v2548, %v2550
  %v2552 = vrot.slane %v2545, %v2551
  %v2553 = vpack.i.b16 %v1884, %v1883
  %v2554 = vpack.i.b16 %v1886, %v1885
  %v2556 = vcombine.low %v2553, %v2554
  %v2558 = vunpack.c.l.s4 1966171168
  %v2559 = vunpack.c.0.s8 %v2558
  %v2560 = vlaneseq
  %v2561 = vshrl.u32 %v2560, 7
  %v2562 = vsub.s32 %v2559, %v2561
  %v2563 = vrot.slane %v2556, %v2562
  %v2565 = vunpack.c.l.s4 1966171168
  %v2566 = vunpack.c.0.s8 %v2565
  %v2567 = vlaneseq
  %v2568 = vshrl.u32 %v2567, 7
  %v2569 = vsub.s32 %v2566, %v2568
  %v2570 = vrot.slane %v1887, %v2569
  %v2571 = vcombine.low %v2563, %v2570
  %v2573 = vunpack.c.l.s4 1966171168
  %v2574 = vunpack.c.0.s8 %v2573
  %v2575 = vlaneseq
  %v2576 = vshrl.u32 %v2575, 7
  %v2577 = vsub.s32 %v2574, %v2576
  %v2578 = vrot.slane %v2571, %v2577
  %v2580 = vsel %vm2284, %v2552, 0
  %v2583 = vsel %vm2284, %v2578, 0
  %2585 = vmatprep.subr.bf16.mxu0 0
  %2586 = vmatpush1.bf16.xpose.msra.mxu0 %v2583
  %2587 = vmatprep.subr.bf16.mxu0 0
  %2588 = vmatpush1.bf16.xpose.msra.mxu0 0
  %2589 = vmatprep.subr.bf16.mxu0 0
  %2590 = vmatpush1.bf16.xpose.msra.mxu0 0
  %2591 = vmatprep.subr.bf16.mxu0 0
  %2592 = vmatpush1.bf16.xpose.msra.mxu0 0
  %2593 = vmatprep.subr.bf16.mxu0 0
  %2594 = vmatpush1.bf16.xpose.msra.mxu0 0
  %2595 = vmatprep.subr.bf16.mxu0 0
  %2596 = vmatpush1.bf16.xpose.msra.mxu0 0
  %2597 = vmatprep.subr.bf16.mxu0 0
  %2598 = vmatpush1.bf16.xpose.msra.mxu0 0
  %2599 = vmatprep.subr.bf16.mxu0 0
  %2600 = vmatpush1.bf16.xpose.msra.mxu0 0
  %2601 = vmatprep.subr.bf16.mxu0 0
  %2602 = vmatpush1.bf16.xpose.msra.mxu0 0
  %2603 = vmatprep.subr.bf16.mxu0 0
  %2604 = vmatpush1.bf16.xpose.msra.mxu0 0
  %2605 = vmatprep.subr.bf16.mxu0 0
  %2606 = vmatpush1.bf16.xpose.msra.mxu0 0
  %2607 = vmatprep.subr.bf16.mxu0 0
  %2608 = vmatpush1.bf16.xpose.msra.mxu0 0
  %2609 = vmatprep.subr.bf16.mxu0 0
  %2610 = vmatpush1.bf16.xpose.msra.mxu0 0
  %2611 = vmatprep.subr.bf16.mxu0 0
  %2612 = vmatpush1.bf16.xpose.msra.mxu0 0
  %2613 = vmatprep.subr.bf16.mxu0 0
  %2614 = vmatpush1.bf16.xpose.msra.mxu0 0
  %2615 = vmatprep.subr.bf16.mxu0 0
  %2616 = vmatpush1.bf16.xpose.msra.mxu0 0
  %2617 = vmatprep.mubr.bf16.mxu0 0
  %2618 = vmatmul.mubr.bf16.gmra.mrb[0].mxu0 %v2580
  %v2619 = vpop.f32.mrb[0].mxu0
  %v2620 = vadd.f32 0.0, %v2619
  %v2621 = vpop.f32.mrb[0].mxu0
  %v2622 = vpop.f32.mrb[0].mxu0
  %v2623 = vpop.f32.mrb[0].mxu0
  %2624 = vdwg.mxu0
  %v2625 = vpack.i.b16 %v1595, %v1594
  %v2626 = vpack.i.b16 %v1597, %v1596
  %v2628 = vcombine.low %v2625, %v2626
  %v2630 = vunpack.c.l.s4 1966171168
  %v2631 = vunpack.c.0.s8 %v2630
  %v2632 = vlaneseq
  %v2633 = vshrl.u32 %v2632, 7
  %v2634 = vsub.s32 %v2631, %v2633
  %v2635 = vrot.slane %v2628, %v2634
  %v2637 = vunpack.c.l.s4 1966171168
  %v2638 = vunpack.c.0.s8 %v2637
  %v2639 = vlaneseq
  %v2640 = vshrl.u32 %v2639, 7
  %v2641 = vsub.s32 %v2638, %v2640
  %v2642 = vrot.slane %v1598, %v2641
  %v2643 = vcombine.low %v2635, %v2642
  %v2645 = vunpack.c.l.s4 1966171168
  %v2646 = vunpack.c.0.s8 %v2645
  %v2647 = vlaneseq
  %v2648 = vshrl.u32 %v2647, 7
  %v2649 = vsub.s32 %v2646, %v2648
  %v2650 = vrot.slane %v2643, %v2649
  %v2651 = vpack.i.b16 %v1889, %v1888
  %v2652 = vpack.i.b16 %v1891, %v1890
  %v2654 = vcombine.low %v2651, %v2652
  %v2656 = vunpack.c.l.s4 1966171168
  %v2657 = vunpack.c.0.s8 %v2656
  %v2658 = vlaneseq
  %v2659 = vshrl.u32 %v2658, 7
  %v2660 = vsub.s32 %v2657, %v2659
  %v2661 = vrot.slane %v2654, %v2660
  %v2663 = vunpack.c.l.s4 1966171168
  %v2664 = vunpack.c.0.s8 %v2663
  %v2665 = vlaneseq
  %v2666 = vshrl.u32 %v2665, 7
  %v2667 = vsub.s32 %v2664, %v2666
  %v2668 = vrot.slane %v1892, %v2667
  %v2669 = vcombine.low %v2661, %v2668
  %v2671 = vunpack.c.l.s4 1966171168
  %v2672 = vunpack.c.0.s8 %v2671
  %v2673 = vlaneseq
  %v2674 = vshrl.u32 %v2673, 7
  %v2675 = vsub.s32 %v2672, %v2674
  %v2676 = vrot.slane %v2669, %v2675
  %v2678 = vsel %vm2284, %v2650, 0
  %v2681 = vsel %vm2284, %v2676, 0
  %2683 = vmatprep.subr.bf16.mxu0 0
  %2684 = vmatpush1.bf16.xpose.msra.mxu0 %v2681
  %2685 = vmatprep.subr.bf16.mxu0 0
  %2686 = vmatpush1.bf16.xpose.msra.mxu0 0
  %2687 = vmatprep.subr.bf16.mxu0 0
  %2688 = vmatpush1.bf16.xpose.msra.mxu0 0
  %2689 = vmatprep.subr.bf16.mxu0 0
  %2690 = vmatpush1.bf16.xpose.msra.mxu0 0
  %2691 = vmatprep.subr.bf16.mxu0 0
  %2692 = vmatpush1.bf16.xpose.msra.mxu0 0
  %2693 = vmatprep.subr.bf16.mxu0 0
  %2694 = vmatpush1.bf16.xpose.msra.mxu0 0
  %2695 = vmatprep.subr.bf16.mxu0 0
  %2696 = vmatpush1.bf16.xpose.msra.mxu0 0
  %2697 = vmatprep.subr.bf16.mxu0 0
  %2698 = vmatpush1.bf16.xpose.msra.mxu0 0
  %2699 = vmatprep.subr.bf16.mxu0 0
  %2700 = vmatpush1.bf16.xpose.msra.mxu0 0
  %2701 = vmatprep.subr.bf16.mxu0 0
  %2702 = vmatpush1.bf16.xpose.msra.mxu0 0
  %2703 = vmatprep.subr.bf16.mxu0 0
  %2704 = vmatpush1.bf16.xpose.msra.mxu0 0
  %2705 = vmatprep.subr.bf16.mxu0 0
  %2706 = vmatpush1.bf16.xpose.msra.mxu0 0
  %2707 = vmatprep.subr.bf16.mxu0 0
  %2708 = vmatpush1.bf16.xpose.msra.mxu0 0
  %2709 = vmatprep.subr.bf16.mxu0 0
  %2710 = vmatpush1.bf16.xpose.msra.mxu0 0
  %2711 = vmatprep.subr.bf16.mxu0 0
  %2712 = vmatpush1.bf16.xpose.msra.mxu0 0
  %2713 = vmatprep.subr.bf16.mxu0 0
  %2714 = vmatpush1.bf16.xpose.msra.mxu0 0
  %2715 = vmatprep.mubr.bf16.mxu0 0
  %2716 = vmatmul.mubr.bf16.gmra.mrb[0].mxu0 %v2678
  %v2717 = vpop.f32.mrb[0].mxu0
  %v2718 = vadd.f32 0.0, %v2717
  %v2719 = vpop.f32.mrb[0].mxu0
  %v2720 = vpop.f32.mrb[0].mxu0
  %v2721 = vpop.f32.mrb[0].mxu0
  %2722 = vdwg.mxu0
  %v2723 = vpack.i.b16 %v1600, %v1599
  %v2724 = vpack.i.b16 %v1602, %v1601
  %v2726 = vcombine.low %v2723, %v2724
  %v2728 = vunpack.c.l.s4 1966171168
  %v2729 = vunpack.c.0.s8 %v2728
  %v2730 = vlaneseq
  %v2731 = vshrl.u32 %v2730, 7
  %v2732 = vsub.s32 %v2729, %v2731
  %v2733 = vrot.slane %v2726, %v2732
  %v2735 = vunpack.c.l.s4 1966171168
  %v2736 = vunpack.c.0.s8 %v2735
  %v2737 = vlaneseq
  %v2738 = vshrl.u32 %v2737, 7
  %v2739 = vsub.s32 %v2736, %v2738
  %v2740 = vrot.slane %v1603, %v2739
  %v2741 = vcombine.low %v2733, %v2740
  %v2743 = vunpack.c.l.s4 1966171168
  %v2744 = vunpack.c.0.s8 %v2743
  %v2745 = vlaneseq
  %v2746 = vshrl.u32 %v2745, 7
  %v2747 = vsub.s32 %v2744, %v2746
  %v2748 = vrot.slane %v2741, %v2747
  %v2749 = vpack.i.b16 %v1894, %v1893
  %v2750 = vpack.i.b16 %v1896, %v1895
  %v2752 = vcombine.low %v2749, %v2750
  %v2754 = vunpack.c.l.s4 1966171168
  %v2755 = vunpack.c.0.s8 %v2754
  %v2756 = vlaneseq
  %v2757 = vshrl.u32 %v2756, 7
  %v2758 = vsub.s32 %v2755, %v2757
  %v2759 = vrot.slane %v2752, %v2758
  %v2761 = vunpack.c.l.s4 1966171168
  %v2762 = vunpack.c.0.s8 %v2761
  %v2763 = vlaneseq
  %v2764 = vshrl.u32 %v2763, 7
  %v2765 = vsub.s32 %v2762, %v2764
  %v2766 = vrot.slane %v1897, %v2765
  %v2767 = vcombine.low %v2759, %v2766
  %v2769 = vunpack.c.l.s4 1966171168
  %v2770 = vunpack.c.0.s8 %v2769
  %v2771 = vlaneseq
  %v2772 = vshrl.u32 %v2771, 7
  %v2773 = vsub.s32 %v2770, %v2772
  %v2774 = vrot.slane %v2767, %v2773
  %v2776 = vsel %vm2284, %v2748, 0
  %v2779 = vsel %vm2284, %v2774, 0
  %2781 = vmatprep.subr.bf16.mxu0 0
  %2782 = vmatpush1.bf16.xpose.msra.mxu0 %v2779
  %2783 = vmatprep.subr.bf16.mxu0 0
  %2784 = vmatpush1.bf16.xpose.msra.mxu0 0
  %2785 = vmatprep.subr.bf16.mxu0 0
  %2786 = vmatpush1.bf16.xpose.msra.mxu0 0
  %2787 = vmatprep.subr.bf16.mxu0 0
  %2788 = vmatpush1.bf16.xpose.msra.mxu0 0
  %2789 = vmatprep.subr.bf16.mxu0 0
  %2790 = vmatpush1.bf16.xpose.msra.mxu0 0
  %2791 = vmatprep.subr.bf16.mxu0 0
  %2792 = vmatpush1.bf16.xpose.msra.mxu0 0
  %2793 = vmatprep.subr.bf16.mxu0 0
  %2794 = vmatpush1.bf16.xpose.msra.mxu0 0
  %2795 = vmatprep.subr.bf16.mxu0 0
  %2796 = vmatpush1.bf16.xpose.msra.mxu0 0
  %2797 = vmatprep.subr.bf16.mxu0 0
  %2798 = vmatpush1.bf16.xpose.msra.mxu0 0
  %2799 = vmatprep.subr.bf16.mxu0 0
  %2800 = vmatpush1.bf16.xpose.msra.mxu0 0
  %2801 = vmatprep.subr.bf16.mxu0 0
  %2802 = vmatpush1.bf16.xpose.msra.mxu0 0
  %2803 = vmatprep.subr.bf16.mxu0 0
  %2804 = vmatpush1.bf16.xpose.msra.mxu0 0
  %2805 = vmatprep.subr.bf16.mxu0 0
  %2806 = vmatpush1.bf16.xpose.msra.mxu0 0
  %2807 = vmatprep.subr.bf16.mxu0 0
  %2808 = vmatpush1.bf16.xpose.msra.mxu0 0
  %2809 = vmatprep.subr.bf16.mxu0 0
  %2810 = vmatpush1.bf16.xpose.msra.mxu0 0
  %2811 = vmatprep.subr.bf16.mxu0 0
  %2812 = vmatpush1.bf16.xpose.msra.mxu0 0
  %2813 = vmatprep.mubr.bf16.mxu0 0
  %2814 = vmatmul.mubr.bf16.gmra.mrb[0].mxu0 %v2776
  %v2815 = vpop.f32.mrb[0].mxu0
  %v2816 = vadd.f32 0.0, %v2815
  %v2817 = vpop.f32.mrb[0].mxu0
  %v2818 = vpop.f32.mrb[0].mxu0
  %v2819 = vpop.f32.mrb[0].mxu0
  %2820 = vdwg.mxu0
  %v2821 = vpack.i.b16 %v1605, %v1604
  %v2822 = vpack.i.b16 %v1607, %v1606
  %v2824 = vcombine.low %v2821, %v2822
  %v2826 = vunpack.c.l.s4 1966171168
  %v2827 = vunpack.c.0.s8 %v2826
  %v2828 = vlaneseq
  %v2829 = vshrl.u32 %v2828, 7
  %v2830 = vsub.s32 %v2827, %v2829
  %v2831 = vrot.slane %v2824, %v2830
  %v2833 = vunpack.c.l.s4 1966171168
  %v2834 = vunpack.c.0.s8 %v2833
  %v2835 = vlaneseq
  %v2836 = vshrl.u32 %v2835, 7
  %v2837 = vsub.s32 %v2834, %v2836
  %v2838 = vrot.slane %v1608, %v2837
  %v2839 = vcombine.low %v2831, %v2838
  %v2841 = vunpack.c.l.s4 1966171168
  %v2842 = vunpack.c.0.s8 %v2841
  %v2843 = vlaneseq
  %v2844 = vshrl.u32 %v2843, 7
  %v2845 = vsub.s32 %v2842, %v2844
  %v2846 = vrot.slane %v2839, %v2845
  %v2847 = vpack.i.b16 %v1899, %v1898
  %v2848 = vpack.i.b16 %v1901, %v1900
  %v2850 = vcombine.low %v2847, %v2848
  %v2852 = vunpack.c.l.s4 1966171168
  %v2853 = vunpack.c.0.s8 %v2852
  %v2854 = vlaneseq
  %v2855 = vshrl.u32 %v2854, 7
  %v2856 = vsub.s32 %v2853, %v2855
  %v2857 = vrot.slane %v2850, %v2856
  %v2859 = vunpack.c.l.s4 1966171168
  %v2860 = vunpack.c.0.s8 %v2859
  %v2861 = vlaneseq
  %v2862 = vshrl.u32 %v2861, 7
  %v2863 = vsub.s32 %v2860, %v2862
  %v2864 = vrot.slane %v1902, %v2863
  %v2865 = vcombine.low %v2857, %v2864
  %v2867 = vunpack.c.l.s4 1966171168
  %v2868 = vunpack.c.0.s8 %v2867
  %v2869 = vlaneseq
  %v2870 = vshrl.u32 %v2869, 7
  %v2871 = vsub.s32 %v2868, %v2870
  %v2872 = vrot.slane %v2865, %v2871
  %v2874 = vsel %vm2284, %v2846, 0
  %v2877 = vsel %vm2284, %v2872, 0
  %2879 = vmatprep.subr.bf16.mxu0 0
  %2880 = vmatpush1.bf16.xpose.msra.mxu0 %v2877
  %2881 = vmatprep.subr.bf16.mxu0 0
  %2882 = vmatpush1.bf16.xpose.msra.mxu0 0
  %2883 = vmatprep.subr.bf16.mxu0 0
  %2884 = vmatpush1.bf16.xpose.msra.mxu0 0
  %2885 = vmatprep.subr.bf16.mxu0 0
  %2886 = vmatpush1.bf16.xpose.msra.mxu0 0
  %2887 = vmatprep.subr.bf16.mxu0 0
  %2888 = vmatpush1.bf16.xpose.msra.mxu0 0
  %2889 = vmatprep.subr.bf16.mxu0 0
  %2890 = vmatpush1.bf16.xpose.msra.mxu0 0
  %2891 = vmatprep.subr.bf16.mxu0 0
  %2892 = vmatpush1.bf16.xpose.msra.mxu0 0
  %2893 = vmatprep.subr.bf16.mxu0 0
  %2894 = vmatpush1.bf16.xpose.msra.mxu0 0
  %2895 = vmatprep.subr.bf16.mxu0 0
  %2896 = vmatpush1.bf16.xpose.msra.mxu0 0
  %2897 = vmatprep.subr.bf16.mxu0 0
  %2898 = vmatpush1.bf16.xpose.msra.mxu0 0
  %2899 = vmatprep.subr.bf16.mxu0 0
  %2900 = vmatpush1.bf16.xpose.msra.mxu0 0
  %2901 = vmatprep.subr.bf16.mxu0 0
  %2902 = vmatpush1.bf16.xpose.msra.mxu0 0
  %2903 = vmatprep.subr.bf16.mxu0 0
  %2904 = vmatpush1.bf16.xpose.msra.mxu0 0
  %2905 = vmatprep.subr.bf16.mxu0 0
  %2906 = vmatpush1.bf16.xpose.msra.mxu0 0
  %2907 = vmatprep.subr.bf16.mxu0 0
  %2908 = vmatpush1.bf16.xpose.msra.mxu0 0
  %2909 = vmatprep.subr.bf16.mxu0 0
  %2910 = vmatpush1.bf16.xpose.msra.mxu0 0
  %2911 = vmatprep.mubr.bf16.mxu0 0
  %2912 = vmatmul.mubr.bf16.gmra.mrb[0].mxu0 %v2874
  %v2913 = vpop.f32.mrb[0].mxu0
  %v2914 = vadd.f32 0.0, %v2913
  %v2915 = vpop.f32.mrb[0].mxu0
  %v2916 = vpop.f32.mrb[0].mxu0
  %v2917 = vpop.f32.mrb[0].mxu0
  %2918 = vdwg.mxu0
  %v2919 = vpack.i.b16 %v1610, %v1609
  %v2920 = vpack.i.b16 %v1612, %v1611
  %v2922 = vcombine.low %v2919, %v2920
  %v2924 = vunpack.c.l.s4 1966171168
  %v2925 = vunpack.c.0.s8 %v2924
  %v2926 = vlaneseq
  %v2927 = vshrl.u32 %v2926, 7
  %v2928 = vsub.s32 %v2925, %v2927
  %v2929 = vrot.slane %v2922, %v2928
  %v2931 = vunpack.c.l.s4 1966171168
  %v2932 = vunpack.c.0.s8 %v2931
  %v2933 = vlaneseq
  %v2934 = vshrl.u32 %v2933, 7
  %v2935 = vsub.s32 %v2932, %v2934
  %v2936 = vrot.slane %v1613, %v2935
  %v2937 = vcombine.low %v2929, %v2936
  %v2939 = vunpack.c.l.s4 1966171168
  %v2940 = vunpack.c.0.s8 %v2939
  %v2941 = vlaneseq
  %v2942 = vshrl.u32 %v2941, 7
  %v2943 = vsub.s32 %v2940, %v2942
  %v2944 = vrot.slane %v2937, %v2943
  %v2945 = vpack.i.b16 %v1904, %v1903
  %v2946 = vpack.i.b16 %v1906, %v1905
  %v2948 = vcombine.low %v2945, %v2946
  %v2950 = vunpack.c.l.s4 1966171168
  %v2951 = vunpack.c.0.s8 %v2950
  %v2952 = vlaneseq
  %v2953 = vshrl.u32 %v2952, 7
  %v2954 = vsub.s32 %v2951, %v2953
  %v2955 = vrot.slane %v2948, %v2954
  %v2957 = vunpack.c.l.s4 1966171168
  %v2958 = vunpack.c.0.s8 %v2957
  %v2959 = vlaneseq
  %v2960 = vshrl.u32 %v2959, 7
  %v2961 = vsub.s32 %v2958, %v2960
  %v2962 = vrot.slane %v1907, %v2961
  %v2963 = vcombine.low %v2955, %v2962
  %v2965 = vunpack.c.l.s4 1966171168
  %v2966 = vunpack.c.0.s8 %v2965
  %v2967 = vlaneseq
  %v2968 = vshrl.u32 %v2967, 7
  %v2969 = vsub.s32 %v2966, %v2968
  %v2970 = vrot.slane %v2963, %v2969
  %v2972 = vsel %vm2284, %v2944, 0
  %v2975 = vsel %vm2284, %v2970, 0
  %2977 = vmatprep.subr.bf16.mxu0 0
  %2978 = vmatpush1.bf16.xpose.msra.mxu0 %v2975
  %2979 = vmatprep.subr.bf16.mxu0 0
  %2980 = vmatpush1.bf16.xpose.msra.mxu0 0
  %2981 = vmatprep.subr.bf16.mxu0 0
  %2982 = vmatpush1.bf16.xpose.msra.mxu0 0
  %2983 = vmatprep.subr.bf16.mxu0 0
  %2984 = vmatpush1.bf16.xpose.msra.mxu0 0
  %2985 = vmatprep.subr.bf16.mxu0 0
  %2986 = vmatpush1.bf16.xpose.msra.mxu0 0
  %2987 = vmatprep.subr.bf16.mxu0 0
  %2988 = vmatpush1.bf16.xpose.msra.mxu0 0
  %2989 = vmatprep.subr.bf16.mxu0 0
  %2990 = vmatpush1.bf16.xpose.msra.mxu0 0
  %2991 = vmatprep.subr.bf16.mxu0 0
  %2992 = vmatpush1.bf16.xpose.msra.mxu0 0
  %2993 = vmatprep.subr.bf16.mxu0 0
  %2994 = vmatpush1.bf16.xpose.msra.mxu0 0
  %2995 = vmatprep.subr.bf16.mxu0 0
  %2996 = vmatpush1.bf16.xpose.msra.mxu0 0
  %2997 = vmatprep.subr.bf16.mxu0 0
  %2998 = vmatpush1.bf16.xpose.msra.mxu0 0
  %2999 = vmatprep.subr.bf16.mxu0 0
  %3000 = vmatpush1.bf16.xpose.msra.mxu0 0
  %3001 = vmatprep.subr.bf16.mxu0 0
  %3002 = vmatpush1.bf16.xpose.msra.mxu0 0
  %3003 = vmatprep.subr.bf16.mxu0 0
  %3004 = vmatpush1.bf16.xpose.msra.mxu0 0
  %3005 = vmatprep.subr.bf16.mxu0 0
  %3006 = vmatpush1.bf16.xpose.msra.mxu0 0
  %3007 = vmatprep.subr.bf16.mxu0 0
  %3008 = vmatpush1.bf16.xpose.msra.mxu0 0
  %3009 = vmatprep.mubr.bf16.mxu0 0
  %3010 = vmatmul.mubr.bf16.gmra.mrb[0].mxu0 %v2972
  %v3011 = vpop.f32.mrb[0].mxu0
  %v3012 = vadd.f32 0.0, %v3011
  %v3013 = vpop.f32.mrb[0].mxu0
  %v3014 = vpop.f32.mrb[0].mxu0
  %v3015 = vpop.f32.mrb[0].mxu0
  %3016 = vdwg.mxu0
  %v3017 = vpack.i.b16 %v1615, %v1614
  %v3018 = vpack.i.b16 %v1617, %v1616
  %v3020 = vcombine.low %v3017, %v3018
  %v3022 = vunpack.c.l.s4 1966171168
  %v3023 = vunpack.c.0.s8 %v3022
  %v3024 = vlaneseq
  %v3025 = vshrl.u32 %v3024, 7
  %v3026 = vsub.s32 %v3023, %v3025
  %v3027 = vrot.slane %v3020, %v3026
  %v3029 = vunpack.c.l.s4 1966171168
  %v3030 = vunpack.c.0.s8 %v3029
  %v3031 = vlaneseq
  %v3032 = vshrl.u32 %v3031, 7
  %v3033 = vsub.s32 %v3030, %v3032
  %v3034 = vrot.slane %v1618, %v3033
  %v3035 = vcombine.low %v3027, %v3034
  %v3037 = vunpack.c.l.s4 1966171168
  %v3038 = vunpack.c.0.s8 %v3037
  %v3039 = vlaneseq
  %v3040 = vshrl.u32 %v3039, 7
  %v3041 = vsub.s32 %v3038, %v3040
  %v3042 = vrot.slane %v3035, %v3041
  %v3043 = vpack.i.b16 %v1909, %v1908
  %v3044 = vpack.i.b16 %v1911, %v1910
  %v3046 = vcombine.low %v3043, %v3044
  %v3048 = vunpack.c.l.s4 1966171168
  %v3049 = vunpack.c.0.s8 %v3048
  %v3050 = vlaneseq
  %v3051 = vshrl.u32 %v3050, 7
  %v3052 = vsub.s32 %v3049, %v3051
  %v3053 = vrot.slane %v3046, %v3052
  %v3055 = vunpack.c.l.s4 1966171168
  %v3056 = vunpack.c.0.s8 %v3055
  %v3057 = vlaneseq
  %v3058 = vshrl.u32 %v3057, 7
  %v3059 = vsub.s32 %v3056, %v3058
  %v3060 = vrot.slane %v1912, %v3059
  %v3061 = vcombine.low %v3053, %v3060
  %v3063 = vunpack.c.l.s4 1966171168
  %v3064 = vunpack.c.0.s8 %v3063
  %v3065 = vlaneseq
  %v3066 = vshrl.u32 %v3065, 7
  %v3067 = vsub.s32 %v3064, %v3066
  %v3068 = vrot.slane %v3061, %v3067
  %v3070 = vsel %vm2284, %v3042, 0
  %v3073 = vsel %vm2284, %v3068, 0
  %3075 = vmatprep.subr.bf16.mxu0 0
  %3076 = vmatpush1.bf16.xpose.msra.mxu0 %v3073
  %3077 = vmatprep.subr.bf16.mxu0 0
  %3078 = vmatpush1.bf16.xpose.msra.mxu0 0
  %3079 = vmatprep.subr.bf16.mxu0 0
  %3080 = vmatpush1.bf16.xpose.msra.mxu0 0
  %3081 = vmatprep.subr.bf16.mxu0 0
  %3082 = vmatpush1.bf16.xpose.msra.mxu0 0
  %3083 = vmatprep.subr.bf16.mxu0 0
  %3084 = vmatpush1.bf16.xpose.msra.mxu0 0
  %3085 = vmatprep.subr.bf16.mxu0 0
  %3086 = vmatpush1.bf16.xpose.msra.mxu0 0
  %3087 = vmatprep.subr.bf16.mxu0 0
  %3088 = vmatpush1.bf16.xpose.msra.mxu0 0
  %3089 = vmatprep.subr.bf16.mxu0 0
  %3090 = vmatpush1.bf16.xpose.msra.mxu0 0
  %3091 = vmatprep.subr.bf16.mxu0 0
  %3092 = vmatpush1.bf16.xpose.msra.mxu0 0
  %3093 = vmatprep.subr.bf16.mxu0 0
  %3094 = vmatpush1.bf16.xpose.msra.mxu0 0
  %3095 = vmatprep.subr.bf16.mxu0 0
  %3096 = vmatpush1.bf16.xpose.msra.mxu0 0
  %3097 = vmatprep.subr.bf16.mxu0 0
  %3098 = vmatpush1.bf16.xpose.msra.mxu0 0
  %3099 = vmatprep.subr.bf16.mxu0 0
  %3100 = vmatpush1.bf16.xpose.msra.mxu0 0
  %3101 = vmatprep.subr.bf16.mxu0 0
  %3102 = vmatpush1.bf16.xpose.msra.mxu0 0
  %3103 = vmatprep.subr.bf16.mxu0 0
  %3104 = vmatpush1.bf16.xpose.msra.mxu0 0
  %3105 = vmatprep.subr.bf16.mxu0 0
  %3106 = vmatpush1.bf16.xpose.msra.mxu0 0
  %3107 = vmatprep.mubr.bf16.mxu0 0
  %3108 = vmatmul.mubr.bf16.gmra.mrb[0].mxu0 %v3070
  %v3109 = vpop.f32.mrb[0].mxu0
  %v3110 = vadd.f32 0.0, %v3109
  %v3111 = vpop.f32.mrb[0].mxu0
  %v3112 = vpop.f32.mrb[0].mxu0
  %v3113 = vpop.f32.mrb[0].mxu0
  %3114 = vdwg.mxu0
  %v3115 = vpack.i.b16 %v1620, %v1619
  %v3116 = vpack.i.b16 %v1622, %v1621
  %v3118 = vcombine.low %v3115, %v3116
  %v3120 = vunpack.c.l.s4 1966171168
  %v3121 = vunpack.c.0.s8 %v3120
  %v3122 = vlaneseq
  %v3123 = vshrl.u32 %v3122, 7
  %v3124 = vsub.s32 %v3121, %v3123
  %v3125 = vrot.slane %v3118, %v3124
  %v3127 = vunpack.c.l.s4 1966171168
  %v3128 = vunpack.c.0.s8 %v3127
  %v3129 = vlaneseq
  %v3130 = vshrl.u32 %v3129, 7
  %v3131 = vsub.s32 %v3128, %v3130
  %v3132 = vrot.slane %v1623, %v3131
  %v3133 = vcombine.low %v3125, %v3132
  %v3135 = vunpack.c.l.s4 1966171168
  %v3136 = vunpack.c.0.s8 %v3135
  %v3137 = vlaneseq
  %v3138 = vshrl.u32 %v3137, 7
  %v3139 = vsub.s32 %v3136, %v3138
  %v3140 = vrot.slane %v3133, %v3139
  %v3141 = vpack.i.b16 %v1914, %v1913
  %v3142 = vpack.i.b16 %v1916, %v1915
  %v3144 = vcombine.low %v3141, %v3142
  %v3146 = vunpack.c.l.s4 1966171168
  %v3147 = vunpack.c.0.s8 %v3146
  %v3148 = vlaneseq
  %v3149 = vshrl.u32 %v3148, 7
  %v3150 = vsub.s32 %v3147, %v3149
  %v3151 = vrot.slane %v3144, %v3150
  %v3153 = vunpack.c.l.s4 1966171168
  %v3154 = vunpack.c.0.s8 %v3153
  %v3155 = vlaneseq
  %v3156 = vshrl.u32 %v3155, 7
  %v3157 = vsub.s32 %v3154, %v3156
  %v3158 = vrot.slane %v1917, %v3157
  %v3159 = vcombine.low %v3151, %v3158
  %v3161 = vunpack.c.l.s4 1966171168
  %v3162 = vunpack.c.0.s8 %v3161
  %v3163 = vlaneseq
  %v3164 = vshrl.u32 %v3163, 7
  %v3165 = vsub.s32 %v3162, %v3164
  %v3166 = vrot.slane %v3159, %v3165
  %v3168 = vsel %vm2284, %v3140, 0
  %v3171 = vsel %vm2284, %v3166, 0
  %3173 = vmatprep.subr.bf16.mxu0 0
  %3174 = vmatpush1.bf16.xpose.msra.mxu0 %v3171
  %3175 = vmatprep.subr.bf16.mxu0 0
  %3176 = vmatpush1.bf16.xpose.msra.mxu0 0
  %3177 = vmatprep.subr.bf16.mxu0 0
  %3178 = vmatpush1.bf16.xpose.msra.mxu0 0
  %3179 = vmatprep.subr.bf16.mxu0 0
  %3180 = vmatpush1.bf16.xpose.msra.mxu0 0
  %3181 = vmatprep.subr.bf16.mxu0 0
  %3182 = vmatpush1.bf16.xpose.msra.mxu0 0
  %3183 = vmatprep.subr.bf16.mxu0 0
  %3184 = vmatpush1.bf16.xpose.msra.mxu0 0
  %3185 = vmatprep.subr.bf16.mxu0 0
  %3186 = vmatpush1.bf16.xpose.msra.mxu0 0
  %3187 = vmatprep.subr.bf16.mxu0 0
  %3188 = vmatpush1.bf16.xpose.msra.mxu0 0
  %3189 = vmatprep.subr.bf16.mxu0 0
  %3190 = vmatpush1.bf16.xpose.msra.mxu0 0
  %3191 = vmatprep.subr.bf16.mxu0 0
  %3192 = vmatpush1.bf16.xpose.msra.mxu0 0
  %3193 = vmatprep.subr.bf16.mxu0 0
  %3194 = vmatpush1.bf16.xpose.msra.mxu0 0
  %3195 = vmatprep.subr.bf16.mxu0 0
  %3196 = vmatpush1.bf16.xpose.msra.mxu0 0
  %3197 = vmatprep.subr.bf16.mxu0 0
  %3198 = vmatpush1.bf16.xpose.msra.mxu0 0
  %3199 = vmatprep.subr.bf16.mxu0 0
  %3200 = vmatpush1.bf16.xpose.msra.mxu0 0
  %3201 = vmatprep.subr.bf16.mxu0 0
  %3202 = vmatpush1.bf16.xpose.msra.mxu0 0
  %3203 = vmatprep.subr.bf16.mxu0 0
  %3204 = vmatpush1.bf16.xpose.msra.mxu0 0
  %3205 = vmatprep.mubr.bf16.mxu0 0
  %3206 = vmatmul.mubr.bf16.gmra.mrb[0].mxu0 %v3168
  %v3207 = vpop.f32.mrb[0].mxu0
  %v3208 = vadd.f32 0.0, %v3207
  %v3209 = vpop.f32.mrb[0].mxu0
  %v3210 = vpop.f32.mrb[0].mxu0
  %v3211 = vpop.f32.mrb[0].mxu0
  %3212 = vdwg.mxu0
  %v3213 = vpack.i.b16 %v1625, %v1624
  %v3214 = vpack.i.b16 %v1627, %v1626
  %v3216 = vcombine.low %v3213, %v3214
  %v3218 = vunpack.c.l.s4 1966171168
  %v3219 = vunpack.c.0.s8 %v3218
  %v3220 = vlaneseq
  %v3221 = vshrl.u32 %v3220, 7
  %v3222 = vsub.s32 %v3219, %v3221
  %v3223 = vrot.slane %v3216, %v3222
  %v3225 = vunpack.c.l.s4 1966171168
  %v3226 = vunpack.c.0.s8 %v3225
  %v3227 = vlaneseq
  %v3228 = vshrl.u32 %v3227, 7
  %v3229 = vsub.s32 %v3226, %v3228
  %v3230 = vrot.slane %v1628, %v3229
  %v3231 = vcombine.low %v3223, %v3230
  %v3233 = vunpack.c.l.s4 1966171168
  %v3234 = vunpack.c.0.s8 %v3233
  %v3235 = vlaneseq
  %v3236 = vshrl.u32 %v3235, 7
  %v3237 = vsub.s32 %v3234, %v3236
  %v3238 = vrot.slane %v3231, %v3237
  %v3239 = vpack.i.b16 %v1919, %v1918
  %v3240 = vpack.i.b16 %v1921, %v1920
  %v3242 = vcombine.low %v3239, %v3240
  %v3244 = vunpack.c.l.s4 1966171168
  %v3245 = vunpack.c.0.s8 %v3244
  %v3246 = vlaneseq
  %v3247 = vshrl.u32 %v3246, 7
  %v3248 = vsub.s32 %v3245, %v3247
  %v3249 = vrot.slane %v3242, %v3248
  %v3251 = vunpack.c.l.s4 1966171168
  %v3252 = vunpack.c.0.s8 %v3251
  %v3253 = vlaneseq
  %v3254 = vshrl.u32 %v3253, 7
  %v3255 = vsub.s32 %v3252, %v3254
  %v3256 = vrot.slane %v1922, %v3255
  %v3257 = vcombine.low %v3249, %v3256
  %v3259 = vunpack.c.l.s4 1966171168
  %v3260 = vunpack.c.0.s8 %v3259
  %v3261 = vlaneseq
  %v3262 = vshrl.u32 %v3261, 7
  %v3263 = vsub.s32 %v3260, %v3262
  %v3264 = vrot.slane %v3257, %v3263
  %v3266 = vsel %vm2284, %v3238, 0
  %v3269 = vsel %vm2284, %v3264, 0
  %3271 = vmatprep.subr.bf16.mxu0 0
  %3272 = vmatpush1.bf16.xpose.msra.mxu0 %v3269
  %3273 = vmatprep.subr.bf16.mxu0 0
  %3274 = vmatpush1.bf16.xpose.msra.mxu0 0
  %3275 = vmatprep.subr.bf16.mxu0 0
  %3276 = vmatpush1.bf16.xpose.msra.mxu0 0
  %3277 = vmatprep.subr.bf16.mxu0 0
  %3278 = vmatpush1.bf16.xpose.msra.mxu0 0
  %3279 = vmatprep.subr.bf16.mxu0 0
  %3280 = vmatpush1.bf16.xpose.msra.mxu0 0
  %3281 = vmatprep.subr.bf16.mxu0 0
  %3282 = vmatpush1.bf16.xpose.msra.mxu0 0
  %3283 = vmatprep.subr.bf16.mxu0 0
  %3284 = vmatpush1.bf16.xpose.msra.mxu0 0
  %3285 = vmatprep.subr.bf16.mxu0 0
  %3286 = vmatpush1.bf16.xpose.msra.mxu0 0
  %3287 = vmatprep.subr.bf16.mxu0 0
  %3288 = vmatpush1.bf16.xpose.msra.mxu0 0
  %3289 = vmatprep.subr.bf16.mxu0 0
  %3290 = vmatpush1.bf16.xpose.msra.mxu0 0
  %3291 = vmatprep.subr.bf16.mxu0 0
  %3292 = vmatpush1.bf16.xpose.msra.mxu0 0
  %3293 = vmatprep.subr.bf16.mxu0 0
  %3294 = vmatpush1.bf16.xpose.msra.mxu0 0
  %3295 = vmatprep.subr.bf16.mxu0 0
  %3296 = vmatpush1.bf16.xpose.msra.mxu0 0
  %3297 = vmatprep.subr.bf16.mxu0 0
  %3298 = vmatpush1.bf16.xpose.msra.mxu0 0
  %3299 = vmatprep.subr.bf16.mxu0 0
  %3300 = vmatpush1.bf16.xpose.msra.mxu0 0
  %3301 = vmatprep.subr.bf16.mxu0 0
  %3302 = vmatpush1.bf16.xpose.msra.mxu0 0
  %3303 = vmatprep.mubr.bf16.mxu0 0
  %3304 = vmatmul.mubr.bf16.gmra.mrb[0].mxu0 %v3266
  %v3305 = vpop.f32.mrb[0].mxu0
  %v3306 = vadd.f32 0.0, %v3305
  %v3307 = vpop.f32.mrb[0].mxu0
  %v3308 = vpop.f32.mrb[0].mxu0
  %v3309 = vpop.f32.mrb[0].mxu0
  %3310 = vdwg.mxu0
  %v3311 = vpack.i.b16 %v1630, %v1629
  %v3312 = vpack.i.b16 %v1632, %v1631
  %v3314 = vcombine.low %v3311, %v3312
  %v3316 = vunpack.c.l.s4 1966171168
  %v3317 = vunpack.c.0.s8 %v3316
  %v3318 = vlaneseq
  %v3319 = vshrl.u32 %v3318, 7
  %v3320 = vsub.s32 %v3317, %v3319
  %v3321 = vrot.slane %v3314, %v3320
  %v3323 = vunpack.c.l.s4 1966171168
  %v3324 = vunpack.c.0.s8 %v3323
  %v3325 = vlaneseq
  %v3326 = vshrl.u32 %v3325, 7
  %v3327 = vsub.s32 %v3324, %v3326
  %v3328 = vrot.slane %v1633, %v3327
  %v3329 = vcombine.low %v3321, %v3328
  %v3331 = vunpack.c.l.s4 1966171168
  %v3332 = vunpack.c.0.s8 %v3331
  %v3333 = vlaneseq
  %v3334 = vshrl.u32 %v3333, 7
  %v3335 = vsub.s32 %v3332, %v3334
  %v3336 = vrot.slane %v3329, %v3335
  %v3337 = vpack.i.b16 %v1924, %v1923
  %v3338 = vpack.i.b16 %v1926, %v1925
  %v3340 = vcombine.low %v3337, %v3338
  %v3342 = vunpack.c.l.s4 1966171168
  %v3343 = vunpack.c.0.s8 %v3342
  %v3344 = vlaneseq
  %v3345 = vshrl.u32 %v3344, 7
  %v3346 = vsub.s32 %v3343, %v3345
  %v3347 = vrot.slane %v3340, %v3346
  %v3349 = vunpack.c.l.s4 1966171168
  %v3350 = vunpack.c.0.s8 %v3349
  %v3351 = vlaneseq
  %v3352 = vshrl.u32 %v3351, 7
  %v3353 = vsub.s32 %v3350, %v3352
  %v3354 = vrot.slane %v1927, %v3353
  %v3355 = vcombine.low %v3347, %v3354
  %v3357 = vunpack.c.l.s4 1966171168
  %v3358 = vunpack.c.0.s8 %v3357
  %v3359 = vlaneseq
  %v3360 = vshrl.u32 %v3359, 7
  %v3361 = vsub.s32 %v3358, %v3360
  %v3362 = vrot.slane %v3355, %v3361
  %v3364 = vsel %vm2284, %v3336, 0
  %v3367 = vsel %vm2284, %v3362, 0
  %3369 = vmatprep.subr.bf16.mxu0 0
  %3370 = vmatpush1.bf16.xpose.msra.mxu0 %v3367
  %3371 = vmatprep.subr.bf16.mxu0 0
  %3372 = vmatpush1.bf16.xpose.msra.mxu0 0
  %3373 = vmatprep.subr.bf16.mxu0 0
  %3374 = vmatpush1.bf16.xpose.msra.mxu0 0
  %3375 = vmatprep.subr.bf16.mxu0 0
  %3376 = vmatpush1.bf16.xpose.msra.mxu0 0
  %3377 = vmatprep.subr.bf16.mxu0 0
  %3378 = vmatpush1.bf16.xpose.msra.mxu0 0
  %3379 = vmatprep.subr.bf16.mxu0 0
  %3380 = vmatpush1.bf16.xpose.msra.mxu0 0
  %3381 = vmatprep.subr.bf16.mxu0 0
  %3382 = vmatpush1.bf16.xpose.msra.mxu0 0
  %3383 = vmatprep.subr.bf16.mxu0 0
  %3384 = vmatpush1.bf16.xpose.msra.mxu0 0
  %3385 = vmatprep.subr.bf16.mxu0 0
  %3386 = vmatpush1.bf16.xpose.msra.mxu0 0
  %3387 = vmatprep.subr.bf16.mxu0 0
  %3388 = vmatpush1.bf16.xpose.msra.mxu0 0
  %3389 = vmatprep.subr.bf16.mxu0 0
  %3390 = vmatpush1.bf16.xpose.msra.mxu0 0
  %3391 = vmatprep.subr.bf16.mxu0 0
  %3392 = vmatpush1.bf16.xpose.msra.mxu0 0
  %3393 = vmatprep.subr.bf16.mxu0 0
  %3394 = vmatpush1.bf16.xpose.msra.mxu0 0
  %3395 = vmatprep.subr.bf16.mxu0 0
  %3396 = vmatpush1.bf16.xpose.msra.mxu0 0
  %3397 = vmatprep.subr.bf16.mxu0 0
  %3398 = vmatpush1.bf16.xpose.msra.mxu0 0
  %3399 = vmatprep.subr.bf16.mxu0 0
  %3400 = vmatpush1.bf16.xpose.msra.mxu0 0
  %3401 = vmatprep.mubr.bf16.mxu0 0
  %3402 = vmatmul.mubr.bf16.gmra.mrb[0].mxu0 %v3364
  %v3403 = vpop.f32.mrb[0].mxu0
  %v3404 = vadd.f32 0.0, %v3403
  %v3405 = vpop.f32.mrb[0].mxu0
  %v3406 = vpop.f32.mrb[0].mxu0
  %v3407 = vpop.f32.mrb[0].mxu0
  %3408 = vdwg.mxu0
  %v3409 = vpack.i.b16 %v1635, %v1634
  %v3410 = vpack.i.b16 %v1637, %v1636
  %v3412 = vcombine.low %v3409, %v3410
  %v3414 = vunpack.c.l.s4 1966171168
  %v3415 = vunpack.c.0.s8 %v3414
  %v3416 = vlaneseq
  %v3417 = vshrl.u32 %v3416, 7
  %v3418 = vsub.s32 %v3415, %v3417
  %v3419 = vrot.slane %v3412, %v3418
  %v3421 = vunpack.c.l.s4 1966171168
  %v3422 = vunpack.c.0.s8 %v3421
  %v3423 = vlaneseq
  %v3424 = vshrl.u32 %v3423, 7
  %v3425 = vsub.s32 %v3422, %v3424
  %v3426 = vrot.slane %v1638, %v3425
  %v3427 = vcombine.low %v3419, %v3426
  %v3429 = vunpack.c.l.s4 1966171168
  %v3430 = vunpack.c.0.s8 %v3429
  %v3431 = vlaneseq
  %v3432 = vshrl.u32 %v3431, 7
  %v3433 = vsub.s32 %v3430, %v3432
  %v3434 = vrot.slane %v3427, %v3433
  %v3435 = vpack.i.b16 %v1929, %v1928
  %v3436 = vpack.i.b16 %v1931, %v1930
  %v3438 = vcombine.low %v3435, %v3436
  %v3440 = vunpack.c.l.s4 1966171168
  %v3441 = vunpack.c.0.s8 %v3440
  %v3442 = vlaneseq
  %v3443 = vshrl.u32 %v3442, 7
  %v3444 = vsub.s32 %v3441, %v3443
  %v3445 = vrot.slane %v3438, %v3444
  %v3447 = vunpack.c.l.s4 1966171168
  %v3448 = vunpack.c.0.s8 %v3447
  %v3449 = vlaneseq
  %v3450 = vshrl.u32 %v3449, 7
  %v3451 = vsub.s32 %v3448, %v3450
  %v3452 = vrot.slane %v1932, %v3451
  %v3453 = vcombine.low %v3445, %v3452
  %v3455 = vunpack.c.l.s4 1966171168
  %v3456 = vunpack.c.0.s8 %v3455
  %v3457 = vlaneseq
  %v3458 = vshrl.u32 %v3457, 7
  %v3459 = vsub.s32 %v3456, %v3458
  %v3460 = vrot.slane %v3453, %v3459
  %v3462 = vsel %vm2284, %v3434, 0
  %v3465 = vsel %vm2284, %v3460, 0
  %3467 = vmatprep.subr.bf16.mxu0 0
  %3468 = vmatpush1.bf16.xpose.msra.mxu0 %v3465
  %3469 = vmatprep.subr.bf16.mxu0 0
  %3470 = vmatpush1.bf16.xpose.msra.mxu0 0
  %3471 = vmatprep.subr.bf16.mxu0 0
  %3472 = vmatpush1.bf16.xpose.msra.mxu0 0
  %3473 = vmatprep.subr.bf16.mxu0 0
  %3474 = vmatpush1.bf16.xpose.msra.mxu0 0
  %3475 = vmatprep.subr.bf16.mxu0 0
  %3476 = vmatpush1.bf16.xpose.msra.mxu0 0
  %3477 = vmatprep.subr.bf16.mxu0 0
  %3478 = vmatpush1.bf16.xpose.msra.mxu0 0
  %3479 = vmatprep.subr.bf16.mxu0 0
  %3480 = vmatpush1.bf16.xpose.msra.mxu0 0
  %3481 = vmatprep.subr.bf16.mxu0 0
  %3482 = vmatpush1.bf16.xpose.msra.mxu0 0
  %3483 = vmatprep.subr.bf16.mxu0 0
  %3484 = vmatpush1.bf16.xpose.msra.mxu0 0
  %3485 = vmatprep.subr.bf16.mxu0 0
  %3486 = vmatpush1.bf16.xpose.msra.mxu0 0
  %3487 = vmatprep.subr.bf16.mxu0 0
  %3488 = vmatpush1.bf16.xpose.msra.mxu0 0
  %3489 = vmatprep.subr.bf16.mxu0 0
  %3490 = vmatpush1.bf16.xpose.msra.mxu0 0
  %3491 = vmatprep.subr.bf16.mxu0 0
  %3492 = vmatpush1.bf16.xpose.msra.mxu0 0
  %3493 = vmatprep.subr.bf16.mxu0 0
  %3494 = vmatpush1.bf16.xpose.msra.mxu0 0
  %3495 = vmatprep.subr.bf16.mxu0 0
  %3496 = vmatpush1.bf16.xpose.msra.mxu0 0
  %3497 = vmatprep.subr.bf16.mxu0 0
  %3498 = vmatpush1.bf16.xpose.msra.mxu0 0
  %3499 = vmatprep.mubr.bf16.mxu0 0
  %3500 = vmatmul.mubr.bf16.gmra.mrb[0].mxu0 %v3462
  %v3501 = vpop.f32.mrb[0].mxu0
  %v3502 = vadd.f32 0.0, %v3501
  %v3503 = vpop.f32.mrb[0].mxu0
  %v3504 = vpop.f32.mrb[0].mxu0
  %v3505 = vpop.f32.mrb[0].mxu0
  %3506 = vdwg.mxu0
  %v3507 = vpack.i.b16 %v1640, %v1639
  %v3508 = vpack.i.b16 %v1642, %v1641
  %v3510 = vcombine.low %v3507, %v3508
  %v3512 = vunpack.c.l.s4 1966171168
  %v3513 = vunpack.c.0.s8 %v3512
  %v3514 = vlaneseq
  %v3515 = vshrl.u32 %v3514, 7
  %v3516 = vsub.s32 %v3513, %v3515
  %v3517 = vrot.slane %v3510, %v3516
  %v3519 = vunpack.c.l.s4 1966171168
  %v3520 = vunpack.c.0.s8 %v3519
  %v3521 = vlaneseq
  %v3522 = vshrl.u32 %v3521, 7
  %v3523 = vsub.s32 %v3520, %v3522
  %v3524 = vrot.slane %v1643, %v3523
  %v3525 = vcombine.low %v3517, %v3524
  %v3527 = vunpack.c.l.s4 1966171168
  %v3528 = vunpack.c.0.s8 %v3527
  %v3529 = vlaneseq
  %v3530 = vshrl.u32 %v3529, 7
  %v3531 = vsub.s32 %v3528, %v3530
  %v3532 = vrot.slane %v3525, %v3531
  %v3533 = vpack.i.b16 %v1934, %v1933
  %v3534 = vpack.i.b16 %v1936, %v1935
  %v3536 = vcombine.low %v3533, %v3534
  %v3538 = vunpack.c.l.s4 1966171168
  %v3539 = vunpack.c.0.s8 %v3538
  %v3540 = vlaneseq
  %v3541 = vshrl.u32 %v3540, 7
  %v3542 = vsub.s32 %v3539, %v3541
  %v3543 = vrot.slane %v3536, %v3542
  %v3545 = vunpack.c.l.s4 1966171168
  %v3546 = vunpack.c.0.s8 %v3545
  %v3547 = vlaneseq
  %v3548 = vshrl.u32 %v3547, 7
  %v3549 = vsub.s32 %v3546, %v3548
  %v3550 = vrot.slane %v1937, %v3549
  %v3551 = vcombine.low %v3543, %v3550
  %v3553 = vunpack.c.l.s4 1966171168
  %v3554 = vunpack.c.0.s8 %v3553
  %v3555 = vlaneseq
  %v3556 = vshrl.u32 %v3555, 7
  %v3557 = vsub.s32 %v3554, %v3556
  %v3558 = vrot.slane %v3551, %v3557
  %v3560 = vsel %vm2284, %v3532, 0
  %v3563 = vsel %vm2284, %v3558, 0
  %3565 = vmatprep.subr.bf16.mxu0 0
  %3566 = vmatpush1.bf16.xpose.msra.mxu0 %v3563
  %3567 = vmatprep.subr.bf16.mxu0 0
  %3568 = vmatpush1.bf16.xpose.msra.mxu0 0
  %3569 = vmatprep.subr.bf16.mxu0 0
  %3570 = vmatpush1.bf16.xpose.msra.mxu0 0
  %3571 = vmatprep.subr.bf16.mxu0 0
  %3572 = vmatpush1.bf16.xpose.msra.mxu0 0
  %3573 = vmatprep.subr.bf16.mxu0 0
  %3574 = vmatpush1.bf16.xpose.msra.mxu0 0
  %3575 = vmatprep.subr.bf16.mxu0 0
  %3576 = vmatpush1.bf16.xpose.msra.mxu0 0
  %3577 = vmatprep.subr.bf16.mxu0 0
  %3578 = vmatpush1.bf16.xpose.msra.mxu0 0
  %3579 = vmatprep.subr.bf16.mxu0 0
  %3580 = vmatpush1.bf16.xpose.msra.mxu0 0
  %3581 = vmatprep.subr.bf16.mxu0 0
  %3582 = vmatpush1.bf16.xpose.msra.mxu0 0
  %3583 = vmatprep.subr.bf16.mxu0 0
  %3584 = vmatpush1.bf16.xpose.msra.mxu0 0
  %3585 = vmatprep.subr.bf16.mxu0 0
  %3586 = vmatpush1.bf16.xpose.msra.mxu0 0
  %3587 = vmatprep.subr.bf16.mxu0 0
  %3588 = vmatpush1.bf16.xpose.msra.mxu0 0
  %3589 = vmatprep.subr.bf16.mxu0 0
  %3590 = vmatpush1.bf16.xpose.msra.mxu0 0
  %3591 = vmatprep.subr.bf16.mxu0 0
  %3592 = vmatpush1.bf16.xpose.msra.mxu0 0
  %3593 = vmatprep.subr.bf16.mxu0 0
  %3594 = vmatpush1.bf16.xpose.msra.mxu0 0
  %3595 = vmatprep.subr.bf16.mxu0 0
  %3596 = vmatpush1.bf16.xpose.msra.mxu0 0
  %3597 = vmatprep.mubr.bf16.mxu0 0
  %3598 = vmatmul.mubr.bf16.gmra.mrb[0].mxu0 %v3560
  %v3599 = vpop.f32.mrb[0].mxu0
  %v3600 = vadd.f32 0.0, %v3599
  %v3601 = vpop.f32.mrb[0].mxu0
  %v3602 = vpop.f32.mrb[0].mxu0
  %v3603 = vpop.f32.mrb[0].mxu0
  %3604 = vdwg.mxu0
  %v3605 = vmul.f32 %v2326, 0.125
  %v3606 = vmul.f32 %v2424, 0.125
  %v3607 = vmul.f32 %v2522, 0.125
  %v3608 = vmul.f32 %v2620, 0.125
  %v3609 = vmul.f32 %v2718, 0.125
  %v3610 = vmul.f32 %v2816, 0.125
  %v3611 = vmul.f32 %v2914, 0.125
  %v3612 = vmul.f32 %v3012, 0.125
  %v3613 = vmul.f32 %v3110, 0.125
  %v3614 = vmul.f32 %v3208, 0.125
  %v3615 = vmul.f32 %v3306, 0.125
  %v3616 = vmul.f32 %v3404, 0.125
  %v3617 = vmul.f32 %v3502, 0.125
  %v3618 = vmul.f32 %v3600, 0.125
  %v3619 = vsel %vm1349, 1, 0
  %vm3620 = vcmp.eq.s32.totalorder %v3619, 1
  %v3621 = vsel %vm3620, %v3605, -1e+30
  %v3622 = vsel %vm3620, %v3606, -1e+30
  %v3623 = vsel %vm3620, %v3607, -1e+30
  %v3624 = vsel %vm3620, %v3608, -1e+30
  %v3625 = vsel %vm3620, %v3609, -1e+30
  %v3626 = vsel %vm3620, %v3610, -1e+30
  %v3627 = vsel %vm3620, %v3611, -1e+30
  %v3628 = vsel %vm3620, %v3612, -1e+30
  %v3629 = vsel %vm3620, %v3613, -1e+30
  %v3630 = vsel %vm3620, %v3614, -1e+30
  %v3631 = vsel %vm3620, %v3615, -1e+30
  %v3632 = vsel %vm3620, %v3616, -1e+30
  %v3633 = vsel %vm3620, %v3617, -1e+30
  %v3634 = vsel %vm3620, %v3618, -1e+30
  %vm3635 = vcmask 36864
  %v3636 = vsel %vm3635, %v3621, -inf
  %3637 = vmax.xlane.f32.xlu0 %v3636
  %v3638 = vpop.xlane.xlu0 %3637
  %v3639 = vsel %vm3635, %v3622, -inf
  %3640 = vmax.xlane.f32.xlu0 %v3639
  %v3641 = vpop.xlane.xlu0 %3640
  %v3642 = vsel %vm3635, %v3623, -inf
  %3643 = vmax.xlane.f32.xlu0 %v3642
  %v3644 = vpop.xlane.xlu0 %3643
  %v3645 = vsel %vm3635, %v3624, -inf
  %3646 = vmax.xlane.f32.xlu0 %v3645
  %v3647 = vpop.xlane.xlu0 %3646
  %v3648 = vsel %vm3635, %v3625, -inf
  %3649 = vmax.xlane.f32.xlu0 %v3648
  %v3650 = vpop.xlane.xlu0 %3649
  %v3651 = vsel %vm3635, %v3626, -inf
  %3652 = vmax.xlane.f32.xlu0 %v3651
  %v3653 = vpop.xlane.xlu0 %3652
  %v3654 = vsel %vm3635, %v3627, -inf
  %3655 = vmax.xlane.f32.xlu0 %v3654
  %v3656 = vpop.xlane.xlu0 %3655
  %v3657 = vsel %vm3635, %v3628, -inf
  %3658 = vmax.xlane.f32.xlu0 %v3657
  %v3659 = vpop.xlane.xlu0 %3658
  %v3660 = vsel %vm3635, %v3629, -inf
  %3661 = vmax.xlane.f32.xlu0 %v3660
  %v3662 = vpop.xlane.xlu0 %3661
  %v3663 = vsel %vm3635, %v3630, -inf
  %3664 = vmax.xlane.f32.xlu0 %v3663
  %v3665 = vpop.xlane.xlu0 %3664
  %v3666 = vsel %vm3635, %v3631, -inf
  %3667 = vmax.xlane.f32.xlu0 %v3666
  %v3668 = vpop.xlane.xlu0 %3667
  %v3669 = vsel %vm3635, %v3632, -inf
  %3670 = vmax.xlane.f32.xlu0 %v3669
  %v3671 = vpop.xlane.xlu0 %3670
  %v3672 = vsel %vm3635, %v3633, -inf
  %3673 = vmax.xlane.f32.xlu0 %v3672
  %v3674 = vpop.xlane.xlu0 %3673
  %v3675 = vsel %vm3635, %v3634, -inf
  %3676 = vmax.xlane.f32.xlu0 %v3675
  %v3677 = vpop.xlane.xlu0 %3676
  %v3678 = vsub.f32 %v3621, %v3638
  %v3679 = vsub.f32 %v3622, %v3641
  %v3680 = vsub.f32 %v3623, %v3644
  %v3681 = vsub.f32 %v3624, %v3647
  %v3682 = vsub.f32 %v3625, %v3650
  %v3683 = vsub.f32 %v3626, %v3653
  %v3684 = vsub.f32 %v3627, %v3656
  %v3685 = vsub.f32 %v3628, %v3659
  %v3686 = vsub.f32 %v3629, %v3662
  %v3687 = vsub.f32 %v3630, %v3665
  %v3688 = vsub.f32 %v3631, %v3668
  %v3689 = vsub.f32 %v3632, %v3671
  %v3690 = vsub.f32 %v3633, %v3674
  %v3691 = vsub.f32 %v3634, %v3677
  %v3692 = vmul.f32 %v3678, 1.442695
  %v3693 = vpow.pop %v3692
  %v3694 = vmul.f32 %v3679, 1.442695
  %v3695 = vpow.pop %v3694
  %v3696 = vmul.f32 %v3680, 1.442695
  %v3697 = vpow.pop %v3696
  %v3698 = vmul.f32 %v3681, 1.442695
  %v3699 = vpow.pop %v3698
  %v3700 = vmul.f32 %v3682, 1.442695
  %v3701 = vpow.pop %v3700
  %v3702 = vmul.f32 %v3683, 1.442695
  %v3703 = vpow.pop %v3702
  %v3704 = vmul.f32 %v3684, 1.442695
  %v3705 = vpow.pop %v3704
  %v3706 = vmul.f32 %v3685, 1.442695
  %v3707 = vpow.pop %v3706
  %v3708 = vmul.f32 %v3686, 1.442695
  %v3709 = vpow.pop %v3708
  %v3710 = vmul.f32 %v3687, 1.442695
  %v3711 = vpow.pop %v3710
  %v3712 = vmul.f32 %v3688, 1.442695
  %v3713 = vpow.pop %v3712
  %v3714 = vmul.f32 %v3689, 1.442695
  %v3715 = vpow.pop %v3714
  %v3716 = vmul.f32 %v3690, 1.442695
  %v3717 = vpow.pop %v3716
  %v3718 = vmul.f32 %v3691, 1.442695
  %v3719 = vpow.pop %v3718
  %v3720 = vsel %vm3635, %v3693, 0.0
  %3721 = vadd.xlane.f32.xlu0 %v3720
  %v3722 = vpop.xlane.xlu0 %3721
  %v3723 = vsel %vm3635, %v3695, 0.0
  %3724 = vadd.xlane.f32.xlu0 %v3723
  %v3725 = vpop.xlane.xlu0 %3724
  %v3726 = vsel %vm3635, %v3697, 0.0
  %3727 = vadd.xlane.f32.xlu0 %v3726
  %v3728 = vpop.xlane.xlu0 %3727
  %v3729 = vsel %vm3635, %v3699, 0.0
  %3730 = vadd.xlane.f32.xlu0 %v3729
  %v3731 = vpop.xlane.xlu0 %3730
  %v3732 = vsel %vm3635, %v3701, 0.0
  %3733 = vadd.xlane.f32.xlu0 %v3732
  %v3734 = vpop.xlane.xlu0 %3733
  %v3735 = vsel %vm3635, %v3703, 0.0
  %3736 = vadd.xlane.f32.xlu0 %v3735
  %v3737 = vpop.xlane.xlu0 %3736
  %v3738 = vsel %vm3635, %v3705, 0.0
  %3739 = vadd.xlane.f32.xlu0 %v3738
  %v3740 = vpop.xlane.xlu0 %3739
  %v3741 = vsel %vm3635, %v3707, 0.0
  %3742 = vadd.xlane.f32.xlu0 %v3741
  %v3743 = vpop.xlane.xlu0 %3742
  %v3744 = vsel %vm3635, %v3709, 0.0
  %3745 = vadd.xlane.f32.xlu0 %v3744
  %v3746 = vpop.xlane.xlu0 %3745
  %v3747 = vsel %vm3635, %v3711, 0.0
  %3748 = vadd.xlane.f32.xlu0 %v3747
  %v3749 = vpop.xlane.xlu0 %3748
  %v3750 = vsel %vm3635, %v3713, 0.0
  %3751 = vadd.xlane.f32.xlu0 %v3750
  %v3752 = vpop.xlane.xlu0 %3751
  %v3753 = vsel %vm3635, %v3715, 0.0
  %3754 = vadd.xlane.f32.xlu0 %v3753
  %v3755 = vpop.xlane.xlu0 %3754
  %v3756 = vsel %vm3635, %v3717, 0.0
  %3757 = vadd.xlane.f32.xlu0 %v3756
  %v3758 = vpop.xlane.xlu0 %3757
  %v3759 = vsel %vm3635, %v3719, 0.0
  %3760 = vadd.xlane.f32.xlu0 %v3759
  %v3761 = vpop.xlane.xlu0 %3760
  %v3762 = vrcp.pop %v3722
  %v3763 = vrcp.pop %v3725
  %v3764 = vrcp.pop %v3728
  %v3765 = vrcp.pop %v3731
  %v3766 = vrcp.pop %v3734
  %v3767 = vrcp.pop %v3737
  %v3768 = vrcp.pop %v3740
  %v3769 = vrcp.pop %v3743
  %v3770 = vrcp.pop %v3746
  %v3771 = vrcp.pop %v3749
  %v3772 = vrcp.pop %v3752
  %v3773 = vrcp.pop %v3755
  %v3774 = vrcp.pop %v3758
  %v3775 = vrcp.pop %v3761
  %v3776 = vmul.f32 %v3693, %v3762
  %v3777 = vmul.f32 %v3695, %v3763
  %v3778 = vmul.f32 %v3697, %v3764
  %v3779 = vmul.f32 %v3699, %v3765
  %v3780 = vmul.f32 %v3701, %v3766
  %v3781 = vmul.f32 %v3703, %v3767
  %v3782 = vmul.f32 %v3705, %v3768
  %v3783 = vmul.f32 %v3707, %v3769
  %v3784 = vmul.f32 %v3709, %v3770
  %v3785 = vmul.f32 %v3711, %v3771
  %v3786 = vmul.f32 %v3713, %v3772
  %v3787 = vmul.f32 %v3715, %v3773
  %v3788 = vmul.f32 %v3717, %v3774
  %v3789 = vmul.f32 %v3719, %v3775
  %v3790 = vpack.c.bf16 %v3776, %v3776
  %v3791 = vpack.c.bf16 %v3777, %v3777
  %v3792 = vpack.c.bf16 %v3778, %v3778
  %v3793 = vpack.c.bf16 %v3779, %v3779
  %v3794 = vpack.c.bf16 %v3780, %v3780
  %v3795 = vpack.c.bf16 %v3781, %v3781
  %v3796 = vpack.c.bf16 %v3782, %v3782
  %v3797 = vpack.c.bf16 %v3783, %v3783
  %v3798 = vpack.c.bf16 %v3784, %v3784
  %v3799 = vpack.c.bf16 %v3785, %v3785
  %v3800 = vpack.c.bf16 %v3786, %v3786
  %v3801 = vpack.c.bf16 %v3787, %v3787
  %v3802 = vpack.c.bf16 %v3788, %v3788
  %v3803 = vpack.c.bf16 %v3789, %v3789
  %v3804 = vpack.i.b16 %v2163, %v2162
  %v3805 = vpack.i.b16 %v2165, %v2164
  %v3807 = vcombine.low %v3804, %v3805
  %v3809 = vunpack.c.l.s4 1966171168
  %v3810 = vunpack.c.0.s8 %v3809
  %v3811 = vlaneseq
  %v3812 = vshrl.u32 %v3811, 7
  %v3813 = vsub.s32 %v3810, %v3812
  %v3814 = vrot.slane %v3807, %v3813
  %v3816 = vunpack.c.l.s4 1966171168
  %v3817 = vunpack.c.0.s8 %v3816
  %v3818 = vlaneseq
  %v3819 = vshrl.u32 %v3818, 7
  %v3820 = vsub.s32 %v3817, %v3819
  %v3821 = vrot.slane %v2166, %v3820
  %v3822 = vcombine.low %v3814, %v3821
  %v3824 = vunpack.c.l.s4 1966171168
  %v3825 = vunpack.c.0.s8 %v3824
  %v3826 = vlaneseq
  %v3827 = vshrl.u32 %v3826, 7
  %v3828 = vsub.s32 %v3825, %v3827
  %v3829 = vrot.slane %v3822, %v3828
  %vm3830 = vcmask 39936
  %v3832 = vsel %vm3830, %v3790, 0
  %vm3834 = vcmask 1041408
  %vm3835 = vcmask 1042432
  %v3836 = vsel %vm3834, 4294967295, 65535
  %v3837 = vsel %vm3835, %v3836, 0
  %v3839 = vand.u32 %v3829, %v3837
  %3841 = vmatprep.subr.bf16.mxu0 0
  %3842 = vmatpush1.bf16.msra.mxu0 %v3839
  %3843 = vmatprep.subr.bf16.mxu0 0
  %3844 = vmatpush1.bf16.msra.mxu0 0
  %3845 = vmatprep.subr.bf16.mxu0 0
  %3846 = vmatpush1.bf16.msra.mxu0 0
  %3847 = vmatprep.subr.bf16.mxu0 0
  %3848 = vmatpush1.bf16.msra.mxu0 0
  %3849 = vmatprep.subr.bf16.mxu0 0
  %3850 = vmatpush1.bf16.msra.mxu0 0
  %3851 = vmatprep.subr.bf16.mxu0 0
  %3852 = vmatpush1.bf16.msra.mxu0 0
  %3853 = vmatprep.subr.bf16.mxu0 0
  %3854 = vmatpush1.bf16.msra.mxu0 0
  %3855 = vmatprep.subr.bf16.mxu0 0
  %3856 = vmatpush1.bf16.msra.mxu0 0
  %3857 = vmatprep.subr.bf16.mxu0 0
  %3858 = vmatpush1.bf16.msra.mxu0 0
  %3859 = vmatprep.subr.bf16.mxu0 0
  %3860 = vmatpush1.bf16.msra.mxu0 0
  %3861 = vmatprep.subr.bf16.mxu0 0
  %3862 = vmatpush1.bf16.msra.mxu0 0
  %3863 = vmatprep.subr.bf16.mxu0 0
  %3864 = vmatpush1.bf16.msra.mxu0 0
  %3865 = vmatprep.subr.bf16.mxu0 0
  %3866 = vmatpush1.bf16.msra.mxu0 0
  %3867 = vmatprep.subr.bf16.mxu0 0
  %3868 = vmatpush1.bf16.msra.mxu0 0
  %3869 = vmatprep.subr.bf16.mxu0 0
  %3870 = vmatpush1.bf16.msra.mxu0 0
  %3871 = vmatprep.subr.bf16.mxu0 0
  %3872 = vmatpush1.bf16.msra.mxu0 0
  %3873 = vmatprep.mubr.bf16.mxu0 0
  %3874 = vmatmul.mubr.bf16.gmra.mrb[0].mxu0 %v3832
  %v3875 = vpop.f32.mrb[0].mxu0
  %v3876 = vadd.f32 0.0, %v3875
  %v3877 = vpop.f32.mrb[0].mxu0
  %v3878 = vpop.f32.mrb[0].mxu0
  %v3879 = vpop.f32.mrb[0].mxu0
  %3880 = vdwg.mxu0
  %v3881 = vpack.i.b16 %v2168, %v2167
  %v3882 = vpack.i.b16 %v2170, %v2169
  %v3884 = vcombine.low %v3881, %v3882
  %v3886 = vunpack.c.l.s4 1966171168
  %v3887 = vunpack.c.0.s8 %v3886
  %v3888 = vlaneseq
  %v3889 = vshrl.u32 %v3888, 7
  %v3890 = vsub.s32 %v3887, %v3889
  %v3891 = vrot.slane %v3884, %v3890
  %v3893 = vunpack.c.l.s4 1966171168
  %v3894 = vunpack.c.0.s8 %v3893
  %v3895 = vlaneseq
  %v3896 = vshrl.u32 %v3895, 7
  %v3897 = vsub.s32 %v3894, %v3896
  %v3898 = vrot.slane %v2171, %v3897
  %v3899 = vcombine.low %v3891, %v3898
  %v3901 = vunpack.c.l.s4 1966171168
  %v3902 = vunpack.c.0.s8 %v3901
  %v3903 = vlaneseq
  %v3904 = vshrl.u32 %v3903, 7
  %v3905 = vsub.s32 %v3902, %v3904
  %v3906 = vrot.slane %v3899, %v3905
  %v3908 = vsel %vm3830, %v3791, 0
  %v3911 = vand.u32 %v3906, %v3837
  %3913 = vmatprep.subr.bf16.mxu0 0
  %3914 = vmatpush1.bf16.msra.mxu0 %v3911
  %3915 = vmatprep.subr.bf16.mxu0 0
  %3916 = vmatpush1.bf16.msra.mxu0 0
  %3917 = vmatprep.subr.bf16.mxu0 0
  %3918 = vmatpush1.bf16.msra.mxu0 0
  %3919 = vmatprep.subr.bf16.mxu0 0
  %3920 = vmatpush1.bf16.msra.mxu0 0
  %3921 = vmatprep.subr.bf16.mxu0 0
  %3922 = vmatpush1.bf16.msra.mxu0 0
  %3923 = vmatprep.subr.bf16.mxu0 0
  %3924 = vmatpush1.bf16.msra.mxu0 0
  %3925 = vmatprep.subr.bf16.mxu0 0
  %3926 = vmatpush1.bf16.msra.mxu0 0
  %3927 = vmatprep.subr.bf16.mxu0 0
  %3928 = vmatpush1.bf16.msra.mxu0 0
  %3929 = vmatprep.subr.bf16.mxu0 0
  %3930 = vmatpush1.bf16.msra.mxu0 0
  %3931 = vmatprep.subr.bf16.mxu0 0
  %3932 = vmatpush1.bf16.msra.mxu0 0
  %3933 = vmatprep.subr.bf16.mxu0 0
  %3934 = vmatpush1.bf16.msra.mxu0 0
  %3935 = vmatprep.subr.bf16.mxu0 0
  %3936 = vmatpush1.bf16.msra.mxu0 0
  %3937 = vmatprep.subr.bf16.mxu0 0
  %3938 = vmatpush1.bf16.msra.mxu0 0
  %3939 = vmatprep.subr.bf16.mxu0 0
  %3940 = vmatpush1.bf16.msra.mxu0 0
  %3941 = vmatprep.subr.bf16.mxu0 0
  %3942 = vmatpush1.bf16.msra.mxu0 0
  %3943 = vmatprep.subr.bf16.mxu0 0
  %3944 = vmatpush1.bf16.msra.mxu0 0
  %3945 = vmatprep.mubr.bf16.mxu0 0
  %3946 = vmatmul.mubr.bf16.gmra.mrb[0].mxu0 %v3908
  %v3947 = vpop.f32.mrb[0].mxu0
  %v3948 = vadd.f32 0.0, %v3947
  %v3949 = vpop.f32.mrb[0].mxu0
  %v3950 = vpop.f32.mrb[0].mxu0
  %v3951 = vpop.f32.mrb[0].mxu0
  %3952 = vdwg.mxu0
  %v3953 = vpack.i.b16 %v2173, %v2172
  %v3954 = vpack.i.b16 %v2175, %v2174
  %v3956 = vcombine.low %v3953, %v3954
  %v3958 = vunpack.c.l.s4 1966171168
  %v3959 = vunpack.c.0.s8 %v3958
  %v3960 = vlaneseq
  %v3961 = vshrl.u32 %v3960, 7
  %v3962 = vsub.s32 %v3959, %v3961
  %v3963 = vrot.slane %v3956, %v3962
  %v3965 = vunpack.c.l.s4 1966171168
  %v3966 = vunpack.c.0.s8 %v3965
  %v3967 = vlaneseq
  %v3968 = vshrl.u32 %v3967, 7
  %v3969 = vsub.s32 %v3966, %v3968
  %v3970 = vrot.slane %v2176, %v3969
  %v3971 = vcombine.low %v3963, %v3970
  %v3973 = vunpack.c.l.s4 1966171168
  %v3974 = vunpack.c.0.s8 %v3973
  %v3975 = vlaneseq
  %v3976 = vshrl.u32 %v3975, 7
  %v3977 = vsub.s32 %v3974, %v3976
  %v3978 = vrot.slane %v3971, %v3977
  %v3980 = vsel %vm3830, %v3792, 0
  %v3983 = vand.u32 %v3978, %v3837
  %3985 = vmatprep.subr.bf16.mxu0 0
  %3986 = vmatpush1.bf16.msra.mxu0 %v3983
  %3987 = vmatprep.subr.bf16.mxu0 0
  %3988 = vmatpush1.bf16.msra.mxu0 0
  %3989 = vmatprep.subr.bf16.mxu0 0
  %3990 = vmatpush1.bf16.msra.mxu0 0
  %3991 = vmatprep.subr.bf16.mxu0 0
  %3992 = vmatpush1.bf16.msra.mxu0 0
  %3993 = vmatprep.subr.bf16.mxu0 0
  %3994 = vmatpush1.bf16.msra.mxu0 0
  %3995 = vmatprep.subr.bf16.mxu0 0
  %3996 = vmatpush1.bf16.msra.mxu0 0
  %3997 = vmatprep.subr.bf16.mxu0 0
  %3998 = vmatpush1.bf16.msra.mxu0 0
  %3999 = vmatprep.subr.bf16.mxu0 0
  %4000 = vmatpush1.bf16.msra.mxu0 0
  %4001 = vmatprep.subr.bf16.mxu0 0
  %4002 = vmatpush1.bf16.msra.mxu0 0
  %4003 = vmatprep.subr.bf16.mxu0 0
  %4004 = vmatpush1.bf16.msra.mxu0 0
  %4005 = vmatprep.subr.bf16.mxu0 0
  %4006 = vmatpush1.bf16.msra.mxu0 0
  %4007 = vmatprep.subr.bf16.mxu0 0
  %4008 = vmatpush1.bf16.msra.mxu0 0
  %4009 = vmatprep.subr.bf16.mxu0 0
  %4010 = vmatpush1.bf16.msra.mxu0 0
  %4011 = vmatprep.subr.bf16.mxu0 0
  %4012 = vmatpush1.bf16.msra.mxu0 0
  %4013 = vmatprep.subr.bf16.mxu0 0
  %4014 = vmatpush1.bf16.msra.mxu0 0
  %4015 = vmatprep.subr.bf16.mxu0 0
  %4016 = vmatpush1.bf16.msra.mxu0 0
  %4017 = vmatprep.mubr.bf16.mxu0 0
  %4018 = vmatmul.mubr.bf16.gmra.mrb[0].mxu0 %v3980
  %v4019 = vpop.f32.mrb[0].mxu0
  %v4020 = vadd.f32 0.0, %v4019
  %v4021 = vpop.f32.mrb[0].mxu0
  %v4022 = vpop.f32.mrb[0].mxu0
  %v4023 = vpop.f32.mrb[0].mxu0
  %4024 = vdwg.mxu0
  %v4025 = vpack.i.b16 %v2178, %v2177
  %v4026 = vpack.i.b16 %v2180, %v2179
  %v4028 = vcombine.low %v4025, %v4026
  %v4030 = vunpack.c.l.s4 1966171168
  %v4031 = vunpack.c.0.s8 %v4030
  %v4032 = vlaneseq
  %v4033 = vshrl.u32 %v4032, 7
  %v4034 = vsub.s32 %v4031, %v4033
  %v4035 = vrot.slane %v4028, %v4034
  %v4037 = vunpack.c.l.s4 1966171168
  %v4038 = vunpack.c.0.s8 %v4037
  %v4039 = vlaneseq
  %v4040 = vshrl.u32 %v4039, 7
  %v4041 = vsub.s32 %v4038, %v4040
  %v4042 = vrot.slane %v2181, %v4041
  %v4043 = vcombine.low %v4035, %v4042
  %v4045 = vunpack.c.l.s4 1966171168
  %v4046 = vunpack.c.0.s8 %v4045
  %v4047 = vlaneseq
  %v4048 = vshrl.u32 %v4047, 7
  %v4049 = vsub.s32 %v4046, %v4048
  %v4050 = vrot.slane %v4043, %v4049
  %v4052 = vsel %vm3830, %v3793, 0
  %v4055 = vand.u32 %v4050, %v3837
  %4057 = vmatprep.subr.bf16.mxu0 0
  %4058 = vmatpush1.bf16.msra.mxu0 %v4055
  %4059 = vmatprep.subr.bf16.mxu0 0
  %4060 = vmatpush1.bf16.msra.mxu0 0
  %4061 = vmatprep.subr.bf16.mxu0 0
  %4062 = vmatpush1.bf16.msra.mxu0 0
  %4063 = vmatprep.subr.bf16.mxu0 0
  %4064 = vmatpush1.bf16.msra.mxu0 0
  %4065 = vmatprep.subr.bf16.mxu0 0
  %4066 = vmatpush1.bf16.msra.mxu0 0
  %4067 = vmatprep.subr.bf16.mxu0 0
  %4068 = vmatpush1.bf16.msra.mxu0 0
  %4069 = vmatprep.subr.bf16.mxu0 0
  %4070 = vmatpush1.bf16.msra.mxu0 0
  %4071 = vmatprep.subr.bf16.mxu0 0
  %4072 = vmatpush1.bf16.msra.mxu0 0
  %4073 = vmatprep.subr.bf16.mxu0 0
  %4074 = vmatpush1.bf16.msra.mxu0 0
  %4075 = vmatprep.subr.bf16.mxu0 0
  %4076 = vmatpush1.bf16.msra.mxu0 0
  %4077 = vmatprep.subr.bf16.mxu0 0
  %4078 = vmatpush1.bf16.msra.mxu0 0
  %4079 = vmatprep.subr.bf16.mxu0 0
  %4080 = vmatpush1.bf16.msra.mxu0 0
  %4081 = vmatprep.subr.bf16.mxu0 0
  %4082 = vmatpush1.bf16.msra.mxu0 0
  %4083 = vmatprep.subr.bf16.mxu0 0
  %4084 = vmatpush1.bf16.msra.mxu0 0
  %4085 = vmatprep.subr.bf16.mxu0 0
  %4086 = vmatpush1.bf16.msra.mxu0 0
  %4087 = vmatprep.subr.bf16.mxu0 0
  %4088 = vmatpush1.bf16.msra.mxu0 0
  %4089 = vmatprep.mubr.bf16.mxu0 0
  %4090 = vmatmul.mubr.bf16.gmra.mrb[0].mxu0 %v4052
  %v4091 = vpop.f32.mrb[0].mxu0
  %v4092 = vadd.f32 0.0, %v4091
  %v4093 = vpop.f32.mrb[0].mxu0
  %v4094 = vpop.f32.mrb[0].mxu0
  %v4095 = vpop.f32.mrb[0].mxu0
  %4096 = vdwg.mxu0
  %v4097 = vpack.i.b16 %v2183, %v2182
  %v4098 = vpack.i.b16 %v2185, %v2184
  %v4100 = vcombine.low %v4097, %v4098
  %v4102 = vunpack.c.l.s4 1966171168
  %v4103 = vunpack.c.0.s8 %v4102
  %v4104 = vlaneseq
  %v4105 = vshrl.u32 %v4104, 7
  %v4106 = vsub.s32 %v4103, %v4105
  %v4107 = vrot.slane %v4100, %v4106
  %v4109 = vunpack.c.l.s4 1966171168
  %v4110 = vunpack.c.0.s8 %v4109
  %v4111 = vlaneseq
  %v4112 = vshrl.u32 %v4111, 7
  %v4113 = vsub.s32 %v4110, %v4112
  %v4114 = vrot.slane %v2186, %v4113
  %v4115 = vcombine.low %v4107, %v4114
  %v4117 = vunpack.c.l.s4 1966171168
  %v4118 = vunpack.c.0.s8 %v4117
  %v4119 = vlaneseq
  %v4120 = vshrl.u32 %v4119, 7
  %v4121 = vsub.s32 %v4118, %v4120
  %v4122 = vrot.slane %v4115, %v4121
  %v4124 = vsel %vm3830, %v3794, 0
  %v4127 = vand.u32 %v4122, %v3837
  %4129 = vmatprep.subr.bf16.mxu0 0
  %4130 = vmatpush1.bf16.msra.mxu0 %v4127
  %4131 = vmatprep.subr.bf16.mxu0 0
  %4132 = vmatpush1.bf16.msra.mxu0 0
  %4133 = vmatprep.subr.bf16.mxu0 0
  %4134 = vmatpush1.bf16.msra.mxu0 0
  %4135 = vmatprep.subr.bf16.mxu0 0
  %4136 = vmatpush1.bf16.msra.mxu0 0
  %4137 = vmatprep.subr.bf16.mxu0 0
  %4138 = vmatpush1.bf16.msra.mxu0 0
  %4139 = vmatprep.subr.bf16.mxu0 0
  %4140 = vmatpush1.bf16.msra.mxu0 0
  %4141 = vmatprep.subr.bf16.mxu0 0
  %4142 = vmatpush1.bf16.msra.mxu0 0
  %4143 = vmatprep.subr.bf16.mxu0 0
  %4144 = vmatpush1.bf16.msra.mxu0 0
  %4145 = vmatprep.subr.bf16.mxu0 0
  %4146 = vmatpush1.bf16.msra.mxu0 0
  %4147 = vmatprep.subr.bf16.mxu0 0
  %4148 = vmatpush1.bf16.msra.mxu0 0
  %4149 = vmatprep.subr.bf16.mxu0 0
  %4150 = vmatpush1.bf16.msra.mxu0 0
  %4151 = vmatprep.subr.bf16.mxu0 0
  %4152 = vmatpush1.bf16.msra.mxu0 0
  %4153 = vmatprep.subr.bf16.mxu0 0
  %4154 = vmatpush1.bf16.msra.mxu0 0
  %4155 = vmatprep.subr.bf16.mxu0 0
  %4156 = vmatpush1.bf16.msra.mxu0 0
  %4157 = vmatprep.subr.bf16.mxu0 0
  %4158 = vmatpush1.bf16.msra.mxu0 0
  %4159 = vmatprep.subr.bf16.mxu0 0
  %4160 = vmatpush1.bf16.msra.mxu0 0
  %4161 = vmatprep.mubr.bf16.mxu0 0
  %4162 = vmatmul.mubr.bf16.gmra.mrb[0].mxu0 %v4124
  %v4163 = vpop.f32.mrb[0].mxu0
  %v4164 = vadd.f32 0.0, %v4163
  %v4165 = vpop.f32.mrb[0].mxu0
  %v4166 = vpop.f32.mrb[0].mxu0
  %v4167 = vpop.f32.mrb[0].mxu0
  %4168 = vdwg.mxu0
  %v4169 = vpack.i.b16 %v2188, %v2187
  %v4170 = vpack.i.b16 %v2190, %v2189
  %v4172 = vcombine.low %v4169, %v4170
  %v4174 = vunpack.c.l.s4 1966171168
  %v4175 = vunpack.c.0.s8 %v4174
  %v4176 = vlaneseq
  %v4177 = vshrl.u32 %v4176, 7
  %v4178 = vsub.s32 %v4175, %v4177
  %v4179 = vrot.slane %v4172, %v4178
  %v4181 = vunpack.c.l.s4 1966171168
  %v4182 = vunpack.c.0.s8 %v4181
  %v4183 = vlaneseq
  %v4184 = vshrl.u32 %v4183, 7
  %v4185 = vsub.s32 %v4182, %v4184
  %v4186 = vrot.slane %v2191, %v4185
  %v4187 = vcombine.low %v4179, %v4186
  %v4189 = vunpack.c.l.s4 1966171168
  %v4190 = vunpack.c.0.s8 %v4189
  %v4191 = vlaneseq
  %v4192 = vshrl.u32 %v4191, 7
  %v4193 = vsub.s32 %v4190, %v4192
  %v4194 = vrot.slane %v4187, %v4193
  %v4196 = vsel %vm3830, %v3795, 0
  %v4199 = vand.u32 %v4194, %v3837
  %4201 = vmatprep.subr.bf16.mxu0 0
  %4202 = vmatpush1.bf16.msra.mxu0 %v4199
  %4203 = vmatprep.subr.bf16.mxu0 0
  %4204 = vmatpush1.bf16.msra.mxu0 0
  %4205 = vmatprep.subr.bf16.mxu0 0
  %4206 = vmatpush1.bf16.msra.mxu0 0
  %4207 = vmatprep.subr.bf16.mxu0 0
  %4208 = vmatpush1.bf16.msra.mxu0 0
  %4209 = vmatprep.subr.bf16.mxu0 0
  %4210 = vmatpush1.bf16.msra.mxu0 0
  %4211 = vmatprep.subr.bf16.mxu0 0
  %4212 = vmatpush1.bf16.msra.mxu0 0
  %4213 = vmatprep.subr.bf16.mxu0 0
  %4214 = vmatpush1.bf16.msra.mxu0 0
  %4215 = vmatprep.subr.bf16.mxu0 0
  %4216 = vmatpush1.bf16.msra.mxu0 0
  %4217 = vmatprep.subr.bf16.mxu0 0
  %4218 = vmatpush1.bf16.msra.mxu0 0
  %4219 = vmatprep.subr.bf16.mxu0 0
  %4220 = vmatpush1.bf16.msra.mxu0 0
  %4221 = vmatprep.subr.bf16.mxu0 0
  %4222 = vmatpush1.bf16.msra.mxu0 0
  %4223 = vmatprep.subr.bf16.mxu0 0
  %4224 = vmatpush1.bf16.msra.mxu0 0
  %4225 = vmatprep.subr.bf16.mxu0 0
  %4226 = vmatpush1.bf16.msra.mxu0 0
  %4227 = vmatprep.subr.bf16.mxu0 0
  %4228 = vmatpush1.bf16.msra.mxu0 0
  %4229 = vmatprep.subr.bf16.mxu0 0
  %4230 = vmatpush1.bf16.msra.mxu0 0
  %4231 = vmatprep.subr.bf16.mxu0 0
  %4232 = vmatpush1.bf16.msra.mxu0 0
  %4233 = vmatprep.mubr.bf16.mxu0 0
  %4234 = vmatmul.mubr.bf16.gmra.mrb[0].mxu0 %v4196
  %v4235 = vpop.f32.mrb[0].mxu0
  %v4236 = vadd.f32 0.0, %v4235
  %v4237 = vpop.f32.mrb[0].mxu0
  %v4238 = vpop.f32.mrb[0].mxu0
  %v4239 = vpop.f32.mrb[0].mxu0
  %4240 = vdwg.mxu0
  %v4241 = vpack.i.b16 %v2193, %v2192
  %v4242 = vpack.i.b16 %v2195, %v2194
  %v4244 = vcombine.low %v4241, %v4242
  %v4246 = vunpack.c.l.s4 1966171168
  %v4247 = vunpack.c.0.s8 %v4246
  %v4248 = vlaneseq
  %v4249 = vshrl.u32 %v4248, 7
  %v4250 = vsub.s32 %v4247, %v4249
  %v4251 = vrot.slane %v4244, %v4250
  %v4253 = vunpack.c.l.s4 1966171168
  %v4254 = vunpack.c.0.s8 %v4253
  %v4255 = vlaneseq
  %v4256 = vshrl.u32 %v4255, 7
  %v4257 = vsub.s32 %v4254, %v4256
  %v4258 = vrot.slane %v2196, %v4257
  %v4259 = vcombine.low %v4251, %v4258
  %v4261 = vunpack.c.l.s4 1966171168
  %v4262 = vunpack.c.0.s8 %v4261
  %v4263 = vlaneseq
  %v4264 = vshrl.u32 %v4263, 7
  %v4265 = vsub.s32 %v4262, %v4264
  %v4266 = vrot.slane %v4259, %v4265
  %v4268 = vsel %vm3830, %v3796, 0
  %v4271 = vand.u32 %v4266, %v3837
  %4273 = vmatprep.subr.bf16.mxu0 0
  %4274 = vmatpush1.bf16.msra.mxu0 %v4271
  %4275 = vmatprep.subr.bf16.mxu0 0
  %4276 = vmatpush1.bf16.msra.mxu0 0
  %4277 = vmatprep.subr.bf16.mxu0 0
  %4278 = vmatpush1.bf16.msra.mxu0 0
  %4279 = vmatprep.subr.bf16.mxu0 0
  %4280 = vmatpush1.bf16.msra.mxu0 0
  %4281 = vmatprep.subr.bf16.mxu0 0
  %4282 = vmatpush1.bf16.msra.mxu0 0
  %4283 = vmatprep.subr.bf16.mxu0 0
  %4284 = vmatpush1.bf16.msra.mxu0 0
  %4285 = vmatprep.subr.bf16.mxu0 0
  %4286 = vmatpush1.bf16.msra.mxu0 0
  %4287 = vmatprep.subr.bf16.mxu0 0
  %4288 = vmatpush1.bf16.msra.mxu0 0
  %4289 = vmatprep.subr.bf16.mxu0 0
  %4290 = vmatpush1.bf16.msra.mxu0 0
  %4291 = vmatprep.subr.bf16.mxu0 0
  %4292 = vmatpush1.bf16.msra.mxu0 0
  %4293 = vmatprep.subr.bf16.mxu0 0
  %4294 = vmatpush1.bf16.msra.mxu0 0
  %4295 = vmatprep.subr.bf16.mxu0 0
  %4296 = vmatpush1.bf16.msra.mxu0 0
  %4297 = vmatprep.subr.bf16.mxu0 0
  %4298 = vmatpush1.bf16.msra.mxu0 0
  %4299 = vmatprep.subr.bf16.mxu0 0
  %4300 = vmatpush1.bf16.msra.mxu0 0
  %4301 = vmatprep.subr.bf16.mxu0 0
  %4302 = vmatpush1.bf16.msra.mxu0 0
  %4303 = vmatprep.subr.bf16.mxu0 0
  %4304 = vmatpush1.bf16.msra.mxu0 0
  %4305 = vmatprep.mubr.bf16.mxu0 0
  %4306 = vmatmul.mubr.bf16.gmra.mrb[0].mxu0 %v4268
  %v4307 = vpop.f32.mrb[0].mxu0
  %v4308 = vadd.f32 0.0, %v4307
  %v4309 = vpop.f32.mrb[0].mxu0
  %v4310 = vpop.f32.mrb[0].mxu0
  %v4311 = vpop.f32.mrb[0].mxu0
  %4312 = vdwg.mxu0
  %v4313 = vpack.i.b16 %v2198, %v2197
  %v4314 = vpack.i.b16 %v2200, %v2199
  %v4316 = vcombine.low %v4313, %v4314
  %v4318 = vunpack.c.l.s4 1966171168
  %v4319 = vunpack.c.0.s8 %v4318
  %v4320 = vlaneseq
  %v4321 = vshrl.u32 %v4320, 7
  %v4322 = vsub.s32 %v4319, %v4321
  %v4323 = vrot.slane %v4316, %v4322
  %v4325 = vunpack.c.l.s4 1966171168
  %v4326 = vunpack.c.0.s8 %v4325
  %v4327 = vlaneseq
  %v4328 = vshrl.u32 %v4327, 7
  %v4329 = vsub.s32 %v4326, %v4328
  %v4330 = vrot.slane %v2201, %v4329
  %v4331 = vcombine.low %v4323, %v4330
  %v4333 = vunpack.c.l.s4 1966171168
  %v4334 = vunpack.c.0.s8 %v4333
  %v4335 = vlaneseq
  %v4336 = vshrl.u32 %v4335, 7
  %v4337 = vsub.s32 %v4334, %v4336
  %v4338 = vrot.slane %v4331, %v4337
  %v4340 = vsel %vm3830, %v3797, 0
  %v4343 = vand.u32 %v4338, %v3837
  %4345 = vmatprep.subr.bf16.mxu0 0
  %4346 = vmatpush1.bf16.msra.mxu0 %v4343
  %4347 = vmatprep.subr.bf16.mxu0 0
  %4348 = vmatpush1.bf16.msra.mxu0 0
  %4349 = vmatprep.subr.bf16.mxu0 0
  %4350 = vmatpush1.bf16.msra.mxu0 0
  %4351 = vmatprep.subr.bf16.mxu0 0
  %4352 = vmatpush1.bf16.msra.mxu0 0
  %4353 = vmatprep.subr.bf16.mxu0 0
  %4354 = vmatpush1.bf16.msra.mxu0 0
  %4355 = vmatprep.subr.bf16.mxu0 0
  %4356 = vmatpush1.bf16.msra.mxu0 0
  %4357 = vmatprep.subr.bf16.mxu0 0
  %4358 = vmatpush1.bf16.msra.mxu0 0
  %4359 = vmatprep.subr.bf16.mxu0 0
  %4360 = vmatpush1.bf16.msra.mxu0 0
  %4361 = vmatprep.subr.bf16.mxu0 0
  %4362 = vmatpush1.bf16.msra.mxu0 0
  %4363 = vmatprep.subr.bf16.mxu0 0
  %4364 = vmatpush1.bf16.msra.mxu0 0
  %4365 = vmatprep.subr.bf16.mxu0 0
  %4366 = vmatpush1.bf16.msra.mxu0 0
  %4367 = vmatprep.subr.bf16.mxu0 0
  %4368 = vmatpush1.bf16.msra.mxu0 0
  %4369 = vmatprep.subr.bf16.mxu0 0
  %4370 = vmatpush1.bf16.msra.mxu0 0
  %4371 = vmatprep.subr.bf16.mxu0 0
  %4372 = vmatpush1.bf16.msra.mxu0 0
  %4373 = vmatprep.subr.bf16.mxu0 0
  %4374 = vmatpush1.bf16.msra.mxu0 0
  %4375 = vmatprep.subr.bf16.mxu0 0
  %4376 = vmatpush1.bf16.msra.mxu0 0
  %4377 = vmatprep.mubr.bf16.mxu0 0
  %4378 = vmatmul.mubr.bf16.gmra.mrb[0].mxu0 %v4340
  %v4379 = vpop.f32.mrb[0].mxu0
  %v4380 = vadd.f32 0.0, %v4379
  %v4381 = vpop.f32.mrb[0].mxu0
  %v4382 = vpop.f32.mrb[0].mxu0
  %v4383 = vpop.f32.mrb[0].mxu0
  %4384 = vdwg.mxu0
  %v4385 = vpack.i.b16 %v2203, %v2202
  %v4386 = vpack.i.b16 %v2205, %v2204
  %v4388 = vcombine.low %v4385, %v4386
  %v4390 = vunpack.c.l.s4 1966171168
  %v4391 = vunpack.c.0.s8 %v4390
  %v4392 = vlaneseq
  %v4393 = vshrl.u32 %v4392, 7
  %v4394 = vsub.s32 %v4391, %v4393
  %v4395 = vrot.slane %v4388, %v4394
  %v4397 = vunpack.c.l.s4 1966171168
  %v4398 = vunpack.c.0.s8 %v4397
  %v4399 = vlaneseq
  %v4400 = vshrl.u32 %v4399, 7
  %v4401 = vsub.s32 %v4398, %v4400
  %v4402 = vrot.slane %v2206, %v4401
  %v4403 = vcombine.low %v4395, %v4402
  %v4405 = vunpack.c.l.s4 1966171168
  %v4406 = vunpack.c.0.s8 %v4405
  %v4407 = vlaneseq
  %v4408 = vshrl.u32 %v4407, 7
  %v4409 = vsub.s32 %v4406, %v4408
  %v4410 = vrot.slane %v4403, %v4409
  %v4412 = vsel %vm3830, %v3798, 0
  %v4415 = vand.u32 %v4410, %v3837
  %4417 = vmatprep.subr.bf16.mxu0 0
  %4418 = vmatpush1.bf16.msra.mxu0 %v4415
  %4419 = vmatprep.subr.bf16.mxu0 0
  %4420 = vmatpush1.bf16.msra.mxu0 0
  %4421 = vmatprep.subr.bf16.mxu0 0
  %4422 = vmatpush1.bf16.msra.mxu0 0
  %4423 = vmatprep.subr.bf16.mxu0 0
  %4424 = vmatpush1.bf16.msra.mxu0 0
  %4425 = vmatprep.subr.bf16.mxu0 0
  %4426 = vmatpush1.bf16.msra.mxu0 0
  %4427 = vmatprep.subr.bf16.mxu0 0
  %4428 = vmatpush1.bf16.msra.mxu0 0
  %4429 = vmatprep.subr.bf16.mxu0 0
  %4430 = vmatpush1.bf16.msra.mxu0 0
  %4431 = vmatprep.subr.bf16.mxu0 0
  %4432 = vmatpush1.bf16.msra.mxu0 0
  %4433 = vmatprep.subr.bf16.mxu0 0
  %4434 = vmatpush1.bf16.msra.mxu0 0
  %4435 = vmatprep.subr.bf16.mxu0 0
  %4436 = vmatpush1.bf16.msra.mxu0 0
  %4437 = vmatprep.subr.bf16.mxu0 0
  %4438 = vmatpush1.bf16.msra.mxu0 0
  %4439 = vmatprep.subr.bf16.mxu0 0
  %4440 = vmatpush1.bf16.msra.mxu0 0
  %4441 = vmatprep.subr.bf16.mxu0 0
  %4442 = vmatpush1.bf16.msra.mxu0 0
  %4443 = vmatprep.subr.bf16.mxu0 0
  %4444 = vmatpush1.bf16.msra.mxu0 0
  %4445 = vmatprep.subr.bf16.mxu0 0
  %4446 = vmatpush1.bf16.msra.mxu0 0
  %4447 = vmatprep.subr.bf16.mxu0 0
  %4448 = vmatpush1.bf16.msra.mxu0 0
  %4449 = vmatprep.mubr.bf16.mxu0 0
  %4450 = vmatmul.mubr.bf16.gmra.mrb[0].mxu0 %v4412
  %v4451 = vpop.f32.mrb[0].mxu0
  %v4452 = vadd.f32 0.0, %v4451
  %v4453 = vpop.f32.mrb[0].mxu0
  %v4454 = vpop.f32.mrb[0].mxu0
  %v4455 = vpop.f32.mrb[0].mxu0
  %4456 = vdwg.mxu0
  %v4457 = vpack.i.b16 %v2208, %v2207
  %v4458 = vpack.i.b16 %v2210, %v2209
  %v4460 = vcombine.low %v4457, %v4458
  %v4462 = vunpack.c.l.s4 1966171168
  %v4463 = vunpack.c.0.s8 %v4462
  %v4464 = vlaneseq
  %v4465 = vshrl.u32 %v4464, 7
  %v4466 = vsub.s32 %v4463, %v4465
  %v4467 = vrot.slane %v4460, %v4466
  %v4469 = vunpack.c.l.s4 1966171168
  %v4470 = vunpack.c.0.s8 %v4469
  %v4471 = vlaneseq
  %v4472 = vshrl.u32 %v4471, 7
  %v4473 = vsub.s32 %v4470, %v4472
  %v4474 = vrot.slane %v2211, %v4473
  %v4475 = vcombine.low %v4467, %v4474
  %v4477 = vunpack.c.l.s4 1966171168
  %v4478 = vunpack.c.0.s8 %v4477
  %v4479 = vlaneseq
  %v4480 = vshrl.u32 %v4479, 7
  %v4481 = vsub.s32 %v4478, %v4480
  %v4482 = vrot.slane %v4475, %v4481
  %v4484 = vsel %vm3830, %v3799, 0
  %v4487 = vand.u32 %v4482, %v3837
  %4489 = vmatprep.subr.bf16.mxu0 0
  %4490 = vmatpush1.bf16.msra.mxu0 %v4487
  %4491 = vmatprep.subr.bf16.mxu0 0
  %4492 = vmatpush1.bf16.msra.mxu0 0
  %4493 = vmatprep.subr.bf16.mxu0 0
  %4494 = vmatpush1.bf16.msra.mxu0 0
  %4495 = vmatprep.subr.bf16.mxu0 0
  %4496 = vmatpush1.bf16.msra.mxu0 0
  %4497 = vmatprep.subr.bf16.mxu0 0
  %4498 = vmatpush1.bf16.msra.mxu0 0
  %4499 = vmatprep.subr.bf16.mxu0 0
  %4500 = vmatpush1.bf16.msra.mxu0 0
  %4501 = vmatprep.subr.bf16.mxu0 0
  %4502 = vmatpush1.bf16.msra.mxu0 0
  %4503 = vmatprep.subr.bf16.mxu0 0
  %4504 = vmatpush1.bf16.msra.mxu0 0
  %4505 = vmatprep.subr.bf16.mxu0 0
  %4506 = vmatpush1.bf16.msra.mxu0 0
  %4507 = vmatprep.subr.bf16.mxu0 0
  %4508 = vmatpush1.bf16.msra.mxu0 0
  %4509 = vmatprep.subr.bf16.mxu0 0
  %4510 = vmatpush1.bf16.msra.mxu0 0
  %4511 = vmatprep.subr.bf16.mxu0 0
  %4512 = vmatpush1.bf16.msra.mxu0 0
  %4513 = vmatprep.subr.bf16.mxu0 0
  %4514 = vmatpush1.bf16.msra.mxu0 0
  %4515 = vmatprep.subr.bf16.mxu0 0
  %4516 = vmatpush1.bf16.msra.mxu0 0
  %4517 = vmatprep.subr.bf16.mxu0 0
  %4518 = vmatpush1.bf16.msra.mxu0 0
  %4519 = vmatprep.subr.bf16.mxu0 0
  %4520 = vmatpush1.bf16.msra.mxu0 0
  %4521 = vmatprep.mubr.bf16.mxu0 0
  %4522 = vmatmul.mubr.bf16.gmra.mrb[0].mxu0 %v4484
  %v4523 = vpop.f32.mrb[0].mxu0
  %v4524 = vadd.f32 0.0, %v4523
  %v4525 = vpop.f32.mrb[0].mxu0
  %v4526 = vpop.f32.mrb[0].mxu0
  %v4527 = vpop.f32.mrb[0].mxu0
  %4528 = vdwg.mxu0
  %v4529 = vpack.i.b16 %v2213, %v2212
  %v4530 = vpack.i.b16 %v2215, %v2214
  %v4532 = vcombine.low %v4529, %v4530
  %v4534 = vunpack.c.l.s4 1966171168
  %v4535 = vunpack.c.0.s8 %v4534
  %v4536 = vlaneseq
  %v4537 = vshrl.u32 %v4536, 7
  %v4538 = vsub.s32 %v4535, %v4537
  %v4539 = vrot.slane %v4532, %v4538
  %v4541 = vunpack.c.l.s4 1966171168
  %v4542 = vunpack.c.0.s8 %v4541
  %v4543 = vlaneseq
  %v4544 = vshrl.u32 %v4543, 7
  %v4545 = vsub.s32 %v4542, %v4544
  %v4546 = vrot.slane %v2216, %v4545
  %v4547 = vcombine.low %v4539, %v4546
  %v4549 = vunpack.c.l.s4 1966171168
  %v4550 = vunpack.c.0.s8 %v4549
  %v4551 = vlaneseq
  %v4552 = vshrl.u32 %v4551, 7
  %v4553 = vsub.s32 %v4550, %v4552
  %v4554 = vrot.slane %v4547, %v4553
  %v4556 = vsel %vm3830, %v3800, 0
  %v4559 = vand.u32 %v4554, %v3837
  %4561 = vmatprep.subr.bf16.mxu0 0
  %4562 = vmatpush1.bf16.msra.mxu0 %v4559
  %4563 = vmatprep.subr.bf16.mxu0 0
  %4564 = vmatpush1.bf16.msra.mxu0 0
  %4565 = vmatprep.subr.bf16.mxu0 0
  %4566 = vmatpush1.bf16.msra.mxu0 0
  %4567 = vmatprep.subr.bf16.mxu0 0
  %4568 = vmatpush1.bf16.msra.mxu0 0
  %4569 = vmatprep.subr.bf16.mxu0 0
  %4570 = vmatpush1.bf16.msra.mxu0 0
  %4571 = vmatprep.subr.bf16.mxu0 0
  %4572 = vmatpush1.bf16.msra.mxu0 0
  %4573 = vmatprep.subr.bf16.mxu0 0
  %4574 = vmatpush1.bf16.msra.mxu0 0
  %4575 = vmatprep.subr.bf16.mxu0 0
  %4576 = vmatpush1.bf16.msra.mxu0 0
  %4577 = vmatprep.subr.bf16.mxu0 0
  %4578 = vmatpush1.bf16.msra.mxu0 0
  %4579 = vmatprep.subr.bf16.mxu0 0
  %4580 = vmatpush1.bf16.msra.mxu0 0
  %4581 = vmatprep.subr.bf16.mxu0 0
  %4582 = vmatpush1.bf16.msra.mxu0 0
  %4583 = vmatprep.subr.bf16.mxu0 0
  %4584 = vmatpush1.bf16.msra.mxu0 0
  %4585 = vmatprep.subr.bf16.mxu0 0
  %4586 = vmatpush1.bf16.msra.mxu0 0
  %4587 = vmatprep.subr.bf16.mxu0 0
  %4588 = vmatpush1.bf16.msra.mxu0 0
  %4589 = vmatprep.subr.bf16.mxu0 0
  %4590 = vmatpush1.bf16.msra.mxu0 0
  %4591 = vmatprep.subr.bf16.mxu0 0
  %4592 = vmatpush1.bf16.msra.mxu0 0
  %4593 = vmatprep.mubr.bf16.mxu0 0
  %4594 = vmatmul.mubr.bf16.gmra.mrb[0].mxu0 %v4556
  %v4595 = vpop.f32.mrb[0].mxu0
  %v4596 = vadd.f32 0.0, %v4595
  %v4597 = vpop.f32.mrb[0].mxu0
  %v4598 = vpop.f32.mrb[0].mxu0
  %v4599 = vpop.f32.mrb[0].mxu0
  %4600 = vdwg.mxu0
  %v4601 = vpack.i.b16 %v2218, %v2217
  %v4602 = vpack.i.b16 %v2220, %v2219
  %v4604 = vcombine.low %v4601, %v4602
  %v4606 = vunpack.c.l.s4 1966171168
  %v4607 = vunpack.c.0.s8 %v4606
  %v4608 = vlaneseq
  %v4609 = vshrl.u32 %v4608, 7
  %v4610 = vsub.s32 %v4607, %v4609
  %v4611 = vrot.slane %v4604, %v4610
  %v4613 = vunpack.c.l.s4 1966171168
  %v4614 = vunpack.c.0.s8 %v4613
  %v4615 = vlaneseq
  %v4616 = vshrl.u32 %v4615, 7
  %v4617 = vsub.s32 %v4614, %v4616
  %v4618 = vrot.slane %v2221, %v4617
  %v4619 = vcombine.low %v4611, %v4618
  %v4621 = vunpack.c.l.s4 1966171168
  %v4622 = vunpack.c.0.s8 %v4621
  %v4623 = vlaneseq
  %v4624 = vshrl.u32 %v4623, 7
  %v4625 = vsub.s32 %v4622, %v4624
  %v4626 = vrot.slane %v4619, %v4625
  %v4628 = vsel %vm3830, %v3801, 0
  %v4631 = vand.u32 %v4626, %v3837
  %4633 = vmatprep.subr.bf16.mxu0 0
  %4634 = vmatpush1.bf16.msra.mxu0 %v4631
  %4635 = vmatprep.subr.bf16.mxu0 0
  %4636 = vmatpush1.bf16.msra.mxu0 0
  %4637 = vmatprep.subr.bf16.mxu0 0
  %4638 = vmatpush1.bf16.msra.mxu0 0
  %4639 = vmatprep.subr.bf16.mxu0 0
  %4640 = vmatpush1.bf16.msra.mxu0 0
  %4641 = vmatprep.subr.bf16.mxu0 0
  %4642 = vmatpush1.bf16.msra.mxu0 0
  %4643 = vmatprep.subr.bf16.mxu0 0
  %4644 = vmatpush1.bf16.msra.mxu0 0
  %4645 = vmatprep.subr.bf16.mxu0 0
  %4646 = vmatpush1.bf16.msra.mxu0 0
  %4647 = vmatprep.subr.bf16.mxu0 0
  %4648 = vmatpush1.bf16.msra.mxu0 0
  %4649 = vmatprep.subr.bf16.mxu0 0
  %4650 = vmatpush1.bf16.msra.mxu0 0
  %4651 = vmatprep.subr.bf16.mxu0 0
  %4652 = vmatpush1.bf16.msra.mxu0 0
  %4653 = vmatprep.subr.bf16.mxu0 0
  %4654 = vmatpush1.bf16.msra.mxu0 0
  %4655 = vmatprep.subr.bf16.mxu0 0
  %4656 = vmatpush1.bf16.msra.mxu0 0
  %4657 = vmatprep.subr.bf16.mxu0 0
  %4658 = vmatpush1.bf16.msra.mxu0 0
  %4659 = vmatprep.subr.bf16.mxu0 0
  %4660 = vmatpush1.bf16.msra.mxu0 0
  %4661 = vmatprep.subr.bf16.mxu0 0
  %4662 = vmatpush1.bf16.msra.mxu0 0
  %4663 = vmatprep.subr.bf16.mxu0 0
  %4664 = vmatpush1.bf16.msra.mxu0 0
  %4665 = vmatprep.mubr.bf16.mxu0 0
  %4666 = vmatmul.mubr.bf16.gmra.mrb[0].mxu0 %v4628
  %v4667 = vpop.f32.mrb[0].mxu0
  %v4668 = vadd.f32 0.0, %v4667
  %v4669 = vpop.f32.mrb[0].mxu0
  %v4670 = vpop.f32.mrb[0].mxu0
  %v4671 = vpop.f32.mrb[0].mxu0
  %4672 = vdwg.mxu0
  %v4673 = vpack.i.b16 %v2223, %v2222
  %v4674 = vpack.i.b16 %v2225, %v2224
  %v4676 = vcombine.low %v4673, %v4674
  %v4678 = vunpack.c.l.s4 1966171168
  %v4679 = vunpack.c.0.s8 %v4678
  %v4680 = vlaneseq
  %v4681 = vshrl.u32 %v4680, 7
  %v4682 = vsub.s32 %v4679, %v4681
  %v4683 = vrot.slane %v4676, %v4682
  %v4685 = vunpack.c.l.s4 1966171168
  %v4686 = vunpack.c.0.s8 %v4685
  %v4687 = vlaneseq
  %v4688 = vshrl.u32 %v4687, 7
  %v4689 = vsub.s32 %v4686, %v4688
  %v4690 = vrot.slane %v2226, %v4689
  %v4691 = vcombine.low %v4683, %v4690
  %v4693 = vunpack.c.l.s4 1966171168
  %v4694 = vunpack.c.0.s8 %v4693
  %v4695 = vlaneseq
  %v4696 = vshrl.u32 %v4695, 7
  %v4697 = vsub.s32 %v4694, %v4696
  %v4698 = vrot.slane %v4691, %v4697
  %v4700 = vsel %vm3830, %v3802, 0
  %v4703 = vand.u32 %v4698, %v3837
  %4705 = vmatprep.subr.bf16.mxu0 0
  %4706 = vmatpush1.bf16.msra.mxu0 %v4703
  %4707 = vmatprep.subr.bf16.mxu0 0
  %4708 = vmatpush1.bf16.msra.mxu0 0
  %4709 = vmatprep.subr.bf16.mxu0 0
  %4710 = vmatpush1.bf16.msra.mxu0 0
  %4711 = vmatprep.subr.bf16.mxu0 0
  %4712 = vmatpush1.bf16.msra.mxu0 0
  %4713 = vmatprep.subr.bf16.mxu0 0
  %4714 = vmatpush1.bf16.msra.mxu0 0
  %4715 = vmatprep.subr.bf16.mxu0 0
  %4716 = vmatpush1.bf16.msra.mxu0 0
  %4717 = vmatprep.subr.bf16.mxu0 0
  %4718 = vmatpush1.bf16.msra.mxu0 0
  %4719 = vmatprep.subr.bf16.mxu0 0
  %4720 = vmatpush1.bf16.msra.mxu0 0
  %4721 = vmatprep.subr.bf16.mxu0 0
  %4722 = vmatpush1.bf16.msra.mxu0 0
  %4723 = vmatprep.subr.bf16.mxu0 0
  %4724 = vmatpush1.bf16.msra.mxu0 0
  %4725 = vmatprep.subr.bf16.mxu0 0
  %4726 = vmatpush1.bf16.msra.mxu0 0
  %4727 = vmatprep.subr.bf16.mxu0 0
  %4728 = vmatpush1.bf16.msra.mxu0 0
  %4729 = vmatprep.subr.bf16.mxu0 0
  %4730 = vmatpush1.bf16.msra.mxu0 0
  %4731 = vmatprep.subr.bf16.mxu0 0
  %4732 = vmatpush1.bf16.msra.mxu0 0
  %4733 = vmatprep.subr.bf16.mxu0 0
  %4734 = vmatpush1.bf16.msra.mxu0 0
  %4735 = vmatprep.subr.bf16.mxu0 0
  %4736 = vmatpush1.bf16.msra.mxu0 0
  %4737 = vmatprep.mubr.bf16.mxu0 0
  %4738 = vmatmul.mubr.bf16.gmra.mrb[0].mxu0 %v4700
  %v4739 = vpop.f32.mrb[0].mxu0
  %v4740 = vadd.f32 0.0, %v4739
  %v4741 = vpop.f32.mrb[0].mxu0
  %v4742 = vpop.f32.mrb[0].mxu0
  %v4743 = vpop.f32.mrb[0].mxu0
  %4744 = vdwg.mxu0
  %v4745 = vpack.i.b16 %v2228, %v2227
  %v4746 = vpack.i.b16 %v2230, %v2229
  %v4748 = vcombine.low %v4745, %v4746
  %v4750 = vunpack.c.l.s4 1966171168
  %v4751 = vunpack.c.0.s8 %v4750
  %v4752 = vlaneseq
  %v4753 = vshrl.u32 %v4752, 7
  %v4754 = vsub.s32 %v4751, %v4753
  %v4755 = vrot.slane %v4748, %v4754
  %v4757 = vunpack.c.l.s4 1966171168
  %v4758 = vunpack.c.0.s8 %v4757
  %v4759 = vlaneseq
  %v4760 = vshrl.u32 %v4759, 7
  %v4761 = vsub.s32 %v4758, %v4760
  %v4762 = vrot.slane %v2231, %v4761
  %v4763 = vcombine.low %v4755, %v4762
  %v4765 = vunpack.c.l.s4 1966171168
  %v4766 = vunpack.c.0.s8 %v4765
  %v4767 = vlaneseq
  %v4768 = vshrl.u32 %v4767, 7
  %v4769 = vsub.s32 %v4766, %v4768
  %v4770 = vrot.slane %v4763, %v4769
  %v4772 = vsel %vm3830, %v3803, 0
  %v4775 = vand.u32 %v4770, %v3837
  %4777 = vmatprep.subr.bf16.mxu0 0
  %4778 = vmatpush1.bf16.msra.mxu0 %v4775
  %4779 = vmatprep.subr.bf16.mxu0 0
  %4780 = vmatpush1.bf16.msra.mxu0 0
  %4781 = vmatprep.subr.bf16.mxu0 0
  %4782 = vmatpush1.bf16.msra.mxu0 0
  %4783 = vmatprep.subr.bf16.mxu0 0
  %4784 = vmatpush1.bf16.msra.mxu0 0
  %4785 = vmatprep.subr.bf16.mxu0 0
  %4786 = vmatpush1.bf16.msra.mxu0 0
  %4787 = vmatprep.subr.bf16.mxu0 0
  %4788 = vmatpush1.bf16.msra.mxu0 0
  %4789 = vmatprep.subr.bf16.mxu0 0
  %4790 = vmatpush1.bf16.msra.mxu0 0
  %4791 = vmatprep.subr.bf16.mxu0 0
  %4792 = vmatpush1.bf16.msra.mxu0 0
  %4793 = vmatprep.subr.bf16.mxu0 0
  %4794 = vmatpush1.bf16.msra.mxu0 0
  %4795 = vmatprep.subr.bf16.mxu0 0
  %4796 = vmatpush1.bf16.msra.mxu0 0
  %4797 = vmatprep.subr.bf16.mxu0 0
  %4798 = vmatpush1.bf16.msra.mxu0 0
  %4799 = vmatprep.subr.bf16.mxu0 0
  %4800 = vmatpush1.bf16.msra.mxu0 0
  %4801 = vmatprep.subr.bf16.mxu0 0
  %4802 = vmatpush1.bf16.msra.mxu0 0
  %4803 = vmatprep.subr.bf16.mxu0 0
  %4804 = vmatpush1.bf16.msra.mxu0 0
  %4805 = vmatprep.subr.bf16.mxu0 0
  %4806 = vmatpush1.bf16.msra.mxu0 0
  %4807 = vmatprep.subr.bf16.mxu0 0
  %4808 = vmatpush1.bf16.msra.mxu0 0
  %4809 = vmatprep.mubr.bf16.mxu0 0
  %4810 = vmatmul.mubr.bf16.gmra.mrb[0].mxu0 %v4772
  %v4811 = vpop.f32.mrb[0].mxu0
  %v4812 = vadd.f32 0.0, %v4811
  %v4813 = vpop.f32.mrb[0].mxu0
  %v4814 = vpop.f32.mrb[0].mxu0
  %v4815 = vpop.f32.mrb[0].mxu0
  %4816 = vdwg.mxu0
  %v4831 = vcombine.high %v3876, %v3876
  %v4833 = vunpack.c.l.s4 1966171168
  %v4834 = vunpack.c.0.s8 %v4833
  %v4835 = vlaneseq
  %v4836 = vshrl.u32 %v4835, 7
  %v4837 = vsub.s32 %v4834, %v4836
  %v4838 = vrot.slane %v3876, %v4837
  %v4840 = vunpack.c.l.s4 1966171168
  %v4841 = vunpack.c.0.s8 %v4840
  %v4842 = vlaneseq
  %v4843 = vshrl.u32 %v4842, 7
  %v4844 = vsub.s32 %v4841, %v4843
  %v4845 = vrot.slane %v4831, %v4844
  %v4846 = vcombine.high %v4838, %v4838
  %v4848 = vunpack.c.l.s4 1966171168
  %v4849 = vunpack.c.0.s8 %v4848
  %v4850 = vlaneseq
  %v4851 = vshrl.u32 %v4850, 7
  %v4852 = vsub.s32 %v4849, %v4851
  %v4853 = vrot.slane %v4838, %v4852
  %v4855 = vunpack.c.l.s4 1966171168
  %v4856 = vunpack.c.0.s8 %v4855
  %v4857 = vlaneseq
  %v4858 = vshrl.u32 %v4857, 7
  %v4859 = vsub.s32 %v4856, %v4858
  %v4860 = vrot.slane %v4845, %v4859
  %v4862 = vunpack.c.l.s4 1966171168
  %v4863 = vunpack.c.0.s8 %v4862
  %v4864 = vlaneseq
  %v4865 = vshrl.u32 %v4864, 7
  %v4866 = vsub.s32 %v4863, %v4865
  %v4867 = vrot.slane %v4846, %v4866
  %v4868 = vcombine.high %v4853, %v4853
  %v4869 = vcombine.high %v4867, %v4867
  %v4870 = vcombine.high %v3948, %v3948
  %v4872 = vunpack.c.l.s4 1966171168
  %v4873 = vunpack.c.0.s8 %v4872
  %v4874 = vlaneseq
  %v4875 = vshrl.u32 %v4874, 7
  %v4876 = vsub.s32 %v4873, %v4875
  %v4877 = vrot.slane %v3948, %v4876
  %v4879 = vunpack.c.l.s4 1966171168
  %v4880 = vunpack.c.0.s8 %v4879
  %v4881 = vlaneseq
  %v4882 = vshrl.u32 %v4881, 7
  %v4883 = vsub.s32 %v4880, %v4882
  %v4884 = vrot.slane %v4870, %v4883
  %v4885 = vcombine.high %v4877, %v4877
  %v4887 = vunpack.c.l.s4 1966171168
  %v4888 = vunpack.c.0.s8 %v4887
  %v4889 = vlaneseq
  %v4890 = vshrl.u32 %v4889, 7
  %v4891 = vsub.s32 %v4888, %v4890
  %v4892 = vrot.slane %v4877, %v4891
  %v4894 = vunpack.c.l.s4 1966171168
  %v4895 = vunpack.c.0.s8 %v4894
  %v4896 = vlaneseq
  %v4897 = vshrl.u32 %v4896, 7
  %v4898 = vsub.s32 %v4895, %v4897
  %v4899 = vrot.slane %v4884, %v4898
  %v4901 = vunpack.c.l.s4 1966171168
  %v4902 = vunpack.c.0.s8 %v4901
  %v4903 = vlaneseq
  %v4904 = vshrl.u32 %v4903, 7
  %v4905 = vsub.s32 %v4902, %v4904
  %v4906 = vrot.slane %v4885, %v4905
  %v4907 = vcombine.high %v4892, %v4892
  %v4908 = vcombine.high %v4906, %v4906
  %v4909 = vcombine.high %v4020, %v4020
  %v4911 = vunpack.c.l.s4 1966171168
  %v4912 = vunpack.c.0.s8 %v4911
  %v4913 = vlaneseq
  %v4914 = vshrl.u32 %v4913, 7
  %v4915 = vsub.s32 %v4912, %v4914
  %v4916 = vrot.slane %v4020, %v4915
  %v4918 = vunpack.c.l.s4 1966171168
  %v4919 = vunpack.c.0.s8 %v4918
  %v4920 = vlaneseq
  %v4921 = vshrl.u32 %v4920, 7
  %v4922 = vsub.s32 %v4919, %v4921
  %v4923 = vrot.slane %v4909, %v4922
  %v4924 = vcombine.high %v4916, %v4916
  %v4926 = vunpack.c.l.s4 1966171168
  %v4927 = vunpack.c.0.s8 %v4926
  %v4928 = vlaneseq
  %v4929 = vshrl.u32 %v4928, 7
  %v4930 = vsub.s32 %v4927, %v4929
  %v4931 = vrot.slane %v4916, %v4930
  %v4933 = vunpack.c.l.s4 1966171168
  %v4934 = vunpack.c.0.s8 %v4933
  %v4935 = vlaneseq
  %v4936 = vshrl.u32 %v4935, 7
  %v4937 = vsub.s32 %v4934, %v4936
  %v4938 = vrot.slane %v4923, %v4937
  %v4940 = vunpack.c.l.s4 1966171168
  %v4941 = vunpack.c.0.s8 %v4940
  %v4942 = vlaneseq
  %v4943 = vshrl.u32 %v4942, 7
  %v4944 = vsub.s32 %v4941, %v4943
  %v4945 = vrot.slane %v4924, %v4944
  %v4946 = vcombine.high %v4931, %v4931
  %v4947 = vcombine.high %v4945, %v4945
  %v4948 = vcombine.high %v4092, %v4092
  %v4950 = vunpack.c.l.s4 1966171168
  %v4951 = vunpack.c.0.s8 %v4950
  %v4952 = vlaneseq
  %v4953 = vshrl.u32 %v4952, 7
  %v4954 = vsub.s32 %v4951, %v4953
  %v4955 = vrot.slane %v4092, %v4954
  %v4957 = vunpack.c.l.s4 1966171168
  %v4958 = vunpack.c.0.s8 %v4957
  %v4959 = vlaneseq
  %v4960 = vshrl.u32 %v4959, 7
  %v4961 = vsub.s32 %v4958, %v4960
  %v4962 = vrot.slane %v4948, %v4961
  %v4963 = vcombine.high %v4955, %v4955
  %v4965 = vunpack.c.l.s4 1966171168
  %v4966 = vunpack.c.0.s8 %v4965
  %v4967 = vlaneseq
  %v4968 = vshrl.u32 %v4967, 7
  %v4969 = vsub.s32 %v4966, %v4968
  %v4970 = vrot.slane %v4955, %v4969
  %v4972 = vunpack.c.l.s4 1966171168
  %v4973 = vunpack.c.0.s8 %v4972
  %v4974 = vlaneseq
  %v4975 = vshrl.u32 %v4974, 7
  %v4976 = vsub.s32 %v4973, %v4975
  %v4977 = vrot.slane %v4962, %v4976
  %v4979 = vunpack.c.l.s4 1966171168
  %v4980 = vunpack.c.0.s8 %v4979
  %v4981 = vlaneseq
  %v4982 = vshrl.u32 %v4981, 7
  %v4983 = vsub.s32 %v4980, %v4982
  %v4984 = vrot.slane %v4963, %v4983
  %v4985 = vcombine.high %v4970, %v4970
  %v4986 = vcombine.high %v4984, %v4984
  %v4987 = vcombine.high %v4164, %v4164
  %v4989 = vunpack.c.l.s4 1966171168
  %v4990 = vunpack.c.0.s8 %v4989
  %v4991 = vlaneseq
  %v4992 = vshrl.u32 %v4991, 7
  %v4993 = vsub.s32 %v4990, %v4992
  %v4994 = vrot.slane %v4164, %v4993
  %v4996 = vunpack.c.l.s4 1966171168
  %v4997 = vunpack.c.0.s8 %v4996
  %v4998 = vlaneseq
  %v4999 = vshrl.u32 %v4998, 7
  %v5000 = vsub.s32 %v4997, %v4999
  %v5001 = vrot.slane %v4987, %v5000
  %v5002 = vcombine.high %v4994, %v4994
  %v5004 = vunpack.c.l.s4 1966171168
  %v5005 = vunpack.c.0.s8 %v5004
  %v5006 = vlaneseq
  %v5007 = vshrl.u32 %v5006, 7
  %v5008 = vsub.s32 %v5005, %v5007
  %v5009 = vrot.slane %v4994, %v5008
  %v5011 = vunpack.c.l.s4 1966171168
  %v5012 = vunpack.c.0.s8 %v5011
  %v5013 = vlaneseq
  %v5014 = vshrl.u32 %v5013, 7
  %v5015 = vsub.s32 %v5012, %v5014
  %v5016 = vrot.slane %v5001, %v5015
  %v5018 = vunpack.c.l.s4 1966171168
  %v5019 = vunpack.c.0.s8 %v5018
  %v5020 = vlaneseq
  %v5021 = vshrl.u32 %v5020, 7
  %v5022 = vsub.s32 %v5019, %v5021
  %v5023 = vrot.slane %v5002, %v5022
  %v5024 = vcombine.high %v5009, %v5009
  %v5025 = vcombine.high %v5023, %v5023
  %v5026 = vcombine.high %v4236, %v4236
  %v5028 = vunpack.c.l.s4 1966171168
  %v5029 = vunpack.c.0.s8 %v5028
  %v5030 = vlaneseq
  %v5031 = vshrl.u32 %v5030, 7
  %v5032 = vsub.s32 %v5029, %v5031
  %v5033 = vrot.slane %v4236, %v5032
  %v5035 = vunpack.c.l.s4 1966171168
  %v5036 = vunpack.c.0.s8 %v5035
  %v5037 = vlaneseq
  %v5038 = vshrl.u32 %v5037, 7
  %v5039 = vsub.s32 %v5036, %v5038
  %v5040 = vrot.slane %v5026, %v5039
  %v5041 = vcombine.high %v5033, %v5033
  %v5043 = vunpack.c.l.s4 1966171168
  %v5044 = vunpack.c.0.s8 %v5043
  %v5045 = vlaneseq
  %v5046 = vshrl.u32 %v5045, 7
  %v5047 = vsub.s32 %v5044, %v5046
  %v5048 = vrot.slane %v5033, %v5047
  %v5050 = vunpack.c.l.s4 1966171168
  %v5051 = vunpack.c.0.s8 %v5050
  %v5052 = vlaneseq
  %v5053 = vshrl.u32 %v5052, 7
  %v5054 = vsub.s32 %v5051, %v5053
  %v5055 = vrot.slane %v5040, %v5054
  %v5057 = vunpack.c.l.s4 1966171168
  %v5058 = vunpack.c.0.s8 %v5057
  %v5059 = vlaneseq
  %v5060 = vshrl.u32 %v5059, 7
  %v5061 = vsub.s32 %v5058, %v5060
  %v5062 = vrot.slane %v5041, %v5061
  %v5063 = vcombine.high %v5048, %v5048
  %v5064 = vcombine.high %v5062, %v5062
  %v5065 = vcombine.high %v4308, %v4308
  %v5067 = vunpack.c.l.s4 1966171168
  %v5068 = vunpack.c.0.s8 %v5067
  %v5069 = vlaneseq
  %v5070 = vshrl.u32 %v5069, 7
  %v5071 = vsub.s32 %v5068, %v5070
  %v5072 = vrot.slane %v4308, %v5071
  %v5074 = vunpack.c.l.s4 1966171168
  %v5075 = vunpack.c.0.s8 %v5074
  %v5076 = vlaneseq
  %v5077 = vshrl.u32 %v5076, 7
  %v5078 = vsub.s32 %v5075, %v5077
  %v5079 = vrot.slane %v5065, %v5078
  %v5080 = vcombine.high %v5072, %v5072
  %v5082 = vunpack.c.l.s4 1966171168
  %v5083 = vunpack.c.0.s8 %v5082
  %v5084 = vlaneseq
  %v5085 = vshrl.u32 %v5084, 7
  %v5086 = vsub.s32 %v5083, %v5085
  %v5087 = vrot.slane %v5072, %v5086
  %v5089 = vunpack.c.l.s4 1966171168
  %v5090 = vunpack.c.0.s8 %v5089
  %v5091 = vlaneseq
  %v5092 = vshrl.u32 %v5091, 7
  %v5093 = vsub.s32 %v5090, %v5092
  %v5094 = vrot.slane %v5079, %v5093
  %v5096 = vunpack.c.l.s4 1966171168
  %v5097 = vunpack.c.0.s8 %v5096
  %v5098 = vlaneseq
  %v5099 = vshrl.u32 %v5098, 7
  %v5100 = vsub.s32 %v5097, %v5099
  %v5101 = vrot.slane %v5080, %v5100
  %v5102 = vcombine.high %v5087, %v5087
  %v5103 = vcombine.high %v5101, %v5101
  %v5104 = vcombine.high %v4380, %v4380
  %v5106 = vunpack.c.l.s4 1966171168
  %v5107 = vunpack.c.0.s8 %v5106
  %v5108 = vlaneseq
  %v5109 = vshrl.u32 %v5108, 7
  %v5110 = vsub.s32 %v5107, %v5109
  %v5111 = vrot.slane %v4380, %v5110
  %v5113 = vunpack.c.l.s4 1966171168
  %v5114 = vunpack.c.0.s8 %v5113
  %v5115 = vlaneseq
  %v5116 = vshrl.u32 %v5115, 7
  %v5117 = vsub.s32 %v5114, %v5116
  %v5118 = vrot.slane %v5104, %v5117
  %v5119 = vcombine.high %v5111, %v5111
  %v5121 = vunpack.c.l.s4 1966171168
  %v5122 = vunpack.c.0.s8 %v5121
  %v5123 = vlaneseq
  %v5124 = vshrl.u32 %v5123, 7
  %v5125 = vsub.s32 %v5122, %v5124
  %v5126 = vrot.slane %v5111, %v5125
  %v5128 = vunpack.c.l.s4 1966171168
  %v5129 = vunpack.c.0.s8 %v5128
  %v5130 = vlaneseq
  %v5131 = vshrl.u32 %v5130, 7
  %v5132 = vsub.s32 %v5129, %v5131
  %v5133 = vrot.slane %v5118, %v5132
  %v5135 = vunpack.c.l.s4 1966171168
  %v5136 = vunpack.c.0.s8 %v5135
  %v5137 = vlaneseq
  %v5138 = vshrl.u32 %v5137, 7
  %v5139 = vsub.s32 %v5136, %v5138
  %v5140 = vrot.slane %v5119, %v5139
  %v5141 = vcombine.high %v5126, %v5126
  %v5142 = vcombine.high %v5140, %v5140
  %v5143 = vcombine.high %v4452, %v4452
  %v5145 = vunpack.c.l.s4 1966171168
  %v5146 = vunpack.c.0.s8 %v5145
  %v5147 = vlaneseq
  %v5148 = vshrl.u32 %v5147, 7
  %v5149 = vsub.s32 %v5146, %v5148
  %v5150 = vrot.slane %v4452, %v5149
  %v5152 = vunpack.c.l.s4 1966171168
  %v5153 = vunpack.c.0.s8 %v5152
  %v5154 = vlaneseq
  %v5155 = vshrl.u32 %v5154, 7
  %v5156 = vsub.s32 %v5153, %v5155
  %v5157 = vrot.slane %v5143, %v5156
  %v5158 = vcombine.high %v5150, %v5150
  %v5160 = vunpack.c.l.s4 1966171168
  %v5161 = vunpack.c.0.s8 %v5160
  %v5162 = vlaneseq
  %v5163 = vshrl.u32 %v5162, 7
  %v5164 = vsub.s32 %v5161, %v5163
  %v5165 = vrot.slane %v5150, %v5164
  %v5167 = vunpack.c.l.s4 1966171168
  %v5168 = vunpack.c.0.s8 %v5167
  %v5169 = vlaneseq
  %v5170 = vshrl.u32 %v5169, 7
  %v5171 = vsub.s32 %v5168, %v5170
  %v5172 = vrot.slane %v5157, %v5171
  %v5174 = vunpack.c.l.s4 1966171168
  %v5175 = vunpack.c.0.s8 %v5174
  %v5176 = vlaneseq
  %v5177 = vshrl.u32 %v5176, 7
  %v5178 = vsub.s32 %v5175, %v5177
  %v5179 = vrot.slane %v5158, %v5178
  %v5180 = vcombine.high %v5165, %v5165
  %v5181 = vcombine.high %v5179, %v5179
  %v5182 = vcombine.high %v4524, %v4524
  %v5184 = vunpack.c.l.s4 1966171168
  %v5185 = vunpack.c.0.s8 %v5184
  %v5186 = vlaneseq
  %v5187 = vshrl.u32 %v5186, 7
  %v5188 = vsub.s32 %v5185, %v5187
  %v5189 = vrot.slane %v4524, %v5188
  %v5191 = vunpack.c.l.s4 1966171168
  %v5192 = vunpack.c.0.s8 %v5191
  %v5193 = vlaneseq
  %v5194 = vshrl.u32 %v5193, 7
  %v5195 = vsub.s32 %v5192, %v5194
  %v5196 = vrot.slane %v5182, %v5195
  %v5197 = vcombine.high %v5189, %v5189
  %v5199 = vunpack.c.l.s4 1966171168
  %v5200 = vunpack.c.0.s8 %v5199
  %v5201 = vlaneseq
  %v5202 = vshrl.u32 %v5201, 7
  %v5203 = vsub.s32 %v5200, %v5202
  %v5204 = vrot.slane %v5189, %v5203
  %v5206 = vunpack.c.l.s4 1966171168
  %v5207 = vunpack.c.0.s8 %v5206
  %v5208 = vlaneseq
  %v5209 = vshrl.u32 %v5208, 7
  %v5210 = vsub.s32 %v5207, %v5209
  %v5211 = vrot.slane %v5196, %v5210
  %v5213 = vunpack.c.l.s4 1966171168
  %v5214 = vunpack.c.0.s8 %v5213
  %v5215 = vlaneseq
  %v5216 = vshrl.u32 %v5215, 7
  %v5217 = vsub.s32 %v5214, %v5216
  %v5218 = vrot.slane %v5197, %v5217
  %v5219 = vcombine.high %v5204, %v5204
  %v5220 = vcombine.high %v5218, %v5218
  %v5221 = vcombine.high %v4596, %v4596
  %v5223 = vunpack.c.l.s4 1966171168
  %v5224 = vunpack.c.0.s8 %v5223
  %v5225 = vlaneseq
  %v5226 = vshrl.u32 %v5225, 7
  %v5227 = vsub.s32 %v5224, %v5226
  %v5228 = vrot.slane %v4596, %v5227
  %v5230 = vunpack.c.l.s4 1966171168
  %v5231 = vunpack.c.0.s8 %v5230
  %v5232 = vlaneseq
  %v5233 = vshrl.u32 %v5232, 7
  %v5234 = vsub.s32 %v5231, %v5233
  %v5235 = vrot.slane %v5221, %v5234
  %v5236 = vcombine.high %v5228, %v5228
  %v5238 = vunpack.c.l.s4 1966171168
  %v5239 = vunpack.c.0.s8 %v5238
  %v5240 = vlaneseq
  %v5241 = vshrl.u32 %v5240, 7
  %v5242 = vsub.s32 %v5239, %v5241
  %v5243 = vrot.slane %v5228, %v5242
  %v5245 = vunpack.c.l.s4 1966171168
  %v5246 = vunpack.c.0.s8 %v5245
  %v5247 = vlaneseq
  %v5248 = vshrl.u32 %v5247, 7
  %v5249 = vsub.s32 %v5246, %v5248
  %v5250 = vrot.slane %v5235, %v5249
  %v5252 = vunpack.c.l.s4 1966171168
  %v5253 = vunpack.c.0.s8 %v5252
  %v5254 = vlaneseq
  %v5255 = vshrl.u32 %v5254, 7
  %v5256 = vsub.s32 %v5253, %v5255
  %v5257 = vrot.slane %v5236, %v5256
  %v5258 = vcombine.high %v5243, %v5243
  %v5259 = vcombine.high %v5257, %v5257
  %v5260 = vcombine.high %v4668, %v4668
  %v5262 = vunpack.c.l.s4 1966171168
  %v5263 = vunpack.c.0.s8 %v5262
  %v5264 = vlaneseq
  %v5265 = vshrl.u32 %v5264, 7
  %v5266 = vsub.s32 %v5263, %v5265
  %v5267 = vrot.slane %v4668, %v5266
  %v5269 = vunpack.c.l.s4 1966171168
  %v5270 = vunpack.c.0.s8 %v5269
  %v5271 = vlaneseq
  %v5272 = vshrl.u32 %v5271, 7
  %v5273 = vsub.s32 %v5270, %v5272
  %v5274 = vrot.slane %v5260, %v5273
  %v5275 = vcombine.high %v5267, %v5267
  %v5277 = vunpack.c.l.s4 1966171168
  %v5278 = vunpack.c.0.s8 %v5277
  %v5279 = vlaneseq
  %v5280 = vshrl.u32 %v5279, 7
  %v5281 = vsub.s32 %v5278, %v5280
  %v5282 = vrot.slane %v5267, %v5281
  %v5284 = vunpack.c.l.s4 1966171168
  %v5285 = vunpack.c.0.s8 %v5284
  %v5286 = vlaneseq
  %v5287 = vshrl.u32 %v5286, 7
  %v5288 = vsub.s32 %v5285, %v5287
  %v5289 = vrot.slane %v5274, %v5288
  %v5291 = vunpack.c.l.s4 1966171168
  %v5292 = vunpack.c.0.s8 %v5291
  %v5293 = vlaneseq
  %v5294 = vshrl.u32 %v5293, 7
  %v5295 = vsub.s32 %v5292, %v5294
  %v5296 = vrot.slane %v5275, %v5295
  %v5297 = vcombine.high %v5282, %v5282
  %v5298 = vcombine.high %v5296, %v5296
  %v5299 = vcombine.high %v4740, %v4740
  %v5301 = vunpack.c.l.s4 1966171168
  %v5302 = vunpack.c.0.s8 %v5301
  %v5303 = vlaneseq
  %v5304 = vshrl.u32 %v5303, 7
  %v5305 = vsub.s32 %v5302, %v5304
  %v5306 = vrot.slane %v4740, %v5305
  %v5308 = vunpack.c.l.s4 1966171168
  %v5309 = vunpack.c.0.s8 %v5308
  %v5310 = vlaneseq
  %v5311 = vshrl.u32 %v5310, 7
  %v5312 = vsub.s32 %v5309, %v5311
  %v5313 = vrot.slane %v5299, %v5312
  %v5314 = vcombine.high %v5306, %v5306
  %v5316 = vunpack.c.l.s4 1966171168
  %v5317 = vunpack.c.0.s8 %v5316
  %v5318 = vlaneseq
  %v5319 = vshrl.u32 %v5318, 7
  %v5320 = vsub.s32 %v5317, %v5319
  %v5321 = vrot.slane %v5306, %v5320
  %v5323 = vunpack.c.l.s4 1966171168
  %v5324 = vunpack.c.0.s8 %v5323
  %v5325 = vlaneseq
  %v5326 = vshrl.u32 %v5325, 7
  %v5327 = vsub.s32 %v5324, %v5326
  %v5328 = vrot.slane %v5313, %v5327
  %v5330 = vunpack.c.l.s4 1966171168
  %v5331 = vunpack.c.0.s8 %v5330
  %v5332 = vlaneseq
  %v5333 = vshrl.u32 %v5332, 7
  %v5334 = vsub.s32 %v5331, %v5333
  %v5335 = vrot.slane %v5314, %v5334
  %v5336 = vcombine.high %v5321, %v5321
  %v5337 = vcombine.high %v5335, %v5335
  %v5338 = vcombine.high %v4812, %v4812
  %v5340 = vunpack.c.l.s4 1966171168
  %v5341 = vunpack.c.0.s8 %v5340
  %v5342 = vlaneseq
  %v5343 = vshrl.u32 %v5342, 7
  %v5344 = vsub.s32 %v5341, %v5343
  %v5345 = vrot.slane %v4812, %v5344
  %v5347 = vunpack.c.l.s4 1966171168
  %v5348 = vunpack.c.0.s8 %v5347
  %v5349 = vlaneseq
  %v5350 = vshrl.u32 %v5349, 7
  %v5351 = vsub.s32 %v5348, %v5350
  %v5352 = vrot.slane %v5338, %v5351
  %v5353 = vcombine.high %v5345, %v5345
  %v5355 = vunpack.c.l.s4 1966171168
  %v5356 = vunpack.c.0.s8 %v5355
  %v5357 = vlaneseq
  %v5358 = vshrl.u32 %v5357, 7
  %v5359 = vsub.s32 %v5356, %v5358
  %v5360 = vrot.slane %v5345, %v5359
  %v5362 = vunpack.c.l.s4 1966171168
  %v5363 = vunpack.c.0.s8 %v5362
  %v5364 = vlaneseq
  %v5365 = vshrl.u32 %v5364, 7
  %v5366 = vsub.s32 %v5363, %v5365
  %v5367 = vrot.slane %v5352, %v5366
  %v5369 = vunpack.c.l.s4 1966171168
  %v5370 = vunpack.c.0.s8 %v5369
  %v5371 = vlaneseq
  %v5372 = vshrl.u32 %v5371, 7
  %v5373 = vsub.s32 %v5370, %v5372
  %v5374 = vrot.slane %v5353, %v5373
  %v5375 = vcombine.high %v5360, %v5360
  %v5376 = vcombine.high %v5374, %v5374
  %5377 = vrot.lane.b32.xlu0 %v2257, 64
  %v5378 = vpop.permute.xlu0 %5377
  %5379 = vrot.lane.b32.xlu0 %v2283, 64
  %v5380 = vpop.permute.xlu0 %5379
  %v5382 = vsel %vm2284, %v5378, 0
  %v5385 = vsel %vm2284, %v5380, 0
  %5387 = vmatprep.subr.bf16.mxu0 0
  %5388 = vmatpush1.bf16.xpose.msra.mxu0 %v5385
  %5389 = vmatprep.subr.bf16.mxu0 0
  %5390 = vmatpush1.bf16.xpose.msra.mxu0 0
  %5391 = vmatprep.subr.bf16.mxu0 0
  %5392 = vmatpush1.bf16.xpose.msra.mxu0 0
  %5393 = vmatprep.subr.bf16.mxu0 0
  %5394 = vmatpush1.bf16.xpose.msra.mxu0 0
  %5395 = vmatprep.subr.bf16.mxu0 0
  %5396 = vmatpush1.bf16.xpose.msra.mxu0 0
  %5397 = vmatprep.subr.bf16.mxu0 0
  %5398 = vmatpush1.bf16.xpose.msra.mxu0 0
  %5399 = vmatprep.subr.bf16.mxu0 0
  %5400 = vmatpush1.bf16.xpose.msra.mxu0 0
  %5401 = vmatprep.subr.bf16.mxu0 0
  %5402 = vmatpush1.bf16.xpose.msra.mxu0 0
  %5403 = vmatprep.subr.bf16.mxu0 0
  %5404 = vmatpush1.bf16.xpose.msra.mxu0 0
  %5405 = vmatprep.subr.bf16.mxu0 0
  %5406 = vmatpush1.bf16.xpose.msra.mxu0 0
  %5407 = vmatprep.subr.bf16.mxu0 0
  %5408 = vmatpush1.bf16.xpose.msra.mxu0 0
  %5409 = vmatprep.subr.bf16.mxu0 0
  %5410 = vmatpush1.bf16.xpose.msra.mxu0 0
  %5411 = vmatprep.subr.bf16.mxu0 0
  %5412 = vmatpush1.bf16.xpose.msra.mxu0 0
  %5413 = vmatprep.subr.bf16.mxu0 0
  %5414 = vmatpush1.bf16.xpose.msra.mxu0 0
  %5415 = vmatprep.subr.bf16.mxu0 0
  %5416 = vmatpush1.bf16.xpose.msra.mxu0 0
  %5417 = vmatprep.subr.bf16.mxu0 0
  %5418 = vmatpush1.bf16.xpose.msra.mxu0 0
  %5419 = vmatprep.mubr.bf16.mxu0 0
  %5420 = vmatmul.mubr.bf16.gmra.mrb[0].mxu0 %v5382
  %v5421 = vpop.f32.mrb[0].mxu0
  %v5422 = vadd.f32 0.0, %v5421
  %v5423 = vpop.f32.mrb[0].mxu0
  %v5424 = vpop.f32.mrb[0].mxu0
  %v5425 = vpop.f32.mrb[0].mxu0
  %5426 = vdwg.mxu0
  %5427 = vrot.lane.b32.xlu0 %v2356, 64
  %v5428 = vpop.permute.xlu0 %5427
  %5429 = vrot.lane.b32.xlu0 %v2382, 64
  %v5430 = vpop.permute.xlu0 %5429
  %v5432 = vsel %vm2284, %v5428, 0
  %v5435 = vsel %vm2284, %v5430, 0
  %5437 = vmatprep.subr.bf16.mxu0 0
  %5438 = vmatpush1.bf16.xpose.msra.mxu0 %v5435
  %5439 = vmatprep.subr.bf16.mxu0 0
  %5440 = vmatpush1.bf16.xpose.msra.mxu0 0
  %5441 = vmatprep.subr.bf16.mxu0 0
  %5442 = vmatpush1.bf16.xpose.msra.mxu0 0
  %5443 = vmatprep.subr.bf16.mxu0 0
  %5444 = vmatpush1.bf16.xpose.msra.mxu0 0
  %5445 = vmatprep.subr.bf16.mxu0 0
  %5446 = vmatpush1.bf16.xpose.msra.mxu0 0
  %5447 = vmatprep.subr.bf16.mxu0 0
  %5448 = vmatpush1.bf16.xpose.msra.mxu0 0
  %5449 = vmatprep.subr.bf16.mxu0 0
  %5450 = vmatpush1.bf16.xpose.msra.mxu0 0
  %5451 = vmatprep.subr.bf16.mxu0 0
  %5452 = vmatpush1.bf16.xpose.msra.mxu0 0
  %5453 = vmatprep.subr.bf16.mxu0 0
  %5454 = vmatpush1.bf16.xpose.msra.mxu0 0
  %5455 = vmatprep.subr.bf16.mxu0 0
  %5456 = vmatpush1.bf16.xpose.msra.mxu0 0
  %5457 = vmatprep.subr.bf16.mxu0 0
  %5458 = vmatpush1.bf16.xpose.msra.mxu0 0
  %5459 = vmatprep.subr.bf16.mxu0 0
  %5460 = vmatpush1.bf16.xpose.msra.mxu0 0
  %5461 = vmatprep.subr.bf16.mxu0 0
  %5462 = vmatpush1.bf16.xpose.msra.mxu0 0
  %5463 = vmatprep.subr.bf16.mxu0 0
  %5464 = vmatpush1.bf16.xpose.msra.mxu0 0
  %5465 = vmatprep.subr.bf16.mxu0 0
  %5466 = vmatpush1.bf16.xpose.msra.mxu0 0
  %5467 = vmatprep.subr.bf16.mxu0 0
  %5468 = vmatpush1.bf16.xpose.msra.mxu0 0
  %5469 = vmatprep.mubr.bf16.mxu0 0
  %5470 = vmatmul.mubr.bf16.gmra.mrb[0].mxu0 %v5432
  %v5471 = vpop.f32.mrb[0].mxu0
  %v5472 = vadd.f32 0.0, %v5471
  %v5473 = vpop.f32.mrb[0].mxu0
  %v5474 = vpop.f32.mrb[0].mxu0
  %v5475 = vpop.f32.mrb[0].mxu0
  %5476 = vdwg.mxu0
  %5477 = vrot.lane.b32.xlu0 %v2454, 64
  %v5478 = vpop.permute.xlu0 %5477
  %5479 = vrot.lane.b32.xlu0 %v2480, 64
  %v5480 = vpop.permute.xlu0 %5479
  %v5482 = vsel %vm2284, %v5478, 0
  %v5485 = vsel %vm2284, %v5480, 0
  %5487 = vmatprep.subr.bf16.mxu0 0
  %5488 = vmatpush1.bf16.xpose.msra.mxu0 %v5485
  %5489 = vmatprep.subr.bf16.mxu0 0
  %5490 = vmatpush1.bf16.xpose.msra.mxu0 0
  %5491 = vmatprep.subr.bf16.mxu0 0
  %5492 = vmatpush1.bf16.xpose.msra.mxu0 0
  %5493 = vmatprep.subr.bf16.mxu0 0
  %5494 = vmatpush1.bf16.xpose.msra.mxu0 0
  %5495 = vmatprep.subr.bf16.mxu0 0
  %5496 = vmatpush1.bf16.xpose.msra.mxu0 0
  %5497 = vmatprep.subr.bf16.mxu0 0
  %5498 = vmatpush1.bf16.xpose.msra.mxu0 0
  %5499 = vmatprep.subr.bf16.mxu0 0
  %5500 = vmatpush1.bf16.xpose.msra.mxu0 0
  %5501 = vmatprep.subr.bf16.mxu0 0
  %5502 = vmatpush1.bf16.xpose.msra.mxu0 0
  %5503 = vmatprep.subr.bf16.mxu0 0
  %5504 = vmatpush1.bf16.xpose.msra.mxu0 0
  %5505 = vmatprep.subr.bf16.mxu0 0
  %5506 = vmatpush1.bf16.xpose.msra.mxu0 0
  %5507 = vmatprep.subr.bf16.mxu0 0
  %5508 = vmatpush1.bf16.xpose.msra.mxu0 0
  %5509 = vmatprep.subr.bf16.mxu0 0
  %5510 = vmatpush1.bf16.xpose.msra.mxu0 0
  %5511 = vmatprep.subr.bf16.mxu0 0
  %5512 = vmatpush1.bf16.xpose.msra.mxu0 0
  %5513 = vmatprep.subr.bf16.mxu0 0
  %5514 = vmatpush1.bf16.xpose.msra.mxu0 0
  %5515 = vmatprep.subr.bf16.mxu0 0
  %5516 = vmatpush1.bf16.xpose.msra.mxu0 0
  %5517 = vmatprep.subr.bf16.mxu0 0
  %5518 = vmatpush1.bf16.xpose.msra.mxu0 0
  %5519 = vmatprep.mubr.bf16.mxu0 0
  %5520 = vmatmul.mubr.bf16.gmra.mrb[0].mxu0 %v5482
  %v5521 = vpop.f32.mrb[0].mxu0
  %v5522 = vadd.f32 0.0, %v5521
  %v5523 = vpop.f32.mrb[0].mxu0
  %v5524 = vpop.f32.mrb[0].mxu0
  %v5525 = vpop.f32.mrb[0].mxu0
  %5526 = vdwg.mxu0
  %5527 = vrot.lane.b32.xlu0 %v2552, 64
  %v5528 = vpop.permute.xlu0 %5527
  %5529 = vrot.lane.b32.xlu0 %v2578, 64
  %v5530 = vpop.permute.xlu0 %5529
  %v5532 = vsel %vm2284, %v5528, 0
  %v5535 = vsel %vm2284, %v5530, 0
  %5537 = vmatprep.subr.bf16.mxu0 0
  %5538 = vmatpush1.bf16.xpose.msra.mxu0 %v5535
  %5539 = vmatprep.subr.bf16.mxu0 0
  %5540 = vmatpush1.bf16.xpose.msra.mxu0 0
  %5541 = vmatprep.subr.bf16.mxu0 0
  %5542 = vmatpush1.bf16.xpose.msra.mxu0 0
  %5543 = vmatprep.subr.bf16.mxu0 0
  %5544 = vmatpush1.bf16.xpose.msra.mxu0 0
  %5545 = vmatprep.subr.bf16.mxu0 0
  %5546 = vmatpush1.bf16.xpose.msra.mxu0 0
  %5547 = vmatprep.subr.bf16.mxu0 0
  %5548 = vmatpush1.bf16.xpose.msra.mxu0 0
  %5549 = vmatprep.subr.bf16.mxu0 0
  %5550 = vmatpush1.bf16.xpose.msra.mxu0 0
  %5551 = vmatprep.subr.bf16.mxu0 0
  %5552 = vmatpush1.bf16.xpose.msra.mxu0 0
  %5553 = vmatprep.subr.bf16.mxu0 0
  %5554 = vmatpush1.bf16.xpose.msra.mxu0 0
  %5555 = vmatprep.subr.bf16.mxu0 0
  %5556 = vmatpush1.bf16.xpose.msra.mxu0 0
  %5557 = vmatprep.subr.bf16.mxu0 0
  %5558 = vmatpush1.bf16.xpose.msra.mxu0 0
  %5559 = vmatprep.subr.bf16.mxu0 0
  %5560 = vmatpush1.bf16.xpose.msra.mxu0 0
  %5561 = vmatprep.subr.bf16.mxu0 0
  %5562 = vmatpush1.bf16.xpose.msra.mxu0 0
  %5563 = vmatprep.subr.bf16.mxu0 0
  %5564 = vmatpush1.bf16.xpose.msra.mxu0 0
  %5565 = vmatprep.subr.bf16.mxu0 0
  %5566 = vmatpush1.bf16.xpose.msra.mxu0 0
  %5567 = vmatprep.subr.bf16.mxu0 0
  %5568 = vmatpush1.bf16.xpose.msra.mxu0 0
  %5569 = vmatprep.mubr.bf16.mxu0 0
  %5570 = vmatmul.mubr.bf16.gmra.mrb[0].mxu0 %v5532
  %v5571 = vpop.f32.mrb[0].mxu0
  %v5572 = vadd.f32 0.0, %v5571
  %v5573 = vpop.f32.mrb[0].mxu0
  %v5574 = vpop.f32.mrb[0].mxu0
  %v5575 = vpop.f32.mrb[0].mxu0
  %5576 = vdwg.mxu0
  %5577 = vrot.lane.b32.xlu0 %v2650, 64
  %v5578 = vpop.permute.xlu0 %5577
  %5579 = vrot.lane.b32.xlu0 %v2676, 64
  %v5580 = vpop.permute.xlu0 %5579
  %v5582 = vsel %vm2284, %v5578, 0
  %v5585 = vsel %vm2284, %v5580, 0
  %5587 = vmatprep.subr.bf16.mxu0 0
  %5588 = vmatpush1.bf16.xpose.msra.mxu0 %v5585
  %5589 = vmatprep.subr.bf16.mxu0 0
  %5590 = vmatpush1.bf16.xpose.msra.mxu0 0
  %5591 = vmatprep.subr.bf16.mxu0 0
  %5592 = vmatpush1.bf16.xpose.msra.mxu0 0
  %5593 = vmatprep.subr.bf16.mxu0 0
  %5594 = vmatpush1.bf16.xpose.msra.mxu0 0
  %5595 = vmatprep.subr.bf16.mxu0 0
  %5596 = vmatpush1.bf16.xpose.msra.mxu0 0
  %5597 = vmatprep.subr.bf16.mxu0 0
  %5598 = vmatpush1.bf16.xpose.msra.mxu0 0
  %5599 = vmatprep.subr.bf16.mxu0 0
  %5600 = vmatpush1.bf16.xpose.msra.mxu0 0
  %5601 = vmatprep.subr.bf16.mxu0 0
  %5602 = vmatpush1.bf16.xpose.msra.mxu0 0
  %5603 = vmatprep.subr.bf16.mxu0 0
  %5604 = vmatpush1.bf16.xpose.msra.mxu0 0
  %5605 = vmatprep.subr.bf16.mxu0 0
  %5606 = vmatpush1.bf16.xpose.msra.mxu0 0
  %5607 = vmatprep.subr.bf16.mxu0 0
  %5608 = vmatpush1.bf16.xpose.msra.mxu0 0
  %5609 = vmatprep.subr.bf16.mxu0 0
  %5610 = vmatpush1.bf16.xpose.msra.mxu0 0
  %5611 = vmatprep.subr.bf16.mxu0 0
  %5612 = vmatpush1.bf16.xpose.msra.mxu0 0
  %5613 = vmatprep.subr.bf16.mxu0 0
  %5614 = vmatpush1.bf16.xpose.msra.mxu0 0
  %5615 = vmatprep.subr.bf16.mxu0 0
  %5616 = vmatpush1.bf16.xpose.msra.mxu0 0
  %5617 = vmatprep.subr.bf16.mxu0 0
  %5618 = vmatpush1.bf16.xpose.msra.mxu0 0
  %5619 = vmatprep.mubr.bf16.mxu0 0
  %5620 = vmatmul.mubr.bf16.gmra.mrb[0].mxu0 %v5582
  %v5621 = vpop.f32.mrb[0].mxu0
  %v5622 = vadd.f32 0.0, %v5621
  %v5623 = vpop.f32.mrb[0].mxu0
  %v5624 = vpop.f32.mrb[0].mxu0
  %v5625 = vpop.f32.mrb[0].mxu0
  %5626 = vdwg.mxu0
  %5627 = vrot.lane.b32.xlu0 %v2748, 64
  %v5628 = vpop.permute.xlu0 %5627
  %5629 = vrot.lane.b32.xlu0 %v2774, 64
  %v5630 = vpop.permute.xlu0 %5629
  %v5632 = vsel %vm2284, %v5628, 0
  %v5635 = vsel %vm2284, %v5630, 0
  %5637 = vmatprep.subr.bf16.mxu0 0
  %5638 = vmatpush1.bf16.xpose.msra.mxu0 %v5635
  %5639 = vmatprep.subr.bf16.mxu0 0
  %5640 = vmatpush1.bf16.xpose.msra.mxu0 0
  %5641 = vmatprep.subr.bf16.mxu0 0
  %5642 = vmatpush1.bf16.xpose.msra.mxu0 0
  %5643 = vmatprep.subr.bf16.mxu0 0
  %5644 = vmatpush1.bf16.xpose.msra.mxu0 0
  %5645 = vmatprep.subr.bf16.mxu0 0
  %5646 = vmatpush1.bf16.xpose.msra.mxu0 0
  %5647 = vmatprep.subr.bf16.mxu0 0
  %5648 = vmatpush1.bf16.xpose.msra.mxu0 0
  %5649 = vmatprep.subr.bf16.mxu0 0
  %5650 = vmatpush1.bf16.xpose.msra.mxu0 0
  %5651 = vmatprep.subr.bf16.mxu0 0
  %5652 = vmatpush1.bf16.xpose.msra.mxu0 0
  %5653 = vmatprep.subr.bf16.mxu0 0
  %5654 = vmatpush1.bf16.xpose.msra.mxu0 0
  %5655 = vmatprep.subr.bf16.mxu0 0
  %5656 = vmatpush1.bf16.xpose.msra.mxu0 0
  %5657 = vmatprep.subr.bf16.mxu0 0
  %5658 = vmatpush1.bf16.xpose.msra.mxu0 0
  %5659 = vmatprep.subr.bf16.mxu0 0
  %5660 = vmatpush1.bf16.xpose.msra.mxu0 0
  %5661 = vmatprep.subr.bf16.mxu0 0
  %5662 = vmatpush1.bf16.xpose.msra.mxu0 0
  %5663 = vmatprep.subr.bf16.mxu0 0
  %5664 = vmatpush1.bf16.xpose.msra.mxu0 0
  %5665 = vmatprep.subr.bf16.mxu0 0
  %5666 = vmatpush1.bf16.xpose.msra.mxu0 0
  %5667 = vmatprep.subr.bf16.mxu0 0
  %5668 = vmatpush1.bf16.xpose.msra.mxu0 0
  %5669 = vmatprep.mubr.bf16.mxu0 0
  %5670 = vmatmul.mubr.bf16.gmra.mrb[0].mxu0 %v5632
  %v5671 = vpop.f32.mrb[0].mxu0
  %v5672 = vadd.f32 0.0, %v5671
  %v5673 = vpop.f32.mrb[0].mxu0
  %v5674 = vpop.f32.mrb[0].mxu0
  %v5675 = vpop.f32.mrb[0].mxu0
  %5676 = vdwg.mxu0
  %5677 = vrot.lane.b32.xlu0 %v2846, 64
  %v5678 = vpop.permute.xlu0 %5677
  %5679 = vrot.lane.b32.xlu0 %v2872, 64
  %v5680 = vpop.permute.xlu0 %5679
  %v5682 = vsel %vm2284, %v5678, 0
  %v5685 = vsel %vm2284, %v5680, 0
  %5687 = vmatprep.subr.bf16.mxu0 0
  %5688 = vmatpush1.bf16.xpose.msra.mxu0 %v5685
  %5689 = vmatprep.subr.bf16.mxu0 0
  %5690 = vmatpush1.bf16.xpose.msra.mxu0 0
  %5691 = vmatprep.subr.bf16.mxu0 0
  %5692 = vmatpush1.bf16.xpose.msra.mxu0 0
  %5693 = vmatprep.subr.bf16.mxu0 0
  %5694 = vmatpush1.bf16.xpose.msra.mxu0 0
  %5695 = vmatprep.subr.bf16.mxu0 0
  %5696 = vmatpush1.bf16.xpose.msra.mxu0 0
  %5697 = vmatprep.subr.bf16.mxu0 0
  %5698 = vmatpush1.bf16.xpose.msra.mxu0 0
  %5699 = vmatprep.subr.bf16.mxu0 0
  %5700 = vmatpush1.bf16.xpose.msra.mxu0 0
  %5701 = vmatprep.subr.bf16.mxu0 0
  %5702 = vmatpush1.bf16.xpose.msra.mxu0 0
  %5703 = vmatprep.subr.bf16.mxu0 0
  %5704 = vmatpush1.bf16.xpose.msra.mxu0 0
  %5705 = vmatprep.subr.bf16.mxu0 0
  %5706 = vmatpush1.bf16.xpose.msra.mxu0 0
  %5707 = vmatprep.subr.bf16.mxu0 0
  %5708 = vmatpush1.bf16.xpose.msra.mxu0 0
  %5709 = vmatprep.subr.bf16.mxu0 0
  %5710 = vmatpush1.bf16.xpose.msra.mxu0 0
  %5711 = vmatprep.subr.bf16.mxu0 0
  %5712 = vmatpush1.bf16.xpose.msra.mxu0 0
  %5713 = vmatprep.subr.bf16.mxu0 0
  %5714 = vmatpush1.bf16.xpose.msra.mxu0 0
  %5715 = vmatprep.subr.bf16.mxu0 0
  %5716 = vmatpush1.bf16.xpose.msra.mxu0 0
  %5717 = vmatprep.subr.bf16.mxu0 0
  %5718 = vmatpush1.bf16.xpose.msra.mxu0 0
  %5719 = vmatprep.mubr.bf16.mxu0 0
  %5720 = vmatmul.mubr.bf16.gmra.mrb[0].mxu0 %v5682
  %v5721 = vpop.f32.mrb[0].mxu0
  %v5722 = vadd.f32 0.0, %v5721
  %v5723 = vpop.f32.mrb[0].mxu0
  %v5724 = vpop.f32.mrb[0].mxu0
  %v5725 = vpop.f32.mrb[0].mxu0
  %5726 = vdwg.mxu0
  %5727 = vrot.lane.b32.xlu0 %v2944, 64
  %v5728 = vpop.permute.xlu0 %5727
  %5729 = vrot.lane.b32.xlu0 %v2970, 64
  %v5730 = vpop.permute.xlu0 %5729
  %v5732 = vsel %vm2284, %v5728, 0
  %v5735 = vsel %vm2284, %v5730, 0
  %5737 = vmatprep.subr.bf16.mxu0 0
  %5738 = vmatpush1.bf16.xpose.msra.mxu0 %v5735
  %5739 = vmatprep.subr.bf16.mxu0 0
  %5740 = vmatpush1.bf16.xpose.msra.mxu0 0
  %5741 = vmatprep.subr.bf16.mxu0 0
  %5742 = vmatpush1.bf16.xpose.msra.mxu0 0
  %5743 = vmatprep.subr.bf16.mxu0 0
  %5744 = vmatpush1.bf16.xpose.msra.mxu0 0
  %5745 = vmatprep.subr.bf16.mxu0 0
  %5746 = vmatpush1.bf16.xpose.msra.mxu0 0
  %5747 = vmatprep.subr.bf16.mxu0 0
  %5748 = vmatpush1.bf16.xpose.msra.mxu0 0
  %5749 = vmatprep.subr.bf16.mxu0 0
  %5750 = vmatpush1.bf16.xpose.msra.mxu0 0
  %5751 = vmatprep.subr.bf16.mxu0 0
  %5752 = vmatpush1.bf16.xpose.msra.mxu0 0
  %5753 = vmatprep.subr.bf16.mxu0 0
  %5754 = vmatpush1.bf16.xpose.msra.mxu0 0
  %5755 = vmatprep.subr.bf16.mxu0 0
  %5756 = vmatpush1.bf16.xpose.msra.mxu0 0
  %5757 = vmatprep.subr.bf16.mxu0 0
  %5758 = vmatpush1.bf16.xpose.msra.mxu0 0
  %5759 = vmatprep.subr.bf16.mxu0 0
  %5760 = vmatpush1.bf16.xpose.msra.mxu0 0
  %5761 = vmatprep.subr.bf16.mxu0 0
  %5762 = vmatpush1.bf16.xpose.msra.mxu0 0
  %5763 = vmatprep.subr.bf16.mxu0 0
  %5764 = vmatpush1.bf16.xpose.msra.mxu0 0
  %5765 = vmatprep.subr.bf16.mxu0 0
  %5766 = vmatpush1.bf16.xpose.msra.mxu0 0
  %5767 = vmatprep.subr.bf16.mxu0 0
  %5768 = vmatpush1.bf16.xpose.msra.mxu0 0
  %5769 = vmatprep.mubr.bf16.mxu0 0
  %5770 = vmatmul.mubr.bf16.gmra.mrb[0].mxu0 %v5732
  %v5771 = vpop.f32.mrb[0].mxu0
  %v5772 = vadd.f32 0.0, %v5771
  %v5773 = vpop.f32.mrb[0].mxu0
  %v5774 = vpop.f32.mrb[0].mxu0
  %v5775 = vpop.f32.mrb[0].mxu0
  %5776 = vdwg.mxu0
  %5777 = vrot.lane.b32.xlu0 %v3042, 64
  %v5778 = vpop.permute.xlu0 %5777
  %5779 = vrot.lane.b32.xlu0 %v3068, 64
  %v5780 = vpop.permute.xlu0 %5779
  %v5782 = vsel %vm2284, %v5778, 0
  %v5785 = vsel %vm2284, %v5780, 0
  %5787 = vmatprep.subr.bf16.mxu0 0
  %5788 = vmatpush1.bf16.xpose.msra.mxu0 %v5785
  %5789 = vmatprep.subr.bf16.mxu0 0
  %5790 = vmatpush1.bf16.xpose.msra.mxu0 0
  %5791 = vmatprep.subr.bf16.mxu0 0
  %5792 = vmatpush1.bf16.xpose.msra.mxu0 0
  %5793 = vmatprep.subr.bf16.mxu0 0
  %5794 = vmatpush1.bf16.xpose.msra.mxu0 0
  %5795 = vmatprep.subr.bf16.mxu0 0
  %5796 = vmatpush1.bf16.xpose.msra.mxu0 0
  %5797 = vmatprep.subr.bf16.mxu0 0
  %5798 = vmatpush1.bf16.xpose.msra.mxu0 0
  %5799 = vmatprep.subr.bf16.mxu0 0
  %5800 = vmatpush1.bf16.xpose.msra.mxu0 0
  %5801 = vmatprep.subr.bf16.mxu0 0
  %5802 = vmatpush1.bf16.xpose.msra.mxu0 0
  %5803 = vmatprep.subr.bf16.mxu0 0
  %5804 = vmatpush1.bf16.xpose.msra.mxu0 0
  %5805 = vmatprep.subr.bf16.mxu0 0
  %5806 = vmatpush1.bf16.xpose.msra.mxu0 0
  %5807 = vmatprep.subr.bf16.mxu0 0
  %5808 = vmatpush1.bf16.xpose.msra.mxu0 0
  %5809 = vmatprep.subr.bf16.mxu0 0
  %5810 = vmatpush1.bf16.xpose.msra.mxu0 0
  %5811 = vmatprep.subr.bf16.mxu0 0
  %5812 = vmatpush1.bf16.xpose.msra.mxu0 0
  %5813 = vmatprep.subr.bf16.mxu0 0
  %5814 = vmatpush1.bf16.xpose.msra.mxu0 0
  %5815 = vmatprep.subr.bf16.mxu0 0
  %5816 = vmatpush1.bf16.xpose.msra.mxu0 0
  %5817 = vmatprep.subr.bf16.mxu0 0
  %5818 = vmatpush1.bf16.xpose.msra.mxu0 0
  %5819 = vmatprep.mubr.bf16.mxu0 0
  %5820 = vmatmul.mubr.bf16.gmra.mrb[0].mxu0 %v5782
  %v5821 = vpop.f32.mrb[0].mxu0
  %v5822 = vadd.f32 0.0, %v5821
  %v5823 = vpop.f32.mrb[0].mxu0
  %v5824 = vpop.f32.mrb[0].mxu0
  %v5825 = vpop.f32.mrb[0].mxu0
  %5826 = vdwg.mxu0
  %5827 = vrot.lane.b32.xlu0 %v3140, 64
  %v5828 = vpop.permute.xlu0 %5827
  %5829 = vrot.lane.b32.xlu0 %v3166, 64
  %v5830 = vpop.permute.xlu0 %5829
  %v5832 = vsel %vm2284, %v5828, 0
  %v5835 = vsel %vm2284, %v5830, 0
  %5837 = vmatprep.subr.bf16.mxu0 0
  %5838 = vmatpush1.bf16.xpose.msra.mxu0 %v5835
  %5839 = vmatprep.subr.bf16.mxu0 0
  %5840 = vmatpush1.bf16.xpose.msra.mxu0 0
  %5841 = vmatprep.subr.bf16.mxu0 0
  %5842 = vmatpush1.bf16.xpose.msra.mxu0 0
  %5843 = vmatprep.subr.bf16.mxu0 0
  %5844 = vmatpush1.bf16.xpose.msra.mxu0 0
  %5845 = vmatprep.subr.bf16.mxu0 0
  %5846 = vmatpush1.bf16.xpose.msra.mxu0 0
  %5847 = vmatprep.subr.bf16.mxu0 0
  %5848 = vmatpush1.bf16.xpose.msra.mxu0 0
  %5849 = vmatprep.subr.bf16.mxu0 0
  %5850 = vmatpush1.bf16.xpose.msra.mxu0 0
  %5851 = vmatprep.subr.bf16.mxu0 0
  %5852 = vmatpush1.bf16.xpose.msra.mxu0 0
  %5853 = vmatprep.subr.bf16.mxu0 0
  %5854 = vmatpush1.bf16.xpose.msra.mxu0 0
  %5855 = vmatprep.subr.bf16.mxu0 0
  %5856 = vmatpush1.bf16.xpose.msra.mxu0 0
  %5857 = vmatprep.subr.bf16.mxu0 0
  %5858 = vmatpush1.bf16.xpose.msra.mxu0 0
  %5859 = vmatprep.subr.bf16.mxu0 0
  %5860 = vmatpush1.bf16.xpose.msra.mxu0 0
  %5861 = vmatprep.subr.bf16.mxu0 0
  %5862 = vmatpush1.bf16.xpose.msra.mxu0 0
  %5863 = vmatprep.subr.bf16.mxu0 0
  %5864 = vmatpush1.bf16.xpose.msra.mxu0 0
  %5865 = vmatprep.subr.bf16.mxu0 0
  %5866 = vmatpush1.bf16.xpose.msra.mxu0 0
  %5867 = vmatprep.subr.bf16.mxu0 0
  %5868 = vmatpush1.bf16.xpose.msra.mxu0 0
  %5869 = vmatprep.mubr.bf16.mxu0 0
  %5870 = vmatmul.mubr.bf16.gmra.mrb[0].mxu0 %v5832
  %v5871 = vpop.f32.mrb[0].mxu0
  %v5872 = vadd.f32 0.0, %v5871
  %v5873 = vpop.f32.mrb[0].mxu0
  %v5874 = vpop.f32.mrb[0].mxu0
  %v5875 = vpop.f32.mrb[0].mxu0
  %5876 = vdwg.mxu0
  %5877 = vrot.lane.b32.xlu0 %v3238, 64
  %v5878 = vpop.permute.xlu0 %5877
  %5879 = vrot.lane.b32.xlu0 %v3264, 64
  %v5880 = vpop.permute.xlu0 %5879
  %v5882 = vsel %vm2284, %v5878, 0
  %v5885 = vsel %vm2284, %v5880, 0
  %5887 = vmatprep.subr.bf16.mxu0 0
  %5888 = vmatpush1.bf16.xpose.msra.mxu0 %v5885
  %5889 = vmatprep.subr.bf16.mxu0 0
  %5890 = vmatpush1.bf16.xpose.msra.mxu0 0
  %5891 = vmatprep.subr.bf16.mxu0 0
  %5892 = vmatpush1.bf16.xpose.msra.mxu0 0
  %5893 = vmatprep.subr.bf16.mxu0 0
  %5894 = vmatpush1.bf16.xpose.msra.mxu0 0
  %5895 = vmatprep.subr.bf16.mxu0 0
  %5896 = vmatpush1.bf16.xpose.msra.mxu0 0
  %5897 = vmatprep.subr.bf16.mxu0 0
  %5898 = vmatpush1.bf16.xpose.msra.mxu0 0
  %5899 = vmatprep.subr.bf16.mxu0 0
  %5900 = vmatpush1.bf16.xpose.msra.mxu0 0
  %5901 = vmatprep.subr.bf16.mxu0 0
  %5902 = vmatpush1.bf16.xpose.msra.mxu0 0
  %5903 = vmatprep.subr.bf16.mxu0 0
  %5904 = vmatpush1.bf16.xpose.msra.mxu0 0
  %5905 = vmatprep.subr.bf16.mxu0 0
  %5906 = vmatpush1.bf16.xpose.msra.mxu0 0
  %5907 = vmatprep.subr.bf16.mxu0 0
  %5908 = vmatpush1.bf16.xpose.msra.mxu0 0
  %5909 = vmatprep.subr.bf16.mxu0 0
  %5910 = vmatpush1.bf16.xpose.msra.mxu0 0
  %5911 = vmatprep.subr.bf16.mxu0 0
  %5912 = vmatpush1.bf16.xpose.msra.mxu0 0
  %5913 = vmatprep.subr.bf16.mxu0 0
  %5914 = vmatpush1.bf16.xpose.msra.mxu0 0
  %5915 = vmatprep.subr.bf16.mxu0 0
  %5916 = vmatpush1.bf16.xpose.msra.mxu0 0
  %5917 = vmatprep.subr.bf16.mxu0 0
  %5918 = vmatpush1.bf16.xpose.msra.mxu0 0
  %5919 = vmatprep.mubr.bf16.mxu0 0
  %5920 = vmatmul.mubr.bf16.gmra.mrb[0].mxu0 %v5882
  %v5921 = vpop.f32.mrb[0].mxu0
  %v5922 = vadd.f32 0.0, %v5921
  %v5923 = vpop.f32.mrb[0].mxu0
  %v5924 = vpop.f32.mrb[0].mxu0
  %v5925 = vpop.f32.mrb[0].mxu0
  %5926 = vdwg.mxu0
  %5927 = vrot.lane.b32.xlu0 %v3336, 64
  %v5928 = vpop.permute.xlu0 %5927
  %5929 = vrot.lane.b32.xlu0 %v3362, 64
  %v5930 = vpop.permute.xlu0 %5929
  %v5932 = vsel %vm2284, %v5928, 0
  %v5935 = vsel %vm2284, %v5930, 0
  %5937 = vmatprep.subr.bf16.mxu0 0
  %5938 = vmatpush1.bf16.xpose.msra.mxu0 %v5935
  %5939 = vmatprep.subr.bf16.mxu0 0
  %5940 = vmatpush1.bf16.xpose.msra.mxu0 0
  %5941 = vmatprep.subr.bf16.mxu0 0
  %5942 = vmatpush1.bf16.xpose.msra.mxu0 0
  %5943 = vmatprep.subr.bf16.mxu0 0
  %5944 = vmatpush1.bf16.xpose.msra.mxu0 0
  %5945 = vmatprep.subr.bf16.mxu0 0
  %5946 = vmatpush1.bf16.xpose.msra.mxu0 0
  %5947 = vmatprep.subr.bf16.mxu0 0
  %5948 = vmatpush1.bf16.xpose.msra.mxu0 0
  %5949 = vmatprep.subr.bf16.mxu0 0
  %5950 = vmatpush1.bf16.xpose.msra.mxu0 0
  %5951 = vmatprep.subr.bf16.mxu0 0
  %5952 = vmatpush1.bf16.xpose.msra.mxu0 0
  %5953 = vmatprep.subr.bf16.mxu0 0
  %5954 = vmatpush1.bf16.xpose.msra.mxu0 0
  %5955 = vmatprep.subr.bf16.mxu0 0
  %5956 = vmatpush1.bf16.xpose.msra.mxu0 0
  %5957 = vmatprep.subr.bf16.mxu0 0
  %5958 = vmatpush1.bf16.xpose.msra.mxu0 0
  %5959 = vmatprep.subr.bf16.mxu0 0
  %5960 = vmatpush1.bf16.xpose.msra.mxu0 0
  %5961 = vmatprep.subr.bf16.mxu0 0
  %5962 = vmatpush1.bf16.xpose.msra.mxu0 0
  %5963 = vmatprep.subr.bf16.mxu0 0
  %5964 = vmatpush1.bf16.xpose.msra.mxu0 0
  %5965 = vmatprep.subr.bf16.mxu0 0
  %5966 = vmatpush1.bf16.xpose.msra.mxu0 0
  %5967 = vmatprep.subr.bf16.mxu0 0
  %5968 = vmatpush1.bf16.xpose.msra.mxu0 0
  %5969 = vmatprep.mubr.bf16.mxu0 0
  %5970 = vmatmul.mubr.bf16.gmra.mrb[0].mxu0 %v5932
  %v5971 = vpop.f32.mrb[0].mxu0
  %v5972 = vadd.f32 0.0, %v5971
  %v5973 = vpop.f32.mrb[0].mxu0
  %v5974 = vpop.f32.mrb[0].mxu0
  %v5975 = vpop.f32.mrb[0].mxu0
  %5976 = vdwg.mxu0
  %5977 = vrot.lane.b32.xlu0 %v3434, 64
  %v5978 = vpop.permute.xlu0 %5977
  %5979 = vrot.lane.b32.xlu0 %v3460, 64
  %v5980 = vpop.permute.xlu0 %5979
  %v5982 = vsel %vm2284, %v5978, 0
  %v5985 = vsel %vm2284, %v5980, 0
  %5987 = vmatprep.subr.bf16.mxu0 0
  %5988 = vmatpush1.bf16.xpose.msra.mxu0 %v5985
  %5989 = vmatprep.subr.bf16.mxu0 0
  %5990 = vmatpush1.bf16.xpose.msra.mxu0 0
  %5991 = vmatprep.subr.bf16.mxu0 0
  %5992 = vmatpush1.bf16.xpose.msra.mxu0 0
  %5993 = vmatprep.subr.bf16.mxu0 0
  %5994 = vmatpush1.bf16.xpose.msra.mxu0 0
  %5995 = vmatprep.subr.bf16.mxu0 0
  %5996 = vmatpush1.bf16.xpose.msra.mxu0 0
  %5997 = vmatprep.subr.bf16.mxu0 0
  %5998 = vmatpush1.bf16.xpose.msra.mxu0 0
  %5999 = vmatprep.subr.bf16.mxu0 0
  %6000 = vmatpush1.bf16.xpose.msra.mxu0 0
  %6001 = vmatprep.subr.bf16.mxu0 0
  %6002 = vmatpush1.bf16.xpose.msra.mxu0 0
  %6003 = vmatprep.subr.bf16.mxu0 0
  %6004 = vmatpush1.bf16.xpose.msra.mxu0 0
  %6005 = vmatprep.subr.bf16.mxu0 0
  %6006 = vmatpush1.bf16.xpose.msra.mxu0 0
  %6007 = vmatprep.subr.bf16.mxu0 0
  %6008 = vmatpush1.bf16.xpose.msra.mxu0 0
  %6009 = vmatprep.subr.bf16.mxu0 0
  %6010 = vmatpush1.bf16.xpose.msra.mxu0 0
  %6011 = vmatprep.subr.bf16.mxu0 0
  %6012 = vmatpush1.bf16.xpose.msra.mxu0 0
  %6013 = vmatprep.subr.bf16.mxu0 0
  %6014 = vmatpush1.bf16.xpose.msra.mxu0 0
  %6015 = vmatprep.subr.bf16.mxu0 0
  %6016 = vmatpush1.bf16.xpose.msra.mxu0 0
  %6017 = vmatprep.subr.bf16.mxu0 0
  %6018 = vmatpush1.bf16.xpose.msra.mxu0 0
  %6019 = vmatprep.mubr.bf16.mxu0 0
  %6020 = vmatmul.mubr.bf16.gmra.mrb[0].mxu0 %v5982
  %v6021 = vpop.f32.mrb[0].mxu0
  %v6022 = vadd.f32 0.0, %v6021
  %v6023 = vpop.f32.mrb[0].mxu0
  %v6024 = vpop.f32.mrb[0].mxu0
  %v6025 = vpop.f32.mrb[0].mxu0
  %6026 = vdwg.mxu0
  %6027 = vrot.lane.b32.xlu0 %v3532, 64
  %v6028 = vpop.permute.xlu0 %6027
  %6029 = vrot.lane.b32.xlu0 %v3558, 64
  %v6030 = vpop.permute.xlu0 %6029
  %v6032 = vsel %vm2284, %v6028, 0
  %v6035 = vsel %vm2284, %v6030, 0
  %6037 = vmatprep.subr.bf16.mxu0 0
  %6038 = vmatpush1.bf16.xpose.msra.mxu0 %v6035
  %6039 = vmatprep.subr.bf16.mxu0 0
  %6040 = vmatpush1.bf16.xpose.msra.mxu0 0
  %6041 = vmatprep.subr.bf16.mxu0 0
  %6042 = vmatpush1.bf16.xpose.msra.mxu0 0
  %6043 = vmatprep.subr.bf16.mxu0 0
  %6044 = vmatpush1.bf16.xpose.msra.mxu0 0
  %6045 = vmatprep.subr.bf16.mxu0 0
  %6046 = vmatpush1.bf16.xpose.msra.mxu0 0
  %6047 = vmatprep.subr.bf16.mxu0 0
  %6048 = vmatpush1.bf16.xpose.msra.mxu0 0
  %6049 = vmatprep.subr.bf16.mxu0 0
  %6050 = vmatpush1.bf16.xpose.msra.mxu0 0
  %6051 = vmatprep.subr.bf16.mxu0 0
  %6052 = vmatpush1.bf16.xpose.msra.mxu0 0
  %6053 = vmatprep.subr.bf16.mxu0 0
  %6054 = vmatpush1.bf16.xpose.msra.mxu0 0
  %6055 = vmatprep.subr.bf16.mxu0 0
  %6056 = vmatpush1.bf16.xpose.msra.mxu0 0
  %6057 = vmatprep.subr.bf16.mxu0 0
  %6058 = vmatpush1.bf16.xpose.msra.mxu0 0
  %6059 = vmatprep.subr.bf16.mxu0 0
  %6060 = vmatpush1.bf16.xpose.msra.mxu0 0
  %6061 = vmatprep.subr.bf16.mxu0 0
  %6062 = vmatpush1.bf16.xpose.msra.mxu0 0
  %6063 = vmatprep.subr.bf16.mxu0 0
  %6064 = vmatpush1.bf16.xpose.msra.mxu0 0
  %6065 = vmatprep.subr.bf16.mxu0 0
  %6066 = vmatpush1.bf16.xpose.msra.mxu0 0
  %6067 = vmatprep.subr.bf16.mxu0 0
  %6068 = vmatpush1.bf16.xpose.msra.mxu0 0
  %6069 = vmatprep.mubr.bf16.mxu0 0
  %6070 = vmatmul.mubr.bf16.gmra.mrb[0].mxu0 %v6032
  %v6071 = vpop.f32.mrb[0].mxu0
  %v6072 = vadd.f32 0.0, %v6071
  %v6073 = vpop.f32.mrb[0].mxu0
  %v6074 = vpop.f32.mrb[0].mxu0
  %v6075 = vpop.f32.mrb[0].mxu0
  %6076 = vdwg.mxu0
  %v6077 = vmul.f32 %v5422, 0.125
  %v6078 = vmul.f32 %v5472, 0.125
  %v6079 = vmul.f32 %v5522, 0.125
  %v6080 = vmul.f32 %v5572, 0.125
  %v6081 = vmul.f32 %v5622, 0.125
  %v6082 = vmul.f32 %v5672, 0.125
  %v6083 = vmul.f32 %v5722, 0.125
  %v6084 = vmul.f32 %v5772, 0.125
  %v6085 = vmul.f32 %v5822, 0.125
  %v6086 = vmul.f32 %v5872, 0.125
  %v6087 = vmul.f32 %v5922, 0.125
  %v6088 = vmul.f32 %v5972, 0.125
  %v6089 = vmul.f32 %v6022, 0.125
  %v6090 = vmul.f32 %v6072, 0.125
  %v6091 = vsel %vm3620, %v6077, -1e+30
  %v6092 = vsel %vm3620, %v6078, -1e+30
  %v6093 = vsel %vm3620, %v6079, -1e+30
  %v6094 = vsel %vm3620, %v6080, -1e+30
  %v6095 = vsel %vm3620, %v6081, -1e+30
  %v6096 = vsel %vm3620, %v6082, -1e+30
  %v6097 = vsel %vm3620, %v6083, -1e+30
  %v6098 = vsel %vm3620, %v6084, -1e+30
  %v6099 = vsel %vm3620, %v6085, -1e+30
  %v6100 = vsel %vm3620, %v6086, -1e+30
  %v6101 = vsel %vm3620, %v6087, -1e+30
  %v6102 = vsel %vm3620, %v6088, -1e+30
  %v6103 = vsel %vm3620, %v6089, -1e+30
  %v6104 = vsel %vm3620, %v6090, -1e+30
  %v6105 = vsel %vm3635, %v6091, -inf
  %6106 = vmax.xlane.f32.xlu0 %v6105
  %v6107 = vpop.xlane.xlu0 %6106
  %v6108 = vsel %vm3635, %v6092, -inf
  %6109 = vmax.xlane.f32.xlu0 %v6108
  %v6110 = vpop.xlane.xlu0 %6109
  %v6111 = vsel %vm3635, %v6093, -inf
  %6112 = vmax.xlane.f32.xlu0 %v6111
  %v6113 = vpop.xlane.xlu0 %6112
  %v6114 = vsel %vm3635, %v6094, -inf
  %6115 = vmax.xlane.f32.xlu0 %v6114
  %v6116 = vpop.xlane.xlu0 %6115
  %v6117 = vsel %vm3635, %v6095, -inf
  %6118 = vmax.xlane.f32.xlu0 %v6117
  %v6119 = vpop.xlane.xlu0 %6118
  %v6120 = vsel %vm3635, %v6096, -inf
  %6121 = vmax.xlane.f32.xlu0 %v6120
  %v6122 = vpop.xlane.xlu0 %6121
  %v6123 = vsel %vm3635, %v6097, -inf
  %6124 = vmax.xlane.f32.xlu0 %v6123
  %v6125 = vpop.xlane.xlu0 %6124
  %v6126 = vsel %vm3635, %v6098, -inf
  %6127 = vmax.xlane.f32.xlu0 %v6126
  %v6128 = vpop.xlane.xlu0 %6127
  %v6129 = vsel %vm3635, %v6099, -inf
  %6130 = vmax.xlane.f32.xlu0 %v6129
  %v6131 = vpop.xlane.xlu0 %6130
  %v6132 = vsel %vm3635, %v6100, -inf
  %6133 = vmax.xlane.f32.xlu0 %v6132
  %v6134 = vpop.xlane.xlu0 %6133
  %v6135 = vsel %vm3635, %v6101, -inf
  %6136 = vmax.xlane.f32.xlu0 %v6135
  %v6137 = vpop.xlane.xlu0 %6136
  %v6138 = vsel %vm3635, %v6102, -inf
  %6139 = vmax.xlane.f32.xlu0 %v6138
  %v6140 = vpop.xlane.xlu0 %6139
  %v6141 = vsel %vm3635, %v6103, -inf
  %6142 = vmax.xlane.f32.xlu0 %v6141
  %v6143 = vpop.xlane.xlu0 %6142
  %v6144 = vsel %vm3635, %v6104, -inf
  %6145 = vmax.xlane.f32.xlu0 %v6144
  %v6146 = vpop.xlane.xlu0 %6145
  %v6147 = vsub.f32 %v6091, %v6107
  %v6148 = vsub.f32 %v6092, %v6110
  %v6149 = vsub.f32 %v6093, %v6113
  %v6150 = vsub.f32 %v6094, %v6116
  %v6151 = vsub.f32 %v6095, %v6119
  %v6152 = vsub.f32 %v6096, %v6122
  %v6153 = vsub.f32 %v6097, %v6125
  %v6154 = vsub.f32 %v6098, %v6128
  %v6155 = vsub.f32 %v6099, %v6131
  %v6156 = vsub.f32 %v6100, %v6134
  %v6157 = vsub.f32 %v6101, %v6137
  %v6158 = vsub.f32 %v6102, %v6140
  %v6159 = vsub.f32 %v6103, %v6143
  %v6160 = vsub.f32 %v6104, %v6146
  %v6161 = vmul.f32 %v6147, 1.442695
  %v6162 = vpow.pop %v6161
  %v6163 = vmul.f32 %v6148, 1.442695
  %v6164 = vpow.pop %v6163
  %v6165 = vmul.f32 %v6149, 1.442695
  %v6166 = vpow.pop %v6165
  %v6167 = vmul.f32 %v6150, 1.442695
  %v6168 = vpow.pop %v6167
  %v6169 = vmul.f32 %v6151, 1.442695
  %v6170 = vpow.pop %v6169
  %v6171 = vmul.f32 %v6152, 1.442695
  %v6172 = vpow.pop %v6171
  %v6173 = vmul.f32 %v6153, 1.442695
  %v6174 = vpow.pop %v6173
  %v6175 = vmul.f32 %v6154, 1.442695
  %v6176 = vpow.pop %v6175
  %v6177 = vmul.f32 %v6155, 1.442695
  %v6178 = vpow.pop %v6177
  %v6179 = vmul.f32 %v6156, 1.442695
  %v6180 = vpow.pop %v6179
  %v6181 = vmul.f32 %v6157, 1.442695
  %v6182 = vpow.pop %v6181
  %v6183 = vmul.f32 %v6158, 1.442695
  %v6184 = vpow.pop %v6183
  %v6185 = vmul.f32 %v6159, 1.442695
  %v6186 = vpow.pop %v6185
  %v6187 = vmul.f32 %v6160, 1.442695
  %v6188 = vpow.pop %v6187
  %v6189 = vsel %vm3635, %v6162, 0.0
  %6190 = vadd.xlane.f32.xlu0 %v6189
  %v6191 = vpop.xlane.xlu0 %6190
  %v6192 = vsel %vm3635, %v6164, 0.0
  %6193 = vadd.xlane.f32.xlu0 %v6192
  %v6194 = vpop.xlane.xlu0 %6193
  %v6195 = vsel %vm3635, %v6166, 0.0
  %6196 = vadd.xlane.f32.xlu0 %v6195
  %v6197 = vpop.xlane.xlu0 %6196
  %v6198 = vsel %vm3635, %v6168, 0.0
  %6199 = vadd.xlane.f32.xlu0 %v6198
  %v6200 = vpop.xlane.xlu0 %6199
  %v6201 = vsel %vm3635, %v6170, 0.0
  %6202 = vadd.xlane.f32.xlu0 %v6201
  %v6203 = vpop.xlane.xlu0 %6202
  %v6204 = vsel %vm3635, %v6172, 0.0
  %6205 = vadd.xlane.f32.xlu0 %v6204
  %v6206 = vpop.xlane.xlu0 %6205
  %v6207 = vsel %vm3635, %v6174, 0.0
  %6208 = vadd.xlane.f32.xlu0 %v6207
  %v6209 = vpop.xlane.xlu0 %6208
  %v6210 = vsel %vm3635, %v6176, 0.0
  %6211 = vadd.xlane.f32.xlu0 %v6210
  %v6212 = vpop.xlane.xlu0 %6211
  %v6213 = vsel %vm3635, %v6178, 0.0
  %6214 = vadd.xlane.f32.xlu0 %v6213
  %v6215 = vpop.xlane.xlu0 %6214
  %v6216 = vsel %vm3635, %v6180, 0.0
  %6217 = vadd.xlane.f32.xlu0 %v6216
  %v6218 = vpop.xlane.xlu0 %6217
  %v6219 = vsel %vm3635, %v6182, 0.0
  %6220 = vadd.xlane.f32.xlu0 %v6219
  %v6221 = vpop.xlane.xlu0 %6220
  %v6222 = vsel %vm3635, %v6184, 0.0
  %6223 = vadd.xlane.f32.xlu0 %v6222
  %v6224 = vpop.xlane.xlu0 %6223
  %v6225 = vsel %vm3635, %v6186, 0.0
  %6226 = vadd.xlane.f32.xlu0 %v6225
  %v6227 = vpop.xlane.xlu0 %6226
  %v6228 = vsel %vm3635, %v6188, 0.0
  %6229 = vadd.xlane.f32.xlu0 %v6228
  %v6230 = vpop.xlane.xlu0 %6229
  %v6231 = vrcp.pop %v6191
  %v6232 = vrcp.pop %v6194
  %v6233 = vrcp.pop %v6197
  %v6234 = vrcp.pop %v6200
  %v6235 = vrcp.pop %v6203
  %v6236 = vrcp.pop %v6206
  %v6237 = vrcp.pop %v6209
  %v6238 = vrcp.pop %v6212
  %v6239 = vrcp.pop %v6215
  %v6240 = vrcp.pop %v6218
  %v6241 = vrcp.pop %v6221
  %v6242 = vrcp.pop %v6224
  %v6243 = vrcp.pop %v6227
  %v6244 = vrcp.pop %v6230
  %v6245 = vmul.f32 %v6162, %v6231
  %v6246 = vmul.f32 %v6164, %v6232
  %v6247 = vmul.f32 %v6166, %v6233
  %v6248 = vmul.f32 %v6168, %v6234
  %v6249 = vmul.f32 %v6170, %v6235
  %v6250 = vmul.f32 %v6172, %v6236
  %v6251 = vmul.f32 %v6174, %v6237
  %v6252 = vmul.f32 %v6176, %v6238
  %v6253 = vmul.f32 %v6178, %v6239
  %v6254 = vmul.f32 %v6180, %v6240
  %v6255 = vmul.f32 %v6182, %v6241
  %v6256 = vmul.f32 %v6184, %v6242
  %v6257 = vmul.f32 %v6186, %v6243
  %v6258 = vmul.f32 %v6188, %v6244
  %v6259 = vpack.c.bf16 %v6245, %v6245
  %v6260 = vpack.c.bf16 %v6246, %v6246
  %v6261 = vpack.c.bf16 %v6247, %v6247
  %v6262 = vpack.c.bf16 %v6248, %v6248
  %v6263 = vpack.c.bf16 %v6249, %v6249
  %v6264 = vpack.c.bf16 %v6250, %v6250
  %v6265 = vpack.c.bf16 %v6251, %v6251
  %v6266 = vpack.c.bf16 %v6252, %v6252
  %v6267 = vpack.c.bf16 %v6253, %v6253
  %v6268 = vpack.c.bf16 %v6254, %v6254
  %v6269 = vpack.c.bf16 %v6255, %v6255
  %v6270 = vpack.c.bf16 %v6256, %v6256
  %v6271 = vpack.c.bf16 %v6257, %v6257
  %v6272 = vpack.c.bf16 %v6258, %v6258
  %6273 = vrot.lane.b32.xlu0 %v3829, 64
  %v6274 = vpop.permute.xlu0 %6273
  %v6276 = vsel %vm3830, %v6259, 0
  %v6279 = vand.u32 %v6274, %v3837
  %6281 = vmatprep.subr.bf16.mxu0 0
  %6282 = vmatpush1.bf16.msra.mxu0 %v6279
  %6283 = vmatprep.subr.bf16.mxu0 0
  %6284 = vmatpush1.bf16.msra.mxu0 0
  %6285 = vmatprep.subr.bf16.mxu0 0
  %6286 = vmatpush1.bf16.msra.mxu0 0
  %6287 = vmatprep.subr.bf16.mxu0 0
  %6288 = vmatpush1.bf16.msra.mxu0 0
  %6289 = vmatprep.subr.bf16.mxu0 0
  %6290 = vmatpush1.bf16.msra.mxu0 0
  %6291 = vmatprep.subr.bf16.mxu0 0
  %6292 = vmatpush1.bf16.msra.mxu0 0
  %6293 = vmatprep.subr.bf16.mxu0 0
  %6294 = vmatpush1.bf16.msra.mxu0 0
  %6295 = vmatprep.subr.bf16.mxu0 0
  %6296 = vmatpush1.bf16.msra.mxu0 0
  %6297 = vmatprep.subr.bf16.mxu0 0
  %6298 = vmatpush1.bf16.msra.mxu0 0
  %6299 = vmatprep.subr.bf16.mxu0 0
  %6300 = vmatpush1.bf16.msra.mxu0 0
  %6301 = vmatprep.subr.bf16.mxu0 0
  %6302 = vmatpush1.bf16.msra.mxu0 0
  %6303 = vmatprep.subr.bf16.mxu0 0
  %6304 = vmatpush1.bf16.msra.mxu0 0
  %6305 = vmatprep.subr.bf16.mxu0 0
  %6306 = vmatpush1.bf16.msra.mxu0 0
  %6307 = vmatprep.subr.bf16.mxu0 0
  %6308 = vmatpush1.bf16.msra.mxu0 0
  %6309 = vmatprep.subr.bf16.mxu0 0
  %6310 = vmatpush1.bf16.msra.mxu0 0
  %6311 = vmatprep.subr.bf16.mxu0 0
  %6312 = vmatpush1.bf16.msra.mxu0 0
  %6313 = vmatprep.mubr.bf16.mxu0 0
  %6314 = vmatmul.mubr.bf16.gmra.mrb[0].mxu0 %v6276
  %v6315 = vpop.f32.mrb[0].mxu0
  %v6316 = vadd.f32 0.0, %v6315
  %v6317 = vpop.f32.mrb[0].mxu0
  %v6318 = vpop.f32.mrb[0].mxu0
  %v6319 = vpop.f32.mrb[0].mxu0
  %6320 = vdwg.mxu0
  %6321 = vrot.lane.b32.xlu0 %v3906, 64
  %v6322 = vpop.permute.xlu0 %6321
  %v6324 = vsel %vm3830, %v6260, 0
  %v6327 = vand.u32 %v6322, %v3837
  %6329 = vmatprep.subr.bf16.mxu0 0
  %6330 = vmatpush1.bf16.msra.mxu0 %v6327
  %6331 = vmatprep.subr.bf16.mxu0 0
  %6332 = vmatpush1.bf16.msra.mxu0 0
  %6333 = vmatprep.subr.bf16.mxu0 0
  %6334 = vmatpush1.bf16.msra.mxu0 0
  %6335 = vmatprep.subr.bf16.mxu0 0
  %6336 = vmatpush1.bf16.msra.mxu0 0
  %6337 = vmatprep.subr.bf16.mxu0 0
  %6338 = vmatpush1.bf16.msra.mxu0 0
  %6339 = vmatprep.subr.bf16.mxu0 0
  %6340 = vmatpush1.bf16.msra.mxu0 0
  %6341 = vmatprep.subr.bf16.mxu0 0
  %6342 = vmatpush1.bf16.msra.mxu0 0
  %6343 = vmatprep.subr.bf16.mxu0 0
  %6344 = vmatpush1.bf16.msra.mxu0 0
  %6345 = vmatprep.subr.bf16.mxu0 0
  %6346 = vmatpush1.bf16.msra.mxu0 0
  %6347 = vmatprep.subr.bf16.mxu0 0
  %6348 = vmatpush1.bf16.msra.mxu0 0
  %6349 = vmatprep.subr.bf16.mxu0 0
  %6350 = vmatpush1.bf16.msra.mxu0 0
  %6351 = vmatprep.subr.bf16.mxu0 0
  %6352 = vmatpush1.bf16.msra.mxu0 0
  %6353 = vmatprep.subr.bf16.mxu0 0
  %6354 = vmatpush1.bf16.msra.mxu0 0
  %6355 = vmatprep.subr.bf16.mxu0 0
  %6356 = vmatpush1.bf16.msra.mxu0 0
  %6357 = vmatprep.subr.bf16.mxu0 0
  %6358 = vmatpush1.bf16.msra.mxu0 0
  %6359 = vmatprep.subr.bf16.mxu0 0
  %6360 = vmatpush1.bf16.msra.mxu0 0
  %6361 = vmatprep.mubr.bf16.mxu0 0
  %6362 = vmatmul.mubr.bf16.gmra.mrb[0].mxu0 %v6324
  %v6363 = vpop.f32.mrb[0].mxu0
  %v6364 = vadd.f32 0.0, %v6363
  %v6365 = vpop.f32.mrb[0].mxu0
  %v6366 = vpop.f32.mrb[0].mxu0
  %v6367 = vpop.f32.mrb[0].mxu0
  %6368 = vdwg.mxu0
  %6369 = vrot.lane.b32.xlu0 %v3978, 64
  %v6370 = vpop.permute.xlu0 %6369
  %v6372 = vsel %vm3830, %v6261, 0
  %v6375 = vand.u32 %v6370, %v3837
  %6377 = vmatprep.subr.bf16.mxu0 0
  %6378 = vmatpush1.bf16.msra.mxu0 %v6375
  %6379 = vmatprep.subr.bf16.mxu0 0
  %6380 = vmatpush1.bf16.msra.mxu0 0
  %6381 = vmatprep.subr.bf16.mxu0 0
  %6382 = vmatpush1.bf16.msra.mxu0 0
  %6383 = vmatprep.subr.bf16.mxu0 0
  %6384 = vmatpush1.bf16.msra.mxu0 0
  %6385 = vmatprep.subr.bf16.mxu0 0
  %6386 = vmatpush1.bf16.msra.mxu0 0
  %6387 = vmatprep.subr.bf16.mxu0 0
  %6388 = vmatpush1.bf16.msra.mxu0 0
  %6389 = vmatprep.subr.bf16.mxu0 0
  %6390 = vmatpush1.bf16.msra.mxu0 0
  %6391 = vmatprep.subr.bf16.mxu0 0
  %6392 = vmatpush1.bf16.msra.mxu0 0
  %6393 = vmatprep.subr.bf16.mxu0 0
  %6394 = vmatpush1.bf16.msra.mxu0 0
  %6395 = vmatprep.subr.bf16.mxu0 0
  %6396 = vmatpush1.bf16.msra.mxu0 0
  %6397 = vmatprep.subr.bf16.mxu0 0
  %6398 = vmatpush1.bf16.msra.mxu0 0
  %6399 = vmatprep.subr.bf16.mxu0 0
  %6400 = vmatpush1.bf16.msra.mxu0 0
  %6401 = vmatprep.subr.bf16.mxu0 0
  %6402 = vmatpush1.bf16.msra.mxu0 0
  %6403 = vmatprep.subr.bf16.mxu0 0
  %6404 = vmatpush1.bf16.msra.mxu0 0
  %6405 = vmatprep.subr.bf16.mxu0 0
  %6406 = vmatpush1.bf16.msra.mxu0 0
  %6407 = vmatprep.subr.bf16.mxu0 0
  %6408 = vmatpush1.bf16.msra.mxu0 0
  %6409 = vmatprep.mubr.bf16.mxu0 0
  %6410 = vmatmul.mubr.bf16.gmra.mrb[0].mxu0 %v6372
  %v6411 = vpop.f32.mrb[0].mxu0
  %v6412 = vadd.f32 0.0, %v6411
  %v6413 = vpop.f32.mrb[0].mxu0
  %v6414 = vpop.f32.mrb[0].mxu0
  %v6415 = vpop.f32.mrb[0].mxu0
  %6416 = vdwg.mxu0
  %6417 = vrot.lane.b32.xlu0 %v4050, 64
  %v6418 = vpop.permute.xlu0 %6417
  %v6420 = vsel %vm3830, %v6262, 0
  %v6423 = vand.u32 %v6418, %v3837
  %6425 = vmatprep.subr.bf16.mxu0 0
  %6426 = vmatpush1.bf16.msra.mxu0 %v6423
  %6427 = vmatprep.subr.bf16.mxu0 0
  %6428 = vmatpush1.bf16.msra.mxu0 0
  %6429 = vmatprep.subr.bf16.mxu0 0
  %6430 = vmatpush1.bf16.msra.mxu0 0
  %6431 = vmatprep.subr.bf16.mxu0 0
  %6432 = vmatpush1.bf16.msra.mxu0 0
  %6433 = vmatprep.subr.bf16.mxu0 0
  %6434 = vmatpush1.bf16.msra.mxu0 0
  %6435 = vmatprep.subr.bf16.mxu0 0
  %6436 = vmatpush1.bf16.msra.mxu0 0
  %6437 = vmatprep.subr.bf16.mxu0 0
  %6438 = vmatpush1.bf16.msra.mxu0 0
  %6439 = vmatprep.subr.bf16.mxu0 0
  %6440 = vmatpush1.bf16.msra.mxu0 0
  %6441 = vmatprep.subr.bf16.mxu0 0
  %6442 = vmatpush1.bf16.msra.mxu0 0
  %6443 = vmatprep.subr.bf16.mxu0 0
  %6444 = vmatpush1.bf16.msra.mxu0 0
  %6445 = vmatprep.subr.bf16.mxu0 0
  %6446 = vmatpush1.bf16.msra.mxu0 0
  %6447 = vmatprep.subr.bf16.mxu0 0
  %6448 = vmatpush1.bf16.msra.mxu0 0
  %6449 = vmatprep.subr.bf16.mxu0 0
  %6450 = vmatpush1.bf16.msra.mxu0 0
  %6451 = vmatprep.subr.bf16.mxu0 0
  %6452 = vmatpush1.bf16.msra.mxu0 0
  %6453 = vmatprep.subr.bf16.mxu0 0
  %6454 = vmatpush1.bf16.msra.mxu0 0
  %6455 = vmatprep.subr.bf16.mxu0 0
  %6456 = vmatpush1.bf16.msra.mxu0 0
  %6457 = vmatprep.mubr.bf16.mxu0 0
  %6458 = vmatmul.mubr.bf16.gmra.mrb[0].mxu0 %v6420
  %v6459 = vpop.f32.mrb[0].mxu0
  %v6460 = vadd.f32 0.0, %v6459
  %v6461 = vpop.f32.mrb[0].mxu0
  %v6462 = vpop.f32.mrb[0].mxu0
  %v6463 = vpop.f32.mrb[0].mxu0
  %6464 = vdwg.mxu0
  %6465 = vrot.lane.b32.xlu0 %v4122, 64
  %v6466 = vpop.permute.xlu0 %6465
  %v6468 = vsel %vm3830, %v6263, 0
  %v6471 = vand.u32 %v6466, %v3837
  %6473 = vmatprep.subr.bf16.mxu0 0
  %6474 = vmatpush1.bf16.msra.mxu0 %v6471
  %6475 = vmatprep.subr.bf16.mxu0 0
  %6476 = vmatpush1.bf16.msra.mxu0 0
  %6477 = vmatprep.subr.bf16.mxu0 0
  %6478 = vmatpush1.bf16.msra.mxu0 0
  %6479 = vmatprep.subr.bf16.mxu0 0
  %6480 = vmatpush1.bf16.msra.mxu0 0
  %6481 = vmatprep.subr.bf16.mxu0 0
  %6482 = vmatpush1.bf16.msra.mxu0 0
  %6483 = vmatprep.subr.bf16.mxu0 0
  %6484 = vmatpush1.bf16.msra.mxu0 0
  %6485 = vmatprep.subr.bf16.mxu0 0
  %6486 = vmatpush1.bf16.msra.mxu0 0
  %6487 = vmatprep.subr.bf16.mxu0 0
  %6488 = vmatpush1.bf16.msra.mxu0 0
  %6489 = vmatprep.subr.bf16.mxu0 0
  %6490 = vmatpush1.bf16.msra.mxu0 0
  %6491 = vmatprep.subr.bf16.mxu0 0
  %6492 = vmatpush1.bf16.msra.mxu0 0
  %6493 = vmatprep.subr.bf16.mxu0 0
  %6494 = vmatpush1.bf16.msra.mxu0 0
  %6495 = vmatprep.subr.bf16.mxu0 0
  %6496 = vmatpush1.bf16.msra.mxu0 0
  %6497 = vmatprep.subr.bf16.mxu0 0
  %6498 = vmatpush1.bf16.msra.mxu0 0
  %6499 = vmatprep.subr.bf16.mxu0 0
  %6500 = vmatpush1.bf16.msra.mxu0 0
  %6501 = vmatprep.subr.bf16.mxu0 0
  %6502 = vmatpush1.bf16.msra.mxu0 0
  %6503 = vmatprep.subr.bf16.mxu0 0
  %6504 = vmatpush1.bf16.msra.mxu0 0
  %6505 = vmatprep.mubr.bf16.mxu0 0
  %6506 = vmatmul.mubr.bf16.gmra.mrb[0].mxu0 %v6468
  %v6507 = vpop.f32.mrb[0].mxu0
  %v6508 = vadd.f32 0.0, %v6507
  %v6509 = vpop.f32.mrb[0].mxu0
  %v6510 = vpop.f32.mrb[0].mxu0
  %v6511 = vpop.f32.mrb[0].mxu0
  %6512 = vdwg.mxu0
  %6513 = vrot.lane.b32.xlu0 %v4194, 64
  %v6514 = vpop.permute.xlu0 %6513
  %v6516 = vsel %vm3830, %v6264, 0
  %v6519 = vand.u32 %v6514, %v3837
  %6521 = vmatprep.subr.bf16.mxu0 0
  %6522 = vmatpush1.bf16.msra.mxu0 %v6519
  %6523 = vmatprep.subr.bf16.mxu0 0
  %6524 = vmatpush1.bf16.msra.mxu0 0
  %6525 = vmatprep.subr.bf16.mxu0 0
  %6526 = vmatpush1.bf16.msra.mxu0 0
  %6527 = vmatprep.subr.bf16.mxu0 0
  %6528 = vmatpush1.bf16.msra.mxu0 0
  %6529 = vmatprep.subr.bf16.mxu0 0
  %6530 = vmatpush1.bf16.msra.mxu0 0
  %6531 = vmatprep.subr.bf16.mxu0 0
  %6532 = vmatpush1.bf16.msra.mxu0 0
  %6533 = vmatprep.subr.bf16.mxu0 0
  %6534 = vmatpush1.bf16.msra.mxu0 0
  %6535 = vmatprep.subr.bf16.mxu0 0
  %6536 = vmatpush1.bf16.msra.mxu0 0
  %6537 = vmatprep.subr.bf16.mxu0 0
  %6538 = vmatpush1.bf16.msra.mxu0 0
  %6539 = vmatprep.subr.bf16.mxu0 0
  %6540 = vmatpush1.bf16.msra.mxu0 0
  %6541 = vmatprep.subr.bf16.mxu0 0
  %6542 = vmatpush1.bf16.msra.mxu0 0
  %6543 = vmatprep.subr.bf16.mxu0 0
  %6544 = vmatpush1.bf16.msra.mxu0 0
  %6545 = vmatprep.subr.bf16.mxu0 0
  %6546 = vmatpush1.bf16.msra.mxu0 0
  %6547 = vmatprep.subr.bf16.mxu0 0
  %6548 = vmatpush1.bf16.msra.mxu0 0
  %6549 = vmatprep.subr.bf16.mxu0 0
  %6550 = vmatpush1.bf16.msra.mxu0 0
  %6551 = vmatprep.subr.bf16.mxu0 0
  %6552 = vmatpush1.bf16.msra.mxu0 0
  %6553 = vmatprep.mubr.bf16.mxu0 0
  %6554 = vmatmul.mubr.bf16.gmra.mrb[0].mxu0 %v6516
  %v6555 = vpop.f32.mrb[0].mxu0
  %v6556 = vadd.f32 0.0, %v6555
  %v6557 = vpop.f32.mrb[0].mxu0
  %v6558 = vpop.f32.mrb[0].mxu0
  %v6559 = vpop.f32.mrb[0].mxu0
  %6560 = vdwg.mxu0
  %6561 = vrot.lane.b32.xlu0 %v4266, 64
  %v6562 = vpop.permute.xlu0 %6561
  %v6564 = vsel %vm3830, %v6265, 0
  %v6567 = vand.u32 %v6562, %v3837
  %6569 = vmatprep.subr.bf16.mxu0 0
  %6570 = vmatpush1.bf16.msra.mxu0 %v6567
  %6571 = vmatprep.subr.bf16.mxu0 0
  %6572 = vmatpush1.bf16.msra.mxu0 0
  %6573 = vmatprep.subr.bf16.mxu0 0
  %6574 = vmatpush1.bf16.msra.mxu0 0
  %6575 = vmatprep.subr.bf16.mxu0 0
  %6576 = vmatpush1.bf16.msra.mxu0 0
  %6577 = vmatprep.subr.bf16.mxu0 0
  %6578 = vmatpush1.bf16.msra.mxu0 0
  %6579 = vmatprep.subr.bf16.mxu0 0
  %6580 = vmatpush1.bf16.msra.mxu0 0
  %6581 = vmatprep.subr.bf16.mxu0 0
  %6582 = vmatpush1.bf16.msra.mxu0 0
  %6583 = vmatprep.subr.bf16.mxu0 0
  %6584 = vmatpush1.bf16.msra.mxu0 0
  %6585 = vmatprep.subr.bf16.mxu0 0
  %6586 = vmatpush1.bf16.msra.mxu0 0
  %6587 = vmatprep.subr.bf16.mxu0 0
  %6588 = vmatpush1.bf16.msra.mxu0 0
  %6589 = vmatprep.subr.bf16.mxu0 0
  %6590 = vmatpush1.bf16.msra.mxu0 0
  %6591 = vmatprep.subr.bf16.mxu0 0
  %6592 = vmatpush1.bf16.msra.mxu0 0
  %6593 = vmatprep.subr.bf16.mxu0 0
  %6594 = vmatpush1.bf16.msra.mxu0 0
  %6595 = vmatprep.subr.bf16.mxu0 0
  %6596 = vmatpush1.bf16.msra.mxu0 0
  %6597 = vmatprep.subr.bf16.mxu0 0
  %6598 = vmatpush1.bf16.msra.mxu0 0
  %6599 = vmatprep.subr.bf16.mxu0 0
  %6600 = vmatpush1.bf16.msra.mxu0 0
  %6601 = vmatprep.mubr.bf16.mxu0 0
  %6602 = vmatmul.mubr.bf16.gmra.mrb[0].mxu0 %v6564
  %v6603 = vpop.f32.mrb[0].mxu0
  %v6604 = vadd.f32 0.0, %v6603
  %v6605 = vpop.f32.mrb[0].mxu0
  %v6606 = vpop.f32.mrb[0].mxu0
  %v6607 = vpop.f32.mrb[0].mxu0
  %6608 = vdwg.mxu0
  %6609 = vrot.lane.b32.xlu0 %v4338, 64
  %v6610 = vpop.permute.xlu0 %6609
  %v6612 = vsel %vm3830, %v6266, 0
  %v6615 = vand.u32 %v6610, %v3837
  %6617 = vmatprep.subr.bf16.mxu0 0
  %6618 = vmatpush1.bf16.msra.mxu0 %v6615
  %6619 = vmatprep.subr.bf16.mxu0 0
  %6620 = vmatpush1.bf16.msra.mxu0 0
  %6621 = vmatprep.subr.bf16.mxu0 0
  %6622 = vmatpush1.bf16.msra.mxu0 0
  %6623 = vmatprep.subr.bf16.mxu0 0
  %6624 = vmatpush1.bf16.msra.mxu0 0
  %6625 = vmatprep.subr.bf16.mxu0 0
  %6626 = vmatpush1.bf16.msra.mxu0 0
  %6627 = vmatprep.subr.bf16.mxu0 0
  %6628 = vmatpush1.bf16.msra.mxu0 0
  %6629 = vmatprep.subr.bf16.mxu0 0
  %6630 = vmatpush1.bf16.msra.mxu0 0
  %6631 = vmatprep.subr.bf16.mxu0 0
  %6632 = vmatpush1.bf16.msra.mxu0 0
  %6633 = vmatprep.subr.bf16.mxu0 0
  %6634 = vmatpush1.bf16.msra.mxu0 0
  %6635 = vmatprep.subr.bf16.mxu0 0
  %6636 = vmatpush1.bf16.msra.mxu0 0
  %6637 = vmatprep.subr.bf16.mxu0 0
  %6638 = vmatpush1.bf16.msra.mxu0 0
  %6639 = vmatprep.subr.bf16.mxu0 0
  %6640 = vmatpush1.bf16.msra.mxu0 0
  %6641 = vmatprep.subr.bf16.mxu0 0
  %6642 = vmatpush1.bf16.msra.mxu0 0
  %6643 = vmatprep.subr.bf16.mxu0 0
  %6644 = vmatpush1.bf16.msra.mxu0 0
  %6645 = vmatprep.subr.bf16.mxu0 0
  %6646 = vmatpush1.bf16.msra.mxu0 0
  %6647 = vmatprep.subr.bf16.mxu0 0
  %6648 = vmatpush1.bf16.msra.mxu0 0
  %6649 = vmatprep.mubr.bf16.mxu0 0
  %6650 = vmatmul.mubr.bf16.gmra.mrb[0].mxu0 %v6612
  %v6651 = vpop.f32.mrb[0].mxu0
  %v6652 = vadd.f32 0.0, %v6651
  %v6653 = vpop.f32.mrb[0].mxu0
  %v6654 = vpop.f32.mrb[0].mxu0
  %v6655 = vpop.f32.mrb[0].mxu0
  %6656 = vdwg.mxu0
  %6657 = vrot.lane.b32.xlu0 %v4410, 64
  %v6658 = vpop.permute.xlu0 %6657
  %v6660 = vsel %vm3830, %v6267, 0
  %v6663 = vand.u32 %v6658, %v3837
  %6665 = vmatprep.subr.bf16.mxu0 0
  %6666 = vmatpush1.bf16.msra.mxu0 %v6663
  %6667 = vmatprep.subr.bf16.mxu0 0
  %6668 = vmatpush1.bf16.msra.mxu0 0
  %6669 = vmatprep.subr.bf16.mxu0 0
  %6670 = vmatpush1.bf16.msra.mxu0 0
  %6671 = vmatprep.subr.bf16.mxu0 0
  %6672 = vmatpush1.bf16.msra.mxu0 0
  %6673 = vmatprep.subr.bf16.mxu0 0
  %6674 = vmatpush1.bf16.msra.mxu0 0
  %6675 = vmatprep.subr.bf16.mxu0 0
  %6676 = vmatpush1.bf16.msra.mxu0 0
  %6677 = vmatprep.subr.bf16.mxu0 0
  %6678 = vmatpush1.bf16.msra.mxu0 0
  %6679 = vmatprep.subr.bf16.mxu0 0
  %6680 = vmatpush1.bf16.msra.mxu0 0
  %6681 = vmatprep.subr.bf16.mxu0 0
  %6682 = vmatpush1.bf16.msra.mxu0 0
  %6683 = vmatprep.subr.bf16.mxu0 0
  %6684 = vmatpush1.bf16.msra.mxu0 0
  %6685 = vmatprep.subr.bf16.mxu0 0
  %6686 = vmatpush1.bf16.msra.mxu0 0
  %6687 = vmatprep.subr.bf16.mxu0 0
  %6688 = vmatpush1.bf16.msra.mxu0 0
  %6689 = vmatprep.subr.bf16.mxu0 0
  %6690 = vmatpush1.bf16.msra.mxu0 0
  %6691 = vmatprep.subr.bf16.mxu0 0
  %6692 = vmatpush1.bf16.msra.mxu0 0
  %6693 = vmatprep.subr.bf16.mxu0 0
  %6694 = vmatpush1.bf16.msra.mxu0 0
  %6695 = vmatprep.subr.bf16.mxu0 0
  %6696 = vmatpush1.bf16.msra.mxu0 0
  %6697 = vmatprep.mubr.bf16.mxu0 0
  %6698 = vmatmul.mubr.bf16.gmra.mrb[0].mxu0 %v6660
  %v6699 = vpop.f32.mrb[0].mxu0
  %v6700 = vadd.f32 0.0, %v6699
  %v6701 = vpop.f32.mrb[0].mxu0
  %v6702 = vpop.f32.mrb[0].mxu0
  %v6703 = vpop.f32.mrb[0].mxu0
  %6704 = vdwg.mxu0
  %6705 = vrot.lane.b32.xlu0 %v4482, 64
  %v6706 = vpop.permute.xlu0 %6705
  %v6708 = vsel %vm3830, %v6268, 0
  %v6711 = vand.u32 %v6706, %v3837
  %6713 = vmatprep.subr.bf16.mxu0 0
  %6714 = vmatpush1.bf16.msra.mxu0 %v6711
  %6715 = vmatprep.subr.bf16.mxu0 0
  %6716 = vmatpush1.bf16.msra.mxu0 0
  %6717 = vmatprep.subr.bf16.mxu0 0
  %6718 = vmatpush1.bf16.msra.mxu0 0
  %6719 = vmatprep.subr.bf16.mxu0 0
  %6720 = vmatpush1.bf16.msra.mxu0 0
  %6721 = vmatprep.subr.bf16.mxu0 0
  %6722 = vmatpush1.bf16.msra.mxu0 0
  %6723 = vmatprep.subr.bf16.mxu0 0
  %6724 = vmatpush1.bf16.msra.mxu0 0
  %6725 = vmatprep.subr.bf16.mxu0 0
  %6726 = vmatpush1.bf16.msra.mxu0 0
  %6727 = vmatprep.subr.bf16.mxu0 0
  %6728 = vmatpush1.bf16.msra.mxu0 0
  %6729 = vmatprep.subr.bf16.mxu0 0
  %6730 = vmatpush1.bf16.msra.mxu0 0
  %6731 = vmatprep.subr.bf16.mxu0 0
  %6732 = vmatpush1.bf16.msra.mxu0 0
  %6733 = vmatprep.subr.bf16.mxu0 0
  %6734 = vmatpush1.bf16.msra.mxu0 0
  %6735 = vmatprep.subr.bf16.mxu0 0
  %6736 = vmatpush1.bf16.msra.mxu0 0
  %6737 = vmatprep.subr.bf16.mxu0 0
  %6738 = vmatpush1.bf16.msra.mxu0 0
  %6739 = vmatprep.subr.bf16.mxu0 0
  %6740 = vmatpush1.bf16.msra.mxu0 0
  %6741 = vmatprep.subr.bf16.mxu0 0
  %6742 = vmatpush1.bf16.msra.mxu0 0
  %6743 = vmatprep.subr.bf16.mxu0 0
  %6744 = vmatpush1.bf16.msra.mxu0 0
  %6745 = vmatprep.mubr.bf16.mxu0 0
  %6746 = vmatmul.mubr.bf16.gmra.mrb[0].mxu0 %v6708
  %v6747 = vpop.f32.mrb[0].mxu0
  %v6748 = vadd.f32 0.0, %v6747
  %v6749 = vpop.f32.mrb[0].mxu0
  %v6750 = vpop.f32.mrb[0].mxu0
  %v6751 = vpop.f32.mrb[0].mxu0
  %6752 = vdwg.mxu0
  %6753 = vrot.lane.b32.xlu0 %v4554, 64
  %v6754 = vpop.permute.xlu0 %6753
  %v6756 = vsel %vm3830, %v6269, 0
  %v6759 = vand.u32 %v6754, %v3837
  %6761 = vmatprep.subr.bf16.mxu0 0
  %6762 = vmatpush1.bf16.msra.mxu0 %v6759
  %6763 = vmatprep.subr.bf16.mxu0 0
  %6764 = vmatpush1.bf16.msra.mxu0 0
  %6765 = vmatprep.subr.bf16.mxu0 0
  %6766 = vmatpush1.bf16.msra.mxu0 0
  %6767 = vmatprep.subr.bf16.mxu0 0
  %6768 = vmatpush1.bf16.msra.mxu0 0
  %6769 = vmatprep.subr.bf16.mxu0 0
  %6770 = vmatpush1.bf16.msra.mxu0 0
  %6771 = vmatprep.subr.bf16.mxu0 0
  %6772 = vmatpush1.bf16.msra.mxu0 0
  %6773 = vmatprep.subr.bf16.mxu0 0
  %6774 = vmatpush1.bf16.msra.mxu0 0
  %6775 = vmatprep.subr.bf16.mxu0 0
  %6776 = vmatpush1.bf16.msra.mxu0 0
  %6777 = vmatprep.subr.bf16.mxu0 0
  %6778 = vmatpush1.bf16.msra.mxu0 0
  %6779 = vmatprep.subr.bf16.mxu0 0
  %6780 = vmatpush1.bf16.msra.mxu0 0
  %6781 = vmatprep.subr.bf16.mxu0 0
  %6782 = vmatpush1.bf16.msra.mxu0 0
  %6783 = vmatprep.subr.bf16.mxu0 0
  %6784 = vmatpush1.bf16.msra.mxu0 0
  %6785 = vmatprep.subr.bf16.mxu0 0
  %6786 = vmatpush1.bf16.msra.mxu0 0
  %6787 = vmatprep.subr.bf16.mxu0 0
  %6788 = vmatpush1.bf16.msra.mxu0 0
  %6789 = vmatprep.subr.bf16.mxu0 0
  %6790 = vmatpush1.bf16.msra.mxu0 0
  %6791 = vmatprep.subr.bf16.mxu0 0
  %6792 = vmatpush1.bf16.msra.mxu0 0
  %6793 = vmatprep.mubr.bf16.mxu0 0
  %6794 = vmatmul.mubr.bf16.gmra.mrb[0].mxu0 %v6756
  %v6795 = vpop.f32.mrb[0].mxu0
  %v6796 = vadd.f32 0.0, %v6795
  %v6797 = vpop.f32.mrb[0].mxu0
  %v6798 = vpop.f32.mrb[0].mxu0
  %v6799 = vpop.f32.mrb[0].mxu0
  %6800 = vdwg.mxu0
  %6801 = vrot.lane.b32.xlu0 %v4626, 64
  %v6802 = vpop.permute.xlu0 %6801
  %v6804 = vsel %vm3830, %v6270, 0
  %v6807 = vand.u32 %v6802, %v3837
  %6809 = vmatprep.subr.bf16.mxu0 0
  %6810 = vmatpush1.bf16.msra.mxu0 %v6807
  %6811 = vmatprep.subr.bf16.mxu0 0
  %6812 = vmatpush1.bf16.msra.mxu0 0
  %6813 = vmatprep.subr.bf16.mxu0 0
  %6814 = vmatpush1.bf16.msra.mxu0 0
  %6815 = vmatprep.subr.bf16.mxu0 0
  %6816 = vmatpush1.bf16.msra.mxu0 0
  %6817 = vmatprep.subr.bf16.mxu0 0
  %6818 = vmatpush1.bf16.msra.mxu0 0
  %6819 = vmatprep.subr.bf16.mxu0 0
  %6820 = vmatpush1.bf16.msra.mxu0 0
  %6821 = vmatprep.subr.bf16.mxu0 0
  %6822 = vmatpush1.bf16.msra.mxu0 0
  %6823 = vmatprep.subr.bf16.mxu0 0
  %6824 = vmatpush1.bf16.msra.mxu0 0
  %6825 = vmatprep.subr.bf16.mxu0 0
  %6826 = vmatpush1.bf16.msra.mxu0 0
  %6827 = vmatprep.subr.bf16.mxu0 0
  %6828 = vmatpush1.bf16.msra.mxu0 0
  %6829 = vmatprep.subr.bf16.mxu0 0
  %6830 = vmatpush1.bf16.msra.mxu0 0
  %6831 = vmatprep.subr.bf16.mxu0 0
  %6832 = vmatpush1.bf16.msra.mxu0 0
  %6833 = vmatprep.subr.bf16.mxu0 0
  %6834 = vmatpush1.bf16.msra.mxu0 0
  %6835 = vmatprep.subr.bf16.mxu0 0
  %6836 = vmatpush1.bf16.msra.mxu0 0
  %6837 = vmatprep.subr.bf16.mxu0 0
  %6838 = vmatpush1.bf16.msra.mxu0 0
  %6839 = vmatprep.subr.bf16.mxu0 0
  %6840 = vmatpush1.bf16.msra.mxu0 0
  %6841 = vmatprep.mubr.bf16.mxu0 0
  %6842 = vmatmul.mubr.bf16.gmra.mrb[0].mxu0 %v6804
  %v6843 = vpop.f32.mrb[0].mxu0
  %v6844 = vadd.f32 0.0, %v6843
  %v6845 = vpop.f32.mrb[0].mxu0
  %v6846 = vpop.f32.mrb[0].mxu0
  %v6847 = vpop.f32.mrb[0].mxu0
  %6848 = vdwg.mxu0
  %6849 = vrot.lane.b32.xlu0 %v4698, 64
  %v6850 = vpop.permute.xlu0 %6849
  %v6852 = vsel %vm3830, %v6271, 0
  %v6855 = vand.u32 %v6850, %v3837
  %6857 = vmatprep.subr.bf16.mxu0 0
  %6858 = vmatpush1.bf16.msra.mxu0 %v6855
  %6859 = vmatprep.subr.bf16.mxu0 0
  %6860 = vmatpush1.bf16.msra.mxu0 0
  %6861 = vmatprep.subr.bf16.mxu0 0
  %6862 = vmatpush1.bf16.msra.mxu0 0
  %6863 = vmatprep.subr.bf16.mxu0 0
  %6864 = vmatpush1.bf16.msra.mxu0 0
  %6865 = vmatprep.subr.bf16.mxu0 0
  %6866 = vmatpush1.bf16.msra.mxu0 0
  %6867 = vmatprep.subr.bf16.mxu0 0
  %6868 = vmatpush1.bf16.msra.mxu0 0
  %6869 = vmatprep.subr.bf16.mxu0 0
  %6870 = vmatpush1.bf16.msra.mxu0 0
  %6871 = vmatprep.subr.bf16.mxu0 0
  %6872 = vmatpush1.bf16.msra.mxu0 0
  %6873 = vmatprep.subr.bf16.mxu0 0
  %6874 = vmatpush1.bf16.msra.mxu0 0
  %6875 = vmatprep.subr.bf16.mxu0 0
  %6876 = vmatpush1.bf16.msra.mxu0 0
  %6877 = vmatprep.subr.bf16.mxu0 0
  %6878 = vmatpush1.bf16.msra.mxu0 0
  %6879 = vmatprep.subr.bf16.mxu0 0
  %6880 = vmatpush1.bf16.msra.mxu0 0
  %6881 = vmatprep.subr.bf16.mxu0 0
  %6882 = vmatpush1.bf16.msra.mxu0 0
  %6883 = vmatprep.subr.bf16.mxu0 0
  %6884 = vmatpush1.bf16.msra.mxu0 0
  %6885 = vmatprep.subr.bf16.mxu0 0
  %6886 = vmatpush1.bf16.msra.mxu0 0
  %6887 = vmatprep.subr.bf16.mxu0 0
  %6888 = vmatpush1.bf16.msra.mxu0 0
  %6889 = vmatprep.mubr.bf16.mxu0 0
  %6890 = vmatmul.mubr.bf16.gmra.mrb[0].mxu0 %v6852
  %v6891 = vpop.f32.mrb[0].mxu0
  %v6892 = vadd.f32 0.0, %v6891
  %v6893 = vpop.f32.mrb[0].mxu0
  %v6894 = vpop.f32.mrb[0].mxu0
  %v6895 = vpop.f32.mrb[0].mxu0
  %6896 = vdwg.mxu0
  %6897 = vrot.lane.b32.xlu0 %v4770, 64
  %v6898 = vpop.permute.xlu0 %6897
  %v6900 = vsel %vm3830, %v6272, 0
  %v6903 = vand.u32 %v6898, %v3837
  %6905 = vmatprep.subr.bf16.mxu0 0
  %6906 = vmatpush1.bf16.msra.mxu0 %v6903
  %6907 = vmatprep.subr.bf16.mxu0 0
  %6908 = vmatpush1.bf16.msra.mxu0 0
  %6909 = vmatprep.subr.bf16.mxu0 0
  %6910 = vmatpush1.bf16.msra.mxu0 0
  %6911 = vmatprep.subr.bf16.mxu0 0
  %6912 = vmatpush1.bf16.msra.mxu0 0
  %6913 = vmatprep.subr.bf16.mxu0 0
  %6914 = vmatpush1.bf16.msra.mxu0 0
  %6915 = vmatprep.subr.bf16.mxu0 0
  %6916 = vmatpush1.bf16.msra.mxu0 0
  %6917 = vmatprep.subr.bf16.mxu0 0
  %6918 = vmatpush1.bf16.msra.mxu0 0
  %6919 = vmatprep.subr.bf16.mxu0 0
  %6920 = vmatpush1.bf16.msra.mxu0 0
  %6921 = vmatprep.subr.bf16.mxu0 0
  %6922 = vmatpush1.bf16.msra.mxu0 0
  %6923 = vmatprep.subr.bf16.mxu0 0
  %6924 = vmatpush1.bf16.msra.mxu0 0
  %6925 = vmatprep.subr.bf16.mxu0 0
  %6926 = vmatpush1.bf16.msra.mxu0 0
  %6927 = vmatprep.subr.bf16.mxu0 0
  %6928 = vmatpush1.bf16.msra.mxu0 0
  %6929 = vmatprep.subr.bf16.mxu0 0
  %6930 = vmatpush1.bf16.msra.mxu0 0
  %6931 = vmatprep.subr.bf16.mxu0 0
  %6932 = vmatpush1.bf16.msra.mxu0 0
  %6933 = vmatprep.subr.bf16.mxu0 0
  %6934 = vmatpush1.bf16.msra.mxu0 0
  %6935 = vmatprep.subr.bf16.mxu0 0
  %6936 = vmatpush1.bf16.msra.mxu0 0
  %6937 = vmatprep.mubr.bf16.mxu0 0
  %6938 = vmatmul.mubr.bf16.gmra.mrb[0].mxu0 %v6900
  %v6939 = vpop.f32.mrb[0].mxu0
  %v6940 = vadd.f32 0.0, %v6939
  %v6941 = vpop.f32.mrb[0].mxu0
  %v6942 = vpop.f32.mrb[0].mxu0
  %v6943 = vpop.f32.mrb[0].mxu0
  %6944 = vdwg.mxu0
  %v6959 = vcombine.high %v6316, %v6316
  %v6961 = vunpack.c.l.s4 1966171168
  %v6962 = vunpack.c.0.s8 %v6961
  %v6963 = vlaneseq
  %v6964 = vshrl.u32 %v6963, 7
  %v6965 = vsub.s32 %v6962, %v6964
  %v6966 = vrot.slane %v6316, %v6965
  %v6968 = vunpack.c.l.s4 1966171168
  %v6969 = vunpack.c.0.s8 %v6968
  %v6970 = vlaneseq
  %v6971 = vshrl.u32 %v6970, 7
  %v6972 = vsub.s32 %v6969, %v6971
  %v6973 = vrot.slane %v6959, %v6972
  %v6974 = vcombine.high %v6966, %v6966
  %v6976 = vunpack.c.l.s4 1966171168
  %v6977 = vunpack.c.0.s8 %v6976
  %v6978 = vlaneseq
  %v6979 = vshrl.u32 %v6978, 7
  %v6980 = vsub.s32 %v6977, %v6979
  %v6981 = vrot.slane %v6966, %v6980
  %v6983 = vunpack.c.l.s4 1966171168
  %v6984 = vunpack.c.0.s8 %v6983
  %v6985 = vlaneseq
  %v6986 = vshrl.u32 %v6985, 7
  %v6987 = vsub.s32 %v6984, %v6986
  %v6988 = vrot.slane %v6973, %v6987
  %v6990 = vunpack.c.l.s4 1966171168
  %v6991 = vunpack.c.0.s8 %v6990
  %v6992 = vlaneseq
  %v6993 = vshrl.u32 %v6992, 7
  %v6994 = vsub.s32 %v6991, %v6993
  %v6995 = vrot.slane %v6974, %v6994
  %v6996 = vcombine.high %v6981, %v6981
  %v6997 = vcombine.high %v6995, %v6995
  %v6998 = vcombine.high %v6364, %v6364
  %v7000 = vunpack.c.l.s4 1966171168
  %v7001 = vunpack.c.0.s8 %v7000
  %v7002 = vlaneseq
  %v7003 = vshrl.u32 %v7002, 7
  %v7004 = vsub.s32 %v7001, %v7003
  %v7005 = vrot.slane %v6364, %v7004
  %v7007 = vunpack.c.l.s4 1966171168
  %v7008 = vunpack.c.0.s8 %v7007
  %v7009 = vlaneseq
  %v7010 = vshrl.u32 %v7009, 7
  %v7011 = vsub.s32 %v7008, %v7010
  %v7012 = vrot.slane %v6998, %v7011
  %v7013 = vcombine.high %v7005, %v7005
  %v7015 = vunpack.c.l.s4 1966171168
  %v7016 = vunpack.c.0.s8 %v7015
  %v7017 = vlaneseq
  %v7018 = vshrl.u32 %v7017, 7
  %v7019 = vsub.s32 %v7016, %v7018
  %v7020 = vrot.slane %v7005, %v7019
  %v7022 = vunpack.c.l.s4 1966171168
  %v7023 = vunpack.c.0.s8 %v7022
  %v7024 = vlaneseq
  %v7025 = vshrl.u32 %v7024, 7
  %v7026 = vsub.s32 %v7023, %v7025
  %v7027 = vrot.slane %v7012, %v7026
  %v7029 = vunpack.c.l.s4 1966171168
  %v7030 = vunpack.c.0.s8 %v7029
  %v7031 = vlaneseq
  %v7032 = vshrl.u32 %v7031, 7
  %v7033 = vsub.s32 %v7030, %v7032
  %v7034 = vrot.slane %v7013, %v7033
  %v7035 = vcombine.high %v7020, %v7020
  %v7036 = vcombine.high %v7034, %v7034
  %v7037 = vcombine.high %v6412, %v6412
  %v7039 = vunpack.c.l.s4 1966171168
  %v7040 = vunpack.c.0.s8 %v7039
  %v7041 = vlaneseq
  %v7042 = vshrl.u32 %v7041, 7
  %v7043 = vsub.s32 %v7040, %v7042
  %v7044 = vrot.slane %v6412, %v7043
  %v7046 = vunpack.c.l.s4 1966171168
  %v7047 = vunpack.c.0.s8 %v7046
  %v7048 = vlaneseq
  %v7049 = vshrl.u32 %v7048, 7
  %v7050 = vsub.s32 %v7047, %v7049
  %v7051 = vrot.slane %v7037, %v7050
  %v7052 = vcombine.high %v7044, %v7044
  %v7054 = vunpack.c.l.s4 1966171168
  %v7055 = vunpack.c.0.s8 %v7054
  %v7056 = vlaneseq
  %v7057 = vshrl.u32 %v7056, 7
  %v7058 = vsub.s32 %v7055, %v7057
  %v7059 = vrot.slane %v7044, %v7058
  %v7061 = vunpack.c.l.s4 1966171168
  %v7062 = vunpack.c.0.s8 %v7061
  %v7063 = vlaneseq
  %v7064 = vshrl.u32 %v7063, 7
  %v7065 = vsub.s32 %v7062, %v7064
  %v7066 = vrot.slane %v7051, %v7065
  %v7068 = vunpack.c.l.s4 1966171168
  %v7069 = vunpack.c.0.s8 %v7068
  %v7070 = vlaneseq
  %v7071 = vshrl.u32 %v7070, 7
  %v7072 = vsub.s32 %v7069, %v7071
  %v7073 = vrot.slane %v7052, %v7072
  %v7074 = vcombine.high %v7059, %v7059
  %v7075 = vcombine.high %v7073, %v7073
  %v7076 = vcombine.high %v6460, %v6460
  %v7078 = vunpack.c.l.s4 1966171168
  %v7079 = vunpack.c.0.s8 %v7078
  %v7080 = vlaneseq
  %v7081 = vshrl.u32 %v7080, 7
  %v7082 = vsub.s32 %v7079, %v7081
  %v7083 = vrot.slane %v6460, %v7082
  %v7085 = vunpack.c.l.s4 1966171168
  %v7086 = vunpack.c.0.s8 %v7085
  %v7087 = vlaneseq
  %v7088 = vshrl.u32 %v7087, 7
  %v7089 = vsub.s32 %v7086, %v7088
  %v7090 = vrot.slane %v7076, %v7089
  %v7091 = vcombine.high %v7083, %v7083
  %v7093 = vunpack.c.l.s4 1966171168
  %v7094 = vunpack.c.0.s8 %v7093
  %v7095 = vlaneseq
  %v7096 = vshrl.u32 %v7095, 7
  %v7097 = vsub.s32 %v7094, %v7096
  %v7098 = vrot.slane %v7083, %v7097
  %v7100 = vunpack.c.l.s4 1966171168
  %v7101 = vunpack.c.0.s8 %v7100
  %v7102 = vlaneseq
  %v7103 = vshrl.u32 %v7102, 7
  %v7104 = vsub.s32 %v7101, %v7103
  %v7105 = vrot.slane %v7090, %v7104
  %v7107 = vunpack.c.l.s4 1966171168
  %v7108 = vunpack.c.0.s8 %v7107
  %v7109 = vlaneseq
  %v7110 = vshrl.u32 %v7109, 7
  %v7111 = vsub.s32 %v7108, %v7110
  %v7112 = vrot.slane %v7091, %v7111
  %v7113 = vcombine.high %v7098, %v7098
  %v7114 = vcombine.high %v7112, %v7112
  %v7115 = vcombine.high %v6508, %v6508
  %v7117 = vunpack.c.l.s4 1966171168
  %v7118 = vunpack.c.0.s8 %v7117
  %v7119 = vlaneseq
  %v7120 = vshrl.u32 %v7119, 7
  %v7121 = vsub.s32 %v7118, %v7120
  %v7122 = vrot.slane %v6508, %v7121
  %v7124 = vunpack.c.l.s4 1966171168
  %v7125 = vunpack.c.0.s8 %v7124
  %v7126 = vlaneseq
  %v7127 = vshrl.u32 %v7126, 7
  %v7128 = vsub.s32 %v7125, %v7127
  %v7129 = vrot.slane %v7115, %v7128
  %v7130 = vcombine.high %v7122, %v7122
  %v7132 = vunpack.c.l.s4 1966171168
  %v7133 = vunpack.c.0.s8 %v7132
  %v7134 = vlaneseq
  %v7135 = vshrl.u32 %v7134, 7
  %v7136 = vsub.s32 %v7133, %v7135
  %v7137 = vrot.slane %v7122, %v7136
  %v7139 = vunpack.c.l.s4 1966171168
  %v7140 = vunpack.c.0.s8 %v7139
  %v7141 = vlaneseq
  %v7142 = vshrl.u32 %v7141, 7
  %v7143 = vsub.s32 %v7140, %v7142
  %v7144 = vrot.slane %v7129, %v7143
  %v7146 = vunpack.c.l.s4 1966171168
  %v7147 = vunpack.c.0.s8 %v7146
  %v7148 = vlaneseq
  %v7149 = vshrl.u32 %v7148, 7
  %v7150 = vsub.s32 %v7147, %v7149
  %v7151 = vrot.slane %v7130, %v7150
  %v7152 = vcombine.high %v7137, %v7137
  %v7153 = vcombine.high %v7151, %v7151
  %v7154 = vcombine.high %v6556, %v6556
  %v7156 = vunpack.c.l.s4 1966171168
  %v7157 = vunpack.c.0.s8 %v7156
  %v7158 = vlaneseq
  %v7159 = vshrl.u32 %v7158, 7
  %v7160 = vsub.s32 %v7157, %v7159
  %v7161 = vrot.slane %v6556, %v7160
  %v7163 = vunpack.c.l.s4 1966171168
  %v7164 = vunpack.c.0.s8 %v7163
  %v7165 = vlaneseq
  %v7166 = vshrl.u32 %v7165, 7
  %v7167 = vsub.s32 %v7164, %v7166
  %v7168 = vrot.slane %v7154, %v7167
  %v7169 = vcombine.high %v7161, %v7161
  %v7171 = vunpack.c.l.s4 1966171168
  %v7172 = vunpack.c.0.s8 %v7171
  %v7173 = vlaneseq
  %v7174 = vshrl.u32 %v7173, 7
  %v7175 = vsub.s32 %v7172, %v7174
  %v7176 = vrot.slane %v7161, %v7175
  %v7178 = vunpack.c.l.s4 1966171168
  %v7179 = vunpack.c.0.s8 %v7178
  %v7180 = vlaneseq
  %v7181 = vshrl.u32 %v7180, 7
  %v7182 = vsub.s32 %v7179, %v7181
  %v7183 = vrot.slane %v7168, %v7182
  %v7185 = vunpack.c.l.s4 1966171168
  %v7186 = vunpack.c.0.s8 %v7185
  %v7187 = vlaneseq
  %v7188 = vshrl.u32 %v7187, 7
  %v7189 = vsub.s32 %v7186, %v7188
  %v7190 = vrot.slane %v7169, %v7189
  %v7191 = vcombine.high %v7176, %v7176
  %v7192 = vcombine.high %v7190, %v7190
  %v7193 = vcombine.high %v6604, %v6604
  %v7195 = vunpack.c.l.s4 1966171168
  %v7196 = vunpack.c.0.s8 %v7195
  %v7197 = vlaneseq
  %v7198 = vshrl.u32 %v7197, 7
  %v7199 = vsub.s32 %v7196, %v7198
  %v7200 = vrot.slane %v6604, %v7199
  %v7202 = vunpack.c.l.s4 1966171168
  %v7203 = vunpack.c.0.s8 %v7202
  %v7204 = vlaneseq
  %v7205 = vshrl.u32 %v7204, 7
  %v7206 = vsub.s32 %v7203, %v7205
  %v7207 = vrot.slane %v7193, %v7206
  %v7208 = vcombine.high %v7200, %v7200
  %v7210 = vunpack.c.l.s4 1966171168
  %v7211 = vunpack.c.0.s8 %v7210
  %v7212 = vlaneseq
  %v7213 = vshrl.u32 %v7212, 7
  %v7214 = vsub.s32 %v7211, %v7213
  %v7215 = vrot.slane %v7200, %v7214
  %v7217 = vunpack.c.l.s4 1966171168
  %v7218 = vunpack.c.0.s8 %v7217
  %v7219 = vlaneseq
  %v7220 = vshrl.u32 %v7219, 7
  %v7221 = vsub.s32 %v7218, %v7220
  %v7222 = vrot.slane %v7207, %v7221
  %v7224 = vunpack.c.l.s4 1966171168
  %v7225 = vunpack.c.0.s8 %v7224
  %v7226 = vlaneseq
  %v7227 = vshrl.u32 %v7226, 7
  %v7228 = vsub.s32 %v7225, %v7227
  %v7229 = vrot.slane %v7208, %v7228
  %v7230 = vcombine.high %v7215, %v7215
  %v7231 = vcombine.high %v7229, %v7229
  %v7232 = vcombine.high %v6652, %v6652
  %v7234 = vunpack.c.l.s4 1966171168
  %v7235 = vunpack.c.0.s8 %v7234
  %v7236 = vlaneseq
  %v7237 = vshrl.u32 %v7236, 7
  %v7238 = vsub.s32 %v7235, %v7237
  %v7239 = vrot.slane %v6652, %v7238
  %v7241 = vunpack.c.l.s4 1966171168
  %v7242 = vunpack.c.0.s8 %v7241
  %v7243 = vlaneseq
  %v7244 = vshrl.u32 %v7243, 7
  %v7245 = vsub.s32 %v7242, %v7244
  %v7246 = vrot.slane %v7232, %v7245
  %v7247 = vcombine.high %v7239, %v7239
  %v7249 = vunpack.c.l.s4 1966171168
  %v7250 = vunpack.c.0.s8 %v7249
  %v7251 = vlaneseq
  %v7252 = vshrl.u32 %v7251, 7
  %v7253 = vsub.s32 %v7250, %v7252
  %v7254 = vrot.slane %v7239, %v7253
  %v7256 = vunpack.c.l.s4 1966171168
  %v7257 = vunpack.c.0.s8 %v7256
  %v7258 = vlaneseq
  %v7259 = vshrl.u32 %v7258, 7
  %v7260 = vsub.s32 %v7257, %v7259
  %v7261 = vrot.slane %v7246, %v7260
  %v7263 = vunpack.c.l.s4 1966171168
  %v7264 = vunpack.c.0.s8 %v7263
  %v7265 = vlaneseq
  %v7266 = vshrl.u32 %v7265, 7
  %v7267 = vsub.s32 %v7264, %v7266
  %v7268 = vrot.slane %v7247, %v7267
  %v7269 = vcombine.high %v7254, %v7254
  %v7270 = vcombine.high %v7268, %v7268
  %v7271 = vcombine.high %v6700, %v6700
  %v7273 = vunpack.c.l.s4 1966171168
  %v7274 = vunpack.c.0.s8 %v7273
  %v7275 = vlaneseq
  %v7276 = vshrl.u32 %v7275, 7
  %v7277 = vsub.s32 %v7274, %v7276
  %v7278 = vrot.slane %v6700, %v7277
  %v7280 = vunpack.c.l.s4 1966171168
  %v7281 = vunpack.c.0.s8 %v7280
  %v7282 = vlaneseq
  %v7283 = vshrl.u32 %v7282, 7
  %v7284 = vsub.s32 %v7281, %v7283
  %v7285 = vrot.slane %v7271, %v7284
  %v7286 = vcombine.high %v7278, %v7278
  %v7288 = vunpack.c.l.s4 1966171168
  %v7289 = vunpack.c.0.s8 %v7288
  %v7290 = vlaneseq
  %v7291 = vshrl.u32 %v7290, 7
  %v7292 = vsub.s32 %v7289, %v7291
  %v7293 = vrot.slane %v7278, %v7292
  %v7295 = vunpack.c.l.s4 1966171168
  %v7296 = vunpack.c.0.s8 %v7295
  %v7297 = vlaneseq
  %v7298 = vshrl.u32 %v7297, 7
  %v7299 = vsub.s32 %v7296, %v7298
  %v7300 = vrot.slane %v7285, %v7299
  %v7302 = vunpack.c.l.s4 1966171168
  %v7303 = vunpack.c.0.s8 %v7302
  %v7304 = vlaneseq
  %v7305 = vshrl.u32 %v7304, 7
  %v7306 = vsub.s32 %v7303, %v7305
  %v7307 = vrot.slane %v7286, %v7306
  %v7308 = vcombine.high %v7293, %v7293
  %v7309 = vcombine.high %v7307, %v7307
  %v7310 = vcombine.high %v6748, %v6748
  %v7312 = vunpack.c.l.s4 1966171168
  %v7313 = vunpack.c.0.s8 %v7312
  %v7314 = vlaneseq
  %v7315 = vshrl.u32 %v7314, 7
  %v7316 = vsub.s32 %v7313, %v7315
  %v7317 = vrot.slane %v6748, %v7316
  %v7319 = vunpack.c.l.s4 1966171168
  %v7320 = vunpack.c.0.s8 %v7319
  %v7321 = vlaneseq
  %v7322 = vshrl.u32 %v7321, 7
  %v7323 = vsub.s32 %v7320, %v7322
  %v7324 = vrot.slane %v7310, %v7323
  %v7325 = vcombine.high %v7317, %v7317
  %v7327 = vunpack.c.l.s4 1966171168
  %v7328 = vunpack.c.0.s8 %v7327
  %v7329 = vlaneseq
  %v7330 = vshrl.u32 %v7329, 7
  %v7331 = vsub.s32 %v7328, %v7330
  %v7332 = vrot.slane %v7317, %v7331
  %v7334 = vunpack.c.l.s4 1966171168
  %v7335 = vunpack.c.0.s8 %v7334
  %v7336 = vlaneseq
  %v7337 = vshrl.u32 %v7336, 7
  %v7338 = vsub.s32 %v7335, %v7337
  %v7339 = vrot.slane %v7324, %v7338
  %v7341 = vunpack.c.l.s4 1966171168
  %v7342 = vunpack.c.0.s8 %v7341
  %v7343 = vlaneseq
  %v7344 = vshrl.u32 %v7343, 7
  %v7345 = vsub.s32 %v7342, %v7344
  %v7346 = vrot.slane %v7325, %v7345
  %v7347 = vcombine.high %v7332, %v7332
  %v7348 = vcombine.high %v7346, %v7346
  %v7349 = vcombine.high %v6796, %v6796
  %v7351 = vunpack.c.l.s4 1966171168
  %v7352 = vunpack.c.0.s8 %v7351
  %v7353 = vlaneseq
  %v7354 = vshrl.u32 %v7353, 7
  %v7355 = vsub.s32 %v7352, %v7354
  %v7356 = vrot.slane %v6796, %v7355
  %v7358 = vunpack.c.l.s4 1966171168
  %v7359 = vunpack.c.0.s8 %v7358
  %v7360 = vlaneseq
  %v7361 = vshrl.u32 %v7360, 7
  %v7362 = vsub.s32 %v7359, %v7361
  %v7363 = vrot.slane %v7349, %v7362
  %v7364 = vcombine.high %v7356, %v7356
  %v7366 = vunpack.c.l.s4 1966171168
  %v7367 = vunpack.c.0.s8 %v7366
  %v7368 = vlaneseq
  %v7369 = vshrl.u32 %v7368, 7
  %v7370 = vsub.s32 %v7367, %v7369
  %v7371 = vrot.slane %v7356, %v7370
  %v7373 = vunpack.c.l.s4 1966171168
  %v7374 = vunpack.c.0.s8 %v7373
  %v7375 = vlaneseq
  %v7376 = vshrl.u32 %v7375, 7
  %v7377 = vsub.s32 %v7374, %v7376
  %v7378 = vrot.slane %v7363, %v7377
  %v7380 = vunpack.c.l.s4 1966171168
  %v7381 = vunpack.c.0.s8 %v7380
  %v7382 = vlaneseq
  %v7383 = vshrl.u32 %v7382, 7
  %v7384 = vsub.s32 %v7381, %v7383
  %v7385 = vrot.slane %v7364, %v7384
  %v7386 = vcombine.high %v7371, %v7371
  %v7387 = vcombine.high %v7385, %v7385
  %v7388 = vcombine.high %v6844, %v6844
  %v7390 = vunpack.c.l.s4 1966171168
  %v7391 = vunpack.c.0.s8 %v7390
  %v7392 = vlaneseq
  %v7393 = vshrl.u32 %v7392, 7
  %v7394 = vsub.s32 %v7391, %v7393
  %v7395 = vrot.slane %v6844, %v7394
  %v7397 = vunpack.c.l.s4 1966171168
  %v7398 = vunpack.c.0.s8 %v7397
  %v7399 = vlaneseq
  %v7400 = vshrl.u32 %v7399, 7
  %v7401 = vsub.s32 %v7398, %v7400
  %v7402 = vrot.slane %v7388, %v7401
  %v7403 = vcombine.high %v7395, %v7395
  %v7405 = vunpack.c.l.s4 1966171168
  %v7406 = vunpack.c.0.s8 %v7405
  %v7407 = vlaneseq
  %v7408 = vshrl.u32 %v7407, 7
  %v7409 = vsub.s32 %v7406, %v7408
  %v7410 = vrot.slane %v7395, %v7409
  %v7412 = vunpack.c.l.s4 1966171168
  %v7413 = vunpack.c.0.s8 %v7412
  %v7414 = vlaneseq
  %v7415 = vshrl.u32 %v7414, 7
  %v7416 = vsub.s32 %v7413, %v7415
  %v7417 = vrot.slane %v7402, %v7416
  %v7419 = vunpack.c.l.s4 1966171168
  %v7420 = vunpack.c.0.s8 %v7419
  %v7421 = vlaneseq
  %v7422 = vshrl.u32 %v7421, 7
  %v7423 = vsub.s32 %v7420, %v7422
  %v7424 = vrot.slane %v7403, %v7423
  %v7425 = vcombine.high %v7410, %v7410
  %v7426 = vcombine.high %v7424, %v7424
  %v7427 = vcombine.high %v6892, %v6892
  %v7429 = vunpack.c.l.s4 1966171168
  %v7430 = vunpack.c.0.s8 %v7429
  %v7431 = vlaneseq
  %v7432 = vshrl.u32 %v7431, 7
  %v7433 = vsub.s32 %v7430, %v7432
  %v7434 = vrot.slane %v6892, %v7433
  %v7436 = vunpack.c.l.s4 1966171168
  %v7437 = vunpack.c.0.s8 %v7436
  %v7438 = vlaneseq
  %v7439 = vshrl.u32 %v7438, 7
  %v7440 = vsub.s32 %v7437, %v7439
  %v7441 = vrot.slane %v7427, %v7440
  %v7442 = vcombine.high %v7434, %v7434
  %v7444 = vunpack.c.l.s4 1966171168
  %v7445 = vunpack.c.0.s8 %v7444
  %v7446 = vlaneseq
  %v7447 = vshrl.u32 %v7446, 7
  %v7448 = vsub.s32 %v7445, %v7447
  %v7449 = vrot.slane %v7434, %v7448
  %v7451 = vunpack.c.l.s4 1966171168
  %v7452 = vunpack.c.0.s8 %v7451
  %v7453 = vlaneseq
  %v7454 = vshrl.u32 %v7453, 7
  %v7455 = vsub.s32 %v7452, %v7454
  %v7456 = vrot.slane %v7441, %v7455
  %v7458 = vunpack.c.l.s4 1966171168
  %v7459 = vunpack.c.0.s8 %v7458
  %v7460 = vlaneseq
  %v7461 = vshrl.u32 %v7460, 7
  %v7462 = vsub.s32 %v7459, %v7461
  %v7463 = vrot.slane %v7442, %v7462
  %v7464 = vcombine.high %v7449, %v7449
  %v7465 = vcombine.high %v7463, %v7463
  %v7466 = vcombine.high %v6940, %v6940
  %v7468 = vunpack.c.l.s4 1966171168
  %v7469 = vunpack.c.0.s8 %v7468
  %v7470 = vlaneseq
  %v7471 = vshrl.u32 %v7470, 7
  %v7472 = vsub.s32 %v7469, %v7471
  %v7473 = vrot.slane %v6940, %v7472
  %v7475 = vunpack.c.l.s4 1966171168
  %v7476 = vunpack.c.0.s8 %v7475
  %v7477 = vlaneseq
  %v7478 = vshrl.u32 %v7477, 7
  %v7479 = vsub.s32 %v7476, %v7478
  %v7480 = vrot.slane %v7466, %v7479
  %v7481 = vcombine.high %v7473, %v7473
  %v7483 = vunpack.c.l.s4 1966171168
  %v7484 = vunpack.c.0.s8 %v7483
  %v7485 = vlaneseq
  %v7486 = vshrl.u32 %v7485, 7
  %v7487 = vsub.s32 %v7484, %v7486
  %v7488 = vrot.slane %v7473, %v7487
  %v7490 = vunpack.c.l.s4 1966171168
  %v7491 = vunpack.c.0.s8 %v7490
  %v7492 = vlaneseq
  %v7493 = vshrl.u32 %v7492, 7
  %v7494 = vsub.s32 %v7491, %v7493
  %v7495 = vrot.slane %v7480, %v7494
  %v7497 = vunpack.c.l.s4 1966171168
  %v7498 = vunpack.c.0.s8 %v7497
  %v7499 = vlaneseq
  %v7500 = vshrl.u32 %v7499, 7
  %v7501 = vsub.s32 %v7498, %v7500
  %v7502 = vrot.slane %v7481, %v7501
  %v7503 = vcombine.high %v7488, %v7488
  %v7504 = vcombine.high %v7502, %v7502
  %v7505 = vcombine.low %v4853, %v4867
  %v7506 = vcombine.low %v4868, %v4869
  %v7507 = vcombine.low %v4860, %v4892
  %v7508 = vcombine.low %v4906, %v4907
  %v7510 = vunpack.c.l.s4 1966171168
  %v7511 = vunpack.c.0.s8 %v7510
  %v7512 = vlaneseq
  %v7513 = vshrl.u32 %v7512, 7
  %v7514 = vsub.s32 %v7511, %v7513
  %v7515 = vrot.slane %v7505, %v7514
  %v7517 = vunpack.c.l.s4 1966171168
  %v7518 = vunpack.c.0.s8 %v7517
  %v7519 = vlaneseq
  %v7520 = vshrl.u32 %v7519, 7
  %v7521 = vsub.s32 %v7518, %v7520
  %v7522 = vrot.slane %v7506, %v7521
  %v7524 = vunpack.c.l.s4 1966171168
  %v7525 = vunpack.c.0.s8 %v7524
  %v7526 = vlaneseq
  %v7527 = vshrl.u32 %v7526, 7
  %v7528 = vsub.s32 %v7525, %v7527
  %v7529 = vrot.slane %v7507, %v7528
  %v7531 = vunpack.c.l.s4 1966171168
  %v7532 = vunpack.c.0.s8 %v7531
  %v7533 = vlaneseq
  %v7534 = vshrl.u32 %v7533, 7
  %v7535 = vsub.s32 %v7532, %v7534
  %v7536 = vrot.slane %v7508, %v7535
  %v7537 = vcombine.low %v7515, %v7522
  %v7538 = vcombine.low %v7529, %v7536
  %v7540 = vunpack.c.l.s4 1966171168
  %v7541 = vunpack.c.0.s8 %v7540
  %v7542 = vlaneseq
  %v7543 = vshrl.u32 %v7542, 7
  %v7544 = vsub.s32 %v7541, %v7543
  %v7545 = vrot.slane %v7537, %v7544
  %v7547 = vunpack.c.l.s4 1966171168
  %v7548 = vunpack.c.0.s8 %v7547
  %v7549 = vlaneseq
  %v7550 = vshrl.u32 %v7549, 7
  %v7551 = vsub.s32 %v7548, %v7550
  %v7552 = vrot.slane %v7538, %v7551
  %v7553 = vcombine.low %v7545, %v7552
  %v7554 = vcombine.low %v4908, %v4899
  %v7555 = vcombine.low %v4931, %v4945
  %v7556 = vcombine.low %v4946, %v4947
  %v7557 = vcombine.low %v4938, %v4970
  %v7559 = vunpack.c.l.s4 1966171168
  %v7560 = vunpack.c.0.s8 %v7559
  %v7561 = vlaneseq
  %v7562 = vshrl.u32 %v7561, 7
  %v7563 = vsub.s32 %v7560, %v7562
  %v7564 = vrot.slane %v7554, %v7563
  %v7566 = vunpack.c.l.s4 1966171168
  %v7567 = vunpack.c.0.s8 %v7566
  %v7568 = vlaneseq
  %v7569 = vshrl.u32 %v7568, 7
  %v7570 = vsub.s32 %v7567, %v7569
  %v7571 = vrot.slane %v7555, %v7570
  %v7573 = vunpack.c.l.s4 1966171168
  %v7574 = vunpack.c.0.s8 %v7573
  %v7575 = vlaneseq
  %v7576 = vshrl.u32 %v7575, 7
  %v7577 = vsub.s32 %v7574, %v7576
  %v7578 = vrot.slane %v7556, %v7577
  %v7580 = vunpack.c.l.s4 1966171168
  %v7581 = vunpack.c.0.s8 %v7580
  %v7582 = vlaneseq
  %v7583 = vshrl.u32 %v7582, 7
  %v7584 = vsub.s32 %v7581, %v7583
  %v7585 = vrot.slane %v7557, %v7584
  %v7586 = vcombine.low %v7564, %v7571
  %v7587 = vcombine.low %v7578, %v7585
  %v7589 = vunpack.c.l.s4 1966171168
  %v7590 = vunpack.c.0.s8 %v7589
  %v7591 = vlaneseq
  %v7592 = vshrl.u32 %v7591, 7
  %v7593 = vsub.s32 %v7590, %v7592
  %v7594 = vrot.slane %v7586, %v7593
  %v7596 = vunpack.c.l.s4 1966171168
  %v7597 = vunpack.c.0.s8 %v7596
  %v7598 = vlaneseq
  %v7599 = vshrl.u32 %v7598, 7
  %v7600 = vsub.s32 %v7597, %v7599
  %v7601 = vrot.slane %v7587, %v7600
  %v7602 = vcombine.low %v7594, %v7601
  %v7603 = vcombine.low %v4984, %v4985
  %v7604 = vcombine.low %v4986, %v4977
  %v7605 = vcombine.low %v5009, %v5023
  %v7606 = vcombine.low %v5024, %v5025
  %v7608 = vunpack.c.l.s4 1966171168
  %v7609 = vunpack.c.0.s8 %v7608
  %v7610 = vlaneseq
  %v7611 = vshrl.u32 %v7610, 7
  %v7612 = vsub.s32 %v7609, %v7611
  %v7613 = vrot.slane %v7603, %v7612
  %v7615 = vunpack.c.l.s4 1966171168
  %v7616 = vunpack.c.0.s8 %v7615
  %v7617 = vlaneseq
  %v7618 = vshrl.u32 %v7617, 7
  %v7619 = vsub.s32 %v7616, %v7618
  %v7620 = vrot.slane %v7604, %v7619
  %v7622 = vunpack.c.l.s4 1966171168
  %v7623 = vunpack.c.0.s8 %v7622
  %v7624 = vlaneseq
  %v7625 = vshrl.u32 %v7624, 7
  %v7626 = vsub.s32 %v7623, %v7625
  %v7627 = vrot.slane %v7605, %v7626
  %v7629 = vunpack.c.l.s4 1966171168
  %v7630 = vunpack.c.0.s8 %v7629
  %v7631 = vlaneseq
  %v7632 = vshrl.u32 %v7631, 7
  %v7633 = vsub.s32 %v7630, %v7632
  %v7634 = vrot.slane %v7606, %v7633
  %v7635 = vcombine.low %v7613, %v7620
  %v7636 = vcombine.low %v7627, %v7634
  %v7638 = vunpack.c.l.s4 1966171168
  %v7639 = vunpack.c.0.s8 %v7638
  %v7640 = vlaneseq
  %v7641 = vshrl.u32 %v7640, 7
  %v7642 = vsub.s32 %v7639, %v7641
  %v7643 = vrot.slane %v7635, %v7642
  %v7645 = vunpack.c.l.s4 1966171168
  %v7646 = vunpack.c.0.s8 %v7645
  %v7647 = vlaneseq
  %v7648 = vshrl.u32 %v7647, 7
  %v7649 = vsub.s32 %v7646, %v7648
  %v7650 = vrot.slane %v7636, %v7649
  %v7651 = vcombine.low %v7643, %v7650
  %v7652 = vcombine.low %v5016, %v5048
  %v7653 = vcombine.low %v5062, %v5063
  %v7654 = vcombine.low %v5064, %v5055
  %v7655 = vcombine.low %v5087, %v5101
  %v7657 = vunpack.c.l.s4 1966171168
  %v7658 = vunpack.c.0.s8 %v7657
  %v7659 = vlaneseq
  %v7660 = vshrl.u32 %v7659, 7
  %v7661 = vsub.s32 %v7658, %v7660
  %v7662 = vrot.slane %v7652, %v7661
  %v7664 = vunpack.c.l.s4 1966171168
  %v7665 = vunpack.c.0.s8 %v7664
  %v7666 = vlaneseq
  %v7667 = vshrl.u32 %v7666, 7
  %v7668 = vsub.s32 %v7665, %v7667
  %v7669 = vrot.slane %v7653, %v7668
  %v7671 = vunpack.c.l.s4 1966171168
  %v7672 = vunpack.c.0.s8 %v7671
  %v7673 = vlaneseq
  %v7674 = vshrl.u32 %v7673, 7
  %v7675 = vsub.s32 %v7672, %v7674
  %v7676 = vrot.slane %v7654, %v7675
  %v7678 = vunpack.c.l.s4 1966171168
  %v7679 = vunpack.c.0.s8 %v7678
  %v7680 = vlaneseq
  %v7681 = vshrl.u32 %v7680, 7
  %v7682 = vsub.s32 %v7679, %v7681
  %v7683 = vrot.slane %v7655, %v7682
  %v7684 = vcombine.low %v7662, %v7669
  %v7685 = vcombine.low %v7676, %v7683
  %v7687 = vunpack.c.l.s4 1966171168
  %v7688 = vunpack.c.0.s8 %v7687
  %v7689 = vlaneseq
  %v7690 = vshrl.u32 %v7689, 7
  %v7691 = vsub.s32 %v7688, %v7690
  %v7692 = vrot.slane %v7684, %v7691
  %v7694 = vunpack.c.l.s4 1966171168
  %v7695 = vunpack.c.0.s8 %v7694
  %v7696 = vlaneseq
  %v7697 = vshrl.u32 %v7696, 7
  %v7698 = vsub.s32 %v7695, %v7697
  %v7699 = vrot.slane %v7685, %v7698
  %v7700 = vcombine.low %v7692, %v7699
  %v7701 = vcombine.low %v5102, %v5103
  %v7702 = vcombine.low %v5094, %v5126
  %v7703 = vcombine.low %v5140, %v5141
  %v7704 = vcombine.low %v5142, %v5133
  %v7706 = vunpack.c.l.s4 1966171168
  %v7707 = vunpack.c.0.s8 %v7706
  %v7708 = vlaneseq
  %v7709 = vshrl.u32 %v7708, 7
  %v7710 = vsub.s32 %v7707, %v7709
  %v7711 = vrot.slane %v7701, %v7710
  %v7713 = vunpack.c.l.s4 1966171168
  %v7714 = vunpack.c.0.s8 %v7713
  %v7715 = vlaneseq
  %v7716 = vshrl.u32 %v7715, 7
  %v7717 = vsub.s32 %v7714, %v7716
  %v7718 = vrot.slane %v7702, %v7717
  %v7720 = vunpack.c.l.s4 1966171168
  %v7721 = vunpack.c.0.s8 %v7720
  %v7722 = vlaneseq
  %v7723 = vshrl.u32 %v7722, 7
  %v7724 = vsub.s32 %v7721, %v7723
  %v7725 = vrot.slane %v7703, %v7724
  %v7727 = vunpack.c.l.s4 1966171168
  %v7728 = vunpack.c.0.s8 %v7727
  %v7729 = vlaneseq
  %v7730 = vshrl.u32 %v7729, 7
  %v7731 = vsub.s32 %v7728, %v7730
  %v7732 = vrot.slane %v7704, %v7731
  %v7733 = vcombine.low %v7711, %v7718
  %v7734 = vcombine.low %v7725, %v7732
  %v7736 = vunpack.c.l.s4 1966171168
  %v7737 = vunpack.c.0.s8 %v7736
  %v7738 = vlaneseq
  %v7739 = vshrl.u32 %v7738, 7
  %v7740 = vsub.s32 %v7737, %v7739
  %v7741 = vrot.slane %v7733, %v7740
  %v7743 = vunpack.c.l.s4 1966171168
  %v7744 = vunpack.c.0.s8 %v7743
  %v7745 = vlaneseq
  %v7746 = vshrl.u32 %v7745, 7
  %v7747 = vsub.s32 %v7744, %v7746
  %v7748 = vrot.slane %v7734, %v7747
  %v7749 = vcombine.low %v7741, %v7748
  %v7750 = vcombine.low %v5165, %v5179
  %v7751 = vcombine.low %v5180, %v5181
  %v7752 = vcombine.low %v5172, %v5204
  %v7753 = vcombine.low %v5218, %v5219
  %v7755 = vunpack.c.l.s4 1966171168
  %v7756 = vunpack.c.0.s8 %v7755
  %v7757 = vlaneseq
  %v7758 = vshrl.u32 %v7757, 7
  %v7759 = vsub.s32 %v7756, %v7758
  %v7760 = vrot.slane %v7750, %v7759
  %v7762 = vunpack.c.l.s4 1966171168
  %v7763 = vunpack.c.0.s8 %v7762
  %v7764 = vlaneseq
  %v7765 = vshrl.u32 %v7764, 7
  %v7766 = vsub.s32 %v7763, %v7765
  %v7767 = vrot.slane %v7751, %v7766
  %v7769 = vunpack.c.l.s4 1966171168
  %v7770 = vunpack.c.0.s8 %v7769
  %v7771 = vlaneseq
  %v7772 = vshrl.u32 %v7771, 7
  %v7773 = vsub.s32 %v7770, %v7772
  %v7774 = vrot.slane %v7752, %v7773
  %v7776 = vunpack.c.l.s4 1966171168
  %v7777 = vunpack.c.0.s8 %v7776
  %v7778 = vlaneseq
  %v7779 = vshrl.u32 %v7778, 7
  %v7780 = vsub.s32 %v7777, %v7779
  %v7781 = vrot.slane %v7753, %v7780
  %v7782 = vcombine.low %v7760, %v7767
  %v7783 = vcombine.low %v7774, %v7781
  %v7785 = vunpack.c.l.s4 1966171168
  %v7786 = vunpack.c.0.s8 %v7785
  %v7787 = vlaneseq
  %v7788 = vshrl.u32 %v7787, 7
  %v7789 = vsub.s32 %v7786, %v7788
  %v7790 = vrot.slane %v7782, %v7789
  %v7792 = vunpack.c.l.s4 1966171168
  %v7793 = vunpack.c.0.s8 %v7792
  %v7794 = vlaneseq
  %v7795 = vshrl.u32 %v7794, 7
  %v7796 = vsub.s32 %v7793, %v7795
  %v7797 = vrot.slane %v7783, %v7796
  %v7798 = vcombine.low %v7790, %v7797
  %v7799 = vcombine.low %v5220, %v5211
  %v7800 = vcombine.low %v5243, %v5257
  %v7801 = vcombine.low %v5258, %v5259
  %v7802 = vcombine.low %v5250, %v5282
  %v7804 = vunpack.c.l.s4 1966171168
  %v7805 = vunpack.c.0.s8 %v7804
  %v7806 = vlaneseq
  %v7807 = vshrl.u32 %v7806, 7
  %v7808 = vsub.s32 %v7805, %v7807
  %v7809 = vrot.slane %v7799, %v7808
  %v7811 = vunpack.c.l.s4 1966171168
  %v7812 = vunpack.c.0.s8 %v7811
  %v7813 = vlaneseq
  %v7814 = vshrl.u32 %v7813, 7
  %v7815 = vsub.s32 %v7812, %v7814
  %v7816 = vrot.slane %v7800, %v7815
  %v7818 = vunpack.c.l.s4 1966171168
  %v7819 = vunpack.c.0.s8 %v7818
  %v7820 = vlaneseq
  %v7821 = vshrl.u32 %v7820, 7
  %v7822 = vsub.s32 %v7819, %v7821
  %v7823 = vrot.slane %v7801, %v7822
  %v7825 = vunpack.c.l.s4 1966171168
  %v7826 = vunpack.c.0.s8 %v7825
  %v7827 = vlaneseq
  %v7828 = vshrl.u32 %v7827, 7
  %v7829 = vsub.s32 %v7826, %v7828
  %v7830 = vrot.slane %v7802, %v7829
  %v7831 = vcombine.low %v7809, %v7816
  %v7832 = vcombine.low %v7823, %v7830
  %v7834 = vunpack.c.l.s4 1966171168
  %v7835 = vunpack.c.0.s8 %v7834
  %v7836 = vlaneseq
  %v7837 = vshrl.u32 %v7836, 7
  %v7838 = vsub.s32 %v7835, %v7837
  %v7839 = vrot.slane %v7831, %v7838
  %v7841 = vunpack.c.l.s4 1966171168
  %v7842 = vunpack.c.0.s8 %v7841
  %v7843 = vlaneseq
  %v7844 = vshrl.u32 %v7843, 7
  %v7845 = vsub.s32 %v7842, %v7844
  %v7846 = vrot.slane %v7832, %v7845
  %v7847 = vcombine.low %v7839, %v7846
  %v7848 = vcombine.low %v5296, %v5297
  %v7849 = vcombine.low %v5298, %v5289
  %v7850 = vcombine.low %v5321, %v5335
  %v7851 = vcombine.low %v5336, %v5337
  %v7853 = vunpack.c.l.s4 1966171168
  %v7854 = vunpack.c.0.s8 %v7853
  %v7855 = vlaneseq
  %v7856 = vshrl.u32 %v7855, 7
  %v7857 = vsub.s32 %v7854, %v7856
  %v7858 = vrot.slane %v7848, %v7857
  %v7860 = vunpack.c.l.s4 1966171168
  %v7861 = vunpack.c.0.s8 %v7860
  %v7862 = vlaneseq
  %v7863 = vshrl.u32 %v7862, 7
  %v7864 = vsub.s32 %v7861, %v7863
  %v7865 = vrot.slane %v7849, %v7864
  %v7867 = vunpack.c.l.s4 1966171168
  %v7868 = vunpack.c.0.s8 %v7867
  %v7869 = vlaneseq
  %v7870 = vshrl.u32 %v7869, 7
  %v7871 = vsub.s32 %v7868, %v7870
  %v7872 = vrot.slane %v7850, %v7871
  %v7874 = vunpack.c.l.s4 1966171168
  %v7875 = vunpack.c.0.s8 %v7874
  %v7876 = vlaneseq
  %v7877 = vshrl.u32 %v7876, 7
  %v7878 = vsub.s32 %v7875, %v7877
  %v7879 = vrot.slane %v7851, %v7878
  %v7880 = vcombine.low %v7858, %v7865
  %v7881 = vcombine.low %v7872, %v7879
  %v7883 = vunpack.c.l.s4 1966171168
  %v7884 = vunpack.c.0.s8 %v7883
  %v7885 = vlaneseq
  %v7886 = vshrl.u32 %v7885, 7
  %v7887 = vsub.s32 %v7884, %v7886
  %v7888 = vrot.slane %v7880, %v7887
  %v7890 = vunpack.c.l.s4 1966171168
  %v7891 = vunpack.c.0.s8 %v7890
  %v7892 = vlaneseq
  %v7893 = vshrl.u32 %v7892, 7
  %v7894 = vsub.s32 %v7891, %v7893
  %v7895 = vrot.slane %v7881, %v7894
  %v7896 = vcombine.low %v7888, %v7895
  %v7897 = vcombine.low %v5328, %v5360
  %v7898 = vcombine.low %v5374, %v5375
  %v7899 = vcombine.low %v5376, %v5367
  %v7901 = vunpack.c.l.s4 1966171168
  %v7902 = vunpack.c.0.s8 %v7901
  %v7903 = vlaneseq
  %v7904 = vshrl.u32 %v7903, 7
  %v7905 = vsub.s32 %v7902, %v7904
  %v7906 = vrot.slane %v7897, %v7905
  %v7908 = vunpack.c.l.s4 1966171168
  %v7909 = vunpack.c.0.s8 %v7908
  %v7910 = vlaneseq
  %v7911 = vshrl.u32 %v7910, 7
  %v7912 = vsub.s32 %v7909, %v7911
  %v7913 = vrot.slane %v7898, %v7912
  %v7915 = vunpack.c.l.s4 1966171168
  %v7916 = vunpack.c.0.s8 %v7915
  %v7917 = vlaneseq
  %v7918 = vshrl.u32 %v7917, 7
  %v7919 = vsub.s32 %v7916, %v7918
  %v7920 = vrot.slane %v7899, %v7919
  %v7921 = vcombine.low %v7906, %v7913
  %v7923 = vunpack.c.l.s4 1966171168
  %v7924 = vunpack.c.0.s8 %v7923
  %v7925 = vlaneseq
  %v7926 = vshrl.u32 %v7925, 7
  %v7927 = vsub.s32 %v7924, %v7926
  %v7928 = vrot.slane %v7921, %v7927
  %v7930 = vunpack.c.l.s4 1966171168
  %v7931 = vunpack.c.0.s8 %v7930
  %v7932 = vlaneseq
  %v7933 = vshrl.u32 %v7932, 7
  %v7934 = vsub.s32 %v7931, %v7933
  %v7935 = vrot.slane %v7920, %v7934
  %v7936 = vcombine.low %v7928, %v7935
  %v7946 = vcombine.low %v6981, %v6995
  %v7947 = vcombine.low %v6996, %v6997
  %v7948 = vcombine.low %v6988, %v7020
  %v7949 = vcombine.low %v7034, %v7035
  %v7951 = vunpack.c.l.s4 1966171168
  %v7952 = vunpack.c.0.s8 %v7951
  %v7953 = vlaneseq
  %v7954 = vshrl.u32 %v7953, 7
  %v7955 = vsub.s32 %v7952, %v7954
  %v7956 = vrot.slane %v7946, %v7955
  %v7958 = vunpack.c.l.s4 1966171168
  %v7959 = vunpack.c.0.s8 %v7958
  %v7960 = vlaneseq
  %v7961 = vshrl.u32 %v7960, 7
  %v7962 = vsub.s32 %v7959, %v7961
  %v7963 = vrot.slane %v7947, %v7962
  %v7965 = vunpack.c.l.s4 1966171168
  %v7966 = vunpack.c.0.s8 %v7965
  %v7967 = vlaneseq
  %v7968 = vshrl.u32 %v7967, 7
  %v7969 = vsub.s32 %v7966, %v7968
  %v7970 = vrot.slane %v7948, %v7969
  %v7972 = vunpack.c.l.s4 1966171168
  %v7973 = vunpack.c.0.s8 %v7972
  %v7974 = vlaneseq
  %v7975 = vshrl.u32 %v7974, 7
  %v7976 = vsub.s32 %v7973, %v7975
  %v7977 = vrot.slane %v7949, %v7976
  %v7978 = vcombine.low %v7956, %v7963
  %v7979 = vcombine.low %v7970, %v7977
  %v7981 = vunpack.c.l.s4 1966171168
  %v7982 = vunpack.c.0.s8 %v7981
  %v7983 = vlaneseq
  %v7984 = vshrl.u32 %v7983, 7
  %v7985 = vsub.s32 %v7982, %v7984
  %v7986 = vrot.slane %v7978, %v7985
  %v7988 = vunpack.c.l.s4 1966171168
  %v7989 = vunpack.c.0.s8 %v7988
  %v7990 = vlaneseq
  %v7991 = vshrl.u32 %v7990, 7
  %v7992 = vsub.s32 %v7989, %v7991
  %v7993 = vrot.slane %v7979, %v7992
  %v7994 = vcombine.low %v7986, %v7993
  %v7995 = vcombine.low %v7036, %v7027
  %v7996 = vcombine.low %v7059, %v7073
  %v7997 = vcombine.low %v7074, %v7075
  %v7998 = vcombine.low %v7066, %v7098
  %v8000 = vunpack.c.l.s4 1966171168
  %v8001 = vunpack.c.0.s8 %v8000
  %v8002 = vlaneseq
  %v8003 = vshrl.u32 %v8002, 7
  %v8004 = vsub.s32 %v8001, %v8003
  %v8005 = vrot.slane %v7995, %v8004
  %v8007 = vunpack.c.l.s4 1966171168
  %v8008 = vunpack.c.0.s8 %v8007
  %v8009 = vlaneseq
  %v8010 = vshrl.u32 %v8009, 7
  %v8011 = vsub.s32 %v8008, %v8010
  %v8012 = vrot.slane %v7996, %v8011
  %v8014 = vunpack.c.l.s4 1966171168
  %v8015 = vunpack.c.0.s8 %v8014
  %v8016 = vlaneseq
  %v8017 = vshrl.u32 %v8016, 7
  %v8018 = vsub.s32 %v8015, %v8017
  %v8019 = vrot.slane %v7997, %v8018
  %v8021 = vunpack.c.l.s4 1966171168
  %v8022 = vunpack.c.0.s8 %v8021
  %v8023 = vlaneseq
  %v8024 = vshrl.u32 %v8023, 7
  %v8025 = vsub.s32 %v8022, %v8024
  %v8026 = vrot.slane %v7998, %v8025
  %v8027 = vcombine.low %v8005, %v8012
  %v8028 = vcombine.low %v8019, %v8026
  %v8030 = vunpack.c.l.s4 1966171168
  %v8031 = vunpack.c.0.s8 %v8030
  %v8032 = vlaneseq
  %v8033 = vshrl.u32 %v8032, 7
  %v8034 = vsub.s32 %v8031, %v8033
  %v8035 = vrot.slane %v8027, %v8034
  %v8037 = vunpack.c.l.s4 1966171168
  %v8038 = vunpack.c.0.s8 %v8037
  %v8039 = vlaneseq
  %v8040 = vshrl.u32 %v8039, 7
  %v8041 = vsub.s32 %v8038, %v8040
  %v8042 = vrot.slane %v8028, %v8041
  %v8043 = vcombine.low %v8035, %v8042
  %v8044 = vcombine.low %v7112, %v7113
  %v8045 = vcombine.low %v7114, %v7105
  %v8046 = vcombine.low %v7137, %v7151
  %v8047 = vcombine.low %v7152, %v7153
  %v8049 = vunpack.c.l.s4 1966171168
  %v8050 = vunpack.c.0.s8 %v8049
  %v8051 = vlaneseq
  %v8052 = vshrl.u32 %v8051, 7
  %v8053 = vsub.s32 %v8050, %v8052
  %v8054 = vrot.slane %v8044, %v8053
  %v8056 = vunpack.c.l.s4 1966171168
  %v8057 = vunpack.c.0.s8 %v8056
  %v8058 = vlaneseq
  %v8059 = vshrl.u32 %v8058, 7
  %v8060 = vsub.s32 %v8057, %v8059
  %v8061 = vrot.slane %v8045, %v8060
  %v8063 = vunpack.c.l.s4 1966171168
  %v8064 = vunpack.c.0.s8 %v8063
  %v8065 = vlaneseq
  %v8066 = vshrl.u32 %v8065, 7
  %v8067 = vsub.s32 %v8064, %v8066
  %v8068 = vrot.slane %v8046, %v8067
  %v8070 = vunpack.c.l.s4 1966171168
  %v8071 = vunpack.c.0.s8 %v8070
  %v8072 = vlaneseq
  %v8073 = vshrl.u32 %v8072, 7
  %v8074 = vsub.s32 %v8071, %v8073
  %v8075 = vrot.slane %v8047, %v8074
  %v8076 = vcombine.low %v8054, %v8061
  %v8077 = vcombine.low %v8068, %v8075
  %v8079 = vunpack.c.l.s4 1966171168
  %v8080 = vunpack.c.0.s8 %v8079
  %v8081 = vlaneseq
  %v8082 = vshrl.u32 %v8081, 7
  %v8083 = vsub.s32 %v8080, %v8082
  %v8084 = vrot.slane %v8076, %v8083
  %v8086 = vunpack.c.l.s4 1966171168
  %v8087 = vunpack.c.0.s8 %v8086
  %v8088 = vlaneseq
  %v8089 = vshrl.u32 %v8088, 7
  %v8090 = vsub.s32 %v8087, %v8089
  %v8091 = vrot.slane %v8077, %v8090
  %v8092 = vcombine.low %v8084, %v8091
  %v8093 = vcombine.low %v7144, %v7176
  %v8094 = vcombine.low %v7190, %v7191
  %v8095 = vcombine.low %v7192, %v7183
  %v8096 = vcombine.low %v7215, %v7229
  %v8098 = vunpack.c.l.s4 1966171168
  %v8099 = vunpack.c.0.s8 %v8098
  %v8100 = vlaneseq
  %v8101 = vshrl.u32 %v8100, 7
  %v8102 = vsub.s32 %v8099, %v8101
  %v8103 = vrot.slane %v8093, %v8102
  %v8105 = vunpack.c.l.s4 1966171168
  %v8106 = vunpack.c.0.s8 %v8105
  %v8107 = vlaneseq
  %v8108 = vshrl.u32 %v8107, 7
  %v8109 = vsub.s32 %v8106, %v8108
  %v8110 = vrot.slane %v8094, %v8109
  %v8112 = vunpack.c.l.s4 1966171168
  %v8113 = vunpack.c.0.s8 %v8112
  %v8114 = vlaneseq
  %v8115 = vshrl.u32 %v8114, 7
  %v8116 = vsub.s32 %v8113, %v8115
  %v8117 = vrot.slane %v8095, %v8116
  %v8119 = vunpack.c.l.s4 1966171168
  %v8120 = vunpack.c.0.s8 %v8119
  %v8121 = vlaneseq
  %v8122 = vshrl.u32 %v8121, 7
  %v8123 = vsub.s32 %v8120, %v8122
  %v8124 = vrot.slane %v8096, %v8123
  %v8125 = vcombine.low %v8103, %v8110
  %v8126 = vcombine.low %v8117, %v8124
  %v8128 = vunpack.c.l.s4 1966171168
  %v8129 = vunpack.c.0.s8 %v8128
  %v8130 = vlaneseq
  %v8131 = vshrl.u32 %v8130, 7
  %v8132 = vsub.s32 %v8129, %v8131
  %v8133 = vrot.slane %v8125, %v8132
  %v8135 = vunpack.c.l.s4 1966171168
  %v8136 = vunpack.c.0.s8 %v8135
  %v8137 = vlaneseq
  %v8138 = vshrl.u32 %v8137, 7
  %v8139 = vsub.s32 %v8136, %v8138
  %v8140 = vrot.slane %v8126, %v8139
  %v8141 = vcombine.low %v8133, %v8140
  %v8142 = vcombine.low %v7230, %v7231
  %v8143 = vcombine.low %v7222, %v7254
  %v8144 = vcombine.low %v7268, %v7269
  %v8145 = vcombine.low %v7270, %v7261
  %v8147 = vunpack.c.l.s4 1966171168
  %v8148 = vunpack.c.0.s8 %v8147
  %v8149 = vlaneseq
  %v8150 = vshrl.u32 %v8149, 7
  %v8151 = vsub.s32 %v8148, %v8150
  %v8152 = vrot.slane %v8142, %v8151
  %v8154 = vunpack.c.l.s4 1966171168
  %v8155 = vunpack.c.0.s8 %v8154
  %v8156 = vlaneseq
  %v8157 = vshrl.u32 %v8156, 7
  %v8158 = vsub.s32 %v8155, %v8157
  %v8159 = vrot.slane %v8143, %v8158
  %v8161 = vunpack.c.l.s4 1966171168
  %v8162 = vunpack.c.0.s8 %v8161
  %v8163 = vlaneseq
  %v8164 = vshrl.u32 %v8163, 7
  %v8165 = vsub.s32 %v8162, %v8164
  %v8166 = vrot.slane %v8144, %v8165
  %v8168 = vunpack.c.l.s4 1966171168
  %v8169 = vunpack.c.0.s8 %v8168
  %v8170 = vlaneseq
  %v8171 = vshrl.u32 %v8170, 7
  %v8172 = vsub.s32 %v8169, %v8171
  %v8173 = vrot.slane %v8145, %v8172
  %v8174 = vcombine.low %v8152, %v8159
  %v8175 = vcombine.low %v8166, %v8173
  %v8177 = vunpack.c.l.s4 1966171168
  %v8178 = vunpack.c.0.s8 %v8177
  %v8179 = vlaneseq
  %v8180 = vshrl.u32 %v8179, 7
  %v8181 = vsub.s32 %v8178, %v8180
  %v8182 = vrot.slane %v8174, %v8181
  %v8184 = vunpack.c.l.s4 1966171168
  %v8185 = vunpack.c.0.s8 %v8184
  %v8186 = vlaneseq
  %v8187 = vshrl.u32 %v8186, 7
  %v8188 = vsub.s32 %v8185, %v8187
  %v8189 = vrot.slane %v8175, %v8188
  %v8190 = vcombine.low %v8182, %v8189
  %v8191 = vcombine.low %v7293, %v7307
  %v8192 = vcombine.low %v7308, %v7309
  %v8193 = vcombine.low %v7300, %v7332
  %v8194 = vcombine.low %v7346, %v7347
  %v8196 = vunpack.c.l.s4 1966171168
  %v8197 = vunpack.c.0.s8 %v8196
  %v8198 = vlaneseq
  %v8199 = vshrl.u32 %v8198, 7
  %v8200 = vsub.s32 %v8197, %v8199
  %v8201 = vrot.slane %v8191, %v8200
  %v8203 = vunpack.c.l.s4 1966171168
  %v8204 = vunpack.c.0.s8 %v8203
  %v8205 = vlaneseq
  %v8206 = vshrl.u32 %v8205, 7
  %v8207 = vsub.s32 %v8204, %v8206
  %v8208 = vrot.slane %v8192, %v8207
  %v8210 = vunpack.c.l.s4 1966171168
  %v8211 = vunpack.c.0.s8 %v8210
  %v8212 = vlaneseq
  %v8213 = vshrl.u32 %v8212, 7
  %v8214 = vsub.s32 %v8211, %v8213
  %v8215 = vrot.slane %v8193, %v8214
  %v8217 = vunpack.c.l.s4 1966171168
  %v8218 = vunpack.c.0.s8 %v8217
  %v8219 = vlaneseq
  %v8220 = vshrl.u32 %v8219, 7
  %v8221 = vsub.s32 %v8218, %v8220
  %v8222 = vrot.slane %v8194, %v8221
  %v8223 = vcombine.low %v8201, %v8208
  %v8224 = vcombine.low %v8215, %v8222
  %v8226 = vunpack.c.l.s4 1966171168
  %v8227 = vunpack.c.0.s8 %v8226
  %v8228 = vlaneseq
  %v8229 = vshrl.u32 %v8228, 7
  %v8230 = vsub.s32 %v8227, %v8229
  %v8231 = vrot.slane %v8223, %v8230
  %v8233 = vunpack.c.l.s4 1966171168
  %v8234 = vunpack.c.0.s8 %v8233
  %v8235 = vlaneseq
  %v8236 = vshrl.u32 %v8235, 7
  %v8237 = vsub.s32 %v8234, %v8236
  %v8238 = vrot.slane %v8224, %v8237
  %v8239 = vcombine.low %v8231, %v8238
  %v8240 = vcombine.low %v7348, %v7339
  %v8241 = vcombine.low %v7371, %v7385
  %v8242 = vcombine.low %v7386, %v7387
  %v8243 = vcombine.low %v7378, %v7410
  %v8245 = vunpack.c.l.s4 1966171168
  %v8246 = vunpack.c.0.s8 %v8245
  %v8247 = vlaneseq
  %v8248 = vshrl.u32 %v8247, 7
  %v8249 = vsub.s32 %v8246, %v8248
  %v8250 = vrot.slane %v8240, %v8249
  %v8252 = vunpack.c.l.s4 1966171168
  %v8253 = vunpack.c.0.s8 %v8252
  %v8254 = vlaneseq
  %v8255 = vshrl.u32 %v8254, 7
  %v8256 = vsub.s32 %v8253, %v8255
  %v8257 = vrot.slane %v8241, %v8256
  %v8259 = vunpack.c.l.s4 1966171168
  %v8260 = vunpack.c.0.s8 %v8259
  %v8261 = vlaneseq
  %v8262 = vshrl.u32 %v8261, 7
  %v8263 = vsub.s32 %v8260, %v8262
  %v8264 = vrot.slane %v8242, %v8263
  %v8266 = vunpack.c.l.s4 1966171168
  %v8267 = vunpack.c.0.s8 %v8266
  %v8268 = vlaneseq
  %v8269 = vshrl.u32 %v8268, 7
  %v8270 = vsub.s32 %v8267, %v8269
  %v8271 = vrot.slane %v8243, %v8270
  %v8272 = vcombine.low %v8250, %v8257
  %v8273 = vcombine.low %v8264, %v8271
  %v8275 = vunpack.c.l.s4 1966171168
  %v8276 = vunpack.c.0.s8 %v8275
  %v8277 = vlaneseq
  %v8278 = vshrl.u32 %v8277, 7
  %v8279 = vsub.s32 %v8276, %v8278
  %v8280 = vrot.slane %v8272, %v8279
  %v8282 = vunpack.c.l.s4 1966171168
  %v8283 = vunpack.c.0.s8 %v8282
  %v8284 = vlaneseq
  %v8285 = vshrl.u32 %v8284, 7
  %v8286 = vsub.s32 %v8283, %v8285
  %v8287 = vrot.slane %v8273, %v8286
  %v8288 = vcombine.low %v8280, %v8287
  %v8289 = vcombine.low %v7424, %v7425
  %v8290 = vcombine.low %v7426, %v7417
  %v8291 = vcombine.low %v7449, %v7463
  %v8292 = vcombine.low %v7464, %v7465
  %v8294 = vunpack.c.l.s4 1966171168
  %v8295 = vunpack.c.0.s8 %v8294
  %v8296 = vlaneseq
  %v8297 = vshrl.u32 %v8296, 7
  %v8298 = vsub.s32 %v8295, %v8297
  %v8299 = vrot.slane %v8289, %v8298
  %v8301 = vunpack.c.l.s4 1966171168
  %v8302 = vunpack.c.0.s8 %v8301
  %v8303 = vlaneseq
  %v8304 = vshrl.u32 %v8303, 7
  %v8305 = vsub.s32 %v8302, %v8304
  %v8306 = vrot.slane %v8290, %v8305
  %v8308 = vunpack.c.l.s4 1966171168
  %v8309 = vunpack.c.0.s8 %v8308
  %v8310 = vlaneseq
  %v8311 = vshrl.u32 %v8310, 7
  %v8312 = vsub.s32 %v8309, %v8311
  %v8313 = vrot.slane %v8291, %v8312
  %v8315 = vunpack.c.l.s4 1966171168
  %v8316 = vunpack.c.0.s8 %v8315
  %v8317 = vlaneseq
  %v8318 = vshrl.u32 %v8317, 7
  %v8319 = vsub.s32 %v8316, %v8318
  %v8320 = vrot.slane %v8292, %v8319
  %v8321 = vcombine.low %v8299, %v8306
  %v8322 = vcombine.low %v8313, %v8320
  %v8324 = vunpack.c.l.s4 1966171168
  %v8325 = vunpack.c.0.s8 %v8324
  %v8326 = vlaneseq
  %v8327 = vshrl.u32 %v8326, 7
  %v8328 = vsub.s32 %v8325, %v8327
  %v8329 = vrot.slane %v8321, %v8328
  %v8331 = vunpack.c.l.s4 1966171168
  %v8332 = vunpack.c.0.s8 %v8331
  %v8333 = vlaneseq
  %v8334 = vshrl.u32 %v8333, 7
  %v8335 = vsub.s32 %v8332, %v8334
  %v8336 = vrot.slane %v8322, %v8335
  %v8337 = vcombine.low %v8329, %v8336
  %v8338 = vcombine.low %v7456, %v7488
  %v8339 = vcombine.low %v7502, %v7503
  %v8340 = vcombine.low %v7504, %v7495
  %v8342 = vunpack.c.l.s4 1966171168
  %v8343 = vunpack.c.0.s8 %v8342
  %v8344 = vlaneseq
  %v8345 = vshrl.u32 %v8344, 7
  %v8346 = vsub.s32 %v8343, %v8345
  %v8347 = vrot.slane %v8338, %v8346
  %v8349 = vunpack.c.l.s4 1966171168
  %v8350 = vunpack.c.0.s8 %v8349
  %v8351 = vlaneseq
  %v8352 = vshrl.u32 %v8351, 7
  %v8353 = vsub.s32 %v8350, %v8352
  %v8354 = vrot.slane %v8339, %v8353
  %v8356 = vunpack.c.l.s4 1966171168
  %v8357 = vunpack.c.0.s8 %v8356
  %v8358 = vlaneseq
  %v8359 = vshrl.u32 %v8358, 7
  %v8360 = vsub.s32 %v8357, %v8359
  %v8361 = vrot.slane %v8340, %v8360
  %v8362 = vcombine.low %v8347, %v8354
  %v8364 = vunpack.c.l.s4 1966171168
  %v8365 = vunpack.c.0.s8 %v8364
  %v8366 = vlaneseq
  %v8367 = vshrl.u32 %v8366, 7
  %v8368 = vsub.s32 %v8365, %v8367
  %v8369 = vrot.slane %v8362, %v8368
  %v8371 = vunpack.c.l.s4 1966171168
  %v8372 = vunpack.c.0.s8 %v8371
  %v8373 = vlaneseq
  %v8374 = vshrl.u32 %v8373, 7
  %v8375 = vsub.s32 %v8372, %v8374
  %v8376 = vrot.slane %v8361, %v8375
  %v8377 = vcombine.low %v8369, %v8376
  %8378 = vrot.lane.b32.xlu0 %v7994, 64
  %v8379 = vpop.permute.xlu0 %8378
  %8380 = vrot.lane.b32.xlu0 %v8043, 64
  %v8381 = vpop.permute.xlu0 %8380
  %8382 = vrot.lane.b32.xlu0 %v8092, 64
  %v8383 = vpop.permute.xlu0 %8382
  %8384 = vrot.lane.b32.xlu0 %v8141, 64
  %v8385 = vpop.permute.xlu0 %8384
  %8386 = vrot.lane.b32.xlu0 %v8190, 64
  %v8387 = vpop.permute.xlu0 %8386
  %8388 = vrot.lane.b32.xlu0 %v8239, 64
  %v8389 = vpop.permute.xlu0 %8388
  %8390 = vrot.lane.b32.xlu0 %v8288, 64
  %v8391 = vpop.permute.xlu0 %8390
  %8392 = vrot.lane.b32.xlu0 %v8337, 64
  %v8393 = vpop.permute.xlu0 %8392
  %8394 = vrot.lane.b32.xlu0 %v8377, 64
  %v8395 = vpop.permute.xlu0 %8394
  %v8405 = vsel %vm2284, %v7553, %v8379
  %v8406 = vsel %vm2284, %v7602, %v8381
  %v8407 = vsel %vm2284, %v7651, %v8383
  %v8408 = vsel %vm2284, %v7700, %v8385
  %v8409 = vsel %vm2284, %v7749, %v8387
  %v8410 = vsel %vm2284, %v7798, %v8389
  %v8411 = vsel %vm2284, %v7847, %v8391
  %v8412 = vsel %vm2284, %v7896, %v8393
  %v8413 = vsel %vm2284, %v7936, %v8395
  %v8414 = vpack.c.bf16 %v8406, %v8405
  %v8415 = vpack.c.bf16 %v8408, %v8407
  %v8416 = vpack.c.bf16 %v8410, %v8409
  %v8417 = vpack.c.bf16 %v8412, %v8411
  %v8418 = vpack.c.bf16 %v8413, %v8413
  %v8435 = vunpack.c.l.b16 %v883
  %v8436 = vunpack.c.l.b16 %v884
  %v8437 = vunpack.c.l.b16 %v885
  %v8438 = vunpack.c.l.b16 %v886
  %v8439 = vunpack.c.l.b16 %v887
  %v8440 = vunpack.c.l.b16 %v888
  %v8441 = vunpack.c.l.b16 %v889
  %v8442 = vunpack.c.l.b16 %v890
  %v8443 = vunpack.c.l.b16 %v891
  %v8444 = vunpack.c.l.b16 %v892
  %v8445 = vunpack.c.l.b16 %v893
  %v8446 = vunpack.c.l.b16 %v894
  %v8447 = vunpack.c.l.b16 %v895
  %v8448 = vunpack.c.l.b16 %v896
  %v8449 = vunpack.c.l.b16 %v897
  %v8450 = vunpack.c.l.b16 %v898
  %v8451 = vpack.c.b16 %v8436, %v8435
  %v8452 = vpack.c.b16 %v8438, %v8437
  %v8453 = vpack.c.b16 %v8440, %v8439
  %v8454 = vpack.c.b16 %v8442, %v8441
  %v8455 = vpack.c.b16 %v8444, %v8443
  %v8456 = vpack.c.b16 %v8446, %v8445
  %v8457 = vpack.c.b16 %v8448, %v8447
  %v8458 = vpack.c.b16 %v8450, %v8449
  %8467 = vmatprep.subr.bf16.mxu0 0
  %8468 = vmatpush1.bf16.msra.mxu0 %v8451
  %8469 = vmatprep.subr.bf16.mxu0 0
  %8470 = vmatpush1.bf16.msra.mxu0 %v8452
  %8471 = vmatprep.subr.bf16.mxu0 0
  %8472 = vmatpush1.bf16.msra.mxu0 %v8453
  %8473 = vmatprep.subr.bf16.mxu0 0
  %8474 = vmatpush1.bf16.msra.mxu0 %v8454
  %8475 = vmatprep.subr.bf16.mxu0 0
  %8476 = vmatpush1.bf16.msra.mxu0 %v8455
  %8477 = vmatprep.subr.bf16.mxu0 0
  %8478 = vmatpush1.bf16.msra.mxu0 %v8456
  %8479 = vmatprep.subr.bf16.mxu0 0
  %8480 = vmatpush1.bf16.msra.mxu0 %v8457
  %8481 = vmatprep.subr.bf16.mxu0 0
  %8482 = vmatpush1.bf16.msra.mxu0 %v8458
  %8483 = vmatprep.subr.bf16.mxu0 0
  %8484 = vmatpush1.bf16.msra.mxu0 0
  %8485 = vmatprep.subr.bf16.mxu0 0
  %8486 = vmatpush1.bf16.msra.mxu0 0
  %8487 = vmatprep.subr.bf16.mxu0 0
  %8488 = vmatpush1.bf16.msra.mxu0 0
  %8489 = vmatprep.subr.bf16.mxu0 0
  %8490 = vmatpush1.bf16.msra.mxu0 0
  %8491 = vmatprep.subr.bf16.mxu0 0
  %8492 = vmatpush1.bf16.msra.mxu0 0
  %8493 = vmatprep.subr.bf16.mxu0 0
  %8494 = vmatpush1.bf16.msra.mxu0 0
  %8495 = vmatprep.subr.bf16.mxu0 0
  %8496 = vmatpush1.bf16.msra.mxu0 0
  %8497 = vmatprep.subr.bf16.mxu0 0
  %8498 = vmatpush1.bf16.msra.mxu0 0
  %8499 = vmatprep.mubr.bf16.mxu0 0
  %8500 = vmatmul.mubr.bf16.gmra.mrb[0].mxu0 %v8414
  %v8501 = vpop.f32.mrb[0].mxu0
  %v8502 = vadd.f32 0.0, %v8501
  %v8503 = vpop.f32.mrb[0].mxu0
  %v8504 = vpop.f32.mrb[0].mxu0
  %v8505 = vadd.f32 0.0, %v8504
  %v8506 = vpop.f32.mrb[0].mxu0
  %8507 = vmatprep.mubr.bf16.mxu0 0
  %8508 = vmatmul.mubr.bf16.gmra.mrb[0].mxu0 %v8415
  %v8509 = vpop.f32.mrb[0].mxu0
  %v8510 = vadd.f32 0.0, %v8509
  %v8511 = vpop.f32.mrb[0].mxu0
  %v8512 = vpop.f32.mrb[0].mxu0
  %v8513 = vadd.f32 0.0, %v8512
  %v8514 = vpop.f32.mrb[0].mxu0
  %8515 = vmatprep.mubr.bf16.mxu0 0
  %8516 = vmatmul.mubr.bf16.gmra.mrb[0].mxu0 %v8416
  %v8517 = vpop.f32.mrb[0].mxu0
  %v8518 = vadd.f32 0.0, %v8517
  %v8519 = vpop.f32.mrb[0].mxu0
  %v8520 = vpop.f32.mrb[0].mxu0
  %v8521 = vadd.f32 0.0, %v8520
  %v8522 = vpop.f32.mrb[0].mxu0
  %8523 = vmatprep.mubr.bf16.mxu0 0
  %8524 = vmatmul.mubr.bf16.gmra.mrb[0].mxu0 %v8417
  %v8525 = vpop.f32.mrb[0].mxu0
  %v8526 = vadd.f32 0.0, %v8525
  %v8527 = vpop.f32.mrb[0].mxu0
  %v8528 = vpop.f32.mrb[0].mxu0
  %v8529 = vadd.f32 0.0, %v8528
  %v8530 = vpop.f32.mrb[0].mxu0
  %8531 = vmatprep.mubr.bf16.mxu0 0
  %8532 = vmatmul.mubr.bf16.gmra.mrb[0].mxu0 %v8418
  %v8533 = vpop.f32.mrb[0].mxu0
  %v8534 = vadd.f32 0.0, %v8533
  %v8535 = vpop.f32.mrb[0].mxu0
  %v8536 = vpop.f32.mrb[0].mxu0
  %v8537 = vpop.f32.mrb[0].mxu0
  %8538 = vdwg.mxu0
  %v8539 = vadd.f32 %v811, %v8502
  %v8540 = vadd.f32 %v814, %v8505
  %v8541 = vadd.f32 %v819, %v8510
  %v8542 = vadd.f32 %v822, %v8513
  %v8543 = vadd.f32 %v827, %v8518
  %v8544 = vadd.f32 %v830, %v8521
  %v8545 = vadd.f32 %v835, %v8526
  %v8546 = vadd.f32 %v838, %v8529
  %v8547 = vadd.f32 %v843, %v8534
  %v8548 = vmul.f32 %v8539, %v8539
  %v8549 = vmul.f32 %v8540, %v8540
  %v8550 = vmul.f32 %v8541, %v8541
  %v8551 = vmul.f32 %v8542, %v8542
  %v8552 = vmul.f32 %v8543, %v8543
  %v8553 = vmul.f32 %v8544, %v8544
  %v8554 = vmul.f32 %v8545, %v8545
  %v8555 = vmul.f32 %v8546, %v8546
  %v8556 = vmul.f32 %v8547, %v8547
  %8557 = vadd.xlane.f32.xlu0 %v8548
  %v8558 = vpop.xlane.xlu0 %8557
  %8559 = vadd.xlane.f32.xlu0 %v8549
  %v8560 = vpop.xlane.xlu0 %8559
  %8561 = vadd.xlane.f32.xlu0 %v8550
  %v8562 = vpop.xlane.xlu0 %8561
  %8563 = vadd.xlane.f32.xlu0 %v8551
  %v8564 = vpop.xlane.xlu0 %8563
  %8565 = vadd.xlane.f32.xlu0 %v8552
  %v8566 = vpop.xlane.xlu0 %8565
  %8567 = vadd.xlane.f32.xlu0 %v8553
  %v8568 = vpop.xlane.xlu0 %8567
  %8569 = vadd.xlane.f32.xlu0 %v8554
  %v8570 = vpop.xlane.xlu0 %8569
  %8571 = vadd.xlane.f32.xlu0 %v8555
  %v8572 = vpop.xlane.xlu0 %8571
  %v8573 = vsel %vm988, %v8556, 0.0
  %8574 = vadd.xlane.f32.xlu0 %v8573
  %v8575 = vpop.xlane.xlu0 %8574
  %v8576 = vmul.f32 %v8558, %v992
  %v8577 = vmul.f32 %v8560, %v992
  %v8578 = vmul.f32 %v8562, %v992
  %v8579 = vmul.f32 %v8564, %v992
  %v8580 = vmul.f32 %v8566, %v992
  %v8581 = vmul.f32 %v8568, %v992
  %v8582 = vmul.f32 %v8570, %v992
  %v8583 = vmul.f32 %v8572, %v992
  %v8584 = vmul.f32 %v8575, %v992
  %v8585 = vadd.f32 %v8576, 1e-05
  %v8586 = vadd.f32 %v8577, 1e-05
  %v8587 = vadd.f32 %v8578, 1e-05
  %v8588 = vadd.f32 %v8579, 1e-05
  %v8589 = vadd.f32 %v8580, 1e-05
  %v8590 = vadd.f32 %v8581, 1e-05
  %v8591 = vadd.f32 %v8582, 1e-05
  %v8592 = vadd.f32 %v8583, 1e-05
  %v8593 = vadd.f32 %v8584, 1e-05
  %v8594 = vrsqrt.pop %v8585
  %v8595 = vrsqrt.pop %v8586
  %v8596 = vrsqrt.pop %v8587
  %v8597 = vrsqrt.pop %v8588
  %v8598 = vrsqrt.pop %v8589
  %v8599 = vrsqrt.pop %v8590
  %v8600 = vrsqrt.pop %v8591
  %v8601 = vrsqrt.pop %v8592
  %v8602 = vrsqrt.pop %v8593
  %v8603 = vmul.f32 %v8539, %v8594
  %v8604 = vmul.f32 %v8540, %v8595
  %v8605 = vmul.f32 %v8541, %v8596
  %v8606 = vmul.f32 %v8542, %v8597
  %v8607 = vmul.f32 %v8543, %v8598
  %v8608 = vmul.f32 %v8544, %v8599
  %v8609 = vmul.f32 %v8545, %v8600
  %v8610 = vmul.f32 %v8546, %v8601
  %v8611 = vmul.f32 %v8547, %v8602
  %v8613 = vlaneseq
  %v8614 = vshrl.u32 %v8613, 7
  %v8615 = vsub.s32 0, %v8614
  %v8616 = vrot.slane %v849, %v8615
  %v8618 = vmul.f32 %v8603, %v8616
  %v8619 = vmul.f32 %v8604, %v8616
  %v8620 = vmul.f32 %v8605, %v8616
  %v8621 = vmul.f32 %v8606, %v8616
  %v8622 = vmul.f32 %v8607, %v8616
  %v8623 = vmul.f32 %v8608, %v8616
  %v8624 = vmul.f32 %v8609, %v8616
  %v8625 = vmul.f32 %v8610, %v8616
  %v8626 = vmul.f32 %v8611, %v8616
  %v8627 = vpack.c.bf16 %v8619, %v8618
  %v8628 = vpack.c.bf16 %v8621, %v8620
  %v8629 = vpack.c.bf16 %v8623, %v8622
  %v8630 = vpack.c.bf16 %v8625, %v8624
  %v8631 = vpack.c.bf16 %v8626, %v8626
  %v8664 = vunpack.c.l.b16 %v899
  %v8665 = vunpack.c.h.b16 %v899
  %v8666 = vunpack.c.l.b16 %v900
  %v8667 = vunpack.c.h.b16 %v900
  %v8668 = vunpack.c.l.b16 %v901
  %v8669 = vunpack.c.h.b16 %v901
  %v8670 = vunpack.c.l.b16 %v902
  %v8671 = vunpack.c.h.b16 %v902
  %v8672 = vunpack.c.l.b16 %v903
  %v8673 = vunpack.c.h.b16 %v903
  %v8674 = vunpack.c.l.b16 %v904
  %v8675 = vunpack.c.h.b16 %v904
  %v8676 = vunpack.c.l.b16 %v905
  %v8677 = vunpack.c.h.b16 %v905
  %v8678 = vunpack.c.l.b16 %v906
  %v8679 = vunpack.c.h.b16 %v906
  %v8680 = vunpack.c.l.b16 %v907
  %v8681 = vunpack.c.h.b16 %v907
  %v8682 = vunpack.c.l.b16 %v908
  %v8683 = vunpack.c.h.b16 %v908
  %v8684 = vunpack.c.l.b16 %v909
  %v8685 = vunpack.c.h.b16 %v909
  %v8686 = vunpack.c.l.b16 %v910
  %v8687 = vunpack.c.h.b16 %v910
  %v8688 = vunpack.c.l.b16 %v911
  %v8689 = vunpack.c.h.b16 %v911
  %v8690 = vunpack.c.l.b16 %v912
  %v8691 = vunpack.c.h.b16 %v912
  %v8692 = vunpack.c.l.b16 %v913
  %v8693 = vunpack.c.h.b16 %v913
  %v8694 = vunpack.c.l.b16 %v914
  %v8695 = vunpack.c.h.b16 %v914
  %v8696 = vunpack.c.l.b16 %v915
  %v8697 = vunpack.c.h.b16 %v915
  %v8698 = vunpack.c.l.b16 %v916
  %v8699 = vunpack.c.h.b16 %v916
  %v8700 = vunpack.c.l.b16 %v917
  %v8701 = vunpack.c.h.b16 %v917
  %v8702 = vunpack.c.l.b16 %v918
  %v8703 = vunpack.c.h.b16 %v918
  %v8704 = vunpack.c.l.b16 %v919
  %v8705 = vunpack.c.h.b16 %v919
  %v8706 = vunpack.c.l.b16 %v920
  %v8707 = vunpack.c.h.b16 %v920
  %v8708 = vunpack.c.l.b16 %v921
  %v8709 = vunpack.c.h.b16 %v921
  %v8710 = vunpack.c.l.b16 %v922
  %v8711 = vunpack.c.h.b16 %v922
  %v8712 = vunpack.c.l.b16 %v923
  %v8713 = vunpack.c.h.b16 %v923
  %v8714 = vunpack.c.l.b16 %v924
  %v8715 = vunpack.c.h.b16 %v924
  %v8716 = vunpack.c.l.b16 %v925
  %v8717 = vunpack.c.h.b16 %v925
  %v8718 = vunpack.c.l.b16 %v926
  %v8719 = vunpack.c.h.b16 %v926
  %v8720 = vunpack.c.l.b16 %v927
  %v8721 = vunpack.c.h.b16 %v927
  %v8722 = vunpack.c.l.b16 %v928
  %v8723 = vunpack.c.h.b16 %v928
  %v8724 = vunpack.c.l.b16 %v929
  %v8725 = vunpack.c.h.b16 %v929
  %v8726 = vunpack.c.l.b16 %v930
  %v8727 = vunpack.c.h.b16 %v930
  %v8728 = vpack.c.b16 %v8668, %v8664
  %v8729 = vpack.c.b16 %v8669, %v8665
  %v8730 = vpack.c.b16 %v8670, %v8666
  %v8731 = vpack.c.b16 %v8671, %v8667
  %v8732 = vpack.c.b16 %v8676, %v8672
  %v8733 = vpack.c.b16 %v8677, %v8673
  %v8734 = vpack.c.b16 %v8678, %v8674
  %v8735 = vpack.c.b16 %v8679, %v8675
  %v8736 = vpack.c.b16 %v8684, %v8680
  %v8737 = vpack.c.b16 %v8685, %v8681
  %v8738 = vpack.c.b16 %v8686, %v8682
  %v8739 = vpack.c.b16 %v8687, %v8683
  %v8740 = vpack.c.b16 %v8692, %v8688
  %v8741 = vpack.c.b16 %v8693, %v8689
  %v8742 = vpack.c.b16 %v8694, %v8690
  %v8743 = vpack.c.b16 %v8695, %v8691
  %v8744 = vpack.c.b16 %v8700, %v8696
  %v8745 = vpack.c.b16 %v8701, %v8697
  %v8746 = vpack.c.b16 %v8702, %v8698
  %v8747 = vpack.c.b16 %v8703, %v8699
  %v8748 = vpack.c.b16 %v8708, %v8704
  %v8749 = vpack.c.b16 %v8709, %v8705
  %v8750 = vpack.c.b16 %v8710, %v8706
  %v8751 = vpack.c.b16 %v8711, %v8707
  %v8752 = vpack.c.b16 %v8716, %v8712
  %v8753 = vpack.c.b16 %v8717, %v8713
  %v8754 = vpack.c.b16 %v8718, %v8714
  %v8755 = vpack.c.b16 %v8719, %v8715
  %v8756 = vpack.c.b16 %v8724, %v8720
  %v8757 = vpack.c.b16 %v8725, %v8721
  %v8758 = vpack.c.b16 %v8726, %v8722
  %v8759 = vpack.c.b16 %v8727, %v8723
  %8792 = vmatprep.subr.bf16.mxu0 %v8729
  %8793 = vmatpush1.bf16.msra.mxu0 %v8728
  %8794 = vmatprep.subr.bf16.mxu0 %v8733
  %8795 = vmatpush1.bf16.msra.mxu0 %v8732
  %8796 = vmatprep.subr.bf16.mxu0 %v8737
  %8797 = vmatpush1.bf16.msra.mxu0 %v8736
  %8798 = vmatprep.subr.bf16.mxu0 %v8741
  %8799 = vmatpush1.bf16.msra.mxu0 %v8740
  %8800 = vmatprep.subr.bf16.mxu0 %v8745
  %8801 = vmatpush1.bf16.msra.mxu0 %v8744
  %8802 = vmatprep.subr.bf16.mxu0 %v8749
  %8803 = vmatpush1.bf16.msra.mxu0 %v8748
  %8804 = vmatprep.subr.bf16.mxu0 %v8753
  %8805 = vmatpush1.bf16.msra.mxu0 %v8752
  %8806 = vmatprep.subr.bf16.mxu0 %v8757
  %8807 = vmatpush1.bf16.msra.mxu0 %v8756
  %8808 = vmatprep.subr.bf16.mxu0 0
  %8809 = vmatpush1.bf16.msra.mxu0 0
  %8810 = vmatprep.subr.bf16.mxu0 0
  %8811 = vmatpush1.bf16.msra.mxu0 0
  %8812 = vmatprep.subr.bf16.mxu0 0
  %8813 = vmatpush1.bf16.msra.mxu0 0
  %8814 = vmatprep.subr.bf16.mxu0 0
  %8815 = vmatpush1.bf16.msra.mxu0 0
  %8816 = vmatprep.subr.bf16.mxu0 0
  %8817 = vmatpush1.bf16.msra.mxu0 0
  %8818 = vmatprep.subr.bf16.mxu0 0
  %8819 = vmatpush1.bf16.msra.mxu0 0
  %8820 = vmatprep.subr.bf16.mxu0 0
  %8821 = vmatpush1.bf16.msra.mxu0 0
  %8822 = vmatprep.subr.bf16.mxu0 0
  %8823 = vmatpush1.bf16.msra.mxu0 0
  %8824 = vmatprep.mubr.bf16.mxu0 0
  %8825 = vmatmul.mubr.bf16.gmra.mrb[0].mxu0 %v8627
  %v8826 = vpop.f32.mrb[0].mxu0
  %v8827 = vadd.f32 0.0, %v8826
  %v8828 = vpop.f32.mrb[0].mxu0
  %v8829 = vadd.f32 0.0, %v8828
  %v8830 = vpop.f32.mrb[0].mxu0
  %v8831 = vadd.f32 0.0, %v8830
  %v8832 = vpop.f32.mrb[0].mxu0
  %v8833 = vadd.f32 0.0, %v8832
  %8834 = vmatprep.mubr.bf16.mxu0 0
  %8835 = vmatmul.mubr.bf16.gmra.mrb[0].mxu0 %v8628
  %v8836 = vpop.f32.mrb[0].mxu0
  %v8837 = vadd.f32 0.0, %v8836
  %v8838 = vpop.f32.mrb[0].mxu0
  %v8839 = vadd.f32 0.0, %v8838
  %v8840 = vpop.f32.mrb[0].mxu0
  %v8841 = vadd.f32 0.0, %v8840
  %v8842 = vpop.f32.mrb[0].mxu0
  %v8843 = vadd.f32 0.0, %v8842
  %8844 = vmatprep.mubr.bf16.mxu0 0
  %8845 = vmatmul.mubr.bf16.gmra.mrb[0].mxu0 %v8629
  %v8846 = vpop.f32.mrb[0].mxu0
  %v8847 = vadd.f32 0.0, %v8846
  %v8848 = vpop.f32.mrb[0].mxu0
  %v8849 = vadd.f32 0.0, %v8848
  %v8850 = vpop.f32.mrb[0].mxu0
  %v8851 = vadd.f32 0.0, %v8850
  %v8852 = vpop.f32.mrb[0].mxu0
  %v8853 = vadd.f32 0.0, %v8852
  %8854 = vmatprep.mubr.bf16.mxu0 0
  %8855 = vmatmul.mubr.bf16.gmra.mrb[0].mxu0 %v8630
  %v8856 = vpop.f32.mrb[0].mxu0
  %v8857 = vadd.f32 0.0, %v8856
  %v8858 = vpop.f32.mrb[0].mxu0
  %v8859 = vadd.f32 0.0, %v8858
  %v8860 = vpop.f32.mrb[0].mxu0
  %v8861 = vadd.f32 0.0, %v8860
  %v8862 = vpop.f32.mrb[0].mxu0
  %v8863 = vadd.f32 0.0, %v8862
  %8864 = vmatprep.mubr.bf16.mxu0 0
  %8865 = vmatmul.mubr.bf16.gmra.mrb[0].mxu0 %v8631
  %v8866 = vpop.f32.mrb[0].mxu0
  %v8867 = vadd.f32 0.0, %v8866
  %v8868 = vpop.f32.mrb[0].mxu0
  %v8869 = vadd.f32 0.0, %v8868
  %v8870 = vpop.f32.mrb[0].mxu0
  %v8871 = vpop.f32.mrb[0].mxu0
  %8872 = vdwg.mxu0
  %8873 = vmatprep.subr.bf16.mxu0 %v8731
  %8874 = vmatpush1.bf16.msra.mxu0 %v8730
  %8875 = vmatprep.subr.bf16.mxu0 %v8735
  %8876 = vmatpush1.bf16.msra.mxu0 %v8734
  %8877 = vmatprep.subr.bf16.mxu0 %v8739
  %8878 = vmatpush1.bf16.msra.mxu0 %v8738
  %8879 = vmatprep.subr.bf16.mxu0 %v8743
  %8880 = vmatpush1.bf16.msra.mxu0 %v8742
  %8881 = vmatprep.subr.bf16.mxu0 %v8747
  %8882 = vmatpush1.bf16.msra.mxu0 %v8746
  %8883 = vmatprep.subr.bf16.mxu0 %v8751
  %8884 = vmatpush1.bf16.msra.mxu0 %v8750
  %8885 = vmatprep.subr.bf16.mxu0 %v8755
  %8886 = vmatpush1.bf16.msra.mxu0 %v8754
  %8887 = vmatprep.subr.bf16.mxu0 %v8759
  %8888 = vmatpush1.bf16.msra.mxu0 %v8758
  %8889 = vmatprep.subr.bf16.mxu0 0
  %8890 = vmatpush1.bf16.msra.mxu0 0
  %8891 = vmatprep.subr.bf16.mxu0 0
  %8892 = vmatpush1.bf16.msra.mxu0 0
  %8893 = vmatprep.subr.bf16.mxu0 0
  %8894 = vmatpush1.bf16.msra.mxu0 0
  %8895 = vmatprep.subr.bf16.mxu0 0
  %8896 = vmatpush1.bf16.msra.mxu0 0
  %8897 = vmatprep.subr.bf16.mxu0 0
  %8898 = vmatpush1.bf16.msra.mxu0 0
  %8899 = vmatprep.subr.bf16.mxu0 0
  %8900 = vmatpush1.bf16.msra.mxu0 0
  %8901 = vmatprep.subr.bf16.mxu0 0
  %8902 = vmatpush1.bf16.msra.mxu0 0
  %8903 = vmatprep.subr.bf16.mxu0 0
  %8904 = vmatpush1.bf16.msra.mxu0 0
  %8905 = vmatprep.mubr.bf16.mxu0 0
  %8906 = vmatmul.mubr.bf16.gmra.mrb[0].mxu0 %v8627
  %v8907 = vpop.f32.mrb[0].mxu0
  %v8908 = vadd.f32 0.0, %v8907
  %v8909 = vpop.f32.mrb[0].mxu0
  %v8910 = vadd.f32 0.0, %v8909
  %v8911 = vpop.f32.mrb[0].mxu0
  %v8912 = vadd.f32 0.0, %v8911
  %v8913 = vpop.f32.mrb[0].mxu0
  %v8914 = vadd.f32 0.0, %v8913
  %8915 = vmatprep.mubr.bf16.mxu0 0
  %8916 = vmatmul.mubr.bf16.gmra.mrb[0].mxu0 %v8628
  %v8917 = vpop.f32.mrb[0].mxu0
  %v8918 = vadd.f32 0.0, %v8917
  %v8919 = vpop.f32.mrb[0].mxu0
  %v8920 = vadd.f32 0.0, %v8919
  %v8921 = vpop.f32.mrb[0].mxu0
  %v8922 = vadd.f32 0.0, %v8921
  %v8923 = vpop.f32.mrb[0].mxu0
  %v8924 = vadd.f32 0.0, %v8923
  %8925 = vmatprep.mubr.bf16.mxu0 0
  %8926 = vmatmul.mubr.bf16.gmra.mrb[0].mxu0 %v8629
  %v8927 = vpop.f32.mrb[0].mxu0
  %v8928 = vadd.f32 0.0, %v8927
  %v8929 = vpop.f32.mrb[0].mxu0
  %v8930 = vadd.f32 0.0, %v8929
  %v8931 = vpop.f32.mrb[0].mxu0
  %v8932 = vadd.f32 0.0, %v8931
  %v8933 = vpop.f32.mrb[0].mxu0
  %v8934 = vadd.f32 0.0, %v8933
  %8935 = vmatprep.mubr.bf16.mxu0 0
  %8936 = vmatmul.mubr.bf16.gmra.mrb[0].mxu0 %v8630
  %v8937 = vpop.f32.mrb[0].mxu0
  %v8938 = vadd.f32 0.0, %v8937
  %v8939 = vpop.f32.mrb[0].mxu0
  %v8940 = vadd.f32 0.0, %v8939
  %v8941 = vpop.f32.mrb[0].mxu0
  %v8942 = vadd.f32 0.0, %v8941
  %v8943 = vpop.f32.mrb[0].mxu0
  %v8944 = vadd.f32 0.0, %v8943
  %8945 = vmatprep.mubr.bf16.mxu0 0
  %8946 = vmatmul.mubr.bf16.gmra.mrb[0].mxu0 %v8631
  %v8947 = vpop.f32.mrb[0].mxu0
  %v8948 = vadd.f32 0.0, %v8947
  %v8949 = vpop.f32.mrb[0].mxu0
  %v8950 = vadd.f32 0.0, %v8949
  %v8951 = vpop.f32.mrb[0].mxu0
  %v8952 = vpop.f32.mrb[0].mxu0
  %8953 = vdwg.mxu0
  %v8954 = vxor.u32 %v8827, 2147483648
  %v8955 = vxor.u32 %v8829, 2147483648
  %v8956 = vxor.u32 %v8831, 2147483648
  %v8957 = vxor.u32 %v8833, 2147483648
  %v8958 = vxor.u32 %v8837, 2147483648
  %v8959 = vxor.u32 %v8839, 2147483648
  %v8960 = vxor.u32 %v8841, 2147483648
  %v8961 = vxor.u32 %v8843, 2147483648
  %v8962 = vxor.u32 %v8847, 2147483648
  %v8963 = vxor.u32 %v8849, 2147483648
  %v8964 = vxor.u32 %v8851, 2147483648
  %v8965 = vxor.u32 %v8853, 2147483648
  %v8966 = vxor.u32 %v8857, 2147483648
  %v8967 = vxor.u32 %v8859, 2147483648
  %v8968 = vxor.u32 %v8861, 2147483648
  %v8969 = vxor.u32 %v8863, 2147483648
  %v8970 = vxor.u32 %v8867, 2147483648
  %v8971 = vxor.u32 %v8869, 2147483648
  %v8972 = vmul.f32 %v8954, 1.442695
  %v8973 = vpow.pop %v8972
  %v8974 = vmul.f32 %v8955, 1.442695
  %v8975 = vpow.pop %v8974
  %v8976 = vmul.f32 %v8956, 1.442695
  %v8977 = vpow.pop %v8976
  %v8978 = vmul.f32 %v8957, 1.442695
  %v8979 = vpow.pop %v8978
  %v8980 = vmul.f32 %v8958, 1.442695
  %v8981 = vpow.pop %v8980
  %v8982 = vmul.f32 %v8959, 1.442695
  %v8983 = vpow.pop %v8982
  %v8984 = vmul.f32 %v8960, 1.442695
  %v8985 = vpow.pop %v8984
  %v8986 = vmul.f32 %v8961, 1.442695
  %v8987 = vpow.pop %v8986
  %v8988 = vmul.f32 %v8962, 1.442695
  %v8989 = vpow.pop %v8988
  %v8990 = vmul.f32 %v8963, 1.442695
  %v8991 = vpow.pop %v8990
  %v8992 = vmul.f32 %v8964, 1.442695
  %v8993 = vpow.pop %v8992
  %v8994 = vmul.f32 %v8965, 1.442695
  %v8995 = vpow.pop %v8994
  %v8996 = vmul.f32 %v8966, 1.442695
  %v8997 = vpow.pop %v8996
  %v8998 = vmul.f32 %v8967, 1.442695
  %v8999 = vpow.pop %v8998
  %v9000 = vmul.f32 %v8968, 1.442695
  %v9001 = vpow.pop %v9000
  %v9002 = vmul.f32 %v8969, 1.442695
  %v9003 = vpow.pop %v9002
  %v9004 = vmul.f32 %v8970, 1.442695
  %v9005 = vpow.pop %v9004
  %v9006 = vmul.f32 %v8971, 1.442695
  %v9007 = vpow.pop %v9006
  %v9008 = vadd.f32 %v8973, 1.0
  %v9009 = vadd.f32 %v8975, 1.0
  %v9010 = vadd.f32 %v8977, 1.0
  %v9011 = vadd.f32 %v8979, 1.0
  %v9012 = vadd.f32 %v8981, 1.0
  %v9013 = vadd.f32 %v8983, 1.0
  %v9014 = vadd.f32 %v8985, 1.0
  %v9015 = vadd.f32 %v8987, 1.0
  %v9016 = vadd.f32 %v8989, 1.0
  %v9017 = vadd.f32 %v8991, 1.0
  %v9018 = vadd.f32 %v8993, 1.0
  %v9019 = vadd.f32 %v8995, 1.0
  %v9020 = vadd.f32 %v8997, 1.0
  %v9021 = vadd.f32 %v8999, 1.0
  %v9022 = vadd.f32 %v9001, 1.0
  %v9023 = vadd.f32 %v9003, 1.0
  %v9024 = vadd.f32 %v9005, 1.0
  %v9025 = vadd.f32 %v9007, 1.0
  %v9026 = vrcp.pop %v9008
  %v9027 = vmul.f32 1.0, %v9026
  %v9028 = vrcp.pop %v9009
  %v9029 = vmul.f32 1.0, %v9028
  %v9030 = vrcp.pop %v9010
  %v9031 = vmul.f32 1.0, %v9030
  %v9032 = vrcp.pop %v9011
  %v9033 = vmul.f32 1.0, %v9032
  %v9034 = vrcp.pop %v9012
  %v9035 = vmul.f32 1.0, %v9034
  %v9036 = vrcp.pop %v9013
  %v9037 = vmul.f32 1.0, %v9036
  %v9038 = vrcp.pop %v9014
  %v9039 = vmul.f32 1.0, %v9038
  %v9040 = vrcp.pop %v9015
  %v9041 = vmul.f32 1.0, %v9040
  %v9042 = vrcp.pop %v9016
  %v9043 = vmul.f32 1.0, %v9042
  %v9044 = vrcp.pop %v9017
  %v9045 = vmul.f32 1.0, %v9044
  %v9046 = vrcp.pop %v9018
  %v9047 = vmul.f32 1.0, %v9046
  %v9048 = vrcp.pop %v9019
  %v9049 = vmul.f32 1.0, %v9048
  %v9050 = vrcp.pop %v9020
  %v9051 = vmul.f32 1.0, %v9050
  %v9052 = vrcp.pop %v9021
  %v9053 = vmul.f32 1.0, %v9052
  %v9054 = vrcp.pop %v9022
  %v9055 = vmul.f32 1.0, %v9054
  %v9056 = vrcp.pop %v9023
  %v9057 = vmul.f32 1.0, %v9056
  %v9058 = vrcp.pop %v9024
  %v9059 = vmul.f32 1.0, %v9058
  %v9060 = vrcp.pop %v9025
  %v9061 = vmul.f32 1.0, %v9060
  %v9062 = vmul.f32 %v8827, %v9027
  %v9063 = vmul.f32 %v8829, %v9029
  %v9064 = vmul.f32 %v8831, %v9031
  %v9065 = vmul.f32 %v8833, %v9033
  %v9066 = vmul.f32 %v8837, %v9035
  %v9067 = vmul.f32 %v8839, %v9037
  %v9068 = vmul.f32 %v8841, %v9039
  %v9069 = vmul.f32 %v8843, %v9041
  %v9070 = vmul.f32 %v8847, %v9043
  %v9071 = vmul.f32 %v8849, %v9045
  %v9072 = vmul.f32 %v8851, %v9047
  %v9073 = vmul.f32 %v8853, %v9049
  %v9074 = vmul.f32 %v8857, %v9051
  %v9075 = vmul.f32 %v8859, %v9053
  %v9076 = vmul.f32 %v8861, %v9055
  %v9077 = vmul.f32 %v8863, %v9057
  %v9078 = vmul.f32 %v8867, %v9059
  %v9079 = vmul.f32 %v8869, %v9061
  %v9080 = vmul.f32 %v9062, %v8908
  %v9081 = vmul.f32 %v9063, %v8910
  %v9082 = vmul.f32 %v9064, %v8912
  %v9083 = vmul.f32 %v9065, %v8914
  %v9084 = vmul.f32 %v9066, %v8918
  %v9085 = vmul.f32 %v9067, %v8920
  %v9086 = vmul.f32 %v9068, %v8922
  %v9087 = vmul.f32 %v9069, %v8924
  %v9088 = vmul.f32 %v9070, %v8928
  %v9089 = vmul.f32 %v9071, %v8930
  %v9090 = vmul.f32 %v9072, %v8932
  %v9091 = vmul.f32 %v9073, %v8934
  %v9092 = vmul.f32 %v9074, %v8938
  %v9093 = vmul.f32 %v9075, %v8940
  %v9094 = vmul.f32 %v9076, %v8942
  %v9095 = vmul.f32 %v9077, %v8944
  %v9096 = vmul.f32 %v9078, %v8948
  %v9097 = vmul.f32 %v9079, %v8950
  %v9098 = vpack.c.bf16 %v9082, %v9080
  %v9099 = vpack.c.bf16 %v9083, %v9081
  %v9100 = vpack.c.bf16 %v9086, %v9084
  %v9101 = vpack.c.bf16 %v9087, %v9085
  %v9102 = vpack.c.bf16 %v9090, %v9088
  %v9103 = vpack.c.bf16 %v9091, %v9089
  %v9104 = vpack.c.bf16 %v9094, %v9092
  %v9105 = vpack.c.bf16 %v9095, %v9093
  %v9106 = vpack.c.bf16 %v9096, %v9096
  %v9107 = vpack.c.bf16 %v9097, %v9097
  %v9140 = vunpack.c.l.b16 %v931
  %v9141 = vunpack.c.l.b16 %v932
  %v9142 = vunpack.c.l.b16 %v933
  %v9143 = vunpack.c.l.b16 %v934
  %v9144 = vunpack.c.l.b16 %v935
  %v9145 = vunpack.c.l.b16 %v936
  %v9146 = vunpack.c.l.b16 %v937
  %v9147 = vunpack.c.l.b16 %v938
  %v9148 = vunpack.c.l.b16 %v939
  %v9149 = vunpack.c.l.b16 %v940
  %v9150 = vunpack.c.l.b16 %v941
  %v9151 = vunpack.c.l.b16 %v942
  %v9152 = vunpack.c.l.b16 %v943
  %v9153 = vunpack.c.l.b16 %v944
  %v9154 = vunpack.c.l.b16 %v945
  %v9155 = vunpack.c.l.b16 %v946
  %v9156 = vunpack.c.l.b16 %v947
  %v9157 = vunpack.c.l.b16 %v948
  %v9158 = vunpack.c.l.b16 %v949
  %v9159 = vunpack.c.l.b16 %v950
  %v9160 = vunpack.c.l.b16 %v951
  %v9161 = vunpack.c.l.b16 %v952
  %v9162 = vunpack.c.l.b16 %v953
  %v9163 = vunpack.c.l.b16 %v954
  %v9164 = vunpack.c.l.b16 %v955
  %v9165 = vunpack.c.l.b16 %v956
  %v9166 = vunpack.c.l.b16 %v957
  %v9167 = vunpack.c.l.b16 %v958
  %v9168 = vunpack.c.l.b16 %v959
  %v9169 = vunpack.c.l.b16 %v960
  %v9170 = vunpack.c.l.b16 %v961
  %v9171 = vunpack.c.l.b16 %v962
  %v9172 = vpack.c.b16 %v9141, %v9140
  %v9173 = vpack.c.b16 %v9143, %v9142
  %v9174 = vpack.c.b16 %v9145, %v9144
  %v9175 = vpack.c.b16 %v9147, %v9146
  %v9176 = vpack.c.b16 %v9149, %v9148
  %v9177 = vpack.c.b16 %v9151, %v9150
  %v9178 = vpack.c.b16 %v9153, %v9152
  %v9179 = vpack.c.b16 %v9155, %v9154
  %v9180 = vpack.c.b16 %v9157, %v9156
  %v9181 = vpack.c.b16 %v9159, %v9158
  %v9182 = vpack.c.b16 %v9161, %v9160
  %v9183 = vpack.c.b16 %v9163, %v9162
  %v9184 = vpack.c.b16 %v9165, %v9164
  %v9185 = vpack.c.b16 %v9167, %v9166
  %v9186 = vpack.c.b16 %v9169, %v9168
  %v9187 = vpack.c.b16 %v9171, %v9170
  %9204 = vmatprep.subr.bf16.mxu0 0
  %9205 = vmatpush1.bf16.msra.mxu0 %v9172
  %9206 = vmatprep.subr.bf16.mxu0 0
  %9207 = vmatpush1.bf16.msra.mxu0 %v9173
  %9208 = vmatprep.subr.bf16.mxu0 0
  %9209 = vmatpush1.bf16.msra.mxu0 %v9174
  %9210 = vmatprep.subr.bf16.mxu0 0
  %9211 = vmatpush1.bf16.msra.mxu0 %v9175
  %9212 = vmatprep.subr.bf16.mxu0 0
  %9213 = vmatpush1.bf16.msra.mxu0 %v9176
  %9214 = vmatprep.subr.bf16.mxu0 0
  %9215 = vmatpush1.bf16.msra.mxu0 %v9177
  %9216 = vmatprep.subr.bf16.mxu0 0
  %9217 = vmatpush1.bf16.msra.mxu0 %v9178
  %9218 = vmatprep.subr.bf16.mxu0 0
  %9219 = vmatpush1.bf16.msra.mxu0 %v9179
  %9220 = vmatprep.subr.bf16.mxu0 0
  %9221 = vmatpush1.bf16.msra.mxu0 %v9180
  %9222 = vmatprep.subr.bf16.mxu0 0
  %9223 = vmatpush1.bf16.msra.mxu0 %v9181
  %9224 = vmatprep.subr.bf16.mxu0 0
  %9225 = vmatpush1.bf16.msra.mxu0 %v9182
  %9226 = vmatprep.subr.bf16.mxu0 0
  %9227 = vmatpush1.bf16.msra.mxu0 %v9183
  %9228 = vmatprep.subr.bf16.mxu0 0
  %9229 = vmatpush1.bf16.msra.mxu0 %v9184
  %9230 = vmatprep.subr.bf16.mxu0 0
  %9231 = vmatpush1.bf16.msra.mxu0 %v9185
  %9232 = vmatprep.subr.bf16.mxu0 0
  %9233 = vmatpush1.bf16.msra.mxu0 %v9186
  %9234 = vmatprep.subr.bf16.mxu0 0
  %9235 = vmatpush1.bf16.msra.mxu0 %v9187
  %9236 = vmatprep.mubr.bf16.mxu0 %v9099
  %9237 = vmatmul.mubr.bf16.gmra.mrb[0].mxu0 %v9098
  %v9238 = vpop.f32.mrb[0].mxu0
  %v9239 = vadd.f32 0.0, %v9238
  %v9240 = vpop.f32.mrb[0].mxu0
  %v9241 = vpop.f32.mrb[0].mxu0
  %v9242 = vadd.f32 0.0, %v9241
  %v9243 = vpop.f32.mrb[0].mxu0
  %9244 = vmatprep.mubr.bf16.mxu0 %v9101
  %9245 = vmatmul.mubr.bf16.gmra.mrb[0].mxu0 %v9100
  %v9246 = vpop.f32.mrb[0].mxu0
  %v9247 = vadd.f32 0.0, %v9246
  %v9248 = vpop.f32.mrb[0].mxu0
  %v9249 = vpop.f32.mrb[0].mxu0
  %v9250 = vadd.f32 0.0, %v9249
  %v9251 = vpop.f32.mrb[0].mxu0
  %9252 = vmatprep.mubr.bf16.mxu0 %v9103
  %9253 = vmatmul.mubr.bf16.gmra.mrb[0].mxu0 %v9102
  %v9254 = vpop.f32.mrb[0].mxu0
  %v9255 = vadd.f32 0.0, %v9254
  %v9256 = vpop.f32.mrb[0].mxu0
  %v9257 = vpop.f32.mrb[0].mxu0
  %v9258 = vadd.f32 0.0, %v9257
  %v9259 = vpop.f32.mrb[0].mxu0
  %9260 = vmatprep.mubr.bf16.mxu0 %v9105
  %9261 = vmatmul.mubr.bf16.gmra.mrb[0].mxu0 %v9104
  %v9262 = vpop.f32.mrb[0].mxu0
  %v9263 = vadd.f32 0.0, %v9262
  %v9264 = vpop.f32.mrb[0].mxu0
  %v9265 = vpop.f32.mrb[0].mxu0
  %v9266 = vadd.f32 0.0, %v9265
  %v9267 = vpop.f32.mrb[0].mxu0
  %9268 = vmatprep.mubr.bf16.mxu0 %v9107
  %9269 = vmatmul.mubr.bf16.gmra.mrb[0].mxu0 %v9106
  %v9270 = vpop.f32.mrb[0].mxu0
  %v9271 = vadd.f32 0.0, %v9270
  %v9272 = vpop.f32.mrb[0].mxu0
  %v9273 = vpop.f32.mrb[0].mxu0
  %v9274 = vpop.f32.mrb[0].mxu0
  %9275 = vdwg.mxu0
  %v9276 = vadd.f32 %v8539, %v9239
  %v9277 = vadd.f32 %v8540, %v9242
  %v9278 = vadd.f32 %v8541, %v9247
  %v9279 = vadd.f32 %v8542, %v9250
  %v9280 = vadd.f32 %v8543, %v9255
  %v9281 = vadd.f32 %v8544, %v9258
  %v9282 = vadd.f32 %v8545, %v9263
  %v9283 = vadd.f32 %v8546, %v9266
  %v9284 = vadd.f32 %v8547, %v9271
  %v9285 = vmul.f32 %v9276, %v9276
  %v9286 = vmul.f32 %v9277, %v9277
  %v9287 = vmul.f32 %v9278, %v9278
  %v9288 = vmul.f32 %v9279, %v9279
  %v9289 = vmul.f32 %v9280, %v9280
  %v9290 = vmul.f32 %v9281, %v9281
  %v9291 = vmul.f32 %v9282, %v9282
  %v9292 = vmul.f32 %v9283, %v9283
  %v9293 = vmul.f32 %v9284, %v9284
  %9294 = vadd.xlane.f32.xlu0 %v9285
  %v9295 = vpop.xlane.xlu0 %9294
  %9296 = vadd.xlane.f32.xlu0 %v9286
  %v9297 = vpop.xlane.xlu0 %9296
  %9298 = vadd.xlane.f32.xlu0 %v9287
  %v9299 = vpop.xlane.xlu0 %9298
  %9300 = vadd.xlane.f32.xlu0 %v9288
  %v9301 = vpop.xlane.xlu0 %9300
  %9302 = vadd.xlane.f32.xlu0 %v9289
  %v9303 = vpop.xlane.xlu0 %9302
  %9304 = vadd.xlane.f32.xlu0 %v9290
  %v9305 = vpop.xlane.xlu0 %9304
  %9306 = vadd.xlane.f32.xlu0 %v9291
  %v9307 = vpop.xlane.xlu0 %9306
  %9308 = vadd.xlane.f32.xlu0 %v9292
  %v9309 = vpop.xlane.xlu0 %9308
  %v9310 = vsel %vm988, %v9293, 0.0
  %9311 = vadd.xlane.f32.xlu0 %v9310
  %v9312 = vpop.xlane.xlu0 %9311
  %v9313 = vmul.f32 %v9295, %v992
  %v9314 = vmul.f32 %v9297, %v992
  %v9315 = vmul.f32 %v9299, %v992
  %v9316 = vmul.f32 %v9301, %v992
  %v9317 = vmul.f32 %v9303, %v992
  %v9318 = vmul.f32 %v9305, %v992
  %v9319 = vmul.f32 %v9307, %v992
  %v9320 = vmul.f32 %v9309, %v992
  %v9321 = vmul.f32 %v9312, %v992
  %v9322 = vadd.f32 %v9313, 1e-05
  %v9323 = vadd.f32 %v9314, 1e-05
  %v9324 = vadd.f32 %v9315, 1e-05
  %v9325 = vadd.f32 %v9316, 1e-05
  %v9326 = vadd.f32 %v9317, 1e-05
  %v9327 = vadd.f32 %v9318, 1e-05
  %v9328 = vadd.f32 %v9319, 1e-05
  %v9329 = vadd.f32 %v9320, 1e-05
  %v9330 = vadd.f32 %v9321, 1e-05
  %v9331 = vrsqrt.pop %v9322
  %v9332 = vrsqrt.pop %v9323
  %v9333 = vrsqrt.pop %v9324
  %v9334 = vrsqrt.pop %v9325
  %v9335 = vrsqrt.pop %v9326
  %v9336 = vrsqrt.pop %v9327
  %v9337 = vrsqrt.pop %v9328
  %v9338 = vrsqrt.pop %v9329
  %v9339 = vrsqrt.pop %v9330
  %v9340 = vmul.f32 %v9276, %v9331
  %v9341 = vmul.f32 %v9277, %v9332
  %v9342 = vmul.f32 %v9278, %v9333
  %v9343 = vmul.f32 %v9279, %v9334
  %v9344 = vmul.f32 %v9280, %v9335
  %v9345 = vmul.f32 %v9281, %v9336
  %v9346 = vmul.f32 %v9282, %v9337
  %v9347 = vmul.f32 %v9283, %v9338
  %v9348 = vmul.f32 %v9284, %v9339
  %v9350 = vlaneseq
  %v9351 = vshrl.u32 %v9350, 7
  %v9352 = vsub.s32 0, %v9351
  %v9353 = vrot.slane %v850, %v9352
  %v9355 = vmul.f32 %v9340, %v9353
  %v9356 = vmul.f32 %v9341, %v9353
  %v9357 = vmul.f32 %v9342, %v9353
  %v9358 = vmul.f32 %v9343, %v9353
  %v9359 = vmul.f32 %v9344, %v9353
  %v9360 = vmul.f32 %v9345, %v9353
  %v9361 = vmul.f32 %v9346, %v9353
  %v9362 = vmul.f32 %v9347, %v9353
  %v9363 = vmul.f32 %v9348, %v9353
  %v9373 = vcombine.high %v9355, %v9355
  %v9375 = vunpack.c.l.s4 1966171168
  %v9376 = vunpack.c.0.s8 %v9375
  %v9377 = vlaneseq
  %v9378 = vshrl.u32 %v9377, 7
  %v9379 = vsub.s32 %v9376, %v9378
  %v9380 = vrot.slane %v9355, %v9379
  %v9382 = vunpack.c.l.s4 1966171168
  %v9383 = vunpack.c.0.s8 %v9382
  %v9384 = vlaneseq
  %v9385 = vshrl.u32 %v9384, 7
  %v9386 = vsub.s32 %v9383, %v9385
  %v9387 = vrot.slane %v9373, %v9386
  %v9388 = vcombine.high %v9380, %v9380
  %v9389 = vcombine.high %v9387, %v9387
  %v9391 = vunpack.c.l.s4 1966171168
  %v9392 = vunpack.c.0.s8 %v9391
  %v9393 = vlaneseq
  %v9394 = vshrl.u32 %v9393, 7
  %v9395 = vsub.s32 %v9392, %v9394
  %v9396 = vrot.slane %v9380, %v9395
  %v9398 = vunpack.c.l.s4 1966171168
  %v9399 = vunpack.c.0.s8 %v9398
  %v9400 = vlaneseq
  %v9401 = vshrl.u32 %v9400, 7
  %v9402 = vsub.s32 %v9399, %v9401
  %v9403 = vrot.slane %v9387, %v9402
  %v9405 = vunpack.c.l.s4 1966171168
  %v9406 = vunpack.c.0.s8 %v9405
  %v9407 = vlaneseq
  %v9408 = vshrl.u32 %v9407, 7
  %v9409 = vsub.s32 %v9406, %v9408
  %v9410 = vrot.slane %v9388, %v9409
  %v9412 = vunpack.c.l.s4 1966171168
  %v9413 = vunpack.c.0.s8 %v9412
  %v9414 = vlaneseq
  %v9415 = vshrl.u32 %v9414, 7
  %v9416 = vsub.s32 %v9413, %v9415
  %v9417 = vrot.slane %v9389, %v9416
  %v9418 = vcombine.high %v9396, %v9396
  %v9419 = vcombine.high %v9403, %v9403
  %v9420 = vcombine.high %v9410, %v9410
  %v9421 = vcombine.high %v9417, %v9417
  %v9422 = vcombine.high %v9356, %v9356
  %v9424 = vunpack.c.l.s4 1966171168
  %v9425 = vunpack.c.0.s8 %v9424
  %v9426 = vlaneseq
  %v9427 = vshrl.u32 %v9426, 7
  %v9428 = vsub.s32 %v9425, %v9427
  %v9429 = vrot.slane %v9356, %v9428
  %v9431 = vunpack.c.l.s4 1966171168
  %v9432 = vunpack.c.0.s8 %v9431
  %v9433 = vlaneseq
  %v9434 = vshrl.u32 %v9433, 7
  %v9435 = vsub.s32 %v9432, %v9434
  %v9436 = vrot.slane %v9422, %v9435
  %v9437 = vcombine.high %v9429, %v9429
  %v9438 = vcombine.high %v9436, %v9436
  %v9440 = vunpack.c.l.s4 1966171168
  %v9441 = vunpack.c.0.s8 %v9440
  %v9442 = vlaneseq
  %v9443 = vshrl.u32 %v9442, 7
  %v9444 = vsub.s32 %v9441, %v9443
  %v9445 = vrot.slane %v9429, %v9444
  %v9447 = vunpack.c.l.s4 1966171168
  %v9448 = vunpack.c.0.s8 %v9447
  %v9449 = vlaneseq
  %v9450 = vshrl.u32 %v9449, 7
  %v9451 = vsub.s32 %v9448, %v9450
  %v9452 = vrot.slane %v9436, %v9451
  %v9454 = vunpack.c.l.s4 1966171168
  %v9455 = vunpack.c.0.s8 %v9454
  %v9456 = vlaneseq
  %v9457 = vshrl.u32 %v9456, 7
  %v9458 = vsub.s32 %v9455, %v9457
  %v9459 = vrot.slane %v9437, %v9458
  %v9461 = vunpack.c.l.s4 1966171168
  %v9462 = vunpack.c.0.s8 %v9461
  %v9463 = vlaneseq
  %v9464 = vshrl.u32 %v9463, 7
  %v9465 = vsub.s32 %v9462, %v9464
  %v9466 = vrot.slane %v9438, %v9465
  %v9467 = vcombine.high %v9445, %v9445
  %v9468 = vcombine.high %v9452, %v9452
  %v9469 = vcombine.high %v9459, %v9459
  %v9470 = vcombine.high %v9466, %v9466
  %v9471 = vcombine.high %v9357, %v9357
  %v9473 = vunpack.c.l.s4 1966171168
  %v9474 = vunpack.c.0.s8 %v9473
  %v9475 = vlaneseq
  %v9476 = vshrl.u32 %v9475, 7
  %v9477 = vsub.s32 %v9474, %v9476
  %v9478 = vrot.slane %v9357, %v9477
  %v9480 = vunpack.c.l.s4 1966171168
  %v9481 = vunpack.c.0.s8 %v9480
  %v9482 = vlaneseq
  %v9483 = vshrl.u32 %v9482, 7
  %v9484 = vsub.s32 %v9481, %v9483
  %v9485 = vrot.slane %v9471, %v9484
  %v9486 = vcombine.high %v9478, %v9478
  %v9487 = vcombine.high %v9485, %v9485
  %v9489 = vunpack.c.l.s4 1966171168
  %v9490 = vunpack.c.0.s8 %v9489
  %v9491 = vlaneseq
  %v9492 = vshrl.u32 %v9491, 7
  %v9493 = vsub.s32 %v9490, %v9492
  %v9494 = vrot.slane %v9478, %v9493
  %v9496 = vunpack.c.l.s4 1966171168
  %v9497 = vunpack.c.0.s8 %v9496
  %v9498 = vlaneseq
  %v9499 = vshrl.u32 %v9498, 7
  %v9500 = vsub.s32 %v9497, %v9499
  %v9501 = vrot.slane %v9485, %v9500
  %v9503 = vunpack.c.l.s4 1966171168
  %v9504 = vunpack.c.0.s8 %v9503
  %v9505 = vlaneseq
  %v9506 = vshrl.u32 %v9505, 7
  %v9507 = vsub.s32 %v9504, %v9506
  %v9508 = vrot.slane %v9486, %v9507
  %v9510 = vunpack.c.l.s4 1966171168
  %v9511 = vunpack.c.0.s8 %v9510
  %v9512 = vlaneseq
  %v9513 = vshrl.u32 %v9512, 7
  %v9514 = vsub.s32 %v9511, %v9513
  %v9515 = vrot.slane %v9487, %v9514
  %v9516 = vcombine.high %v9494, %v9494
  %v9517 = vcombine.high %v9501, %v9501
  %v9518 = vcombine.high %v9508, %v9508
  %v9519 = vcombine.high %v9515, %v9515
  %v9520 = vcombine.high %v9358, %v9358
  %v9522 = vunpack.c.l.s4 1966171168
  %v9523 = vunpack.c.0.s8 %v9522
  %v9524 = vlaneseq
  %v9525 = vshrl.u32 %v9524, 7
  %v9526 = vsub.s32 %v9523, %v9525
  %v9527 = vrot.slane %v9358, %v9526
  %v9529 = vunpack.c.l.s4 1966171168
  %v9530 = vunpack.c.0.s8 %v9529
  %v9531 = vlaneseq
  %v9532 = vshrl.u32 %v9531, 7
  %v9533 = vsub.s32 %v9530, %v9532
  %v9534 = vrot.slane %v9520, %v9533
  %v9535 = vcombine.high %v9527, %v9527
  %v9536 = vcombine.high %v9534, %v9534
  %v9538 = vunpack.c.l.s4 1966171168
  %v9539 = vunpack.c.0.s8 %v9538
  %v9540 = vlaneseq
  %v9541 = vshrl.u32 %v9540, 7
  %v9542 = vsub.s32 %v9539, %v9541
  %v9543 = vrot.slane %v9527, %v9542
  %v9545 = vunpack.c.l.s4 1966171168
  %v9546 = vunpack.c.0.s8 %v9545
  %v9547 = vlaneseq
  %v9548 = vshrl.u32 %v9547, 7
  %v9549 = vsub.s32 %v9546, %v9548
  %v9550 = vrot.slane %v9534, %v9549
  %v9552 = vunpack.c.l.s4 1966171168
  %v9553 = vunpack.c.0.s8 %v9552
  %v9554 = vlaneseq
  %v9555 = vshrl.u32 %v9554, 7
  %v9556 = vsub.s32 %v9553, %v9555
  %v9557 = vrot.slane %v9535, %v9556
  %v9559 = vunpack.c.l.s4 1966171168
  %v9560 = vunpack.c.0.s8 %v9559
  %v9561 = vlaneseq
  %v9562 = vshrl.u32 %v9561, 7
  %v9563 = vsub.s32 %v9560, %v9562
  %v9564 = vrot.slane %v9536, %v9563
  %v9565 = vcombine.high %v9543, %v9543
  %v9566 = vcombine.high %v9550, %v9550
  %v9567 = vcombine.high %v9557, %v9557
  %v9568 = vcombine.high %v9564, %v9564
  %v9569 = vcombine.high %v9359, %v9359
  %v9571 = vunpack.c.l.s4 1966171168
  %v9572 = vunpack.c.0.s8 %v9571
  %v9573 = vlaneseq
  %v9574 = vshrl.u32 %v9573, 7
  %v9575 = vsub.s32 %v9572, %v9574
  %v9576 = vrot.slane %v9359, %v9575
  %v9578 = vunpack.c.l.s4 1966171168
  %v9579 = vunpack.c.0.s8 %v9578
  %v9580 = vlaneseq
  %v9581 = vshrl.u32 %v9580, 7
  %v9582 = vsub.s32 %v9579, %v9581
  %v9583 = vrot.slane %v9569, %v9582
  %v9584 = vcombine.high %v9576, %v9576
  %v9585 = vcombine.high %v9583, %v9583
  %v9587 = vunpack.c.l.s4 1966171168
  %v9588 = vunpack.c.0.s8 %v9587
  %v9589 = vlaneseq
  %v9590 = vshrl.u32 %v9589, 7
  %v9591 = vsub.s32 %v9588, %v9590
  %v9592 = vrot.slane %v9576, %v9591
  %v9594 = vunpack.c.l.s4 1966171168
  %v9595 = vunpack.c.0.s8 %v9594
  %v9596 = vlaneseq
  %v9597 = vshrl.u32 %v9596, 7
  %v9598 = vsub.s32 %v9595, %v9597
  %v9599 = vrot.slane %v9583, %v9598
  %v9601 = vunpack.c.l.s4 1966171168
  %v9602 = vunpack.c.0.s8 %v9601
  %v9603 = vlaneseq
  %v9604 = vshrl.u32 %v9603, 7
  %v9605 = vsub.s32 %v9602, %v9604
  %v9606 = vrot.slane %v9584, %v9605
  %v9608 = vunpack.c.l.s4 1966171168
  %v9609 = vunpack.c.0.s8 %v9608
  %v9610 = vlaneseq
  %v9611 = vshrl.u32 %v9610, 7
  %v9612 = vsub.s32 %v9609, %v9611
  %v9613 = vrot.slane %v9585, %v9612
  %v9614 = vcombine.high %v9592, %v9592
  %v9615 = vcombine.high %v9599, %v9599
  %v9616 = vcombine.high %v9606, %v9606
  %v9617 = vcombine.high %v9613, %v9613
  %v9618 = vcombine.high %v9360, %v9360
  %v9620 = vunpack.c.l.s4 1966171168
  %v9621 = vunpack.c.0.s8 %v9620
  %v9622 = vlaneseq
  %v9623 = vshrl.u32 %v9622, 7
  %v9624 = vsub.s32 %v9621, %v9623
  %v9625 = vrot.slane %v9360, %v9624
  %v9627 = vunpack.c.l.s4 1966171168
  %v9628 = vunpack.c.0.s8 %v9627
  %v9629 = vlaneseq
  %v9630 = vshrl.u32 %v9629, 7
  %v9631 = vsub.s32 %v9628, %v9630
  %v9632 = vrot.slane %v9618, %v9631
  %v9633 = vcombine.high %v9625, %v9625
  %v9634 = vcombine.high %v9632, %v9632
  %v9636 = vunpack.c.l.s4 1966171168
  %v9637 = vunpack.c.0.s8 %v9636
  %v9638 = vlaneseq
  %v9639 = vshrl.u32 %v9638, 7
  %v9640 = vsub.s32 %v9637, %v9639
  %v9641 = vrot.slane %v9625, %v9640
  %v9643 = vunpack.c.l.s4 1966171168
  %v9644 = vunpack.c.0.s8 %v9643
  %v9645 = vlaneseq
  %v9646 = vshrl.u32 %v9645, 7
  %v9647 = vsub.s32 %v9644, %v9646
  %v9648 = vrot.slane %v9632, %v9647
  %v9650 = vunpack.c.l.s4 1966171168
  %v9651 = vunpack.c.0.s8 %v9650
  %v9652 = vlaneseq
  %v9653 = vshrl.u32 %v9652, 7
  %v9654 = vsub.s32 %v9651, %v9653
  %v9655 = vrot.slane %v9633, %v9654
  %v9657 = vunpack.c.l.s4 1966171168
  %v9658 = vunpack.c.0.s8 %v9657
  %v9659 = vlaneseq
  %v9660 = vshrl.u32 %v9659, 7
  %v9661 = vsub.s32 %v9658, %v9660
  %v9662 = vrot.slane %v9634, %v9661
  %v9663 = vcombine.high %v9641, %v9641
  %v9664 = vcombine.high %v9648, %v9648
  %v9665 = vcombine.high %v9655, %v9655
  %v9666 = vcombine.high %v9662, %v9662
  %v9667 = vcombine.high %v9361, %v9361
  %v9669 = vunpack.c.l.s4 1966171168
  %v9670 = vunpack.c.0.s8 %v9669
  %v9671 = vlaneseq
  %v9672 = vshrl.u32 %v9671, 7
  %v9673 = vsub.s32 %v9670, %v9672
  %v9674 = vrot.slane %v9361, %v9673
  %v9676 = vunpack.c.l.s4 1966171168
  %v9677 = vunpack.c.0.s8 %v9676
  %v9678 = vlaneseq
  %v9679 = vshrl.u32 %v9678, 7
  %v9680 = vsub.s32 %v9677, %v9679
  %v9681 = vrot.slane %v9667, %v9680
  %v9682 = vcombine.high %v9674, %v9674
  %v9683 = vcombine.high %v9681, %v9681
  %v9685 = vunpack.c.l.s4 1966171168
  %v9686 = vunpack.c.0.s8 %v9685
  %v9687 = vlaneseq
  %v9688 = vshrl.u32 %v9687, 7
  %v9689 = vsub.s32 %v9686, %v9688
  %v9690 = vrot.slane %v9674, %v9689
  %v9692 = vunpack.c.l.s4 1966171168
  %v9693 = vunpack.c.0.s8 %v9692
  %v9694 = vlaneseq
  %v9695 = vshrl.u32 %v9694, 7
  %v9696 = vsub.s32 %v9693, %v9695
  %v9697 = vrot.slane %v9681, %v9696
  %v9699 = vunpack.c.l.s4 1966171168
  %v9700 = vunpack.c.0.s8 %v9699
  %v9701 = vlaneseq
  %v9702 = vshrl.u32 %v9701, 7
  %v9703 = vsub.s32 %v9700, %v9702
  %v9704 = vrot.slane %v9682, %v9703
  %v9706 = vunpack.c.l.s4 1966171168
  %v9707 = vunpack.c.0.s8 %v9706
  %v9708 = vlaneseq
  %v9709 = vshrl.u32 %v9708, 7
  %v9710 = vsub.s32 %v9707, %v9709
  %v9711 = vrot.slane %v9683, %v9710
  %v9712 = vcombine.high %v9690, %v9690
  %v9713 = vcombine.high %v9697, %v9697
  %v9714 = vcombine.high %v9704, %v9704
  %v9715 = vcombine.high %v9711, %v9711
  %v9716 = vcombine.high %v9362, %v9362
  %v9718 = vunpack.c.l.s4 1966171168
  %v9719 = vunpack.c.0.s8 %v9718
  %v9720 = vlaneseq
  %v9721 = vshrl.u32 %v9720, 7
  %v9722 = vsub.s32 %v9719, %v9721
  %v9723 = vrot.slane %v9362, %v9722
  %v9725 = vunpack.c.l.s4 1966171168
  %v9726 = vunpack.c.0.s8 %v9725
  %v9727 = vlaneseq
  %v9728 = vshrl.u32 %v9727, 7
  %v9729 = vsub.s32 %v9726, %v9728
  %v9730 = vrot.slane %v9716, %v9729
  %v9731 = vcombine.high %v9723, %v9723
  %v9732 = vcombine.high %v9730, %v9730
  %v9734 = vunpack.c.l.s4 1966171168
  %v9735 = vunpack.c.0.s8 %v9734
  %v9736 = vlaneseq
  %v9737 = vshrl.u32 %v9736, 7
  %v9738 = vsub.s32 %v9735, %v9737
  %v9739 = vrot.slane %v9723, %v9738
  %v9741 = vunpack.c.l.s4 1966171168
  %v9742 = vunpack.c.0.s8 %v9741
  %v9743 = vlaneseq
  %v9744 = vshrl.u32 %v9743, 7
  %v9745 = vsub.s32 %v9742, %v9744
  %v9746 = vrot.slane %v9730, %v9745
  %v9748 = vunpack.c.l.s4 1966171168
  %v9749 = vunpack.c.0.s8 %v9748
  %v9750 = vlaneseq
  %v9751 = vshrl.u32 %v9750, 7
  %v9752 = vsub.s32 %v9749, %v9751
  %v9753 = vrot.slane %v9731, %v9752
  %v9755 = vunpack.c.l.s4 1966171168
  %v9756 = vunpack.c.0.s8 %v9755
  %v9757 = vlaneseq
  %v9758 = vshrl.u32 %v9757, 7
  %v9759 = vsub.s32 %v9756, %v9758
  %v9760 = vrot.slane %v9732, %v9759
  %v9761 = vcombine.high %v9739, %v9739
  %v9762 = vcombine.high %v9746, %v9746
  %v9763 = vcombine.high %v9753, %v9753
  %v9764 = vcombine.high %v9760, %v9760
  %v9765 = vcombine.high %v9363, %v9363
  %v9767 = vunpack.c.l.s4 1966171168
  %v9768 = vunpack.c.0.s8 %v9767
  %v9769 = vlaneseq
  %v9770 = vshrl.u32 %v9769, 7
  %v9771 = vsub.s32 %v9768, %v9770
  %v9772 = vrot.slane %v9363, %v9771
  %v9774 = vunpack.c.l.s4 1966171168
  %v9775 = vunpack.c.0.s8 %v9774
  %v9776 = vlaneseq
  %v9777 = vshrl.u32 %v9776, 7
  %v9778 = vsub.s32 %v9775, %v9777
  %v9779 = vrot.slane %v9765, %v9778
  %v9780 = vcombine.high %v9772, %v9772
  %v9781 = vcombine.high %v9779, %v9779
  %v9783 = vunpack.c.l.s4 1966171168
  %v9784 = vunpack.c.0.s8 %v9783
  %v9785 = vlaneseq
  %v9786 = vshrl.u32 %v9785, 7
  %v9787 = vsub.s32 %v9784, %v9786
  %v9788 = vrot.slane %v9772, %v9787
  %v9790 = vunpack.c.l.s4 1966171168
  %v9791 = vunpack.c.0.s8 %v9790
  %v9792 = vlaneseq
  %v9793 = vshrl.u32 %v9792, 7
  %v9794 = vsub.s32 %v9791, %v9793
  %v9795 = vrot.slane %v9779, %v9794
  %v9797 = vunpack.c.l.s4 1966171168
  %v9798 = vunpack.c.0.s8 %v9797
  %v9799 = vlaneseq
  %v9800 = vshrl.u32 %v9799, 7
  %v9801 = vsub.s32 %v9798, %v9800
  %v9802 = vrot.slane %v9780, %v9801
  %v9804 = vunpack.c.l.s4 1966171168
  %v9805 = vunpack.c.0.s8 %v9804
  %v9806 = vlaneseq
  %v9807 = vshrl.u32 %v9806, 7
  %v9808 = vsub.s32 %v9805, %v9807
  %v9809 = vrot.slane %v9781, %v9808
  %v9810 = vcombine.high %v9788, %v9788
  %v9811 = vcombine.high %v9802, %v9802
  %v9812 = vcombine.low %v9396, %v9410
  %v9813 = vcombine.low %v9418, %v9420
  %v9815 = vunpack.c.l.s4 1966171168
  %v9816 = vunpack.c.0.s8 %v9815
  %v9817 = vlaneseq
  %v9818 = vshrl.u32 %v9817, 7
  %v9819 = vsub.s32 %v9816, %v9818
  %v9820 = vrot.slane %v9812, %v9819
  %v9822 = vunpack.c.l.s4 1966171168
  %v9823 = vunpack.c.0.s8 %v9822
  %v9824 = vlaneseq
  %v9825 = vshrl.u32 %v9824, 7
  %v9826 = vsub.s32 %v9823, %v9825
  %v9827 = vrot.slane %v9813, %v9826
  %v9829 = vunpack.c.l.s4 1966171168
  %v9830 = vunpack.c.0.s8 %v9829
  %v9831 = vlaneseq
  %v9832 = vshrl.u32 %v9831, 7
  %v9833 = vsub.s32 %v9830, %v9832
  %v9834 = vrot.slane %v9403, %v9833
  %v9835 = vcombine.low %v9820, %v9827
  %v9837 = vunpack.c.l.s4 1966171168
  %v9838 = vunpack.c.0.s8 %v9837
  %v9839 = vlaneseq
  %v9840 = vshrl.u32 %v9839, 7
  %v9841 = vsub.s32 %v9838, %v9840
  %v9842 = vrot.slane %v9835, %v9841
  %v9844 = vunpack.c.l.s4 1966171168
  %v9845 = vunpack.c.0.s8 %v9844
  %v9846 = vlaneseq
  %v9847 = vshrl.u32 %v9846, 7
  %v9848 = vsub.s32 %v9845, %v9847
  %v9849 = vrot.slane %v9834, %v9848
  %v9850 = vcombine.low %v9842, %v9849
  %v9851 = vcombine.low %v9417, %v9419
  %v9852 = vcombine.low %v9421, %v9445
  %v9854 = vunpack.c.l.s4 1966171168
  %v9855 = vunpack.c.0.s8 %v9854
  %v9856 = vlaneseq
  %v9857 = vshrl.u32 %v9856, 7
  %v9858 = vsub.s32 %v9855, %v9857
  %v9859 = vrot.slane %v9851, %v9858
  %v9861 = vunpack.c.l.s4 1966171168
  %v9862 = vunpack.c.0.s8 %v9861
  %v9863 = vlaneseq
  %v9864 = vshrl.u32 %v9863, 7
  %v9865 = vsub.s32 %v9862, %v9864
  %v9866 = vrot.slane %v9852, %v9865
  %v9868 = vunpack.c.l.s4 1966171168
  %v9869 = vunpack.c.0.s8 %v9868
  %v9870 = vlaneseq
  %v9871 = vshrl.u32 %v9870, 7
  %v9872 = vsub.s32 %v9869, %v9871
  %v9873 = vrot.slane %v9459, %v9872
  %v9874 = vcombine.low %v9859, %v9866
  %v9876 = vunpack.c.l.s4 1966171168
  %v9877 = vunpack.c.0.s8 %v9876
  %v9878 = vlaneseq
  %v9879 = vshrl.u32 %v9878, 7
  %v9880 = vsub.s32 %v9877, %v9879
  %v9881 = vrot.slane %v9874, %v9880
  %v9883 = vunpack.c.l.s4 1966171168
  %v9884 = vunpack.c.0.s8 %v9883
  %v9885 = vlaneseq
  %v9886 = vshrl.u32 %v9885, 7
  %v9887 = vsub.s32 %v9884, %v9886
  %v9888 = vrot.slane %v9873, %v9887
  %v9889 = vcombine.low %v9881, %v9888
  %v9890 = vcombine.low %v9467, %v9469
  %v9891 = vcombine.low %v9452, %v9466
  %v9893 = vunpack.c.l.s4 1966171168
  %v9894 = vunpack.c.0.s8 %v9893
  %v9895 = vlaneseq
  %v9896 = vshrl.u32 %v9895, 7
  %v9897 = vsub.s32 %v9894, %v9896
  %v9898 = vrot.slane %v9890, %v9897
  %v9900 = vunpack.c.l.s4 1966171168
  %v9901 = vunpack.c.0.s8 %v9900
  %v9902 = vlaneseq
  %v9903 = vshrl.u32 %v9902, 7
  %v9904 = vsub.s32 %v9901, %v9903
  %v9905 = vrot.slane %v9891, %v9904
  %v9907 = vunpack.c.l.s4 1966171168
  %v9908 = vunpack.c.0.s8 %v9907
  %v9909 = vlaneseq
  %v9910 = vshrl.u32 %v9909, 7
  %v9911 = vsub.s32 %v9908, %v9910
  %v9912 = vrot.slane %v9468, %v9911
  %v9913 = vcombine.low %v9898, %v9905
  %v9915 = vunpack.c.l.s4 1966171168
  %v9916 = vunpack.c.0.s8 %v9915
  %v9917 = vlaneseq
  %v9918 = vshrl.u32 %v9917, 7
  %v9919 = vsub.s32 %v9916, %v9918
  %v9920 = vrot.slane %v9913, %v9919
  %v9922 = vunpack.c.l.s4 1966171168
  %v9923 = vunpack.c.0.s8 %v9922
  %v9924 = vlaneseq
  %v9925 = vshrl.u32 %v9924, 7
  %v9926 = vsub.s32 %v9923, %v9925
  %v9927 = vrot.slane %v9912, %v9926
  %v9928 = vcombine.low %v9920, %v9927
  %v9929 = vcombine.low %v9470, %v9494
  %v9930 = vcombine.low %v9508, %v9516
  %v9932 = vunpack.c.l.s4 1966171168
  %v9933 = vunpack.c.0.s8 %v9932
  %v9934 = vlaneseq
  %v9935 = vshrl.u32 %v9934, 7
  %v9936 = vsub.s32 %v9933, %v9935
  %v9937 = vrot.slane %v9929, %v9936
  %v9939 = vunpack.c.l.s4 1966171168
  %v9940 = vunpack.c.0.s8 %v9939
  %v9941 = vlaneseq
  %v9942 = vshrl.u32 %v9941, 7
  %v9943 = vsub.s32 %v9940, %v9942
  %v9944 = vrot.slane %v9930, %v9943
  %v9946 = vunpack.c.l.s4 1966171168
  %v9947 = vunpack.c.0.s8 %v9946
  %v9948 = vlaneseq
  %v9949 = vshrl.u32 %v9948, 7
  %v9950 = vsub.s32 %v9947, %v9949
  %v9951 = vrot.slane %v9518, %v9950
  %v9952 = vcombine.low %v9937, %v9944
  %v9954 = vunpack.c.l.s4 1966171168
  %v9955 = vunpack.c.0.s8 %v9954
  %v9956 = vlaneseq
  %v9957 = vshrl.u32 %v9956, 7
  %v9958 = vsub.s32 %v9955, %v9957
  %v9959 = vrot.slane %v9952, %v9958
  %v9961 = vunpack.c.l.s4 1966171168
  %v9962 = vunpack.c.0.s8 %v9961
  %v9963 = vlaneseq
  %v9964 = vshrl.u32 %v9963, 7
  %v9965 = vsub.s32 %v9962, %v9964
  %v9966 = vrot.slane %v9951, %v9965
  %v9967 = vcombine.low %v9959, %v9966
  %v9968 = vcombine.low %v9501, %v9515
  %v9969 = vcombine.low %v9517, %v9519
  %v9971 = vunpack.c.l.s4 1966171168
  %v9972 = vunpack.c.0.s8 %v9971
  %v9973 = vlaneseq
  %v9974 = vshrl.u32 %v9973, 7
  %v9975 = vsub.s32 %v9972, %v9974
  %v9976 = vrot.slane %v9968, %v9975
  %v9978 = vunpack.c.l.s4 1966171168
  %v9979 = vunpack.c.0.s8 %v9978
  %v9980 = vlaneseq
  %v9981 = vshrl.u32 %v9980, 7
  %v9982 = vsub.s32 %v9979, %v9981
  %v9983 = vrot.slane %v9969, %v9982
  %v9985 = vunpack.c.l.s4 1966171168
  %v9986 = vunpack.c.0.s8 %v9985
  %v9987 = vlaneseq
  %v9988 = vshrl.u32 %v9987, 7
  %v9989 = vsub.s32 %v9986, %v9988
  %v9990 = vrot.slane %v9543, %v9989
  %v9991 = vcombine.low %v9976, %v9983
  %v9993 = vunpack.c.l.s4 1966171168
  %v9994 = vunpack.c.0.s8 %v9993
  %v9995 = vlaneseq
  %v9996 = vshrl.u32 %v9995, 7
  %v9997 = vsub.s32 %v9994, %v9996
  %v9998 = vrot.slane %v9991, %v9997
  %v10000 = vunpack.c.l.s4 1966171168
  %v10001 = vunpack.c.0.s8 %v10000
  %v10002 = vlaneseq
  %v10003 = vshrl.u32 %v10002, 7
  %v10004 = vsub.s32 %v10001, %v10003
  %v10005 = vrot.slane %v9990, %v10004
  %v10006 = vcombine.low %v9998, %v10005
  %v10007 = vcombine.low %v9557, %v9565
  %v10008 = vcombine.low %v9567, %v9550
  %v10010 = vunpack.c.l.s4 1966171168
  %v10011 = vunpack.c.0.s8 %v10010
  %v10012 = vlaneseq
  %v10013 = vshrl.u32 %v10012, 7
  %v10014 = vsub.s32 %v10011, %v10013
  %v10015 = vrot.slane %v10007, %v10014
  %v10017 = vunpack.c.l.s4 1966171168
  %v10018 = vunpack.c.0.s8 %v10017
  %v10019 = vlaneseq
  %v10020 = vshrl.u32 %v10019, 7
  %v10021 = vsub.s32 %v10018, %v10020
  %v10022 = vrot.slane %v10008, %v10021
  %v10024 = vunpack.c.l.s4 1966171168
  %v10025 = vunpack.c.0.s8 %v10024
  %v10026 = vlaneseq
  %v10027 = vshrl.u32 %v10026, 7
  %v10028 = vsub.s32 %v10025, %v10027
  %v10029 = vrot.slane %v9564, %v10028
  %v10030 = vcombine.low %v10015, %v10022
  %v10032 = vunpack.c.l.s4 1966171168
  %v10033 = vunpack.c.0.s8 %v10032
  %v10034 = vlaneseq
  %v10035 = vshrl.u32 %v10034, 7
  %v10036 = vsub.s32 %v10033, %v10035
  %v10037 = vrot.slane %v10030, %v10036
  %v10039 = vunpack.c.l.s4 1966171168
  %v10040 = vunpack.c.0.s8 %v10039
  %v10041 = vlaneseq
  %v10042 = vshrl.u32 %v10041, 7
  %v10043 = vsub.s32 %v10040, %v10042
  %v10044 = vrot.slane %v10029, %v10043
  %v10045 = vcombine.low %v10037, %v10044
  %v10046 = vcombine.low %v9566, %v9568
  %v10047 = vcombine.low %v9592, %v9606
  %v10049 = vunpack.c.l.s4 1966171168
  %v10050 = vunpack.c.0.s8 %v10049
  %v10051 = vlaneseq
  %v10052 = vshrl.u32 %v10051, 7
  %v10053 = vsub.s32 %v10050, %v10052
  %v10054 = vrot.slane %v10046, %v10053
  %v10056 = vunpack.c.l.s4 1966171168
  %v10057 = vunpack.c.0.s8 %v10056
  %v10058 = vlaneseq
  %v10059 = vshrl.u32 %v10058, 7
  %v10060 = vsub.s32 %v10057, %v10059
  %v10061 = vrot.slane %v10047, %v10060
  %v10063 = vunpack.c.l.s4 1966171168
  %v10064 = vunpack.c.0.s8 %v10063
  %v10065 = vlaneseq
  %v10066 = vshrl.u32 %v10065, 7
  %v10067 = vsub.s32 %v10064, %v10066
  %v10068 = vrot.slane %v9614, %v10067
  %v10069 = vcombine.low %v10054, %v10061
  %v10071 = vunpack.c.l.s4 1966171168
  %v10072 = vunpack.c.0.s8 %v10071
  %v10073 = vlaneseq
  %v10074 = vshrl.u32 %v10073, 7
  %v10075 = vsub.s32 %v10072, %v10074
  %v10076 = vrot.slane %v10069, %v10075
  %v10078 = vunpack.c.l.s4 1966171168
  %v10079 = vunpack.c.0.s8 %v10078
  %v10080 = vlaneseq
  %v10081 = vshrl.u32 %v10080, 7
  %v10082 = vsub.s32 %v10079, %v10081
  %v10083 = vrot.slane %v10068, %v10082
  %v10084 = vcombine.low %v10076, %v10083
  %v10085 = vcombine.low %v9616, %v9599
  %v10086 = vcombine.low %v9613, %v9615
  %v10088 = vunpack.c.l.s4 1966171168
  %v10089 = vunpack.c.0.s8 %v10088
  %v10090 = vlaneseq
  %v10091 = vshrl.u32 %v10090, 7
  %v10092 = vsub.s32 %v10089, %v10091
  %v10093 = vrot.slane %v10085, %v10092
  %v10095 = vunpack.c.l.s4 1966171168
  %v10096 = vunpack.c.0.s8 %v10095
  %v10097 = vlaneseq
  %v10098 = vshrl.u32 %v10097, 7
  %v10099 = vsub.s32 %v10096, %v10098
  %v10100 = vrot.slane %v10086, %v10099
  %v10102 = vunpack.c.l.s4 1966171168
  %v10103 = vunpack.c.0.s8 %v10102
  %v10104 = vlaneseq
  %v10105 = vshrl.u32 %v10104, 7
  %v10106 = vsub.s32 %v10103, %v10105
  %v10107 = vrot.slane %v9617, %v10106
  %v10108 = vcombine.low %v10093, %v10100
  %v10110 = vunpack.c.l.s4 1966171168
  %v10111 = vunpack.c.0.s8 %v10110
  %v10112 = vlaneseq
  %v10113 = vshrl.u32 %v10112, 7
  %v10114 = vsub.s32 %v10111, %v10113
  %v10115 = vrot.slane %v10108, %v10114
  %v10117 = vunpack.c.l.s4 1966171168
  %v10118 = vunpack.c.0.s8 %v10117
  %v10119 = vlaneseq
  %v10120 = vshrl.u32 %v10119, 7
  %v10121 = vsub.s32 %v10118, %v10120
  %v10122 = vrot.slane %v10107, %v10121
  %v10123 = vcombine.low %v10115, %v10122
  %v10124 = vcombine.low %v9641, %v9655
  %v10125 = vcombine.low %v9663, %v9665
  %v10127 = vunpack.c.l.s4 1966171168
  %v10128 = vunpack.c.0.s8 %v10127
  %v10129 = vlaneseq
  %v10130 = vshrl.u32 %v10129, 7
  %v10131 = vsub.s32 %v10128, %v10130
  %v10132 = vrot.slane %v10124, %v10131
  %v10134 = vunpack.c.l.s4 1966171168
  %v10135 = vunpack.c.0.s8 %v10134
  %v10136 = vlaneseq
  %v10137 = vshrl.u32 %v10136, 7
  %v10138 = vsub.s32 %v10135, %v10137
  %v10139 = vrot.slane %v10125, %v10138
  %v10141 = vunpack.c.l.s4 1966171168
  %v10142 = vunpack.c.0.s8 %v10141
  %v10143 = vlaneseq
  %v10144 = vshrl.u32 %v10143, 7
  %v10145 = vsub.s32 %v10142, %v10144
  %v10146 = vrot.slane %v9648, %v10145
  %v10147 = vcombine.low %v10132, %v10139
  %v10149 = vunpack.c.l.s4 1966171168
  %v10150 = vunpack.c.0.s8 %v10149
  %v10151 = vlaneseq
  %v10152 = vshrl.u32 %v10151, 7
  %v10153 = vsub.s32 %v10150, %v10152
  %v10154 = vrot.slane %v10147, %v10153
  %v10156 = vunpack.c.l.s4 1966171168
  %v10157 = vunpack.c.0.s8 %v10156
  %v10158 = vlaneseq
  %v10159 = vshrl.u32 %v10158, 7
  %v10160 = vsub.s32 %v10157, %v10159
  %v10161 = vrot.slane %v10146, %v10160
  %v10162 = vcombine.low %v10154, %v10161
  %v10163 = vcombine.low %v9662, %v9664
  %v10164 = vcombine.low %v9666, %v9690
  %v10166 = vunpack.c.l.s4 1966171168
  %v10167 = vunpack.c.0.s8 %v10166
  %v10168 = vlaneseq
  %v10169 = vshrl.u32 %v10168, 7
  %v10170 = vsub.s32 %v10167, %v10169
  %v10171 = vrot.slane %v10163, %v10170
  %v10173 = vunpack.c.l.s4 1966171168
  %v10174 = vunpack.c.0.s8 %v10173
  %v10175 = vlaneseq
  %v10176 = vshrl.u32 %v10175, 7
  %v10177 = vsub.s32 %v10174, %v10176
  %v10178 = vrot.slane %v10164, %v10177
  %v10180 = vunpack.c.l.s4 1966171168
  %v10181 = vunpack.c.0.s8 %v10180
  %v10182 = vlaneseq
  %v10183 = vshrl.u32 %v10182, 7
  %v10184 = vsub.s32 %v10181, %v10183
  %v10185 = vrot.slane %v9704, %v10184
  %v10186 = vcombine.low %v10171, %v10178
  %v10188 = vunpack.c.l.s4 1966171168
  %v10189 = vunpack.c.0.s8 %v10188
  %v10190 = vlaneseq
  %v10191 = vshrl.u32 %v10190, 7
  %v10192 = vsub.s32 %v10189, %v10191
  %v10193 = vrot.slane %v10186, %v10192
  %v10195 = vunpack.c.l.s4 1966171168
  %v10196 = vunpack.c.0.s8 %v10195
  %v10197 = vlaneseq
  %v10198 = vshrl.u32 %v10197, 7
  %v10199 = vsub.s32 %v10196, %v10198
  %v10200 = vrot.slane %v10185, %v10199
  %v10201 = vcombine.low %v10193, %v10200
  %v10202 = vcombine.low %v9712, %v9714
  %v10203 = vcombine.low %v9697, %v9711
  %v10205 = vunpack.c.l.s4 1966171168
  %v10206 = vunpack.c.0.s8 %v10205
  %v10207 = vlaneseq
  %v10208 = vshrl.u32 %v10207, 7
  %v10209 = vsub.s32 %v10206, %v10208
  %v10210 = vrot.slane %v10202, %v10209
  %v10212 = vunpack.c.l.s4 1966171168
  %v10213 = vunpack.c.0.s8 %v10212
  %v10214 = vlaneseq
  %v10215 = vshrl.u32 %v10214, 7
  %v10216 = vsub.s32 %v10213, %v10215
  %v10217 = vrot.slane %v10203, %v10216
  %v10219 = vunpack.c.l.s4 1966171168
  %v10220 = vunpack.c.0.s8 %v10219
  %v10221 = vlaneseq
  %v10222 = vshrl.u32 %v10221, 7
  %v10223 = vsub.s32 %v10220, %v10222
  %v10224 = vrot.slane %v9713, %v10223
  %v10225 = vcombine.low %v10210, %v10217
  %v10227 = vunpack.c.l.s4 1966171168
  %v10228 = vunpack.c.0.s8 %v10227
  %v10229 = vlaneseq
  %v10230 = vshrl.u32 %v10229, 7
  %v10231 = vsub.s32 %v10228, %v10230
  %v10232 = vrot.slane %v10225, %v10231
  %v10234 = vunpack.c.l.s4 1966171168
  %v10235 = vunpack.c.0.s8 %v10234
  %v10236 = vlaneseq
  %v10237 = vshrl.u32 %v10236, 7
  %v10238 = vsub.s32 %v10235, %v10237
  %v10239 = vrot.slane %v10224, %v10238
  %v10240 = vcombine.low %v10232, %v10239
  %v10241 = vcombine.low %v9715, %v9739
  %v10242 = vcombine.low %v9753, %v9761
  %v10244 = vunpack.c.l.s4 1966171168
  %v10245 = vunpack.c.0.s8 %v10244
  %v10246 = vlaneseq
  %v10247 = vshrl.u32 %v10246, 7
  %v10248 = vsub.s32 %v10245, %v10247
  %v10249 = vrot.slane %v10241, %v10248
  %v10251 = vunpack.c.l.s4 1966171168
  %v10252 = vunpack.c.0.s8 %v10251
  %v10253 = vlaneseq
  %v10254 = vshrl.u32 %v10253, 7
  %v10255 = vsub.s32 %v10252, %v10254
  %v10256 = vrot.slane %v10242, %v10255
  %v10258 = vunpack.c.l.s4 1966171168
  %v10259 = vunpack.c.0.s8 %v10258
  %v10260 = vlaneseq
  %v10261 = vshrl.u32 %v10260, 7
  %v10262 = vsub.s32 %v10259, %v10261
  %v10263 = vrot.slane %v9763, %v10262
  %v10264 = vcombine.low %v10249, %v10256
  %v10266 = vunpack.c.l.s4 1966171168
  %v10267 = vunpack.c.0.s8 %v10266
  %v10268 = vlaneseq
  %v10269 = vshrl.u32 %v10268, 7
  %v10270 = vsub.s32 %v10267, %v10269
  %v10271 = vrot.slane %v10264, %v10270
  %v10273 = vunpack.c.l.s4 1966171168
  %v10274 = vunpack.c.0.s8 %v10273
  %v10275 = vlaneseq
  %v10276 = vshrl.u32 %v10275, 7
  %v10277 = vsub.s32 %v10274, %v10276
  %v10278 = vrot.slane %v10263, %v10277
  %v10279 = vcombine.low %v10271, %v10278
  %v10280 = vcombine.low %v9746, %v9760
  %v10281 = vcombine.low %v9762, %v9764
  %v10283 = vunpack.c.l.s4 1966171168
  %v10284 = vunpack.c.0.s8 %v10283
  %v10285 = vlaneseq
  %v10286 = vshrl.u32 %v10285, 7
  %v10287 = vsub.s32 %v10284, %v10286
  %v10288 = vrot.slane %v10280, %v10287
  %v10290 = vunpack.c.l.s4 1966171168
  %v10291 = vunpack.c.0.s8 %v10290
  %v10292 = vlaneseq
  %v10293 = vshrl.u32 %v10292, 7
  %v10294 = vsub.s32 %v10291, %v10293
  %v10295 = vrot.slane %v10281, %v10294
  %v10297 = vunpack.c.l.s4 1966171168
  %v10298 = vunpack.c.0.s8 %v10297
  %v10299 = vlaneseq
  %v10300 = vshrl.u32 %v10299, 7
  %v10301 = vsub.s32 %v10298, %v10300
  %v10302 = vrot.slane %v9788, %v10301
  %v10303 = vcombine.low %v10288, %v10295
  %v10305 = vunpack.c.l.s4 1966171168
  %v10306 = vunpack.c.0.s8 %v10305
  %v10307 = vlaneseq
  %v10308 = vshrl.u32 %v10307, 7
  %v10309 = vsub.s32 %v10306, %v10308
  %v10310 = vrot.slane %v10303, %v10309
  %v10312 = vunpack.c.l.s4 1966171168
  %v10313 = vunpack.c.0.s8 %v10312
  %v10314 = vlaneseq
  %v10315 = vshrl.u32 %v10314, 7
  %v10316 = vsub.s32 %v10313, %v10315
  %v10317 = vrot.slane %v10302, %v10316
  %v10318 = vcombine.low %v10310, %v10317
  %v10319 = vcombine.low %v9802, %v9810
  %v10320 = vcombine.low %v9811, %v9795
  %v10322 = vunpack.c.l.s4 1966171168
  %v10323 = vunpack.c.0.s8 %v10322
  %v10324 = vlaneseq
  %v10325 = vshrl.u32 %v10324, 7
  %v10326 = vsub.s32 %v10323, %v10325
  %v10327 = vrot.slane %v10319, %v10326
  %v10329 = vunpack.c.l.s4 1966171168
  %v10330 = vunpack.c.0.s8 %v10329
  %v10331 = vlaneseq
  %v10332 = vshrl.u32 %v10331, 7
  %v10333 = vsub.s32 %v10330, %v10332
  %v10334 = vrot.slane %v10320, %v10333
  %v10336 = vunpack.c.l.s4 1966171168
  %v10337 = vunpack.c.0.s8 %v10336
  %v10338 = vlaneseq
  %v10339 = vshrl.u32 %v10338, 7
  %v10340 = vsub.s32 %v10337, %v10339
  %v10341 = vrot.slane %v9809, %v10340
  %v10342 = vcombine.low %v10327, %v10334
  %v10344 = vunpack.c.l.s4 1966171168
  %v10345 = vunpack.c.0.s8 %v10344
  %v10346 = vlaneseq
  %v10347 = vshrl.u32 %v10346, 7
  %v10348 = vsub.s32 %v10345, %v10347
  %v10349 = vrot.slane %v10342, %v10348
  %v10351 = vunpack.c.l.s4 1966171168
  %v10352 = vunpack.c.0.s8 %v10351
  %v10353 = vlaneseq
  %v10354 = vshrl.u32 %v10353, 7
  %v10355 = vsub.s32 %v10352, %v10354
  %v10356 = vrot.slane %v10341, %v10355
  %v10357 = vcombine.low %v10349, %v10356
  %v10372 = vpack.c.bf16 %v9850, %v9850
  %v10373 = vpack.c.bf16 %v9889, %v9889
  %v10374 = vpack.c.bf16 %v9928, %v9928
  %v10375 = vpack.c.bf16 %v9967, %v9967
  %v10376 = vpack.c.bf16 %v10006, %v10006
  %v10377 = vpack.c.bf16 %v10045, %v10045
  %v10378 = vpack.c.bf16 %v10084, %v10084
  %v10379 = vpack.c.bf16 %v10123, %v10123
  %v10380 = vpack.c.bf16 %v10162, %v10162
  %v10381 = vpack.c.bf16 %v10201, %v10201
  %v10382 = vpack.c.bf16 %v10240, %v10240
  %v10383 = vpack.c.bf16 %v10279, %v10279
  %v10384 = vpack.c.bf16 %v10318, %v10318
  %v10385 = vpack.c.bf16 %v10357, %v10357
  %vm10386 = vcmask 1042432
  %vm10387 = vsmask.f32 2304
  %vm10388 = vmand %vm10386, %vm10387
  %v10389 = vld [vmem:[%s9] sm:$0x7]
  %v10390 = vsel %vm10388, %v10372, %v10389
  %10391 = vst [vmem:[%s9] sm:$0x7] %v10390
  %v10392 = vld [vmem:[%s9 + $0x4] sm:$0x7]
  %v10393 = vsel %vm10388, %v10373, %v10392
  %10394 = vst [vmem:[%s9 + $0x4] sm:$0x7] %v10393
  %v10395 = vld [vmem:[%s9 + $0x8] sm:$0x7]
  %v10396 = vsel %vm10388, %v10374, %v10395
  %10397 = vst [vmem:[%s9 + $0x8] sm:$0x7] %v10396
  %v10398 = vld [vmem:[%s9 + $0xc] sm:$0x7]
  %v10399 = vsel %vm10388, %v10375, %v10398
  %10400 = vst [vmem:[%s9 + $0xc] sm:$0x7] %v10399
  %v10401 = vld [vmem:[%s9 + $0x10] sm:$0x7]
  %v10402 = vsel %vm10388, %v10376, %v10401
  %10403 = vst [vmem:[%s9 + $0x10] sm:$0x7] %v10402
  %v10404 = vld [vmem:[%s9 + $0x14] sm:$0x7]
  %v10405 = vsel %vm10388, %v10377, %v10404
  %10406 = vst [vmem:[%s9 + $0x14] sm:$0x7] %v10405
  %v10407 = vld [vmem:[%s9 + $0x18] sm:$0x7]
  %v10408 = vsel %vm10388, %v10378, %v10407
  %10409 = vst [vmem:[%s9 + $0x18] sm:$0x7] %v10408
  %v10410 = vld [vmem:[%s9 + $0x1c] sm:$0x7]
  %v10411 = vsel %vm10388, %v10379, %v10410
  %10412 = vst [vmem:[%s9 + $0x1c] sm:$0x7] %v10411
  %v10413 = vld [vmem:[%s9 + $0x20] sm:$0x7]
  %v10414 = vsel %vm10388, %v10380, %v10413
  %10415 = vst [vmem:[%s9 + $0x20] sm:$0x7] %v10414
  %v10416 = vld [vmem:[%s9 + $0x24] sm:$0x7]
  %v10417 = vsel %vm10388, %v10381, %v10416
  %10418 = vst [vmem:[%s9 + $0x24] sm:$0x7] %v10417
  %v10419 = vld [vmem:[%s9 + $0x28] sm:$0x7]
  %v10420 = vsel %vm10388, %v10382, %v10419
  %10421 = vst [vmem:[%s9 + $0x28] sm:$0x7] %v10420
  %v10422 = vld [vmem:[%s9 + $0x2c] sm:$0x7]
  %v10423 = vsel %vm10388, %v10383, %v10422
  %10424 = vst [vmem:[%s9 + $0x2c] sm:$0x7] %v10423
  %v10425 = vld [vmem:[%s9 + $0x30] sm:$0x7]
  %v10426 = vsel %vm10388, %v10384, %v10425
  %10427 = vst [vmem:[%s9 + $0x30] sm:$0x7] %v10426
  %v10428 = vld [vmem:[%s9 + $0x34] sm:$0x7]
  %v10429 = vsel %vm10388, %v10385, %v10428
  %10430 = vst [vmem:[%s9 + $0x34] sm:$0x7] %v10429
  // Predicated region
  $region38: #{tts_forward.4} parent=0 // pred_check
    _
  $region39: #{tts_forward.4} parent=0 // pred_check_branch
    %10432 = sbr.rel (0) target = $region41
  $region40: #{tts_forward.4} parent=0 // pred_region
    _
  $region41: #{tts_forward.4} parent=0 // pred_fallthru
    _
  // Predicated region
  $region42: #{tts_forward.4} parent=0 // pred_check
    _
  $region43: #{tts_forward.4} parent=0 // pred_check_branch
    %10434 = sbr.rel (0) target = $region45
  $region44: #{tts_forward.4} parent=0 // pred_region
    _
  $region45: #{tts_forward.4} parent=0 // pred_fallthru
    _

</llo_original>
